<compile_context>
chip_gen: v6e
topology: v6e:2x2x1
jax: 0.10.0
libtpu: 0.0.40
codegen_flags: <defaults>
</compile_context>

<pallas_src>
import functools
import math

import jax
import jax.numpy as jnp
from jax import lax
from jax.experimental import pallas as pl
from jax.experimental.pallas import tpu as pltpu


# ---------------------------------------------------------------------------
# Weight-slab row offsets (every block starts at a multiple-of-8 row, lane 0).
# ---------------------------------------------------------------------------
# Embedding slab: Win=[G1x_cat|W1_cat](3,76) W2bd(12,24) W3bd(24,48) G1Fbd(48,64)
#                 G2bd(64,96) G3bd(96,128) Attn_bd(128,2)
_E_WIN, _E_W2, _E_W3, _E_G1F, _E_G2, _E_G3, _E_ATT = 0, 8, 24, 48, 96, 160, 256
_E_ROWS = 384
# Tail slab: Wx=[c1_wx|T1](3,70) T2(6,12) T3(12,24) Wh(24,64) Wg(128,64)
#            Wtpg=[phi|g|theta](64,96) Ww(32,64) Wza=[conv2|attn](64,P+1)
#            fc1(64,64) fc2(64,51)
(_T_WX, _T_W2, _T_W3, _T_WH, _T_WG, _T_TPG, _T_WW, _T_ZA, _T_FC1, _T_FC2) = (
    0, 8, 16, 32, 56, 184, 248, 280, 344, 408)
_T_ROWS = 472


def _fixed(shape):
    """Full-array BlockSpec for a grid=(1,) call."""
    nd = len(shape)
    return pl.BlockSpec(shape, lambda i, _nd=nd: (0,) * _nd)


# ---------------------------------------------------------------------------
# Kernel 1: fused two-branch embedding (BasePointNet -> GlobalPointNet ->
# attention pooling -> fused 3-layer LSTM), single grid step.
# ---------------------------------------------------------------------------

def _embed_kernel(x_ref, w_ref, b_ref, wih_ref, whh_ref, lb_ref, h0_ref, c0_ref,
                  out_ref, vec_scr, seq_scr,
                  *, n_frames, n_pts, batch, length):
    f32 = jnp.float32
    x = x_ref[...]                                                    # (N*P, 3)

    # Shared-LHS fusion: x feeds both BasePointNet layer1 and GlobalPointNet's xyz columns.
    xp = jnp.dot(x, w_ref[_E_WIN:_E_WIN + 3, 0:76], preferred_element_type=f32)
    g1x = xp[:, 0:64]                                                 # xyz -> GP conv1 part
    h = jnp.maximum(xp[:, 64:76] + b_ref[0:1, 0:12], 0.0)            # both branches, 6+6
    h = jnp.maximum(jnp.dot(h, w_ref[_E_W2:_E_W2 + 12, 0:24],
                            preferred_element_type=f32) + b_ref[1:2, 0:24], 0.0)
    h = jnp.maximum(jnp.dot(h, w_ref[_E_W3:_E_W3 + 24, 0:48],
                            preferred_element_type=f32) + b_ref[2:3, 0:48], 0.0)   # 24+24
    g = jnp.maximum(g1x + jnp.dot(h, w_ref[_E_G1F:_E_G1F + 48, 0:64],
                                  preferred_element_type=f32) + b_ref[3:4, 0:64], 0.0)
    g = jnp.maximum(jnp.dot(g, w_ref[_E_G2:_E_G2 + 64, 0:96],
                            preferred_element_type=f32) + b_ref[4:5, 0:96], 0.0)
    g = jnp.maximum(jnp.dot(g, w_ref[_E_G3:_E_G3 + 96, 0:128],
                            preferred_element_type=f32) + b_ref[5:6, 0:128], 0.0)  # (M,128)
    logits = (jnp.dot(g, w_ref[_E_ATT:_E_ATT + 128, 0:2], preferred_element_type=f32)
              + b_ref[6:7, 0:2])                                      # (M, 2) [pars|pose]

    # Per-frame attention pooling (exact softmax over points) for both branches at once.
    g3 = g.reshape(n_frames, n_pts, 128)
    l3 = logits.reshape(n_frames, n_pts, 2)
    e = jnp.exp(l3 - jnp.max(l3, axis=1, keepdims=True))
    wts = e / jnp.sum(e, axis=1, keepdims=True)                       # (N, P, 2)
    lane = lax.broadcasted_iota(jnp.int32, (n_frames, n_pts, 128), 2)
    w_full = jnp.where(lane < 64, wts[:, :, 0:1], wts[:, :, 1:2])     # branch-select by lane
    vec_scr[...] = jnp.sum(g3 * w_full, axis=1)                       # (N, 128)

    # Reorder (b, l)-major pooled vectors to time-major (L, B, 128) via strided reads.
    for t in range(length):
        seq_scr[t] = vec_scr[pl.ds(t, batch, length), :]              # stride = length

    # Fused two-branch 3-layer LSTM (PyTorch gate order), gate columns 128-lane aligned:
    # [i_p i_q | f_p f_q | g_p g_q | o_p o_q].  Weight refs are read inside the step so
    # no (128,512) value stays live across the loop (keeps vreg pressure low).
    # TODO(synk): eval mode only -- inter-layer dropout(0.1) omitted.
    for layer in range(3):
        def step(t, carry, layer=layer):
            hh, cc = carry
            xt = seq_scr[t]                                           # (B, 128)
            gates = (jnp.dot(xt, wih_ref[layer], preferred_element_type=f32)
                     + jnp.dot(hh, whh_ref[layer], preferred_element_type=f32)
                     + lb_ref[layer])                                 # (B, 512)
            i_g = jax.nn.sigmoid(gates[:, 0:128])
            f_g = jax.nn.sigmoid(gates[:, 128:256])
            g_g = jnp.tanh(gates[:, 256:384])
            o_g = jax.nn.sigmoid(gates[:, 384:512])
            cc = f_g * cc + i_g * g_g
            hh = o_g * jnp.tanh(cc)
            seq_scr[t] = hh                                           # input for next layer
            return (hh, cc)

        lax.fori_loop(0, length, step, (h0_ref[layer], c0_ref[layer]),
                      unroll=min(length, 4))

    out_ref[...] = seq_scr[...]                                       # (L, B, 128) time-major


def _embedding_branches(params, x_flat, h0c, c0c, *, n, n_pts, batch, length):
    return pl.pallas_call(
        functools.partial(_embed_kernel, n_frames=n, n_pts=n_pts,
                          batch=batch, length=length),
        grid=(1,),
        in_specs=[
            _fixed((n * n_pts, 3)),
            _fixed((_E_ROWS, 128)),
            _fixed((8, 128)),
            _fixed((3, 128, 512)),
            _fixed((3, 128, 512)),
            _fixed((3, 1, 512)),
            _fixed((3, batch, 128)),
            _fixed((3, batch, 128)),
        ],
        out_specs=_fixed((length, batch, 128)),
        out_shape=jax.ShapeDtypeStruct((length, batch, 128), jnp.float32),
        scratch_shapes=[
            pltpu.VMEM((n, 128), jnp.float32),               # pooled per-frame vectors
            pltpu.VMEM((length, batch, 128), jnp.float32),   # time-major LSTM activations
        ],
        compiler_params=pltpu.CompilerParams(dimension_semantics=("arbitrary",)),
    )(x_flat, params['e_w'], params['e_b'],
      params['lstm_wih'], params['lstm_whh'], params['lstm_b'], h0c, c0c)


# ---------------------------------------------------------------------------
# Kernel 2: fused tail (top BasePointNet -> conv1(+hoisted globals) -> NONLocal ->
# conv2+log_softmax + attention-pool -> fc1 -> fc2) over a block of frames.
# ---------------------------------------------------------------------------

def _tail_kernel(x_ref, gv_ref, w_ref, b_ref,
                 op_ref, ow_ref, pg_scr,
                 *, n_blk, n_pts, num_part):
    f32 = jnp.float32
    m = n_blk * n_pts
    half = n_pts // 2   # TODO(synk): even n_pts assumed (MaxPool1d drops a trailing odd point).
    x = x_ref[...]                                                    # (m, 3)
    gv = gv_ref[...]                                                  # (n_blk, 128) [pars|pose]

    # Top BasePointParsingNet (3->6->12->24); conv1's xyz columns fused in (shared LHS x).
    xp = jnp.dot(x, w_ref[_T_WX:_T_WX + 3, 0:70], preferred_element_type=f32)
    c1x = xp[:, 0:64]
    h = jnp.maximum(xp[:, 64:70] + b_ref[0:1, 0:6], 0.0)
    h = jnp.maximum(jnp.dot(h, w_ref[_T_W2:_T_W2 + 6, 0:12],
                            preferred_element_type=f32) + b_ref[1:2, 0:12], 0.0)
    h = jnp.maximum(jnp.dot(h, w_ref[_T_W3:_T_W3 + 12, 0:24],
                            preferred_element_type=f32) + b_ref[2:3, 0:24], 0.0)   # (m, 24)

    # conv1(155->64)+BN+ReLU: the 128 broadcast global channels collapse into one (n_blk,64)
    # per-frame row (no 155-wide concat), broadcast-added to every point of the frame.
    gcon = jnp.dot(gv, w_ref[_T_WG:_T_WG + 128, 0:64], preferred_element_type=f32)
    feat = (c1x + jnp.dot(h, w_ref[_T_WH:_T_WH + 24, 0:64], preferred_element_type=f32)
            + b_ref[3:4, 0:64])
    feat = jnp.maximum(feat.reshape(n_blk, n_pts, 64) + gcon[:, None, :], 0.0)
    feat_flat = feat.reshape(m, 64)

    # NONLocalBlock1D: fused phi/g/theta projection (shared LHS feat) -> (m, 96).
    proj = (jnp.dot(feat_flat, w_ref[_T_TPG:_T_TPG + 64, 0:96], preferred_element_type=f32)
            + b_ref[4:5, 0:96])
    theta = proj[:, 64:96].reshape(n_blk, n_pts, 32)
    pg_scr[...] = proj[:, 0:64]                                        # [phi | g]
    # MaxPool1d(k=2) over points via sublane-strided reads (pairs never cross frames).
    pooled = jnp.maximum(pg_scr[pl.ds(0, n_blk * half, 2), :],
                         pg_scr[pl.ds(1, n_blk * half, 2), :])         # (n_blk*half, 64)
    phi_p = pooled[:, 0:32].reshape(n_blk, half, 32)
    g_p = pooled[:, 32:64].reshape(n_blk, half, 32)

    # Frame-batched non-local attention (dot-product mode, f / N normalization).
    f = jnp.einsum('npc,nqc->npq', theta, phi_p,
                   preferred_element_type=f32) * (1.0 / half)
    y = jnp.einsum('npq,nqc->npc', f, g_p, preferred_element_type=f32)  # (n_blk, P, 32)
    # W branch: 1x1 conv + BN (gamma/beta zero-init in module -> folded weights are zero).
    wy = (jnp.dot(y.reshape(m, 32), w_ref[_T_WW:_T_WW + 32, 0:64],
                  preferred_element_type=f32) + b_ref[5:6, 0:64])
    z = wy + feat_flat                                                 # (m, 64) residual

    # conv2 (parsing logits) and the pose attention share LHS z -> one fused matmul.
    za = (jnp.dot(z, w_ref[_T_ZA:_T_ZA + 64, 0:num_part + 1], preferred_element_type=f32)
          + b_ref[6:7, 0:num_part + 1])
    logit = za[:, 0:num_part]
    s = logit - jnp.max(logit, axis=-1, keepdims=True)
    op_ref[...] = s - jnp.log(jnp.sum(jnp.exp(s), axis=-1, keepdims=True))   # log_softmax

    # Pose head: exact softmax attention pool over points -> fc1 -> ReLU -> fc2.
    al = za[:, num_part:num_part + 1].reshape(n_blk, n_pts, 1)
    ae = jnp.exp(al - jnp.max(al, axis=1, keepdims=True))
    aw = ae / jnp.sum(ae, axis=1, keepdims=True)
    pooled_z = jnp.sum(z.reshape(n_blk, n_pts, 64) * aw, axis=1)       # (n_blk, 64)
    pv = jnp.maximum(jnp.dot(pooled_z, w_ref[_T_FC1:_T_FC1 + 64, 0:64],
                             preferred_element_type=f32) + b_ref[7:8, 0:64], 0.0)
    ow_ref[...] = (jnp.dot(pv, w_ref[_T_FC2:_T_FC2 + 64, 0:51],
                           preferred_element_type=f32) + b_ref[8:9, 0:51])


def _tail(params, x_flat, gvec, *, n, n_pts, num_part):
    # Coarse 2-way grid: keeps the v7x megacore split while amortizing per-step overhead;
    # on v5e/v6e it is only one extra (cheap) serial step vs. a fully collapsed grid.
    n_blocks = 2 if (n % 2 == 0 and ((n // 2) * n_pts) % 8 == 0) else 1
    n_blk = n // n_blocks
    gvec_b = gvec.reshape(n_blocks, n_blk, 128)

    out_parsing, out_pose = pl.pallas_call(
        functools.partial(_tail_kernel, n_blk=n_blk, n_pts=n_pts, num_part=num_part),
        grid=(n_blocks,),
        in_specs=[
            pl.BlockSpec((n_blk * n_pts, 3), lambda i: (i, 0)),
            pl.BlockSpec((None, n_blk, 128), lambda i: (i, 0, 0)),
            pl.BlockSpec((_T_ROWS, 128), lambda i: (0, 0)),
            pl.BlockSpec((16, 128), lambda i: (0, 0)),
        ],
        out_specs=[
            pl.BlockSpec((n_blk * n_pts, num_part), lambda i: (i, 0)),
            pl.BlockSpec((None, n_blk, 51), lambda i: (i, 0, 0)),
        ],
        out_shape=[
            jax.ShapeDtypeStruct((n * n_pts, num_part), jnp.float32),
            jax.ShapeDtypeStruct((n_blocks, n_blk, 51), jnp.float32),
        ],
        scratch_shapes=[pltpu.VMEM((n_blk * n_pts, 64), jnp.float32)],   # [phi|g] for maxpool
        compiler_params=pltpu.CompilerParams(dimension_semantics=("parallel",)),
    )(x_flat, gvec_b, params['t_w'], params['t_b'])
    return out_parsing, out_pose.reshape(n, 51)


# ---------------------------------------------------------------------------
# Parameter init + packing (deterministic, synthetic; shapes follow the module __init__;
# real trained weights would be folded/packed identically).
# ---------------------------------------------------------------------------

def init_params(key, num_part):
    keys = iter(jax.random.split(key, 160))

    def unif(shape, fan_in):
        bound = 1.0 / math.sqrt(fan_in)
        return jax.random.uniform(next(keys), shape, jnp.float32, -bound, bound)

    # Eval-mode BN fold with init running stats (mean=0, var=1, gamma=1, beta=0, eps=1e-5).
    # TODO(synk): for trained weights, fold the real running stats instead.
    bns = 1.0 / math.sqrt(1.0 + 1e-5)

    def branch():
        return dict(
            bp1_w=unif((3, 6), 3) * bns, bp1_b=unif((6,), 3) * bns,
            bp2_w=unif((6, 12), 6) * bns, bp2_b=unif((12,), 6) * bns,
            bp3_w=unif((12, 24), 12) * bns, bp3_b=unif((24,), 12) * bns,
            gp1_wx=unif((3, 32), 27) * bns, gp1_wf=unif((24, 32), 27) * bns,
            gp1_b=unif((32,), 27) * bns,
            gp2_w=unif((32, 48), 32) * bns, gp2_b=unif((48,), 32) * bns,
            gp3_w=unif((48, 64), 48) * bns, gp3_b=unif((64,), 48) * bns,
            attn_w=unif((64, 1), 64), attn_b=unif((1,), 64),
            wih=[unif((64, 256), 64) for _ in range(3)],
            whh=[unif((64, 256), 64) for _ in range(3)],
            lb=[unif((256,), 64) + unif((256,), 64) for _ in range(3)],   # b_ih + b_hh
        )

    Pb, Qb = branch(), branch()   # parsing branch, pose branch

    def bd(a, b):                  # block-diagonal stack (keeps branches independent)
        ka, na = a.shape
        kb, nb = b.shape
        o = jnp.zeros((ka + kb, na + nb), jnp.float32)
        return o.at[:ka, :na].set(a).at[ka:, na:].set(b)

    def catn(a, b):
        return jnp.concatenate([a, b], axis=1)

    def catb(a, b):
        return jnp.concatenate([a, b], axis=0)

    def put(slab, r, mat):
        return slab.at[r:r + mat.shape[0], 0:mat.shape[1]].set(mat)

    def putb(blk, r, vec):
        return blk.at[r, 0:vec.shape[0]].set(vec)

    # ---- Embedding slab + bias block ------------------------------------------------
    e_slab = jnp.zeros((_E_ROWS, 128), jnp.float32)
    win = jnp.concatenate([catn(Pb['gp1_wx'], Qb['gp1_wx']),
                           catn(Pb['bp1_w'], Qb['bp1_w'])], axis=1)          # (3, 76)
    e_slab = put(e_slab, _E_WIN, win)
    e_slab = put(e_slab, _E_W2, bd(Pb['bp2_w'], Qb['bp2_w']))
    e_slab = put(e_slab, _E_W3, bd(Pb['bp3_w'], Qb['bp3_w']))
    e_slab = put(e_slab, _E_G1F, bd(Pb['gp1_wf'], Qb['gp1_wf']))
    e_slab = put(e_slab, _E_G2, bd(Pb['gp2_w'], Qb['gp2_w']))
    e_slab = put(e_slab, _E_G3, bd(Pb['gp3_w'], Qb['gp3_w']))
    e_slab = put(e_slab, _E_ATT, bd(Pb['attn_w'], Qb['attn_w']))

    e_bias = jnp.zeros((8, 128), jnp.float32)
    e_bias = putb(e_bias, 0, catb(Pb['bp1_b'], Qb['bp1_b']))
    e_bias = putb(e_bias, 1, catb(Pb['bp2_b'], Qb['bp2_b']))
    e_bias = putb(e_bias, 2, catb(Pb['bp3_b'], Qb['bp3_b']))
    e_bias = putb(e_bias, 3, catb(Pb['gp1_b'], Qb['gp1_b']))
    e_bias = putb(e_bias, 4, catb(Pb['gp2_b'], Qb['gp2_b']))
    e_bias = putb(e_bias, 5, catb(Pb['gp3_b'], Qb['gp3_b']))
    e_bias = putb(e_bias, 6, catb(Pb['attn_b'], Qb['attn_b']))

    # ---- LSTM: lane-aligned gate packing [i_p i_q | f_p f_q | g_p g_q | o_p o_q] ----
    def pack_lstm_w(wp, wq):
        out = jnp.zeros((128, 512), jnp.float32)
        for gi in range(4):
            out = out.at[0:64, gi * 128:gi * 128 + 64].set(wp[:, gi * 64:(gi + 1) * 64])
            out = out.at[64:128, gi * 128 + 64:(gi + 1) * 128].set(wq[:, gi * 64:(gi + 1) * 64])
        return out

    def pack_lstm_b(bp, bq):
        out = jnp.zeros((512,), jnp.float32)
        for gi in range(4):
            out = out.at[gi * 128:gi * 128 + 64].set(bp[gi * 64:(gi + 1) * 64])
            out = out.at[gi * 128 + 64:(gi + 1) * 128].set(bq[gi * 64:(gi + 1) * 64])
        return out

    lstm_wih = jnp.stack([pack_lstm_w(Pb['wih'][l], Qb['wih'][l]) for l in range(3)])
    lstm_whh = jnp.stack([pack_lstm_w(Pb['whh'][l], Qb['whh'][l]) for l in range(3)])
    lstm_b = jnp.stack([pack_lstm_b(Pb['lb'][l], Qb['lb'][l]) for l in range(3)])[:, None, :]

    # ---- Tail slab + bias block -------------------------------------------------------
    t = dict(
        bp1_w=unif((3, 6), 3) * bns, bp1_b=unif((6,), 3) * bns,
        bp2_w=unif((6, 12), 6) * bns, bp2_b=unif((12,), 6) * bns,
        bp3_w=unif((12, 24), 12) * bns, bp3_b=unif((24,), 12) * bns,
        # conv1 (155->64) split by input group [g_parsing(64) | g_pose(64) | xyz(3) | h(24)]
        c1_wg=unif((128, 64), 155) * bns, c1_wx=unif((3, 64), 155) * bns,
        c1_wh=unif((24, 64), 155) * bns, c1_b=unif((64,), 155) * bns,
        th_w=unif((64, 32), 64), th_b=unif((32,), 64),
        ph_w=unif((64, 32), 64), ph_b=unif((32,), 64),
        g_w=unif((64, 32), 64), g_b=unif((32,), 64),
        # NONLocal W = Conv1d(32,64,1) -> BN(64) with zero-init gamma/beta -> folds to zero.
        W_w=jnp.zeros((32, 64), jnp.float32), W_b=jnp.zeros((64,), jnp.float32),
        c2_w=unif((64, num_part), 64), c2_b=unif((num_part,), 64),
        at_w=unif((64, 1), 64), at_b=unif((1,), 64),
        f1_w=unif((64, 64), 64), f1_b=unif((64,), 64),
        f2_w=unif((64, 51), 64), f2_b=unif((51,), 64),
    )
    t_slab = jnp.zeros((_T_ROWS, 128), jnp.float32)
    t_slab = put(t_slab, _T_WX, jnp.concatenate([t['c1_wx'], t['bp1_w']], axis=1))
    t_slab = put(t_slab, _T_W2, t['bp2_w'])
    t_slab = put(t_slab, _T_W3, t['bp3_w'])
    t_slab = put(t_slab, _T_WH, t['c1_wh'])
    t_slab = put(t_slab, _T_WG, t['c1_wg'])
    t_slab = put(t_slab, _T_TPG, jnp.concatenate([t['ph_w'], t['g_w'], t['th_w']], axis=1))
    t_slab = put(t_slab, _T_WW, t['W_w'])
    t_slab = put(t_slab, _T_ZA, jnp.concatenate([t['c2_w'], t['at_w']], axis=1))
    t_slab = put(t_slab, _T_FC1, t['f1_w'])
    t_slab = put(t_slab, _T_FC2, t['f2_w'])

    t_bias = jnp.zeros((16, 128), jnp.float32)
    t_bias = putb(t_bias, 0, t['bp1_b'])
    t_bias = putb(t_bias, 1, t['bp2_b'])
    t_bias = putb(t_bias, 2, t['bp3_b'])
    t_bias = putb(t_bias, 3, t['c1_b'])
    t_bias = putb(t_bias, 4, jnp.concatenate([t['ph_b'], t['g_b'], t['th_b']]))
    t_bias = putb(t_bias, 5, t['W_b'])
    t_bias = putb(t_bias, 6, jnp.concatenate([t['c2_b'], t['at_b']]))
    t_bias = putb(t_bias, 7, t['f1_b'])
    t_bias = putb(t_bias, 8, t['f2_b'])

    return {'e_w': e_slab, 'e_b': e_bias,
            'lstm_wih': lstm_wih, 'lstm_whh': lstm_whh, 'lstm_b': lstm_b,
            't_w': t_slab, 't_b': t_bias}


# ---------------------------------------------------------------------------
# Forward pass (two pallas_calls + trivial XLA reshapes/transposes)
# ---------------------------------------------------------------------------

def parsing_pose_net_forward(params, x1, h0, c0, *, num_part, batch_size, length_size):
    n, n_pts, _ = x1.shape                                   # n = batch_size * length_size
    assert n == batch_size * length_size and n_pts % 2 == 0
    x_flat = x1.reshape(n * n_pts, 3)
    # The module feeds the SAME (h0, c0) to both branch LSTMs -> duplicate along lanes.
    h0c = jnp.concatenate([h0, h0], axis=-1)                 # (3, B, 128)
    c0c = jnp.concatenate([c0, c0], axis=-1)

    # Kernel 1: both branches fused -> time-major (L, B, 128) = [g_parsing | g_pose].
    g_seq = _embedding_branches(params, x_flat, h0c, c0c,
                                n=n, n_pts=n_pts, batch=batch_size, length=length_size)
    gvec = jnp.transpose(g_seq, (1, 0, 2)).reshape(n, 128)   # (b, l)-major frames

    # Kernel 2: fused per-frame tail over coarse frame blocks.
    out_parsing, out_pose = _tail(params, x_flat, gvec, n=n, n_pts=n_pts, num_part=num_part)

    out_parsing = out_parsing.reshape(batch_size, length_size, n_pts, num_part)
    out_pose = out_pose.reshape(batch_size, length_size * 51)
    return out_parsing, out_pose


# ---------------------------------------------------------------------------

if __name__ == "__main__":
    num_part = 8
    batch_size, length_size, n_pts = 2, 2, 16

    key = jax.random.PRNGKey(0)
    kp, kx, kh, kc = jax.random.split(key, 4)
    params = init_params(kp, num_part)

    x1 = jax.random.normal(kx, (batch_size * length_size, n_pts, 3), jnp.float32)
    h0 = jax.random.normal(kh, (3, batch_size, 64), jnp.float32)
    c0 = jax.random.normal(kc, (3, batch_size, 64), jnp.float32)

    fwd = jax.jit(functools.partial(parsing_pose_net_forward,
                                    num_part=num_part,
                                    batch_size=batch_size,
                                    length_size=length_size))
    out_parsing, out_pose = fwd(params, x1, h0, c0)
    jax.block_until_ready((out_parsing, out_pose))

    assert out_parsing.shape == (batch_size, length_size, n_pts, num_part)
    assert out_pose.shape == (batch_size, length_size * 17 * 3)
    assert bool(jnp.all(jnp.isfinite(out_parsing))) and bool(jnp.all(jnp.isfinite(out_pose)))
    print("KERNEL_OK")
</pallas_src>

<mosaic_0001>
module attributes {stable_mosaic.version = 11 : i64} {
  func.func @_embed_kernel(%arg0: i32, %arg1: memref<64x3xf32, #tpu.memory_space<vmem>>, %arg2: memref<384x128xf32, #tpu.memory_space<vmem>>, %arg3: memref<8x128xf32, #tpu.memory_space<vmem>>, %arg4: memref<3x128x512xf32, #tpu.memory_space<vmem>>, %arg5: memref<3x128x512xf32, #tpu.memory_space<vmem>>, %arg6: memref<3x1x512xf32, #tpu.memory_space<vmem>>, %arg7: memref<3x2x128xf32, #tpu.memory_space<vmem>>, %arg8: memref<3x2x128xf32, #tpu.memory_space<vmem>>, %arg9: memref<2x2x128xf32, #tpu.memory_space<vmem>>, %arg10: memref<4x128xf32, #tpu.memory_space<vmem>>, %arg11: memref<2x2x128xf32, #tpu.memory_space<vmem>>) attributes {dimension_semantics = [#tpu.dimension_semantics<arbitrary>], iteration_bounds = array<i64: 1>, scalar_prefetch = 0 : i64, scratch_operands = 2 : i64, tpu.core_type = #tpu.core_type<tc>, window_params = [{pipeline_mode = #tpu.pipeline_mode<synchronous>, transform_indices = @transform_0, window_bounds = array<i64: 64, 3>}, {pipeline_mode = #tpu.pipeline_mode<synchronous>, transform_indices = @transform_1, window_bounds = array<i64: 384, 128>}, {pipeline_mode = #tpu.pipeline_mode<synchronous>, transform_indices = @transform_2, window_bounds = array<i64: 8, 128>}, {pipeline_mode = #tpu.pipeline_mode<synchronous>, transform_indices = @transform_3, window_bounds = array<i64: 3, 128, 512>}, {pipeline_mode = #tpu.pipeline_mode<synchronous>, transform_indices = @transform_4, window_bounds = array<i64: 3, 128, 512>}, {pipeline_mode = #tpu.pipeline_mode<synchronous>, transform_indices = @transform_5, window_bounds = array<i64: 3, 1, 512>}, {pipeline_mode = #tpu.pipeline_mode<synchronous>, transform_indices = @transform_6, window_bounds = array<i64: 3, 2, 128>}, {pipeline_mode = #tpu.pipeline_mode<synchronous>, transform_indices = @transform_7, window_bounds = array<i64: 3, 2, 128>}, {pipeline_mode = #tpu.pipeline_mode<synchronous>, transform_indices = @transform_8, window_bounds = array<i64: 2, 2, 128>}]} {
    %c0 = arith.constant 0 : index
    %c0_0 = arith.constant 0 : index
    %0 = vector.load %arg1[%c0, %c0_0] : memref<64x3xf32, #tpu.memory_space<vmem>>, vector<64x3xf32>
    %c0_1 = arith.constant 0 : index
    %c0_2 = arith.constant 0 : index
    %1 = vector.load %arg2[%c0_1, %c0_2] : memref<384x128xf32, #tpu.memory_space<vmem>>, vector<3x76xf32>
    %cst = arith.constant dense<0.000000e+00> : vector<64x76xf32>
    %2 = tpu.matmul %0, %1, %cst {dimension_numbers = #tpu.dot_dimension_numbers<[1], [0], [0], [1], [0, 0, 1, 1], [], []>} : vector<64x3xf32>, vector<3x76xf32>, vector<64x76xf32> -> vector<64x76xf32>
    %3 = vector.extract_strided_slice %2 {offsets = [0, 0], sizes = [64, 64], strides = [1, 1]} : vector<64x76xf32> to vector<64x64xf32>
    %4 = vector.extract_strided_slice %2 {offsets = [0, 64], sizes = [64, 12], strides = [1, 1]} : vector<64x76xf32> to vector<64x12xf32>
    %c0_3 = arith.constant 0 : index
    %c0_4 = arith.constant 0 : index
    %5 = vector.load %arg3[%c0_3, %c0_4] : memref<8x128xf32, #tpu.memory_space<vmem>>, vector<1x12xf32>
    %6 = vector.broadcast %5 : vector<1x12xf32> to vector<64x12xf32>
    %7 = arith.addf %4, %6 : vector<64x12xf32>
    %cst_5 = arith.constant 0.000000e+00 : f32
    %8 = vector.broadcast %cst_5 : f32 to vector<64x12xf32>
    %9 = arith.maximumf %7, %8 : vector<64x12xf32>
    %c8 = arith.constant 8 : index
    %c0_6 = arith.constant 0 : index
    %10 = vector.load %arg2[%c8, %c0_6] : memref<384x128xf32, #tpu.memory_space<vmem>>, vector<12x24xf32>
    %cst_7 = arith.constant dense<0.000000e+00> : vector<64x24xf32>
    %11 = tpu.matmul %9, %10, %cst_7 {dimension_numbers = #tpu.dot_dimension_numbers<[1], [0], [0], [1], [0, 0, 1, 1], [], []>} : vector<64x12xf32>, vector<12x24xf32>, vector<64x24xf32> -> vector<64x24xf32>
    %c1 = arith.constant 1 : index
    %c0_8 = arith.constant 0 : index
    %12 = vector.load %arg3[%c1, %c0_8] : memref<8x128xf32, #tpu.memory_space<vmem>>, vector<1x24xf32>
    %13 = vector.broadcast %12 : vector<1x24xf32> to vector<64x24xf32>
    %14 = arith.addf %11, %13 : vector<64x24xf32>
    %cst_9 = arith.constant 0.000000e+00 : f32
    %15 = vector.broadcast %cst_9 : f32 to vector<64x24xf32>
    %16 = arith.maximumf %14, %15 : vector<64x24xf32>
    %c24 = arith.constant 24 : index
    %c0_10 = arith.constant 0 : index
    %17 = vector.load %arg2[%c24, %c0_10] : memref<384x128xf32, #tpu.memory_space<vmem>>, vector<24x48xf32>
    %cst_11 = arith.constant dense<0.000000e+00> : vector<64x48xf32>
    %18 = tpu.matmul %16, %17, %cst_11 {dimension_numbers = #tpu.dot_dimension_numbers<[1], [0], [0], [1], [0, 0, 1, 1], [], []>} : vector<64x24xf32>, vector<24x48xf32>, vector<64x48xf32> -> vector<64x48xf32>
    %c2 = arith.constant 2 : index
    %c0_12 = arith.constant 0 : index
    %19 = vector.load %arg3[%c2, %c0_12] : memref<8x128xf32, #tpu.memory_space<vmem>>, vector<1x48xf32>
    %20 = vector.broadcast %19 : vector<1x48xf32> to vector<64x48xf32>
    %21 = arith.addf %18, %20 : vector<64x48xf32>
    %cst_13 = arith.constant 0.000000e+00 : f32
    %22 = vector.broadcast %cst_13 : f32 to vector<64x48xf32>
    %23 = arith.maximumf %21, %22 : vector<64x48xf32>
    %c48 = arith.constant 48 : index
    %c0_14 = arith.constant 0 : index
    %24 = vector.load %arg2[%c48, %c0_14] : memref<384x128xf32, #tpu.memory_space<vmem>>, vector<48x64xf32>
    %cst_15 = arith.constant dense<0.000000e+00> : vector<64x64xf32>
    %25 = tpu.matmul %23, %24, %cst_15 {dimension_numbers = #tpu.dot_dimension_numbers<[1], [0], [0], [1], [0, 0, 1, 1], [], []>} : vector<64x48xf32>, vector<48x64xf32>, vector<64x64xf32> -> vector<64x64xf32>
    %26 = arith.addf %3, %25 : vector<64x64xf32>
    %c3 = arith.constant 3 : index
    %c0_16 = arith.constant 0 : index
    %27 = vector.load %arg3[%c3, %c0_16] : memref<8x128xf32, #tpu.memory_space<vmem>>, vector<1x64xf32>
    %28 = vector.broadcast %27 : vector<1x64xf32> to vector<64x64xf32>
    %29 = arith.addf %26, %28 : vector<64x64xf32>
    %cst_17 = arith.constant 0.000000e+00 : f32
    %30 = vector.broadcast %cst_17 : f32 to vector<64x64xf32>
    %31 = arith.maximumf %29, %30 : vector<64x64xf32>
    %c96 = arith.constant 96 : index
    %c0_18 = arith.constant 0 : index
    %32 = vector.load %arg2[%c96, %c0_18] : memref<384x128xf32, #tpu.memory_space<vmem>>, vector<64x96xf32>
    %cst_19 = arith.constant dense<0.000000e+00> : vector<64x96xf32>
    %33 = tpu.matmul %31, %32, %cst_19 {dimension_numbers = #tpu.dot_dimension_numbers<[1], [0], [0], [1], [0, 0, 1, 1], [], []>} : vector<64x64xf32>, vector<64x96xf32>, vector<64x96xf32> -> vector<64x96xf32>
    %c4 = arith.constant 4 : index
    %c0_20 = arith.constant 0 : index
    %34 = vector.load %arg3[%c4, %c0_20] : memref<8x128xf32, #tpu.memory_space<vmem>>, vector<1x96xf32>
    %35 = vector.broadcast %34 : vector<1x96xf32> to vector<64x96xf32>
    %36 = arith.addf %33, %35 : vector<64x96xf32>
    %cst_21 = arith.constant 0.000000e+00 : f32
    %37 = vector.broadcast %cst_21 : f32 to vector<64x96xf32>
    %38 = arith.maximumf %36, %37 : vector<64x96xf32>
    %c160 = arith.constant 160 : index
    %c0_22 = arith.constant 0 : index
    %39 = vector.load %arg2[%c160, %c0_22] : memref<384x128xf32, #tpu.memory_space<vmem>>, vector<96x128xf32>
    %cst_23 = arith.constant dense<0.000000e+00> : vector<64x128xf32>
    %40 = tpu.matmul %38, %39, %cst_23 {dimension_numbers = #tpu.dot_dimension_numbers<[1], [0], [0], [1], [0, 0, 1, 1], [], []>} : vector<64x96xf32>, vector<96x128xf32>, vector<64x128xf32> -> vector<64x128xf32>
    %c5 = arith.constant 5 : index
    %c0_24 = arith.constant 0 : index
    %41 = vector.load %arg3[%c5, %c0_24] : memref<8x128xf32, #tpu.memory_space<vmem>>, vector<1x128xf32>
    %42 = vector.broadcast %41 : vector<1x128xf32> to vector<64x128xf32>
    %43 = arith.addf %40, %42 : vector<64x128xf32>
    %cst_25 = arith.constant 0.000000e+00 : f32
    %44 = vector.broadcast %cst_25 : f32 to vector<64x128xf32>
    %45 = arith.maximumf %43, %44 : vector<64x128xf32>
    %c256 = arith.constant 256 : index
    %c0_26 = arith.constant 0 : index
    %46 = vector.load %arg2[%c256, %c0_26] : memref<384x128xf32, #tpu.memory_space<vmem>>, vector<128x2xf32>
    %cst_27 = arith.constant dense<0.000000e+00> : vector<64x2xf32>
    %47 = tpu.matmul %45, %46, %cst_27 {dimension_numbers = #tpu.dot_dimension_numbers<[1], [0], [0], [1], [0, 0, 1, 1], [], []>} : vector<64x128xf32>, vector<128x2xf32>, vector<64x2xf32> -> vector<64x2xf32>
    %c6 = arith.constant 6 : index
    %c0_28 = arith.constant 0 : index
    %48 = vector.load %arg3[%c6, %c0_28] : memref<8x128xf32, #tpu.memory_space<vmem>>, vector<1x2xf32>
    %49 = vector.broadcast %48 : vector<1x2xf32> to vector<64x2xf32>
    %50 = arith.addf %47, %49 : vector<64x2xf32>
    %51 = vector.shape_cast %45 : vector<64x128xf32> to vector<4x16x128xf32>
    %52 = vector.shape_cast %50 : vector<64x2xf32> to vector<4x16x2xf32>
    %cst_29 = arith.constant dense<0xFF800000> : vector<4x2xf32>
    %53 = vector.multi_reduction <maximumf>, %52, %cst_29 [1] : vector<4x16x2xf32> to vector<4x2xf32>
    %54 = vector.shape_cast %53 : vector<4x2xf32> to vector<4x1x2xf32>
    %55 = vector.broadcast %54 : vector<4x1x2xf32> to vector<4x16x2xf32>
    %56 = arith.subf %52, %55 : vector<4x16x2xf32>
    %57 = math.exp %56 : vector<4x16x2xf32>
    %cst_30 = arith.constant dense<0.000000e+00> : vector<4x2xf32>
    %58 = vector.multi_reduction <add>, %57, %cst_30 [1] : vector<4x16x2xf32> to vector<4x2xf32>
    %59 = vector.shape_cast %58 : vector<4x2xf32> to vector<4x1x2xf32>
    %60 = vector.broadcast %59 : vector<4x1x2xf32> to vector<4x16x2xf32>
    %61 = arith.divf %57, %60 : vector<4x16x2xf32>
    %62 = tpu.iota {dimensions = array<i32: 2>} : vector<4x16x128xi32>
    %c64_i32 = arith.constant 64 : i32
    %63 = vector.broadcast %c64_i32 : i32 to vector<4x16x128xi32>
    %64 = arith.cmpi slt, %62, %63 : vector<4x16x128xi32>
    %65 = vector.extract_strided_slice %61 {offsets = [0, 0, 0], sizes = [4, 16, 1], strides = [1, 1, 1]} : vector<4x16x2xf32> to vector<4x16x1xf32>
    %66 = vector.extract_strided_slice %61 {offsets = [0, 0, 1], sizes = [4, 16, 1], strides = [1, 1, 1]} : vector<4x16x2xf32> to vector<4x16x1xf32>
    %67 = vector.shape_cast %65 : vector<4x16x1xf32> to vector<4x16x1xf32>
    %68 = vector.broadcast %67 : vector<4x16x1xf32> to vector<4x16x128xf32>
    %69 = vector.shape_cast %66 : vector<4x16x1xf32> to vector<4x16x1xf32>
    %70 = vector.broadcast %69 : vector<4x16x1xf32> to vector<4x16x128xf32>
    %71 = arith.select %64, %68, %70 : vector<4x16x128xi1>, vector<4x16x128xf32>
    %72 = arith.mulf %51, %71 : vector<4x16x128xf32>
    %cst_31 = arith.constant dense<0.000000e+00> : vector<4x128xf32>
    %73 = vector.multi_reduction <add>, %72, %cst_31 [1] : vector<4x16x128xf32> to vector<4x128xf32>
    %c0_32 = arith.constant 0 : index
    %c0_33 = arith.constant 0 : index
    %74 = vector.load %arg10[%c0_32, %c0_33] : memref<4x128xf32, #tpu.memory_space<vmem>>, vector<4x128xf32>
    tpu.vector_store %arg10[%c0_32, %c0_33], %73 {strides = array<i32>} : memref<4x128xf32, #tpu.memory_space<vmem>>, vector<4x128xf32>,
    %c0_34 = arith.constant 0 : index
    %c0_35 = arith.constant 0 : index
    %75 = tpu.strided_load %arg10[%c0_34, %c0_35] {strides = array<i32: 2, 1>} : memref<4x128xf32, #tpu.memory_space<vmem>>, vector<2x128xf32>
    %c0_36 = arith.constant 0 : index
    %c0_37 = arith.constant 0 : index
    %c0_38 = arith.constant 0 : index
    %76 = vector.load %arg11[%c0_36, %c0_37, %c0_38] : memref<2x2x128xf32, #tpu.memory_space<vmem>>, vector<1x2x128xf32>
    %77 = vector.shape_cast %76 : vector<1x2x128xf32> to vector<2x128xf32>
    %78 = vector.shape_cast %75 : vector<2x128xf32> to vector<1x2x128xf32>
    tpu.vector_store %arg11[%c0_36, %c0_37, %c0_38], %78 {strides = array<i32>} : memref<2x2x128xf32, #tpu.memory_space<vmem>>, vector<1x2x128xf32>,
    %c1_39 = arith.constant 1 : index
    %c0_40 = arith.constant 0 : index
    %79 = tpu.strided_load %arg10[%c1_39, %c0_40] {strides = array<i32: 2, 1>} : memref<4x128xf32, #tpu.memory_space<vmem>>, vector<2x128xf32>
    %c1_41 = arith.constant 1 : index
    %c0_42 = arith.constant 0 : index
    %c0_43 = arith.constant 0 : index
    %80 = vector.load %arg11[%c1_41, %c0_42, %c0_43] : memref<2x2x128xf32, #tpu.memory_space<vmem>>, vector<1x2x128xf32>
    %81 = vector.shape_cast %80 : vector<1x2x128xf32> to vector<2x128xf32>
    %82 = vector.shape_cast %79 : vector<2x128xf32> to vector<1x2x128xf32>
    tpu.vector_store %arg11[%c1_41, %c0_42, %c0_43], %82 {strides = array<i32>} : memref<2x2x128xf32, #tpu.memory_space<vmem>>, vector<1x2x128xf32>,
    %c0_44 = arith.constant 0 : index
    %c0_45 = arith.constant 0 : index
    %c0_46 = arith.constant 0 : index
    %83 = vector.load %arg7[%c0_44, %c0_45, %c0_46] : memref<3x2x128xf32, #tpu.memory_space<vmem>>, vector<1x2x128xf32>
    %84 = vector.shape_cast %83 : vector<1x2x128xf32> to vector<2x128xf32>
    %c0_47 = arith.constant 0 : index
    %c0_48 = arith.constant 0 : index
    %c0_49 = arith.constant 0 : index
    %85 = vector.load %arg8[%c0_47, %c0_48, %c0_49] : memref<3x2x128xf32, #tpu.memory_space<vmem>>, vector<1x2x128xf32>
    %86 = vector.shape_cast %85 : vector<1x2x128xf32> to vector<2x128xf32>
    %c0_i32 = arith.constant 0 : i32
    %87 = arith.index_cast %c0_i32 : i32 to index
    %c0_50 = arith.constant 0 : index
    %c0_51 = arith.constant 0 : index
    %88 = vector.load %arg11[%87, %c0_50, %c0_51] : memref<2x2x128xf32, #tpu.memory_space<vmem>>, vector<1x2x128xf32>
    %89 = vector.shape_cast %88 : vector<1x2x128xf32> to vector<2x128xf32>
    %c0_52 = arith.constant 0 : index
    %c0_53 = arith.constant 0 : index
    %c0_54 = arith.constant 0 : index
    %90 = vector.load %arg4[%c0_52, %c0_53, %c0_54] : memref<3x128x512xf32, #tpu.memory_space<vmem>>, vector<1x128x512xf32>
    %91 = vector.shape_cast %90 : vector<1x128x512xf32> to vector<128x512xf32>
    %cst_55 = arith.constant dense<0.000000e+00> : vector<2x512xf32>
    %92 = tpu.matmul %89, %91, %cst_55 {dimension_numbers = #tpu.dot_dimension_numbers<[1], [0], [0], [1], [0, 0, 1, 1], [], []>} : vector<2x128xf32>, vector<128x512xf32>, vector<2x512xf32> -> vector<2x512xf32>
    %c0_56 = arith.constant 0 : index
    %c0_57 = arith.constant 0 : index
    %c0_58 = arith.constant 0 : index
    %93 = vector.load %arg5[%c0_56, %c0_57, %c0_58] : memref<3x128x512xf32, #tpu.memory_space<vmem>>, vector<1x128x512xf32>
    %94 = vector.shape_cast %93 : vector<1x128x512xf32> to vector<128x512xf32>
    %cst_59 = arith.constant dense<0.000000e+00> : vector<2x512xf32>
    %95 = tpu.matmul %84, %94, %cst_59 {dimension_numbers = #tpu.dot_dimension_numbers<[1], [0], [0], [1], [0, 0, 1, 1], [], []>} : vector<2x128xf32>, vector<128x512xf32>, vector<2x512xf32> -> vector<2x512xf32>
    %96 = arith.addf %92, %95 : vector<2x512xf32>
    %c0_60 = arith.constant 0 : index
    %c0_61 = arith.constant 0 : index
    %c0_62 = arith.constant 0 : index
    %97 = vector.load %arg6[%c0_60, %c0_61, %c0_62] : memref<3x1x512xf32, #tpu.memory_space<vmem>>, vector<1x1x512xf32>
    %98 = vector.shape_cast %97 : vector<1x1x512xf32> to vector<1x512xf32>
    %99 = vector.broadcast %98 : vector<1x512xf32> to vector<2x512xf32>
    %100 = arith.addf %96, %99 : vector<2x512xf32>
    %101 = vector.extract_strided_slice %100 {offsets = [0, 0], sizes = [2, 128], strides = [1, 1]} : vector<2x512xf32> to vector<2x128xf32>
    %102 = arith.negf %101 : vector<2x128xf32>
    %103 = math.exp %102 : vector<2x128xf32>
    %cst_63 = arith.constant 1.000000e+00 : f32
    %104 = vector.broadcast %cst_63 : f32 to vector<2x128xf32>
    %105 = arith.addf %104, %103 : vector<2x128xf32>
    %106 = arith.divf %104, %105 : vector<2x128xf32>
    %107 = vector.extract_strided_slice %100 {offsets = [0, 128], sizes = [2, 128], strides = [1, 1]} : vector<2x512xf32> to vector<2x128xf32>
    %108 = arith.negf %107 : vector<2x128xf32>
    %109 = math.exp %108 : vector<2x128xf32>
    %cst_64 = arith.constant 1.000000e+00 : f32
    %110 = vector.broadcast %cst_64 : f32 to vector<2x128xf32>
    %111 = arith.addf %110, %109 : vector<2x128xf32>
    %112 = arith.divf %110, %111 : vector<2x128xf32>
    %113 = vector.extract_strided_slice %100 {offsets = [0, 256], sizes = [2, 128], strides = [1, 1]} : vector<2x512xf32> to vector<2x128xf32>
    %114 = math.tanh %113 : vector<2x128xf32>
    %115 = vector.extract_strided_slice %100 {offsets = [0, 384], sizes = [2, 128], strides = [1, 1]} : vector<2x512xf32> to vector<2x128xf32>
    %116 = arith.negf %115 : vector<2x128xf32>
    %117 = math.exp %116 : vector<2x128xf32>
    %cst_65 = arith.constant 1.000000e+00 : f32
    %118 = vector.broadcast %cst_65 : f32 to vector<2x128xf32>
    %119 = arith.addf %118, %117 : vector<2x128xf32>
    %120 = arith.divf %118, %119 : vector<2x128xf32>
    %121 = arith.mulf %112, %86 : vector<2x128xf32>
    %122 = arith.mulf %106, %114 : vector<2x128xf32>
    %123 = arith.addf %121, %122 : vector<2x128xf32>
    %124 = math.tanh %123 : vector<2x128xf32>
    %125 = arith.mulf %120, %124 : vector<2x128xf32>
    %126 = arith.index_cast %c0_i32 : i32 to index
    %c0_66 = arith.constant 0 : index
    %c0_67 = arith.constant 0 : index
    %127 = vector.load %arg11[%126, %c0_66, %c0_67] : memref<2x2x128xf32, #tpu.memory_space<vmem>>, vector<1x2x128xf32>
    %128 = vector.shape_cast %127 : vector<1x2x128xf32> to vector<2x128xf32>
    %129 = vector.shape_cast %125 : vector<2x128xf32> to vector<1x2x128xf32>
    tpu.vector_store %arg11[%126, %c0_66, %c0_67], %129 {strides = array<i32>} : memref<2x2x128xf32, #tpu.memory_space<vmem>>, vector<1x2x128xf32>,
    %c1_i32 = arith.constant 1 : i32
    %130 = arith.index_cast %c1_i32 : i32 to index
    %c0_68 = arith.constant 0 : index
    %c0_69 = arith.constant 0 : index
    %131 = vector.load %arg11[%130, %c0_68, %c0_69] : memref<2x2x128xf32, #tpu.memory_space<vmem>>, vector<1x2x128xf32>
    %132 = vector.shape_cast %131 : vector<1x2x128xf32> to vector<2x128xf32>
    %c0_70 = arith.constant 0 : index
    %c0_71 = arith.constant 0 : index
    %c0_72 = arith.constant 0 : index
    %133 = vector.load %arg4[%c0_70, %c0_71, %c0_72] : memref<3x128x512xf32, #tpu.memory_space<vmem>>, vector<1x128x512xf32>
    %134 = vector.shape_cast %133 : vector<1x128x512xf32> to vector<128x512xf32>
    %cst_73 = arith.constant dense<0.000000e+00> : vector<2x512xf32>
    %135 = tpu.matmul %132, %134, %cst_73 {dimension_numbers = #tpu.dot_dimension_numbers<[1], [0], [0], [1], [0, 0, 1, 1], [], []>} : vector<2x128xf32>, vector<128x512xf32>, vector<2x512xf32> -> vector<2x512xf32>
    %c0_74 = arith.constant 0 : index
    %c0_75 = arith.constant 0 : index
    %c0_76 = arith.constant 0 : index
    %136 = vector.load %arg5[%c0_74, %c0_75, %c0_76] : memref<3x128x512xf32, #tpu.memory_space<vmem>>, vector<1x128x512xf32>
    %137 = vector.shape_cast %136 : vector<1x128x512xf32> to vector<128x512xf32>
    %cst_77 = arith.constant dense<0.000000e+00> : vector<2x512xf32>
    %138 = tpu.matmul %125, %137, %cst_77 {dimension_numbers = #tpu.dot_dimension_numbers<[1], [0], [0], [1], [0, 0, 1, 1], [], []>} : vector<2x128xf32>, vector<128x512xf32>, vector<2x512xf32> -> vector<2x512xf32>
    %139 = arith.addf %135, %138 : vector<2x512xf32>
    %c0_78 = arith.constant 0 : index
    %c0_79 = arith.constant 0 : index
    %c0_80 = arith.constant 0 : index
    %140 = vector.load %arg6[%c0_78, %c0_79, %c0_80] : memref<3x1x512xf32, #tpu.memory_space<vmem>>, vector<1x1x512xf32>
    %141 = vector.shape_cast %140 : vector<1x1x512xf32> to vector<1x512xf32>
    %142 = vector.broadcast %141 : vector<1x512xf32> to vector<2x512xf32>
    %143 = arith.addf %139, %142 : vector<2x512xf32>
    %144 = vector.extract_strided_slice %143 {offsets = [0, 0], sizes = [2, 128], strides = [1, 1]} : vector<2x512xf32> to vector<2x128xf32>
    %145 = arith.negf %144 : vector<2x128xf32>
    %146 = math.exp %145 : vector<2x128xf32>
    %cst_81 = arith.constant 1.000000e+00 : f32
    %147 = vector.broadcast %cst_81 : f32 to vector<2x128xf32>
    %148 = arith.addf %147, %146 : vector<2x128xf32>
    %149 = arith.divf %147, %148 : vector<2x128xf32>
    %150 = vector.extract_strided_slice %143 {offsets = [0, 128], sizes = [2, 128], strides = [1, 1]} : vector<2x512xf32> to vector<2x128xf32>
    %151 = arith.negf %150 : vector<2x128xf32>
    %152 = math.exp %151 : vector<2x128xf32>
    %cst_82 = arith.constant 1.000000e+00 : f32
    %153 = vector.broadcast %cst_82 : f32 to vector<2x128xf32>
    %154 = arith.addf %153, %152 : vector<2x128xf32>
    %155 = arith.divf %153, %154 : vector<2x128xf32>
    %156 = vector.extract_strided_slice %143 {offsets = [0, 256], sizes = [2, 128], strides = [1, 1]} : vector<2x512xf32> to vector<2x128xf32>
    %157 = math.tanh %156 : vector<2x128xf32>
    %158 = vector.extract_strided_slice %143 {offsets = [0, 384], sizes = [2, 128], strides = [1, 1]} : vector<2x512xf32> to vector<2x128xf32>
    %159 = arith.negf %158 : vector<2x128xf32>
    %160 = math.exp %159 : vector<2x128xf32>
    %cst_83 = arith.constant 1.000000e+00 : f32
    %161 = vector.broadcast %cst_83 : f32 to vector<2x128xf32>
    %162 = arith.addf %161, %160 : vector<2x128xf32>
    %163 = arith.divf %161, %162 : vector<2x128xf32>
    %164 = arith.mulf %155, %123 : vector<2x128xf32>
    %165 = arith.mulf %149, %157 : vector<2x128xf32>
    %166 = arith.addf %164, %165 : vector<2x128xf32>
    %167 = math.tanh %166 : vector<2x128xf32>
    %168 = arith.mulf %163, %167 : vector<2x128xf32>
    %169 = arith.index_cast %c1_i32 : i32 to index
    %c0_84 = arith.constant 0 : index
    %c0_85 = arith.constant 0 : index
    %170 = vector.load %arg11[%169, %c0_84, %c0_85] : memref<2x2x128xf32, #tpu.memory_space<vmem>>, vector<1x2x128xf32>
    %171 = vector.shape_cast %170 : vector<1x2x128xf32> to vector<2x128xf32>
    %172 = vector.shape_cast %168 : vector<2x128xf32> to vector<1x2x128xf32>
    tpu.vector_store %arg11[%169, %c0_84, %c0_85], %172 {strides = array<i32>} : memref<2x2x128xf32, #tpu.memory_space<vmem>>, vector<1x2x128xf32>,
    %c2_i32 = arith.constant 2 : i32
    %c1_86 = arith.constant 1 : index
    %c0_87 = arith.constant 0 : index
    %c0_88 = arith.constant 0 : index
    %173 = vector.load %arg7[%c1_86, %c0_87, %c0_88] : memref<3x2x128xf32, #tpu.memory_space<vmem>>, vector<1x2x128xf32>
    %174 = vector.shape_cast %173 : vector<1x2x128xf32> to vector<2x128xf32>
    %c1_89 = arith.constant 1 : index
    %c0_90 = arith.constant 0 : index
    %c0_91 = arith.constant 0 : index
    %175 = vector.load %arg8[%c1_89, %c0_90, %c0_91] : memref<3x2x128xf32, #tpu.memory_space<vmem>>, vector<1x2x128xf32>
    %176 = vector.shape_cast %175 : vector<1x2x128xf32> to vector<2x128xf32>
    %c0_i32_92 = arith.constant 0 : i32
    %177 = arith.index_cast %c0_i32_92 : i32 to index
    %c0_93 = arith.constant 0 : index
    %c0_94 = arith.constant 0 : index
    %178 = vector.load %arg11[%177, %c0_93, %c0_94] : memref<2x2x128xf32, #tpu.memory_space<vmem>>, vector<1x2x128xf32>
    %179 = vector.shape_cast %178 : vector<1x2x128xf32> to vector<2x128xf32>
    %c1_95 = arith.constant 1 : index
    %c0_96 = arith.constant 0 : index
    %c0_97 = arith.constant 0 : index
    %180 = vector.load %arg4[%c1_95, %c0_96, %c0_97] : memref<3x128x512xf32, #tpu.memory_space<vmem>>, vector<1x128x512xf32>
    %181 = vector.shape_cast %180 : vector<1x128x512xf32> to vector<128x512xf32>
    %cst_98 = arith.constant dense<0.000000e+00> : vector<2x512xf32>
    %182 = tpu.matmul %179, %181, %cst_98 {dimension_numbers = #tpu.dot_dimension_numbers<[1], [0], [0], [1], [0, 0, 1, 1], [], []>} : vector<2x128xf32>, vector<128x512xf32>, vector<2x512xf32> -> vector<2x512xf32>
    %c1_99 = arith.constant 1 : index
    %c0_100 = arith.constant 0 : index
    %c0_101 = arith.constant 0 : index
    %183 = vector.load %arg5[%c1_99, %c0_100, %c0_101] : memref<3x128x512xf32, #tpu.memory_space<vmem>>, vector<1x128x512xf32>
    %184 = vector.shape_cast %183 : vector<1x128x512xf32> to vector<128x512xf32>
    %cst_102 = arith.constant dense<0.000000e+00> : vector<2x512xf32>
    %185 = tpu.matmul %174, %184, %cst_102 {dimension_numbers = #tpu.dot_dimension_numbers<[1], [0], [0], [1], [0, 0, 1, 1], [], []>} : vector<2x128xf32>, vector<128x512xf32>, vector<2x512xf32> -> vector<2x512xf32>
    %186 = arith.addf %182, %185 : vector<2x512xf32>
    %c1_103 = arith.constant 1 : index
    %c0_104 = arith.constant 0 : index
    %c0_105 = arith.constant 0 : index
    %187 = vector.load %arg6[%c1_103, %c0_104, %c0_105] : memref<3x1x512xf32, #tpu.memory_space<vmem>>, vector<1x1x512xf32>
    %188 = vector.shape_cast %187 : vector<1x1x512xf32> to vector<1x512xf32>
    %189 = vector.broadcast %188 : vector<1x512xf32> to vector<2x512xf32>
    %190 = arith.addf %186, %189 : vector<2x512xf32>
    %191 = vector.extract_strided_slice %190 {offsets = [0, 0], sizes = [2, 128], strides = [1, 1]} : vector<2x512xf32> to vector<2x128xf32>
    %192 = arith.negf %191 : vector<2x128xf32>
    %193 = math.exp %192 : vector<2x128xf32>
    %cst_106 = arith.constant 1.000000e+00 : f32
    %194 = vector.broadcast %cst_106 : f32 to vector<2x128xf32>
    %195 = arith.addf %194, %193 : vector<2x128xf32>
    %196 = arith.divf %194, %195 : vector<2x128xf32>
    %197 = vector.extract_strided_slice %190 {offsets = [0, 128], sizes = [2, 128], strides = [1, 1]} : vector<2x512xf32> to vector<2x128xf32>
    %198 = arith.negf %197 : vector<2x128xf32>
    %199 = math.exp %198 : vector<2x128xf32>
    %cst_107 = arith.constant 1.000000e+00 : f32
    %200 = vector.broadcast %cst_107 : f32 to vector<2x128xf32>
    %201 = arith.addf %200, %199 : vector<2x128xf32>
    %202 = arith.divf %200, %201 : vector<2x128xf32>
    %203 = vector.extract_strided_slice %190 {offsets = [0, 256], sizes = [2, 128], strides = [1, 1]} : vector<2x512xf32> to vector<2x128xf32>
    %204 = math.tanh %203 : vector<2x128xf32>
    %205 = vector.extract_strided_slice %190 {offsets = [0, 384], sizes = [2, 128], strides = [1, 1]} : vector<2x512xf32> to vector<2x128xf32>
    %206 = arith.negf %205 : vector<2x128xf32>
    %207 = math.exp %206 : vector<2x128xf32>
    %cst_108 = arith.constant 1.000000e+00 : f32
    %208 = vector.broadcast %cst_108 : f32 to vector<2x128xf32>
    %209 = arith.addf %208, %207 : vector<2x128xf32>
    %210 = arith.divf %208, %209 : vector<2x128xf32>
    %211 = arith.mulf %202, %176 : vector<2x128xf32>
    %212 = arith.mulf %196, %204 : vector<2x128xf32>
    %213 = arith.addf %211, %212 : vector<2x128xf32>
    %214 = math.tanh %213 : vector<2x128xf32>
    %215 = arith.mulf %210, %214 : vector<2x128xf32>
    %216 = arith.index_cast %c0_i32_92 : i32 to index
    %c0_109 = arith.constant 0 : index
    %c0_110 = arith.constant 0 : index
    %217 = vector.load %arg11[%216, %c0_109, %c0_110] : memref<2x2x128xf32, #tpu.memory_space<vmem>>, vector<1x2x128xf32>
    %218 = vector.shape_cast %217 : vector<1x2x128xf32> to vector<2x128xf32>
    %219 = vector.shape_cast %215 : vector<2x128xf32> to vector<1x2x128xf32>
    tpu.vector_store %arg11[%216, %c0_109, %c0_110], %219 {strides = array<i32>} : memref<2x2x128xf32, #tpu.memory_space<vmem>>, vector<1x2x128xf32>,
    %c1_i32_111 = arith.constant 1 : i32
    %220 = arith.index_cast %c1_i32_111 : i32 to index
    %c0_112 = arith.constant 0 : index
    %c0_113 = arith.constant 0 : index
    %221 = vector.load %arg11[%220, %c0_112, %c0_113] : memref<2x2x128xf32, #tpu.memory_space<vmem>>, vector<1x2x128xf32>
    %222 = vector.shape_cast %221 : vector<1x2x128xf32> to vector<2x128xf32>
    %c1_114 = arith.constant 1 : index
    %c0_115 = arith.constant 0 : index
    %c0_116 = arith.constant 0 : index
    %223 = vector.load %arg4[%c1_114, %c0_115, %c0_116] : memref<3x128x512xf32, #tpu.memory_space<vmem>>, vector<1x128x512xf32>
    %224 = vector.shape_cast %223 : vector<1x128x512xf32> to vector<128x512xf32>
    %cst_117 = arith.constant dense<0.000000e+00> : vector<2x512xf32>
    %225 = tpu.matmul %222, %224, %cst_117 {dimension_numbers = #tpu.dot_dimension_numbers<[1], [0], [0], [1], [0, 0, 1, 1], [], []>} : vector<2x128xf32>, vector<128x512xf32>, vector<2x512xf32> -> vector<2x512xf32>
    %c1_118 = arith.constant 1 : index
    %c0_119 = arith.constant 0 : index
    %c0_120 = arith.constant 0 : index
    %226 = vector.load %arg5[%c1_118, %c0_119, %c0_120] : memref<3x128x512xf32, #tpu.memory_space<vmem>>, vector<1x128x512xf32>
    %227 = vector.shape_cast %226 : vector<1x128x512xf32> to vector<128x512xf32>
    %cst_121 = arith.constant dense<0.000000e+00> : vector<2x512xf32>
    %228 = tpu.matmul %215, %227, %cst_121 {dimension_numbers = #tpu.dot_dimension_numbers<[1], [0], [0], [1], [0, 0, 1, 1], [], []>} : vector<2x128xf32>, vector<128x512xf32>, vector<2x512xf32> -> vector<2x512xf32>
    %229 = arith.addf %225, %228 : vector<2x512xf32>
    %c1_122 = arith.constant 1 : index
    %c0_123 = arith.constant 0 : index
    %c0_124 = arith.constant 0 : index
    %230 = vector.load %arg6[%c1_122, %c0_123, %c0_124] : memref<3x1x512xf32, #tpu.memory_space<vmem>>, vector<1x1x512xf32>
    %231 = vector.shape_cast %230 : vector<1x1x512xf32> to vector<1x512xf32>
    %232 = vector.broadcast %231 : vector<1x512xf32> to vector<2x512xf32>
    %233 = arith.addf %229, %232 : vector<2x512xf32>
    %234 = vector.extract_strided_slice %233 {offsets = [0, 0], sizes = [2, 128], strides = [1, 1]} : vector<2x512xf32> to vector<2x128xf32>
    %235 = arith.negf %234 : vector<2x128xf32>
    %236 = math.exp %235 : vector<2x128xf32>
    %cst_125 = arith.constant 1.000000e+00 : f32
    %237 = vector.broadcast %cst_125 : f32 to vector<2x128xf32>
    %238 = arith.addf %237, %236 : vector<2x128xf32>
    %239 = arith.divf %237, %238 : vector<2x128xf32>
    %240 = vector.extract_strided_slice %233 {offsets = [0, 128], sizes = [2, 128], strides = [1, 1]} : vector<2x512xf32> to vector<2x128xf32>
    %241 = arith.negf %240 : vector<2x128xf32>
    %242 = math.exp %241 : vector<2x128xf32>
    %cst_126 = arith.constant 1.000000e+00 : f32
    %243 = vector.broadcast %cst_126 : f32 to vector<2x128xf32>
    %244 = arith.addf %243, %242 : vector<2x128xf32>
    %245 = arith.divf %243, %244 : vector<2x128xf32>
    %246 = vector.extract_strided_slice %233 {offsets = [0, 256], sizes = [2, 128], strides = [1, 1]} : vector<2x512xf32> to vector<2x128xf32>
    %247 = math.tanh %246 : vector<2x128xf32>
    %248 = vector.extract_strided_slice %233 {offsets = [0, 384], sizes = [2, 128], strides = [1, 1]} : vector<2x512xf32> to vector<2x128xf32>
    %249 = arith.negf %248 : vector<2x128xf32>
    %250 = math.exp %249 : vector<2x128xf32>
    %cst_127 = arith.constant 1.000000e+00 : f32
    %251 = vector.broadcast %cst_127 : f32 to vector<2x128xf32>
    %252 = arith.addf %251, %250 : vector<2x128xf32>
    %253 = arith.divf %251, %252 : vector<2x128xf32>
    %254 = arith.mulf %245, %213 : vector<2x128xf32>
    %255 = arith.mulf %239, %247 : vector<2x128xf32>
    %256 = arith.addf %254, %255 : vector<2x128xf32>
    %257 = math.tanh %256 : vector<2x128xf32>
    %258 = arith.mulf %253, %257 : vector<2x128xf32>
    %259 = arith.index_cast %c1_i32_111 : i32 to index
    %c0_128 = arith.constant 0 : index
    %c0_129 = arith.constant 0 : index
    %260 = vector.load %arg11[%259, %c0_128, %c0_129] : memref<2x2x128xf32, #tpu.memory_space<vmem>>, vector<1x2x128xf32>
    %261 = vector.shape_cast %260 : vector<1x2x128xf32> to vector<2x128xf32>
    %262 = vector.shape_cast %258 : vector<2x128xf32> to vector<1x2x128xf32>
    tpu.vector_store %arg11[%259, %c0_128, %c0_129], %262 {strides = array<i32>} : memref<2x2x128xf32, #tpu.memory_space<vmem>>, vector<1x2x128xf32>,
    %c2_i32_130 = arith.constant 2 : i32
    %c2_131 = arith.constant 2 : index
    %c0_132 = arith.constant 0 : index
    %c0_133 = arith.constant 0 : index
    %263 = vector.load %arg7[%c2_131, %c0_132, %c0_133] : memref<3x2x128xf32, #tpu.memory_space<vmem>>, vector<1x2x128xf32>
    %264 = vector.shape_cast %263 : vector<1x2x128xf32> to vector<2x128xf32>
    %c2_134 = arith.constant 2 : index
    %c0_135 = arith.constant 0 : index
    %c0_136 = arith.constant 0 : index
    %265 = vector.load %arg8[%c2_134, %c0_135, %c0_136] : memref<3x2x128xf32, #tpu.memory_space<vmem>>, vector<1x2x128xf32>
    %266 = vector.shape_cast %265 : vector<1x2x128xf32> to vector<2x128xf32>
    %c0_i32_137 = arith.constant 0 : i32
    %267 = arith.index_cast %c0_i32_137 : i32 to index
    %c0_138 = arith.constant 0 : index
    %c0_139 = arith.constant 0 : index
    %268 = vector.load %arg11[%267, %c0_138, %c0_139] : memref<2x2x128xf32, #tpu.memory_space<vmem>>, vector<1x2x128xf32>
    %269 = vector.shape_cast %268 : vector<1x2x128xf32> to vector<2x128xf32>
    %c2_140 = arith.constant 2 : index
    %c0_141 = arith.constant 0 : index
    %c0_142 = arith.constant 0 : index
    %270 = vector.load %arg4[%c2_140, %c0_141, %c0_142] : memref<3x128x512xf32, #tpu.memory_space<vmem>>, vector<1x128x512xf32>
    %271 = vector.shape_cast %270 : vector<1x128x512xf32> to vector<128x512xf32>
    %cst_143 = arith.constant dense<0.000000e+00> : vector<2x512xf32>
    %272 = tpu.matmul %269, %271, %cst_143 {dimension_numbers = #tpu.dot_dimension_numbers<[1], [0], [0], [1], [0, 0, 1, 1], [], []>} : vector<2x128xf32>, vector<128x512xf32>, vector<2x512xf32> -> vector<2x512xf32>
    %c2_144 = arith.constant 2 : index
    %c0_145 = arith.constant 0 : index
    %c0_146 = arith.constant 0 : index
    %273 = vector.load %arg5[%c2_144, %c0_145, %c0_146] : memref<3x128x512xf32, #tpu.memory_space<vmem>>, vector<1x128x512xf32>
    %274 = vector.shape_cast %273 : vector<1x128x512xf32> to vector<128x512xf32>
    %cst_147 = arith.constant dense<0.000000e+00> : vector<2x512xf32>
    %275 = tpu.matmul %264, %274, %cst_147 {dimension_numbers = #tpu.dot_dimension_numbers<[1], [0], [0], [1], [0, 0, 1, 1], [], []>} : vector<2x128xf32>, vector<128x512xf32>, vector<2x512xf32> -> vector<2x512xf32>
    %276 = arith.addf %272, %275 : vector<2x512xf32>
    %c2_148 = arith.constant 2 : index
    %c0_149 = arith.constant 0 : index
    %c0_150 = arith.constant 0 : index
    %277 = vector.load %arg6[%c2_148, %c0_149, %c0_150] : memref<3x1x512xf32, #tpu.memory_space<vmem>>, vector<1x1x512xf32>
    %278 = vector.shape_cast %277 : vector<1x1x512xf32> to vector<1x512xf32>
    %279 = vector.broadcast %278 : vector<1x512xf32> to vector<2x512xf32>
    %280 = arith.addf %276, %279 : vector<2x512xf32>
    %281 = vector.extract_strided_slice %280 {offsets = [0, 0], sizes = [2, 128], strides = [1, 1]} : vector<2x512xf32> to vector<2x128xf32>
    %282 = arith.negf %281 : vector<2x128xf32>
    %283 = math.exp %282 : vector<2x128xf32>
    %cst_151 = arith.constant 1.000000e+00 : f32
    %284 = vector.broadcast %cst_151 : f32 to vector<2x128xf32>
    %285 = arith.addf %284, %283 : vector<2x128xf32>
    %286 = arith.divf %284, %285 : vector<2x128xf32>
    %287 = vector.extract_strided_slice %280 {offsets = [0, 128], sizes = [2, 128], strides = [1, 1]} : vector<2x512xf32> to vector<2x128xf32>
    %288 = arith.negf %287 : vector<2x128xf32>
    %289 = math.exp %288 : vector<2x128xf32>
    %cst_152 = arith.constant 1.000000e+00 : f32
    %290 = vector.broadcast %cst_152 : f32 to vector<2x128xf32>
    %291 = arith.addf %290, %289 : vector<2x128xf32>
    %292 = arith.divf %290, %291 : vector<2x128xf32>
    %293 = vector.extract_strided_slice %280 {offsets = [0, 256], sizes = [2, 128], strides = [1, 1]} : vector<2x512xf32> to vector<2x128xf32>
    %294 = math.tanh %293 : vector<2x128xf32>
    %295 = vector.extract_strided_slice %280 {offsets = [0, 384], sizes = [2, 128], strides = [1, 1]} : vector<2x512xf32> to vector<2x128xf32>
    %296 = arith.negf %295 : vector<2x128xf32>
    %297 = math.exp %296 : vector<2x128xf32>
    %cst_153 = arith.constant 1.000000e+00 : f32
    %298 = vector.broadcast %cst_153 : f32 to vector<2x128xf32>
    %299 = arith.addf %298, %297 : vector<2x128xf32>
    %300 = arith.divf %298, %299 : vector<2x128xf32>
    %301 = arith.mulf %292, %266 : vector<2x128xf32>
    %302 = arith.mulf %286, %294 : vector<2x128xf32>
    %303 = arith.addf %301, %302 : vector<2x128xf32>
    %304 = math.tanh %303 : vector<2x128xf32>
    %305 = arith.mulf %300, %304 : vector<2x128xf32>
    %306 = arith.index_cast %c0_i32_137 : i32 to index
    %c0_154 = arith.constant 0 : index
    %c0_155 = arith.constant 0 : index
    %307 = vector.load %arg11[%306, %c0_154, %c0_155] : memref<2x2x128xf32, #tpu.memory_space<vmem>>, vector<1x2x128xf32>
    %308 = vector.shape_cast %307 : vector<1x2x128xf32> to vector<2x128xf32>
    %309 = vector.shape_cast %305 : vector<2x128xf32> to vector<1x2x128xf32>
    tpu.vector_store %arg11[%306, %c0_154, %c0_155], %309 {strides = array<i32>} : memref<2x2x128xf32, #tpu.memory_space<vmem>>, vector<1x2x128xf32>,
    %c1_i32_156 = arith.constant 1 : i32
    %310 = arith.index_cast %c1_i32_156 : i32 to index
    %c0_157 = arith.constant 0 : index
    %c0_158 = arith.constant 0 : index
    %311 = vector.load %arg11[%310, %c0_157, %c0_158] : memref<2x2x128xf32, #tpu.memory_space<vmem>>, vector<1x2x128xf32>
    %312 = vector.shape_cast %311 : vector<1x2x128xf32> to vector<2x128xf32>
    %c2_159 = arith.constant 2 : index
    %c0_160 = arith.constant 0 : index
    %c0_161 = arith.constant 0 : index
    %313 = vector.load %arg4[%c2_159, %c0_160, %c0_161] : memref<3x128x512xf32, #tpu.memory_space<vmem>>, vector<1x128x512xf32>
    %314 = vector.shape_cast %313 : vector<1x128x512xf32> to vector<128x512xf32>
    %cst_162 = arith.constant dense<0.000000e+00> : vector<2x512xf32>
    %315 = tpu.matmul %312, %314, %cst_162 {dimension_numbers = #tpu.dot_dimension_numbers<[1], [0], [0], [1], [0, 0, 1, 1], [], []>} : vector<2x128xf32>, vector<128x512xf32>, vector<2x512xf32> -> vector<2x512xf32>
    %c2_163 = arith.constant 2 : index
    %c0_164 = arith.constant 0 : index
    %c0_165 = arith.constant 0 : index
    %316 = vector.load %arg5[%c2_163, %c0_164, %c0_165] : memref<3x128x512xf32, #tpu.memory_space<vmem>>, vector<1x128x512xf32>
    %317 = vector.shape_cast %316 : vector<1x128x512xf32> to vector<128x512xf32>
    %cst_166 = arith.constant dense<0.000000e+00> : vector<2x512xf32>
    %318 = tpu.matmul %305, %317, %cst_166 {dimension_numbers = #tpu.dot_dimension_numbers<[1], [0], [0], [1], [0, 0, 1, 1], [], []>} : vector<2x128xf32>, vector<128x512xf32>, vector<2x512xf32> -> vector<2x512xf32>
    %319 = arith.addf %315, %318 : vector<2x512xf32>
    %c2_167 = arith.constant 2 : index
    %c0_168 = arith.constant 0 : index
    %c0_169 = arith.constant 0 : index
    %320 = vector.load %arg6[%c2_167, %c0_168, %c0_169] : memref<3x1x512xf32, #tpu.memory_space<vmem>>, vector<1x1x512xf32>
    %321 = vector.shape_cast %320 : vector<1x1x512xf32> to vector<1x512xf32>
    %322 = vector.broadcast %321 : vector<1x512xf32> to vector<2x512xf32>
    %323 = arith.addf %319, %322 : vector<2x512xf32>
    %324 = vector.extract_strided_slice %323 {offsets = [0, 0], sizes = [2, 128], strides = [1, 1]} : vector<2x512xf32> to vector<2x128xf32>
    %325 = arith.negf %324 : vector<2x128xf32>
    %326 = math.exp %325 : vector<2x128xf32>
    %cst_170 = arith.constant 1.000000e+00 : f32
    %327 = vector.broadcast %cst_170 : f32 to vector<2x128xf32>
    %328 = arith.addf %327, %326 : vector<2x128xf32>
    %329 = arith.divf %327, %328 : vector<2x128xf32>
    %330 = vector.extract_strided_slice %323 {offsets = [0, 128], sizes = [2, 128], strides = [1, 1]} : vector<2x512xf32> to vector<2x128xf32>
    %331 = arith.negf %330 : vector<2x128xf32>
    %332 = math.exp %331 : vector<2x128xf32>
    %cst_171 = arith.constant 1.000000e+00 : f32
    %333 = vector.broadcast %cst_171 : f32 to vector<2x128xf32>
    %334 = arith.addf %333, %332 : vector<2x128xf32>
    %335 = arith.divf %333, %334 : vector<2x128xf32>
    %336 = vector.extract_strided_slice %323 {offsets = [0, 256], sizes = [2, 128], strides = [1, 1]} : vector<2x512xf32> to vector<2x128xf32>
    %337 = math.tanh %336 : vector<2x128xf32>
    %338 = vector.extract_strided_slice %323 {offsets = [0, 384], sizes = [2, 128], strides = [1, 1]} : vector<2x512xf32> to vector<2x128xf32>
    %339 = arith.negf %338 : vector<2x128xf32>
    %340 = math.exp %339 : vector<2x128xf32>
    %cst_172 = arith.constant 1.000000e+00 : f32
    %341 = vector.broadcast %cst_172 : f32 to vector<2x128xf32>
    %342 = arith.addf %341, %340 : vector<2x128xf32>
    %343 = arith.divf %341, %342 : vector<2x128xf32>
    %344 = arith.mulf %335, %303 : vector<2x128xf32>
    %345 = arith.mulf %329, %337 : vector<2x128xf32>
    %346 = arith.addf %344, %345 : vector<2x128xf32>
    %347 = math.tanh %346 : vector<2x128xf32>
    %348 = arith.mulf %343, %347 : vector<2x128xf32>
    %349 = arith.index_cast %c1_i32_156 : i32 to index
    %c0_173 = arith.constant 0 : index
    %c0_174 = arith.constant 0 : index
    %350 = vector.load %arg11[%349, %c0_173, %c0_174] : memref<2x2x128xf32, #tpu.memory_space<vmem>>, vector<1x2x128xf32>
    %351 = vector.shape_cast %350 : vector<1x2x128xf32> to vector<2x128xf32>
    %352 = vector.shape_cast %348 : vector<2x128xf32> to vector<1x2x128xf32>
    tpu.vector_store %arg11[%349, %c0_173, %c0_174], %352 {strides = array<i32>} : memref<2x2x128xf32, #tpu.memory_space<vmem>>, vector<1x2x128xf32>,
    %c2_i32_175 = arith.constant 2 : i32
    %c0_176 = arith.constant 0 : index
    %c0_177 = arith.constant 0 : index
    %c0_178 = arith.constant 0 : index
    %353 = vector.load %arg11[%c0_176, %c0_177, %c0_178] : memref<2x2x128xf32, #tpu.memory_space<vmem>>, vector<2x2x128xf32>
    %c0_179 = arith.constant 0 : index
    %c0_180 = arith.constant 0 : index
    %c0_181 = arith.constant 0 : index
    %354 = vector.load %arg9[%c0_179, %c0_180, %c0_181] : memref<2x2x128xf32, #tpu.memory_space<vmem>>, vector<2x2x128xf32>
    tpu.vector_store %arg9[%c0_179, %c0_180, %c0_181], %353 {strides = array<i32>} : memref<2x2x128xf32, #tpu.memory_space<vmem>>, vector<2x2x128xf32>,
    return
  }
  func.func @transform_0(%arg0: i32) -> (i32, i32) {
    %c0_i32 = arith.constant 0 : i32
    %c0_i32_0 = arith.constant 0 : i32
    %c0_i32_1 = arith.constant 0 : i32
    return %c0_i32, %c0_i32_0 : i32, i32
  }
  func.func @transform_1(%arg0: i32) -> (i32, i32) {
    %c0_i32 = arith.constant 0 : i32
    %c0_i32_0 = arith.constant 0 : i32
    %c0_i32_1 = arith.constant 0 : i32
    return %c0_i32, %c0_i32_0 : i32, i32
  }
  func.func @transform_2(%arg0: i32) -> (i32, i32) {
    %c0_i32 = arith.constant 0 : i32
    %c0_i32_0 = arith.constant 0 : i32
    %c0_i32_1 = arith.constant 0 : i32
    return %c0_i32, %c0_i32_0 : i32, i32
  }
  func.func @transform_3(%arg0: i32) -> (i32, i32, i32) {
    %c0_i32 = arith.constant 0 : i32
    %c0_i32_0 = arith.constant 0 : i32
    %c0_i32_1 = arith.constant 0 : i32
    %c0_i32_2 = arith.constant 0 : i32
    return %c0_i32, %c0_i32_0, %c0_i32_1 : i32, i32, i32
  }
  func.func @transform_4(%arg0: i32) -> (i32, i32, i32) {
    %c0_i32 = arith.constant 0 : i32
    %c0_i32_0 = arith.constant 0 : i32
    %c0_i32_1 = arith.constant 0 : i32
    %c0_i32_2 = arith.constant 0 : i32
    return %c0_i32, %c0_i32_0, %c0_i32_1 : i32, i32, i32
  }
  func.func @transform_5(%arg0: i32) -> (i32, i32, i32) {
    %c0_i32 = arith.constant 0 : i32
    %c0_i32_0 = arith.constant 0 : i32
    %c0_i32_1 = arith.constant 0 : i32
    %c0_i32_2 = arith.constant 0 : i32
    return %c0_i32, %c0_i32_0, %c0_i32_1 : i32, i32, i32
  }
  func.func @transform_6(%arg0: i32) -> (i32, i32, i32) {
    %c0_i32 = arith.constant 0 : i32
    %c0_i32_0 = arith.constant 0 : i32
    %c0_i32_1 = arith.constant 0 : i32
    %c0_i32_2 = arith.constant 0 : i32
    return %c0_i32, %c0_i32_0, %c0_i32_1 : i32, i32, i32
  }
  func.func @transform_7(%arg0: i32) -> (i32, i32, i32) {
    %c0_i32 = arith.constant 0 : i32
    %c0_i32_0 = arith.constant 0 : i32
    %c0_i32_1 = arith.constant 0 : i32
    %c0_i32_2 = arith.constant 0 : i32
    return %c0_i32, %c0_i32_0, %c0_i32_1 : i32, i32, i32
  }
  func.func @transform_8(%arg0: i32) -> (i32, i32, i32) {
    %c0_i32 = arith.constant 0 : i32
    %c0_i32_0 = arith.constant 0 : i32
    %c0_i32_1 = arith.constant 0 : i32
    %c0_i32_2 = arith.constant 0 : i32
    return %c0_i32, %c0_i32_0, %c0_i32_1 : i32, i32, i32
  }
}

module attributes {stable_mosaic.version = 11 : i64} {
  func.func @_tail_kernel(%arg0: i32, %arg1: memref<32x3xf32, #tpu.memory_space<vmem>>, %arg2: memref<1x2x128xf32, #tpu.memory_space<vmem>>, %arg3: memref<472x128xf32, #tpu.memory_space<vmem>>, %arg4: memref<16x128xf32, #tpu.memory_space<vmem>>, %arg5: memref<32x8xf32, #tpu.memory_space<vmem>>, %arg6: memref<1x2x51xf32, #tpu.memory_space<vmem>>, %arg7: memref<32x64xf32, #tpu.memory_space<vmem>>) attributes {dimension_semantics = [#tpu.dimension_semantics<parallel>], iteration_bounds = array<i64: 2>, scalar_prefetch = 0 : i64, scratch_operands = 1 : i64, tpu.core_type = #tpu.core_type<tc>, window_params = [{transform_indices = @transform_0, window_bounds = array<i64: 32, 3>}, {transform_indices = @transform_1, window_bounds = array<i64: 1, 2, 128>}, {pipeline_mode = #tpu.pipeline_mode<synchronous>, transform_indices = @transform_2, window_bounds = array<i64: 472, 128>}, {pipeline_mode = #tpu.pipeline_mode<synchronous>, transform_indices = @transform_3, window_bounds = array<i64: 16, 128>}, {transform_indices = @transform_4, window_bounds = array<i64: 32, 8>}, {transform_indices = @transform_5, window_bounds = array<i64: 1, 2, 51>}]} {
    %c0 = arith.constant 0 : index
    %c0_0 = arith.constant 0 : index
    %0 = vector.load %arg1[%c0, %c0_0] : memref<32x3xf32, #tpu.memory_space<vmem>>, vector<32x3xf32>
    %c0_1 = arith.constant 0 : index
    %c0_2 = arith.constant 0 : index
    %c0_3 = arith.constant 0 : index
    %1 = vector.load %arg2[%c0_1, %c0_2, %c0_3] : memref<1x2x128xf32, #tpu.memory_space<vmem>>, vector<1x2x128xf32>
    %2 = vector.shape_cast %1 : vector<1x2x128xf32> to vector<2x128xf32>
    %c0_4 = arith.constant 0 : index
    %c0_5 = arith.constant 0 : index
    %3 = vector.load %arg3[%c0_4, %c0_5] : memref<472x128xf32, #tpu.memory_space<vmem>>, vector<3x70xf32>
    %cst = arith.constant dense<0.000000e+00> : vector<32x70xf32>
    %4 = tpu.matmul %0, %3, %cst {dimension_numbers = #tpu.dot_dimension_numbers<[1], [0], [0], [1], [0, 0, 1, 1], [], []>} : vector<32x3xf32>, vector<3x70xf32>, vector<32x70xf32> -> vector<32x70xf32>
    %5 = vector.extract_strided_slice %4 {offsets = [0, 0], sizes = [32, 64], strides = [1, 1]} : vector<32x70xf32> to vector<32x64xf32>
    %6 = vector.extract_strided_slice %4 {offsets = [0, 64], sizes = [32, 6], strides = [1, 1]} : vector<32x70xf32> to vector<32x6xf32>
    %c0_6 = arith.constant 0 : index
    %c0_7 = arith.constant 0 : index
    %7 = vector.load %arg4[%c0_6, %c0_7] : memref<16x128xf32, #tpu.memory_space<vmem>>, vector<1x6xf32>
    %8 = vector.broadcast %7 : vector<1x6xf32> to vector<32x6xf32>
    %9 = arith.addf %6, %8 : vector<32x6xf32>
    %cst_8 = arith.constant 0.000000e+00 : f32
    %10 = vector.broadcast %cst_8 : f32 to vector<32x6xf32>
    %11 = arith.maximumf %9, %10 : vector<32x6xf32>
    %c8 = arith.constant 8 : index
    %c0_9 = arith.constant 0 : index
    %12 = vector.load %arg3[%c8, %c0_9] : memref<472x128xf32, #tpu.memory_space<vmem>>, vector<6x12xf32>
    %cst_10 = arith.constant dense<0.000000e+00> : vector<32x12xf32>
    %13 = tpu.matmul %11, %12, %cst_10 {dimension_numbers = #tpu.dot_dimension_numbers<[1], [0], [0], [1], [0, 0, 1, 1], [], []>} : vector<32x6xf32>, vector<6x12xf32>, vector<32x12xf32> -> vector<32x12xf32>
    %c1 = arith.constant 1 : index
    %c0_11 = arith.constant 0 : index
    %14 = vector.load %arg4[%c1, %c0_11] : memref<16x128xf32, #tpu.memory_space<vmem>>, vector<1x12xf32>
    %15 = vector.broadcast %14 : vector<1x12xf32> to vector<32x12xf32>
    %16 = arith.addf %13, %15 : vector<32x12xf32>
    %cst_12 = arith.constant 0.000000e+00 : f32
    %17 = vector.broadcast %cst_12 : f32 to vector<32x12xf32>
    %18 = arith.maximumf %16, %17 : vector<32x12xf32>
    %c16 = arith.constant 16 : index
    %c0_13 = arith.constant 0 : index
    %19 = vector.load %arg3[%c16, %c0_13] : memref<472x128xf32, #tpu.memory_space<vmem>>, vector<12x24xf32>
    %cst_14 = arith.constant dense<0.000000e+00> : vector<32x24xf32>
    %20 = tpu.matmul %18, %19, %cst_14 {dimension_numbers = #tpu.dot_dimension_numbers<[1], [0], [0], [1], [0, 0, 1, 1], [], []>} : vector<32x12xf32>, vector<12x24xf32>, vector<32x24xf32> -> vector<32x24xf32>
    %c2 = arith.constant 2 : index
    %c0_15 = arith.constant 0 : index
    %21 = vector.load %arg4[%c2, %c0_15] : memref<16x128xf32, #tpu.memory_space<vmem>>, vector<1x24xf32>
    %22 = vector.broadcast %21 : vector<1x24xf32> to vector<32x24xf32>
    %23 = arith.addf %20, %22 : vector<32x24xf32>
    %cst_16 = arith.constant 0.000000e+00 : f32
    %24 = vector.broadcast %cst_16 : f32 to vector<32x24xf32>
    %25 = arith.maximumf %23, %24 : vector<32x24xf32>
    %c56 = arith.constant 56 : index
    %c0_17 = arith.constant 0 : index
    %26 = vector.load %arg3[%c56, %c0_17] : memref<472x128xf32, #tpu.memory_space<vmem>>, vector<128x64xf32>
    %cst_18 = arith.constant dense<0.000000e+00> : vector<2x64xf32>
    %27 = tpu.matmul %2, %26, %cst_18 {dimension_numbers = #tpu.dot_dimension_numbers<[1], [0], [0], [1], [0, 0, 1, 1], [], []>} : vector<2x128xf32>, vector<128x64xf32>, vector<2x64xf32> -> vector<2x64xf32>
    %c32 = arith.constant 32 : index
    %c0_19 = arith.constant 0 : index
    %28 = vector.load %arg3[%c32, %c0_19] : memref<472x128xf32, #tpu.memory_space<vmem>>, vector<24x64xf32>
    %cst_20 = arith.constant dense<0.000000e+00> : vector<32x64xf32>
    %29 = tpu.matmul %25, %28, %cst_20 {dimension_numbers = #tpu.dot_dimension_numbers<[1], [0], [0], [1], [0, 0, 1, 1], [], []>} : vector<32x24xf32>, vector<24x64xf32>, vector<32x64xf32> -> vector<32x64xf32>
    %30 = arith.addf %5, %29 : vector<32x64xf32>
    %c3 = arith.constant 3 : index
    %c0_21 = arith.constant 0 : index
    %31 = vector.load %arg4[%c3, %c0_21] : memref<16x128xf32, #tpu.memory_space<vmem>>, vector<1x64xf32>
    %32 = vector.broadcast %31 : vector<1x64xf32> to vector<32x64xf32>
    %33 = arith.addf %30, %32 : vector<32x64xf32>
    %34 = vector.shape_cast %33 : vector<32x64xf32> to vector<2x16x64xf32>
    %35 = vector.shape_cast %27 : vector<2x64xf32> to vector<2x1x64xf32>
    %36 = vector.broadcast %35 : vector<2x1x64xf32> to vector<2x16x64xf32>
    %37 = arith.addf %34, %36 : vector<2x16x64xf32>
    %cst_22 = arith.constant 0.000000e+00 : f32
    %38 = vector.broadcast %cst_22 : f32 to vector<2x16x64xf32>
    %39 = arith.maximumf %37, %38 : vector<2x16x64xf32>
    %40 = vector.shape_cast %39 : vector<2x16x64xf32> to vector<32x64xf32>
    %c184 = arith.constant 184 : index
    %c0_23 = arith.constant 0 : index
    %41 = vector.load %arg3[%c184, %c0_23] : memref<472x128xf32, #tpu.memory_space<vmem>>, vector<64x96xf32>
    %cst_24 = arith.constant dense<0.000000e+00> : vector<32x96xf32>
    %42 = tpu.matmul %40, %41, %cst_24 {dimension_numbers = #tpu.dot_dimension_numbers<[1], [0], [0], [1], [0, 0, 1, 1], [], []>} : vector<32x64xf32>, vector<64x96xf32>, vector<32x96xf32> -> vector<32x96xf32>
    %c4 = arith.constant 4 : index
    %c0_25 = arith.constant 0 : index
    %43 = vector.load %arg4[%c4, %c0_25] : memref<16x128xf32, #tpu.memory_space<vmem>>, vector<1x96xf32>
    %44 = vector.broadcast %43 : vector<1x96xf32> to vector<32x96xf32>
    %45 = arith.addf %42, %44 : vector<32x96xf32>
    %46 = vector.extract_strided_slice %45 {offsets = [0, 64], sizes = [32, 32], strides = [1, 1]} : vector<32x96xf32> to vector<32x32xf32>
    %47 = vector.shape_cast %46 : vector<32x32xf32> to vector<2x16x32xf32>
    %48 = vector.extract_strided_slice %45 {offsets = [0, 0], sizes = [32, 64], strides = [1, 1]} : vector<32x96xf32> to vector<32x64xf32>
    %c0_26 = arith.constant 0 : index
    %c0_27 = arith.constant 0 : index
    %49 = vector.load %arg7[%c0_26, %c0_27] : memref<32x64xf32, #tpu.memory_space<vmem>>, vector<32x64xf32>
    tpu.vector_store %arg7[%c0_26, %c0_27], %48 {strides = array<i32>} : memref<32x64xf32, #tpu.memory_space<vmem>>, vector<32x64xf32>,
    %c0_28 = arith.constant 0 : index
    %c0_29 = arith.constant 0 : index
    %50 = tpu.strided_load %arg7[%c0_28, %c0_29] {strides = array<i32: 2, 1>} : memref<32x64xf32, #tpu.memory_space<vmem>>, vector<16x64xf32>
    %c1_30 = arith.constant 1 : index
    %c0_31 = arith.constant 0 : index
    %51 = tpu.strided_load %arg7[%c1_30, %c0_31] {strides = array<i32: 2, 1>} : memref<32x64xf32, #tpu.memory_space<vmem>>, vector<16x64xf32>
    %52 = arith.maximumf %50, %51 : vector<16x64xf32>
    %53 = vector.extract_strided_slice %52 {offsets = [0, 0], sizes = [16, 32], strides = [1, 1]} : vector<16x64xf32> to vector<16x32xf32>
    %54 = vector.shape_cast %53 : vector<16x32xf32> to vector<2x8x32xf32>
    %55 = vector.extract_strided_slice %52 {offsets = [0, 32], sizes = [16, 32], strides = [1, 1]} : vector<16x64xf32> to vector<16x32xf32>
    %56 = vector.shape_cast %55 : vector<16x32xf32> to vector<2x8x32xf32>
    "tpu.trace_start"() <{level = 10 : i32, message = "npc,nqc->npq"}> : () -> ()
    %cst_32 = arith.constant dense<0.000000e+00> : vector<2x16x8xf32>
    %57 = tpu.matmul %47, %54, %cst_32 {dimension_numbers = #tpu.dot_dimension_numbers<[2], [2], [1], [1], [0, 0, 0, 1, 1, 1], [0], [0]>} : vector<2x16x32xf32>, vector<2x8x32xf32>, vector<2x16x8xf32> -> vector<2x16x8xf32>
    "tpu.trace_stop"() : () -> ()
    %cst_33 = arith.constant 1.250000e-01 : f32
    %58 = vector.broadcast %cst_33 : f32 to vector<2x16x8xf32>
    %59 = arith.mulf %57, %58 : vector<2x16x8xf32>
    "tpu.trace_start"() <{level = 10 : i32, message = "npq,nqc->npc"}> : () -> ()
    %cst_34 = arith.constant dense<0.000000e+00> : vector<2x16x32xf32>
    %60 = tpu.matmul %59, %56, %cst_34 {dimension_numbers = #tpu.dot_dimension_numbers<[2], [1], [1], [2], [0, 0, 0, 1, 1, 2], [0], [0]>} : vector<2x16x8xf32>, vector<2x8x32xf32>, vector<2x16x32xf32> -> vector<2x16x32xf32>
    "tpu.trace_stop"() : () -> ()
    %61 = vector.shape_cast %60 : vector<2x16x32xf32> to vector<32x32xf32>
    %c248 = arith.constant 248 : index
    %c0_35 = arith.constant 0 : index
    %62 = vector.load %arg3[%c248, %c0_35] : memref<472x128xf32, #tpu.memory_space<vmem>>, vector<32x64xf32>
    %cst_36 = arith.constant dense<0.000000e+00> : vector<32x64xf32>
    %63 = tpu.matmul %61, %62, %cst_36 {dimension_numbers = #tpu.dot_dimension_numbers<[1], [0], [0], [1], [0, 0, 1, 1], [], []>} : vector<32x32xf32>, vector<32x64xf32>, vector<32x64xf32> -> vector<32x64xf32>
    %c5 = arith.constant 5 : index
    %c0_37 = arith.constant 0 : index
    %64 = vector.load %arg4[%c5, %c0_37] : memref<16x128xf32, #tpu.memory_space<vmem>>, vector<1x64xf32>
    %65 = vector.broadcast %64 : vector<1x64xf32> to vector<32x64xf32>
    %66 = arith.addf %63, %65 : vector<32x64xf32>
    %67 = arith.addf %66, %40 : vector<32x64xf32>
    %c280 = arith.constant 280 : index
    %c0_38 = arith.constant 0 : index
    %68 = vector.load %arg3[%c280, %c0_38] : memref<472x128xf32, #tpu.memory_space<vmem>>, vector<64x9xf32>
    %cst_39 = arith.constant dense<0.000000e+00> : vector<32x9xf32>
    %69 = tpu.matmul %67, %68, %cst_39 {dimension_numbers = #tpu.dot_dimension_numbers<[1], [0], [0], [1], [0, 0, 1, 1], [], []>} : vector<32x64xf32>, vector<64x9xf32>, vector<32x9xf32> -> vector<32x9xf32>
    %c6 = arith.constant 6 : index
    %c0_40 = arith.constant 0 : index
    %70 = vector.load %arg4[%c6, %c0_40] : memref<16x128xf32, #tpu.memory_space<vmem>>, vector<1x9xf32>
    %71 = vector.broadcast %70 : vector<1x9xf32> to vector<32x9xf32>
    %72 = arith.addf %69, %71 : vector<32x9xf32>
    %73 = vector.extract_strided_slice %72 {offsets = [0, 0], sizes = [32, 8], strides = [1, 1]} : vector<32x9xf32> to vector<32x8xf32>
    %cst_41 = arith.constant dense<0xFF800000> : vector<32xf32>
    %74 = vector.multi_reduction <maximumf>, %73, %cst_41 [1] : vector<32x8xf32> to vector<32xf32>
    %75 = vector.shape_cast %74 : vector<32xf32> to vector<32x1xf32>
    %76 = vector.broadcast %75 : vector<32x1xf32> to vector<32x8xf32>
    %77 = arith.subf %73, %76 : vector<32x8xf32>
    %78 = math.exp %77 : vector<32x8xf32>
    %cst_42 = arith.constant dense<0.000000e+00> : vector<32xf32>
    %79 = vector.multi_reduction <add>, %78, %cst_42 [1] : vector<32x8xf32> to vector<32xf32>
    %80 = vector.shape_cast %79 : vector<32xf32> to vector<32x1xf32>
    %81 = math.log %80 : vector<32x1xf32>
    %82 = vector.broadcast %81 : vector<32x1xf32> to vector<32x8xf32>
    %83 = arith.subf %77, %82 : vector<32x8xf32>
    %c0_43 = arith.constant 0 : index
    %c0_44 = arith.constant 0 : index
    %84 = vector.load %arg5[%c0_43, %c0_44] : memref<32x8xf32, #tpu.memory_space<vmem>>, vector<32x8xf32>
    tpu.vector_store %arg5[%c0_43, %c0_44], %83 {strides = array<i32>} : memref<32x8xf32, #tpu.memory_space<vmem>>, vector<32x8xf32>,
    %85 = vector.extract_strided_slice %72 {offsets = [0, 8], sizes = [32, 1], strides = [1, 1]} : vector<32x9xf32> to vector<32x1xf32>
    %86 = vector.shape_cast %85 : vector<32x1xf32> to vector<2x16x1xf32>
    %cst_45 = arith.constant dense<0xFF800000> : vector<2x1xf32>
    %87 = vector.multi_reduction <maximumf>, %86, %cst_45 [1] : vector<2x16x1xf32> to vector<2x1xf32>
    %88 = vector.shape_cast %87 : vector<2x1xf32> to vector<2x1x1xf32>
    %89 = vector.broadcast %88 : vector<2x1x1xf32> to vector<2x16x1xf32>
    %90 = arith.subf %86, %89 : vector<2x16x1xf32>
    %91 = math.exp %90 : vector<2x16x1xf32>
    %cst_46 = arith.constant dense<0.000000e+00> : vector<2x1xf32>
    %92 = vector.multi_reduction <add>, %91, %cst_46 [1] : vector<2x16x1xf32> to vector<2x1xf32>
    %93 = vector.shape_cast %92 : vector<2x1xf32> to vector<2x1x1xf32>
    %94 = vector.broadcast %93 : vector<2x1x1xf32> to vector<2x16x1xf32>
    %95 = arith.divf %91, %94 : vector<2x16x1xf32>
    %96 = vector.shape_cast %67 : vector<32x64xf32> to vector<2x16x64xf32>
    %97 = vector.broadcast %95 : vector<2x16x1xf32> to vector<2x16x64xf32>
    %98 = arith.mulf %96, %97 : vector<2x16x64xf32>
    %cst_47 = arith.constant dense<0.000000e+00> : vector<2x64xf32>
    %99 = vector.multi_reduction <add>, %98, %cst_47 [1] : vector<2x16x64xf32> to vector<2x64xf32>
    %c344 = arith.constant 344 : index
    %c0_48 = arith.constant 0 : index
    %100 = vector.load %arg3[%c344, %c0_48] : memref<472x128xf32, #tpu.memory_space<vmem>>, vector<64x64xf32>
    %cst_49 = arith.constant dense<0.000000e+00> : vector<2x64xf32>
    %101 = tpu.matmul %99, %100, %cst_49 {dimension_numbers = #tpu.dot_dimension_numbers<[1], [0], [0], [1], [0, 0, 1, 1], [], []>} : vector<2x64xf32>, vector<64x64xf32>, vector<2x64xf32> -> vector<2x64xf32>
    %c7 = arith.constant 7 : index
    %c0_50 = arith.constant 0 : index
    %102 = vector.load %arg4[%c7, %c0_50] : memref<16x128xf32, #tpu.memory_space<vmem>>, vector<1x64xf32>
    %103 = vector.broadcast %102 : vector<1x64xf32> to vector<2x64xf32>
    %104 = arith.addf %101, %103 : vector<2x64xf32>
    %cst_51 = arith.constant 0.000000e+00 : f32
    %105 = vector.broadcast %cst_51 : f32 to vector<2x64xf32>
    %106 = arith.maximumf %104, %105 : vector<2x64xf32>
    %c408 = arith.constant 408 : index
    %c0_52 = arith.constant 0 : index
    %107 = vector.load %arg3[%c408, %c0_52] : memref<472x128xf32, #tpu.memory_space<vmem>>, vector<64x51xf32>
    %cst_53 = arith.constant dense<0.000000e+00> : vector<2x51xf32>
    %108 = tpu.matmul %106, %107, %cst_53 {dimension_numbers = #tpu.dot_dimension_numbers<[1], [0], [0], [1], [0, 0, 1, 1], [], []>} : vector<2x64xf32>, vector<64x51xf32>, vector<2x51xf32> -> vector<2x51xf32>
    %c8_54 = arith.constant 8 : index
    %c0_55 = arith.constant 0 : index
    %109 = vector.load %arg4[%c8_54, %c0_55] : memref<16x128xf32, #tpu.memory_space<vmem>>, vector<1x51xf32>
    %110 = vector.broadcast %109 : vector<1x51xf32> to vector<2x51xf32>
    %111 = arith.addf %108, %110 : vector<2x51xf32>
    %c0_56 = arith.constant 0 : index
    %c0_57 = arith.constant 0 : index
    %c0_58 = arith.constant 0 : index
    %112 = vector.load %arg6[%c0_56, %c0_57, %c0_58] : memref<1x2x51xf32, #tpu.memory_space<vmem>>, vector<1x2x51xf32>
    %113 = vector.shape_cast %112 : vector<1x2x51xf32> to vector<2x51xf32>
    %114 = vector.shape_cast %111 : vector<2x51xf32> to vector<1x2x51xf32>
    tpu.vector_store %arg6[%c0_56, %c0_57, %c0_58], %114 {strides = array<i32>} : memref<1x2x51xf32, #tpu.memory_space<vmem>>, vector<1x2x51xf32>,
    return
  }
  func.func @transform_0(%arg0: i32) -> (i32, i32) {
    %c0_i32 = arith.constant 0 : i32
    %c0_i32_0 = arith.constant 0 : i32
    return %arg0, %c0_i32 : i32, i32
  }
  func.func @transform_1(%arg0: i32) -> (i32, i32, i32) {
    %c0_i32 = arith.constant 0 : i32
    %c0_i32_0 = arith.constant 0 : i32
    %c0_i32_1 = arith.constant 0 : i32
    return %arg0, %c0_i32, %c0_i32_0 : i32, i32, i32
  }
  func.func @transform_2(%arg0: i32) -> (i32, i32) {
    %c0_i32 = arith.constant 0 : i32
    %c0_i32_0 = arith.constant 0 : i32
    %c0_i32_1 = arith.constant 0 : i32
    return %c0_i32, %c0_i32_0 : i32, i32
  }
  func.func @transform_3(%arg0: i32) -> (i32, i32) {
    %c0_i32 = arith.constant 0 : i32
    %c0_i32_0 = arith.constant 0 : i32
    %c0_i32_1 = arith.constant 0 : i32
    return %c0_i32, %c0_i32_0 : i32, i32
  }
  func.func @transform_4(%arg0: i32) -> (i32, i32) {
    %c0_i32 = arith.constant 0 : i32
    %c0_i32_0 = arith.constant 0 : i32
    return %arg0, %c0_i32 : i32, i32
  }
  func.func @transform_5(%arg0: i32) -> (i32, i32, i32) {
    %c0_i32 = arith.constant 0 : i32
    %c0_i32_0 = arith.constant 0 : i32
    %c0_i32_1 = arith.constant 0 : i32
    return %arg0, %c0_i32, %c0_i32_0 : i32, i32, i32
  }
}

</mosaic_0001>

<llo_original>
// kernel: parsing_pose_net_forward.3
$region0: #{parsing_pose_net_forward.3}
  #allocation0 [shape = 'u32[]', space=smem, size = 0x4, offset = 0x4, fixed_abs, tag = 'smem constant byte address 0x4 - core index']
  #allocation1 [shape = 'u32[144,128]{1,0:T(1,128)}', space=vmem, size = 0x12000, scoped, tag = 'internal scratch']
  #allocation2 [shape = 'f32[32,64]{1,0:T(8,128)}', space=vmem, size = 0x4000, scoped, tag = 'scratch operand']
  %s0 = inlined_call_operand.vmem [shape: f32[64,3], index: 0, kind: input, shape index: {}]
  %s1 = inlined_call_operand.vmem [shape: f32[2,2,128], index: 1, kind: input, shape index: {}]
  %s2 = inlined_call_operand.vmem [shape: f32[472,128], index: 2, kind: input, shape index: {}]
  %s3 = inlined_call_operand.vmem [shape: f32[16,128], index: 3, kind: input, shape index: {}]
  %s4 = inlined_call_operand.vmem [shape: f32[64,8], index: 4, kind: output, shape index: {0}]
  %s5 = inlined_call_operand.vmem [shape: f32[2,2,51], index: 5, kind: output, shape index: {1}]
  %6 = xla_tuple %s4, %s5
  %s7 = sld [smem:[#allocation0]]
  $region57: #{parsing_pose_net_forward.3} parent=0
    _
  %s9 = ssub.s32 1, %s7
  %s10 = scalar_select 0, %s9, %s7
  loop: start=0, step=1, limit=4
  $region2: #{parsing_pose_net_forward.3} parent=0 // loop_pre_header
    _
  $region3: #{parsing_pose_net_forward.3} parent=0 // loop_header
    %s12 = sphi 0, %s16
    %p13 = scmp.ge.s32.totalorder %s12, 4
    %s22 = sphi 0, %s24
    %s25 = sphi 0, %s22
    %s26 = sphi 0, %s25
    %s42 = sphi 0, %s26
    %s48 = sphi 0, %s50
    %s51 = sphi 0, %s48
    %s52 = sphi 0, %s51
    %s68 = sphi 0, %s52
    %s72 = sphi 0, %s72
    %s74 = sphi 0, %s72
    %s75 = sphi 0, %s74
    %s89 = sphi 0, %s75
    %s93 = sphi 0, %s93
    %s95 = sphi 0, %s93
    %s96 = sphi 0, %s95
    %s110 = sphi 0, %s96
    %s116 = sphi 0, %s118
    %s119 = sphi 0, %s116
    %s120 = sphi 0, %s119
    %s136 = sphi 0, %s120
    %s142 = sphi 0, %s144
    %s145 = sphi 0, %s142
    %s146 = sphi 0, %s145
    %s162 = sphi 0, %s146
  $region4: #{parsing_pose_net_forward.3} parent=0 // loop_header_branch
    %15 = sbr.rel (%p13) target = $region8
  $region5: #{parsing_pose_net_forward.3} parent=0 // loop_body
    %s17 = ssub.s32 %s12, 1
    %s18 = ssub.s32 %s12, 2
    %s19 = sadd.s32 %s12, 1
    %s20 = ssub.s32 %s12, %s19
    %p21 = scmp.eq.s32.totalorder %s20, 0
    %s23 = sadd.s32 %s22, 1
    %s24 = scalar_select %p21, %s22, %s23
    %p27 = pneg %p21
    %p28 = scmp.eq.s32.totalorder %s12, 1
    %p29 = por %p27, %p28
    %p30 = scmp.ne.s32.totalorder %s22, %s25
    %p31 = scmp.eq.s32.totalorder %s12, 0
    %p32 = por %p30, %p31
    %p33 = scmp.ne.s32.totalorder %s22, %s25
    %p34 = scmp.eq.s32.totalorder %s17, 1
    %p35 = por %p33, %p34
    %p36 = scmp.ne.s32.totalorder %s25, %s26
    %p37 = scmp.eq.s32.totalorder %s17, 0
    %p38 = por %p36, %p37
    %p39 = scmp.ne.s32.totalorder %s25, %s26
    %p40 = scmp.eq.s32.totalorder %s18, 1
    %p41 = por %p39, %p40
    %p43 = scmp.ne.s32.totalorder %s26, %s42
    %p44 = scmp.eq.s32.totalorder %s18, 0
    %p45 = por %p43, %p44
    %s46 = ssub.s32 %s12, %s19
    %p47 = scmp.eq.s32.totalorder %s46, 0
    %s49 = sadd.s32 %s48, 1
    %s50 = scalar_select %p47, %s48, %s49
    %p53 = pneg %p47
    %p54 = scmp.eq.s32.totalorder %s12, 1
    %p55 = por %p53, %p54
    %p56 = scmp.ne.s32.totalorder %s48, %s51
    %p57 = scmp.eq.s32.totalorder %s12, 0
    %p58 = por %p56, %p57
    %p59 = scmp.ne.s32.totalorder %s48, %s51
    %p60 = scmp.eq.s32.totalorder %s17, 1
    %p61 = por %p59, %p60
    %p62 = scmp.ne.s32.totalorder %s51, %s52
    %p63 = scmp.eq.s32.totalorder %s17, 0
    %p64 = por %p62, %p63
    %p65 = scmp.ne.s32.totalorder %s51, %s52
    %p66 = scmp.eq.s32.totalorder %s18, 1
    %p67 = por %p65, %p66
    %p69 = scmp.ne.s32.totalorder %s52, %s68
    %p70 = scmp.eq.s32.totalorder %s18, 0
    %p71 = por %p69, %p70
    %s73 = sadd.s32 %s72, 1
    %p76 = scmp.eq.s32.totalorder %s12, 1
    %p77 = scmp.ne.s32.totalorder %s72, %s74
    %p78 = scmp.eq.s32.totalorder %s12, 0
    %p79 = por %p77, %p78
    %p80 = scmp.ne.s32.totalorder %s72, %s74
    %p81 = scmp.eq.s32.totalorder %s17, 1
    %p82 = por %p80, %p81
    %p83 = scmp.ne.s32.totalorder %s74, %s75
    %p84 = scmp.eq.s32.totalorder %s17, 0
    %p85 = por %p83, %p84
    %p86 = scmp.ne.s32.totalorder %s74, %s75
    %p87 = scmp.eq.s32.totalorder %s18, 1
    %p88 = por %p86, %p87
    %p90 = scmp.ne.s32.totalorder %s75, %s89
    %p91 = scmp.eq.s32.totalorder %s18, 0
    %p92 = por %p90, %p91
    %s94 = sadd.s32 %s93, 1
    %p97 = scmp.eq.s32.totalorder %s12, 1
    %p98 = scmp.ne.s32.totalorder %s93, %s95
    %p99 = scmp.eq.s32.totalorder %s12, 0
    %p100 = por %p98, %p99
    %p101 = scmp.ne.s32.totalorder %s93, %s95
    %p102 = scmp.eq.s32.totalorder %s17, 1
    %p103 = por %p101, %p102
    %p104 = scmp.ne.s32.totalorder %s95, %s96
    %p105 = scmp.eq.s32.totalorder %s17, 0
    %p106 = por %p104, %p105
    %p107 = scmp.ne.s32.totalorder %s95, %s96
    %p108 = scmp.eq.s32.totalorder %s18, 1
    %p109 = por %p107, %p108
    %p111 = scmp.ne.s32.totalorder %s96, %s110
    %p112 = scmp.eq.s32.totalorder %s18, 0
    %p113 = por %p111, %p112
    %s114 = ssub.s32 %s12, %s19
    %p115 = scmp.eq.s32.totalorder %s114, 0
    %s117 = sadd.s32 %s116, 1
    %s118 = scalar_select %p115, %s116, %s117
    %p121 = pneg %p115
    %p122 = scmp.eq.s32.totalorder %s12, 1
    %p123 = por %p121, %p122
    %p124 = scmp.ne.s32.totalorder %s116, %s119
    %p125 = scmp.eq.s32.totalorder %s12, 0
    %p126 = por %p124, %p125
    %p127 = scmp.ne.s32.totalorder %s116, %s119
    %p128 = scmp.eq.s32.totalorder %s17, 1
    %p129 = por %p127, %p128
    %p130 = scmp.ne.s32.totalorder %s119, %s120
    %p131 = scmp.eq.s32.totalorder %s17, 0
    %p132 = por %p130, %p131
    %p133 = scmp.ne.s32.totalorder %s119, %s120
    %p134 = scmp.eq.s32.totalorder %s18, 1
    %p135 = por %p133, %p134
    %p137 = scmp.ne.s32.totalorder %s120, %s136
    %p138 = scmp.eq.s32.totalorder %s18, 0
    %p139 = por %p137, %p138
    %s140 = ssub.s32 %s12, %s19
    %p141 = scmp.eq.s32.totalorder %s140, 0
    %s143 = sadd.s32 %s142, 1
    %s144 = scalar_select %p141, %s142, %s143
    %p147 = pneg %p141
    %p148 = scmp.eq.s32.totalorder %s12, 1
    %p149 = por %p147, %p148
    %p150 = scmp.ne.s32.totalorder %s142, %s145
    %p151 = scmp.eq.s32.totalorder %s12, 0
    %p152 = por %p150, %p151
    %p153 = scmp.ne.s32.totalorder %s142, %s145
    %p154 = scmp.eq.s32.totalorder %s17, 1
    %p155 = por %p153, %p154
    %p156 = scmp.ne.s32.totalorder %s145, %s146
    %p157 = scmp.eq.s32.totalorder %s17, 0
    %p158 = por %p156, %p157
    %p159 = scmp.ne.s32.totalorder %s145, %s146
    %p160 = scmp.eq.s32.totalorder %s18, 1
    %p161 = por %p159, %p160
    %p163 = scmp.ne.s32.totalorder %s146, %s162
    %p164 = scmp.eq.s32.totalorder %s18, 0
    %p165 = por %p163, %p164
    %p166 = scmp.le.s32.totalorder 1, %s12
    %p167 = scmp.lt.s32.totalorder %s12, 3
    %p168 = pnand %p166, %p167
    %p169 = pneg %p168
    // Predicated region
    $region9: #{parsing_pose_net_forward.3} parent=5 // pred_check
      _
    $region10: #{parsing_pose_net_forward.3} parent=5 // pred_check_branch
      %171 = sbr.rel (%p168) target = $region12
    $region11: #{parsing_pose_net_forward.3} parent=5 // pred_region
      %s172 = ssub.s32 %s12, 1
      // Predicated region
      $region13: #{parsing_pose_net_forward.3} parent=11 // pred_check
        %p173 = pneg %p85
      $region14: #{parsing_pose_net_forward.3} parent=11 // pred_check_branch
        %175 = sbr.rel (%p173) target = $region16
      $region15: #{parsing_pose_net_forward.3} parent=11 // pred_region
        _
      $region16: #{parsing_pose_net_forward.3} parent=11 // pred_fallthru
        _
      // Predicated region
      $region17: #{parsing_pose_net_forward.3} parent=11 // pred_check
        %p176 = pneg %p106
      $region18: #{parsing_pose_net_forward.3} parent=11 // pred_check_branch
        %178 = sbr.rel (%p176) target = $region20
      $region19: #{parsing_pose_net_forward.3} parent=11 // pred_region
        _
      $region20: #{parsing_pose_net_forward.3} parent=11 // pred_fallthru
        _
    $region12: #{parsing_pose_net_forward.3} parent=5 // pred_fallthru
      _
    %p179 = scmp.lt.s32.totalorder %s12, 2
    // Predicated region
    $region21: #{parsing_pose_net_forward.3} parent=5 // pred_check
      %p180 = pneg %p179
    $region22: #{parsing_pose_net_forward.3} parent=5 // pred_check_branch
      %182 = sbr.rel (%p180) target = $region24
    $region23: #{parsing_pose_net_forward.3} parent=5 // pred_region
      // Predicated region
      $region25: #{parsing_pose_net_forward.3} parent=23 // pred_check
        %p183 = pneg %p32
      $region26: #{parsing_pose_net_forward.3} parent=23 // pred_check_branch
        %185 = sbr.rel (%p183) target = $region28
      $region27: #{parsing_pose_net_forward.3} parent=23 // pred_region
        %s186 = smul.u32 4, %s12
        %p187 = scmp.lt.s32.totalorder %s186, 7
        %s188 = scalar_select %p187, %s186, 7
        %s189 = smul.addr %s188, 8
        %s190 = scalar_lea.vmem %s0, %s189
        %s191 = smul.u32 4, %s12
      $region28: #{parsing_pose_net_forward.3} parent=23 // pred_fallthru
        _
      // Predicated region
      $region29: #{parsing_pose_net_forward.3} parent=23 // pred_check
        %p192 = pneg %p58
      $region30: #{parsing_pose_net_forward.3} parent=23 // pred_check_branch
        %194 = sbr.rel (%p192) target = $region32
      $region31: #{parsing_pose_net_forward.3} parent=23 // pred_region
        %p195 = scmp.lt.s32.totalorder %s12, 1
        %s196 = scalar_select %p195, %s12, 1
        %s197 = smul.addr %s196, 2
        %s198 = scalar_lea.vmem %s1, %s197
      $region32: #{parsing_pose_net_forward.3} parent=23 // pred_fallthru
        _
    $region24: #{parsing_pose_net_forward.3} parent=5 // pred_fallthru
      _
    %p199 = scmp.le.s32.totalorder 1, %s12
    %p200 = scmp.lt.s32.totalorder %s12, 3
    %p201 = pnand %p199, %p200
    %p202 = pneg %p201
    // Predicated region
    $region33: #{parsing_pose_net_forward.3} parent=5 // pred_check
      _
    $region34: #{parsing_pose_net_forward.3} parent=5 // pred_check_branch
      %204 = sbr.rel (%p201) target = $region36
    $region35: #{parsing_pose_net_forward.3} parent=5 // pred_region
      %s205 = ssub.s32 %s12, 1
      %s206 = smul.u32 4, %s17
      %p207 = scmp.lt.s32.totalorder %s206, 7
      %s208 = scalar_select %p207, %s206, 7
      %s209 = smul.addr %s208, 8
      %s210 = scalar_lea.vmem %s0, %s209
      %p211 = pneg %p38
      %p212 = pneg %p35
      %p213 = scmp.lt.s32.totalorder %s17, 1
      %s214 = scalar_select %p213, %s17, 1
      %s215 = smul.addr %s214, 2
      %s216 = scalar_lea.vmem %s1, %s215
      %p217 = pneg %p64
      %p218 = pneg %p61
      %p219 = pneg %p85
      %p220 = pneg %p82
      %p221 = pneg %p106
      %p222 = pneg %p103
      %p223 = pneg %p132
      %p224 = pneg %p129
      %s225 = smul.u32 4, %s17
      %p226 = scmp.lt.s32.totalorder %s225, 7
      %s227 = scalar_select %p226, %s225, 7
      %s228 = smul.addr %s227, 8
      %s229 = scalar_lea.vmem %s4, %s228
      %p230 = pneg %p158
      %p231 = pneg %p155
      %p232 = scmp.lt.s32.totalorder %s17, 1
      %s233 = scalar_select %p232, %s17, 1
      %s234 = smul.addr %s233, 2
      %s235 = scalar_lea.vmem %s5, %s234
      %s236 = smul.u32 4, %s17
      %p237 = scmp.lt.s32.totalorder %s236, 7
      %s238 = scalar_select %p237, %s236, 7
      %s239 = smul.addr %s238, 8
      %s240 = scalar_lea.vmem %s0, %s239
      %s241 = smul.u32 4, %s17
      %p242 = scmp.lt.s32.totalorder %s17, 1
      %s243 = scalar_select %p242, %s17, 1
      %s244 = smul.addr %s243, 2
      %s245 = scalar_lea.vmem %s1, %s244
      %s246 = smul.u32 4, %s17
      %p247 = scmp.lt.s32.totalorder %s246, 7
      %s248 = scalar_select %p247, %s246, 7
      %s249 = smul.addr %s248, 8
      %s250 = scalar_lea.vmem %s4, %s249
      %s251 = smul.u32 4, %s17
      %p252 = scmp.lt.s32.totalorder %s17, 1
      %s253 = scalar_select %p252, %s17, 1
      %s254 = smul.addr %s253, 2
      %s255 = scalar_lea.vmem %s5, %s254
      %v256 = vld [vmem:[%s240] sm:$0xff]
      %v257 = vld [vmem:[%s240 + $0x8] sm:$0xff]
      %v258 = vld [vmem:[%s240 + $0x10] sm:$0xff]
      %v259 = vld [vmem:[%s240 + $0x18] sm:$0xff]
      %v260 = vld [vmem:[%s245] sm:$0x3]
      %v261 = vld [vmem:[%s2] sm:$0x7]
      %vm262 = vcmask 23552
      %v264 = vsel %vm262, %v256, 0
      %v267 = vsel %vm262, %v257, 0
      %v270 = vsel %vm262, %v258, 0
      %v273 = vsel %vm262, %v259, 0
      %vm275 = vcmask 1042432
      %v277 = vsel %vm275, %v261, 0
      %279 = vmatprep.subr.mxu0 0.0
      %280 = vmatpush1.msra.mxu0 0.0
      %281 = vmatprep.subr.mxu0 0.0
      %282 = vmatpush1.msra.mxu0 0.0
      %283 = vmatprep.subr.mxu0 0.0
      %284 = vmatpush1.msra.mxu0 0.0
      %285 = vmatprep.subr.mxu0 0.0
      %286 = vmatpush1.msra.mxu0 0.0
      %287 = vmatprep.subr.mxu0 0.0
      %288 = vmatpush1.msra.mxu0 0.0
      %289 = vmatprep.subr.mxu0 0.0
      %290 = vmatpush1.msra.mxu0 0.0
      %291 = vmatprep.subr.mxu0 0.0
      %292 = vmatpush1.msra.mxu0 0.0
      %293 = vmatprep.subr.mxu0 0.0
      %294 = vmatpush1.msra.mxu0 0.0
      %295 = vmatprep.subr.mxu0 0.0
      %296 = vmatpush1.msra.mxu0 0.0
      %297 = vmatprep.subr.mxu0 0.0
      %298 = vmatpush1.msra.mxu0 0.0
      %299 = vmatprep.subr.mxu0 0.0
      %300 = vmatpush1.msra.mxu0 0.0
      %301 = vmatprep.subr.mxu0 0.0
      %302 = vmatpush1.msra.mxu0 0.0
      %303 = vmatprep.subr.mxu0 0.0
      %304 = vmatpush1.msra.mxu0 0.0
      %305 = vmatprep.subr.mxu0 0.0
      %306 = vmatpush1.msra.mxu0 0.0
      %307 = vmatprep.subr.mxu0 0.0
      %308 = vmatpush1.msra.mxu0 0.0
      %309 = vmatprep.subr.mxu0 0.0
      %310 = vmatpush1.msra.mxu0 %v277
      %311 = vmatprep.subr.mxu0 0.0
      %312 = vmatpush2.msra.mxu0 0.0
      %313 = vmatprep.subr.mxu0 0.0
      %314 = vmatpush2.msra.mxu0 0.0
      %315 = vmatprep.subr.mxu0 0.0
      %316 = vmatpush2.msra.mxu0 0.0
      %317 = vmatprep.subr.mxu0 0.0
      %318 = vmatpush2.msra.mxu0 0.0
      %319 = vmatprep.subr.mxu0 0.0
      %320 = vmatpush2.msra.mxu0 0.0
      %321 = vmatprep.subr.mxu0 0.0
      %322 = vmatpush2.msra.mxu0 0.0
      %323 = vmatprep.subr.mxu0 0.0
      %324 = vmatpush2.msra.mxu0 0.0
      %325 = vmatprep.subr.mxu0 0.0
      %326 = vmatpush2.msra.mxu0 0.0
      %327 = vmatprep.subr.mxu0 0.0
      %328 = vmatpush2.msra.mxu0 0.0
      %329 = vmatprep.subr.mxu0 0.0
      %330 = vmatpush2.msra.mxu0 0.0
      %331 = vmatprep.subr.mxu0 0.0
      %332 = vmatpush2.msra.mxu0 0.0
      %333 = vmatprep.subr.mxu0 0.0
      %334 = vmatpush2.msra.mxu0 0.0
      %335 = vmatprep.subr.mxu0 0.0
      %336 = vmatpush2.msra.mxu0 0.0
      %337 = vmatprep.subr.mxu0 0.0
      %338 = vmatpush2.msra.mxu0 0.0
      %339 = vmatprep.subr.mxu0 0.0
      %340 = vmatpush2.msra.mxu0 0.0
      %341 = vmatprep.subr.mxu0 0.0
      %342 = vmatpush2.msra.mxu0 0.0
      %343 = vmatprep.mubr.f32.mxu0 0.0
      %344 = vmatmul.mubr.f32.gmra.mxu0 %v264
      %v345 = vpop.f32.mrf.mxu0
      %v346 = vadd.f32 0.0, %v345
      %v347 = vpop.f32.mrf.mxu0
      %348 = vmatprep.mubr.f32.mxu0 0.0
      %349 = vmatmul.mubr.f32.gmra.mxu0 %v267
      %v350 = vpop.f32.mrf.mxu0
      %v351 = vadd.f32 0.0, %v350
      %v352 = vpop.f32.mrf.mxu0
      %353 = vmatprep.mubr.f32.mxu0 0.0
      %354 = vmatmul.mubr.f32.gmra.mxu0 %v270
      %v355 = vpop.f32.mrf.mxu0
      %v356 = vadd.f32 0.0, %v355
      %v357 = vpop.f32.mrf.mxu0
      %358 = vmatprep.mubr.f32.mxu0 0.0
      %359 = vmatmul.mubr.f32.gmra.mxu0 %v273
      %v360 = vpop.f32.mrf.mxu0
      %v361 = vadd.f32 0.0, %v360
      %v362 = vpop.f32.mrf.mxu0
      %363 = vdwg.mxu0
      %v364 = vld [vmem:[%s3] sm:$0x1]
      %v365 = vlaneseq
      %v366 = vshrl.u32 %v365, 7
      %v367 = vsub.s32 0, %v366
      %v368 = vrot.slane %v364, %v367
      %370 = vrot.lane.b32.xlu0 %v368, 64
      %v371 = vpop.permute.xlu0 %370
      %v373 = vadd.f32 %v346, %v371
      %v374 = vadd.f32 %v351, %v371
      %v375 = vadd.f32 %v356, %v371
      %v376 = vadd.f32 %v361, %v371
      %v377 = vmax.f32 %v373, 0.0
      %v378 = vmax.f32 %v374, 0.0
      %v379 = vmax.f32 %v375, 0.0
      %v380 = vmax.f32 %v376, 0.0
      %v381 = vld [vmem:[%s2 + $0x8] sm:$0x3f]
      %v382 = vld [vmem:[%s3 + $0x1] sm:$0x1]
      %v383 = vlaneseq
      %v384 = vshrl.u32 %v383, 7
      %v385 = vsub.s32 0, %v384
      %v386 = vrot.slane %v382, %v385
      %391 = vrot.lane.b32.xlu0 %v377, 64
      %v392 = vpop.permute.xlu0 %391
      %393 = vrot.lane.b32.xlu0 %v378, 64
      %v394 = vpop.permute.xlu0 %393
      %395 = vrot.lane.b32.xlu0 %v379, 64
      %v396 = vpop.permute.xlu0 %395
      %397 = vrot.lane.b32.xlu0 %v380, 64
      %v398 = vpop.permute.xlu0 %397
      %vm399 = vcmask 48128
      %v400 = vsel %vm399, %v392, 0
      %v402 = vsel %vm399, %v394, 0
      %v404 = vsel %vm399, %v396, 0
      %v406 = vsel %vm399, %v398, 0
      %vm408 = vcmask 1045504
      %v410 = vsel %vm408, %v381, 0
      %412 = vmatprep.subr.mxu0 0.0
      %413 = vmatpush1.msra.mxu0 0.0
      %414 = vmatprep.subr.mxu0 0.0
      %415 = vmatpush1.msra.mxu0 0.0
      %416 = vmatprep.subr.mxu0 0.0
      %417 = vmatpush1.msra.mxu0 0.0
      %418 = vmatprep.subr.mxu0 0.0
      %419 = vmatpush1.msra.mxu0 0.0
      %420 = vmatprep.subr.mxu0 0.0
      %421 = vmatpush1.msra.mxu0 0.0
      %422 = vmatprep.subr.mxu0 0.0
      %423 = vmatpush1.msra.mxu0 0.0
      %424 = vmatprep.subr.mxu0 0.0
      %425 = vmatpush1.msra.mxu0 0.0
      %426 = vmatprep.subr.mxu0 0.0
      %427 = vmatpush1.msra.mxu0 0.0
      %428 = vmatprep.subr.mxu0 0.0
      %429 = vmatpush1.msra.mxu0 0.0
      %430 = vmatprep.subr.mxu0 0.0
      %431 = vmatpush1.msra.mxu0 0.0
      %432 = vmatprep.subr.mxu0 0.0
      %433 = vmatpush1.msra.mxu0 0.0
      %434 = vmatprep.subr.mxu0 0.0
      %435 = vmatpush1.msra.mxu0 0.0
      %436 = vmatprep.subr.mxu0 0.0
      %437 = vmatpush1.msra.mxu0 0.0
      %438 = vmatprep.subr.mxu0 0.0
      %439 = vmatpush1.msra.mxu0 0.0
      %440 = vmatprep.subr.mxu0 0.0
      %441 = vmatpush1.msra.mxu0 0.0
      %442 = vmatprep.subr.mxu0 0.0
      %443 = vmatpush1.msra.mxu0 %v410
      %444 = vmatprep.subr.mxu0 0.0
      %445 = vmatpush2.msra.mxu0 0.0
      %446 = vmatprep.subr.mxu0 0.0
      %447 = vmatpush2.msra.mxu0 0.0
      %448 = vmatprep.subr.mxu0 0.0
      %449 = vmatpush2.msra.mxu0 0.0
      %450 = vmatprep.subr.mxu0 0.0
      %451 = vmatpush2.msra.mxu0 0.0
      %452 = vmatprep.subr.mxu0 0.0
      %453 = vmatpush2.msra.mxu0 0.0
      %454 = vmatprep.subr.mxu0 0.0
      %455 = vmatpush2.msra.mxu0 0.0
      %456 = vmatprep.subr.mxu0 0.0
      %457 = vmatpush2.msra.mxu0 0.0
      %458 = vmatprep.subr.mxu0 0.0
      %459 = vmatpush2.msra.mxu0 0.0
      %460 = vmatprep.subr.mxu0 0.0
      %461 = vmatpush2.msra.mxu0 0.0
      %462 = vmatprep.subr.mxu0 0.0
      %463 = vmatpush2.msra.mxu0 0.0
      %464 = vmatprep.subr.mxu0 0.0
      %465 = vmatpush2.msra.mxu0 0.0
      %466 = vmatprep.subr.mxu0 0.0
      %467 = vmatpush2.msra.mxu0 0.0
      %468 = vmatprep.subr.mxu0 0.0
      %469 = vmatpush2.msra.mxu0 0.0
      %470 = vmatprep.subr.mxu0 0.0
      %471 = vmatpush2.msra.mxu0 0.0
      %472 = vmatprep.subr.mxu0 0.0
      %473 = vmatpush2.msra.mxu0 0.0
      %474 = vmatprep.subr.mxu0 0.0
      %475 = vmatpush2.msra.mxu0 0.0
      %476 = vmatprep.mubr.f32.mxu0 0.0
      %477 = vmatmul.mubr.f32.gmra.mxu0 %v400
      %v478 = vpop.f32.mrf.mxu0
      %v479 = vadd.f32 %v386, %v478
      %v480 = vpop.f32.mrf.mxu0
      %481 = vmatprep.mubr.f32.mxu0 0.0
      %482 = vmatmul.mubr.f32.gmra.mxu0 %v402
      %v483 = vpop.f32.mrf.mxu0
      %v484 = vadd.f32 %v386, %v483
      %v485 = vpop.f32.mrf.mxu0
      %486 = vmatprep.mubr.f32.mxu0 0.0
      %487 = vmatmul.mubr.f32.gmra.mxu0 %v404
      %v488 = vpop.f32.mrf.mxu0
      %v489 = vadd.f32 %v386, %v488
      %v490 = vpop.f32.mrf.mxu0
      %491 = vmatprep.mubr.f32.mxu0 0.0
      %492 = vmatmul.mubr.f32.gmra.mxu0 %v406
      %v493 = vpop.f32.mrf.mxu0
      %v494 = vadd.f32 %v386, %v493
      %v495 = vpop.f32.mrf.mxu0
      %496 = vdwg.mxu0
      %v497 = vmax.f32 %v479, 0.0
      %v498 = vmax.f32 %v484, 0.0
      %v499 = vmax.f32 %v489, 0.0
      %v500 = vmax.f32 %v494, 0.0
      %v501 = vld [vmem:[%s2 + $0x10] sm:$0xff]
      %v502 = vld [vmem:[%s2 + $0x18] sm:$0xf]
      %v503 = vld [vmem:[%s3 + $0x2] sm:$0x1]
      %v504 = vlaneseq
      %v505 = vshrl.u32 %v504, 7
      %v506 = vsub.s32 0, %v505
      %v507 = vrot.slane %v503, %v506
      %vm508 = vcmask 97280
      %v510 = vsel %vm508, %v497, 0
      %v513 = vsel %vm508, %v498, 0
      %v516 = vsel %vm508, %v499, 0
      %v519 = vsel %vm508, %v500, 0
      %vm521 = vcmask 1043456
      %v523 = vsel %vm521, %v502, 0
      %525 = vmatprep.subr.mxu0 0.0
      %526 = vmatpush1.msra.mxu0 0.0
      %527 = vmatprep.subr.mxu0 0.0
      %528 = vmatpush1.msra.mxu0 0.0
      %529 = vmatprep.subr.mxu0 0.0
      %530 = vmatpush1.msra.mxu0 0.0
      %531 = vmatprep.subr.mxu0 0.0
      %532 = vmatpush1.msra.mxu0 0.0
      %533 = vmatprep.subr.mxu0 0.0
      %534 = vmatpush1.msra.mxu0 0.0
      %535 = vmatprep.subr.mxu0 0.0
      %536 = vmatpush1.msra.mxu0 0.0
      %537 = vmatprep.subr.mxu0 0.0
      %538 = vmatpush1.msra.mxu0 0.0
      %539 = vmatprep.subr.mxu0 0.0
      %540 = vmatpush1.msra.mxu0 0.0
      %541 = vmatprep.subr.mxu0 0.0
      %542 = vmatpush1.msra.mxu0 0.0
      %543 = vmatprep.subr.mxu0 0.0
      %544 = vmatpush1.msra.mxu0 0.0
      %545 = vmatprep.subr.mxu0 0.0
      %546 = vmatpush1.msra.mxu0 0.0
      %547 = vmatprep.subr.mxu0 0.0
      %548 = vmatpush1.msra.mxu0 0.0
      %549 = vmatprep.subr.mxu0 0.0
      %550 = vmatpush1.msra.mxu0 0.0
      %551 = vmatprep.subr.mxu0 0.0
      %552 = vmatpush1.msra.mxu0 0.0
      %553 = vmatprep.subr.mxu0 0.0
      %554 = vmatpush1.msra.mxu0 %v523
      %555 = vmatprep.subr.mxu0 0.0
      %556 = vmatpush1.msra.mxu0 %v501
      %557 = vmatprep.subr.mxu0 0.0
      %558 = vmatpush2.msra.mxu0 0.0
      %559 = vmatprep.subr.mxu0 0.0
      %560 = vmatpush2.msra.mxu0 0.0
      %561 = vmatprep.subr.mxu0 0.0
      %562 = vmatpush2.msra.mxu0 0.0
      %563 = vmatprep.subr.mxu0 0.0
      %564 = vmatpush2.msra.mxu0 0.0
      %565 = vmatprep.subr.mxu0 0.0
      %566 = vmatpush2.msra.mxu0 0.0
      %567 = vmatprep.subr.mxu0 0.0
      %568 = vmatpush2.msra.mxu0 0.0
      %569 = vmatprep.subr.mxu0 0.0
      %570 = vmatpush2.msra.mxu0 0.0
      %571 = vmatprep.subr.mxu0 0.0
      %572 = vmatpush2.msra.mxu0 0.0
      %573 = vmatprep.subr.mxu0 0.0
      %574 = vmatpush2.msra.mxu0 0.0
      %575 = vmatprep.subr.mxu0 0.0
      %576 = vmatpush2.msra.mxu0 0.0
      %577 = vmatprep.subr.mxu0 0.0
      %578 = vmatpush2.msra.mxu0 0.0
      %579 = vmatprep.subr.mxu0 0.0
      %580 = vmatpush2.msra.mxu0 0.0
      %581 = vmatprep.subr.mxu0 0.0
      %582 = vmatpush2.msra.mxu0 0.0
      %583 = vmatprep.subr.mxu0 0.0
      %584 = vmatpush2.msra.mxu0 0.0
      %585 = vmatprep.subr.mxu0 0.0
      %586 = vmatpush2.msra.mxu0 0.0
      %587 = vmatprep.subr.mxu0 0.0
      %588 = vmatpush2.msra.mxu0 0.0
      %589 = vmatprep.mubr.f32.mxu0 0.0
      %590 = vmatmul.mubr.f32.gmra.mxu0 %v510
      %v591 = vpop.f32.mrf.mxu0
      %v592 = vadd.f32 %v507, %v591
      %v593 = vpop.f32.mrf.mxu0
      %594 = vmatprep.mubr.f32.mxu0 0.0
      %595 = vmatmul.mubr.f32.gmra.mxu0 %v513
      %v596 = vpop.f32.mrf.mxu0
      %v597 = vadd.f32 %v507, %v596
      %v598 = vpop.f32.mrf.mxu0
      %599 = vmatprep.mubr.f32.mxu0 0.0
      %600 = vmatmul.mubr.f32.gmra.mxu0 %v516
      %v601 = vpop.f32.mrf.mxu0
      %v602 = vadd.f32 %v507, %v601
      %v603 = vpop.f32.mrf.mxu0
      %604 = vmatprep.mubr.f32.mxu0 0.0
      %605 = vmatmul.mubr.f32.gmra.mxu0 %v519
      %v606 = vpop.f32.mrf.mxu0
      %v607 = vadd.f32 %v507, %v606
      %v608 = vpop.f32.mrf.mxu0
      %609 = vdwg.mxu0
      %v610 = vmax.f32 %v592, 0.0
      %v611 = vmax.f32 %v597, 0.0
      %v612 = vmax.f32 %v602, 0.0
      %v613 = vmax.f32 %v607, 0.0
      %v614 = vld [vmem:[%s2 + $0x38] sm:$0xff]
      %v615 = vld [vmem:[%s2 + $0x40] sm:$0xff]
      %v616 = vld [vmem:[%s2 + $0x48] sm:$0xff]
      %v617 = vld [vmem:[%s2 + $0x50] sm:$0xff]
      %v618 = vld [vmem:[%s2 + $0x58] sm:$0xff]
      %v619 = vld [vmem:[%s2 + $0x60] sm:$0xff]
      %v620 = vld [vmem:[%s2 + $0x68] sm:$0xff]
      %v621 = vld [vmem:[%s2 + $0x70] sm:$0xff]
      %v622 = vld [vmem:[%s2 + $0x78] sm:$0xff]
      %v623 = vld [vmem:[%s2 + $0x80] sm:$0xff]
      %v624 = vld [vmem:[%s2 + $0x88] sm:$0xff]
      %v625 = vld [vmem:[%s2 + $0x90] sm:$0xff]
      %v626 = vld [vmem:[%s2 + $0x98] sm:$0xff]
      %v627 = vld [vmem:[%s2 + $0xa0] sm:$0xff]
      %v628 = vld [vmem:[%s2 + $0xa8] sm:$0xff]
      %v629 = vld [vmem:[%s2 + $0xb0] sm:$0xff]
      %630 = vmatprep.subr.mxu0 0.0
      %631 = vmatpush1.msra.mxu0 %v629
      %632 = vmatprep.subr.mxu0 0.0
      %633 = vmatpush1.msra.mxu0 %v628
      %634 = vmatprep.subr.mxu0 0.0
      %635 = vmatpush1.msra.mxu0 %v627
      %636 = vmatprep.subr.mxu0 0.0
      %637 = vmatpush1.msra.mxu0 %v626
      %638 = vmatprep.subr.mxu0 0.0
      %639 = vmatpush1.msra.mxu0 %v625
      %640 = vmatprep.subr.mxu0 0.0
      %641 = vmatpush1.msra.mxu0 %v624
      %642 = vmatprep.subr.mxu0 0.0
      %643 = vmatpush1.msra.mxu0 %v623
      %644 = vmatprep.subr.mxu0 0.0
      %645 = vmatpush1.msra.mxu0 %v622
      %646 = vmatprep.subr.mxu0 0.0
      %647 = vmatpush1.msra.mxu0 %v621
      %648 = vmatprep.subr.mxu0 0.0
      %649 = vmatpush1.msra.mxu0 %v620
      %650 = vmatprep.subr.mxu0 0.0
      %651 = vmatpush1.msra.mxu0 %v619
      %652 = vmatprep.subr.mxu0 0.0
      %653 = vmatpush1.msra.mxu0 %v618
      %654 = vmatprep.subr.mxu0 0.0
      %655 = vmatpush1.msra.mxu0 %v617
      %656 = vmatprep.subr.mxu0 0.0
      %657 = vmatpush1.msra.mxu0 %v616
      %658 = vmatprep.subr.mxu0 0.0
      %659 = vmatpush1.msra.mxu0 %v615
      %660 = vmatprep.subr.mxu0 0.0
      %661 = vmatpush1.msra.mxu0 %v614
      %662 = vmatprep.subr.mxu0 0.0
      %663 = vmatpush2.msra.mxu0 0.0
      %664 = vmatprep.subr.mxu0 0.0
      %665 = vmatpush2.msra.mxu0 0.0
      %666 = vmatprep.subr.mxu0 0.0
      %667 = vmatpush2.msra.mxu0 0.0
      %668 = vmatprep.subr.mxu0 0.0
      %669 = vmatpush2.msra.mxu0 0.0
      %670 = vmatprep.subr.mxu0 0.0
      %671 = vmatpush2.msra.mxu0 0.0
      %672 = vmatprep.subr.mxu0 0.0
      %673 = vmatpush2.msra.mxu0 0.0
      %674 = vmatprep.subr.mxu0 0.0
      %675 = vmatpush2.msra.mxu0 0.0
      %676 = vmatprep.subr.mxu0 0.0
      %677 = vmatpush2.msra.mxu0 0.0
      %678 = vmatprep.subr.mxu0 0.0
      %679 = vmatpush2.msra.mxu0 0.0
      %680 = vmatprep.subr.mxu0 0.0
      %681 = vmatpush2.msra.mxu0 0.0
      %682 = vmatprep.subr.mxu0 0.0
      %683 = vmatpush2.msra.mxu0 0.0
      %684 = vmatprep.subr.mxu0 0.0
      %685 = vmatpush2.msra.mxu0 0.0
      %686 = vmatprep.subr.mxu0 0.0
      %687 = vmatpush2.msra.mxu0 0.0
      %688 = vmatprep.subr.mxu0 0.0
      %689 = vmatpush2.msra.mxu0 0.0
      %690 = vmatprep.subr.mxu0 0.0
      %691 = vmatpush2.msra.mxu0 0.0
      %692 = vmatprep.subr.mxu0 0.0
      %693 = vmatpush2.msra.mxu0 0.0
      %694 = vmatprep.mubr.f32.mxu0 0.0
      %695 = vmatmul.mubr.f32.gmra.mxu0 %v260
      %v696 = vpop.f32.mrf.mxu0
      %v697 = vadd.f32 0.0, %v696
      %v698 = vpop.f32.mrf.mxu0
      %699 = vdwg.mxu0
      %v700 = vld [vmem:[%s2 + $0x20] sm:$0xff]
      %v701 = vld [vmem:[%s2 + $0x28] sm:$0xff]
      %v702 = vld [vmem:[%s2 + $0x30] sm:$0xff]
      %vm703 = vcmask 195584
      %v705 = vsel %vm703, %v610, 0
      %v708 = vsel %vm703, %v611, 0
      %v711 = vsel %vm703, %v612, 0
      %v714 = vsel %vm703, %v613, 0
      %716 = vmatprep.subr.mxu0 0.0
      %717 = vmatpush1.msra.mxu0 0.0
      %718 = vmatprep.subr.mxu0 0.0
      %719 = vmatpush1.msra.mxu0 0.0
      %720 = vmatprep.subr.mxu0 0.0
      %721 = vmatpush1.msra.mxu0 0.0
      %722 = vmatprep.subr.mxu0 0.0
      %723 = vmatpush1.msra.mxu0 0.0
      %724 = vmatprep.subr.mxu0 0.0
      %725 = vmatpush1.msra.mxu0 0.0
      %726 = vmatprep.subr.mxu0 0.0
      %727 = vmatpush1.msra.mxu0 0.0
      %728 = vmatprep.subr.mxu0 0.0
      %729 = vmatpush1.msra.mxu0 0.0
      %730 = vmatprep.subr.mxu0 0.0
      %731 = vmatpush1.msra.mxu0 0.0
      %732 = vmatprep.subr.mxu0 0.0
      %733 = vmatpush1.msra.mxu0 0.0
      %734 = vmatprep.subr.mxu0 0.0
      %735 = vmatpush1.msra.mxu0 0.0
      %736 = vmatprep.subr.mxu0 0.0
      %737 = vmatpush1.msra.mxu0 0.0
      %738 = vmatprep.subr.mxu0 0.0
      %739 = vmatpush1.msra.mxu0 0.0
      %740 = vmatprep.subr.mxu0 0.0
      %741 = vmatpush1.msra.mxu0 0.0
      %742 = vmatprep.subr.mxu0 0.0
      %743 = vmatpush1.msra.mxu0 %v702
      %744 = vmatprep.subr.mxu0 0.0
      %745 = vmatpush1.msra.mxu0 %v701
      %746 = vmatprep.subr.mxu0 0.0
      %747 = vmatpush1.msra.mxu0 %v700
      %748 = vmatprep.subr.mxu0 0.0
      %749 = vmatpush2.msra.mxu0 0.0
      %750 = vmatprep.subr.mxu0 0.0
      %751 = vmatpush2.msra.mxu0 0.0
      %752 = vmatprep.subr.mxu0 0.0
      %753 = vmatpush2.msra.mxu0 0.0
      %754 = vmatprep.subr.mxu0 0.0
      %755 = vmatpush2.msra.mxu0 0.0
      %756 = vmatprep.subr.mxu0 0.0
      %757 = vmatpush2.msra.mxu0 0.0
      %758 = vmatprep.subr.mxu0 0.0
      %759 = vmatpush2.msra.mxu0 0.0
      %760 = vmatprep.subr.mxu0 0.0
      %761 = vmatpush2.msra.mxu0 0.0
      %762 = vmatprep.subr.mxu0 0.0
      %763 = vmatpush2.msra.mxu0 0.0
      %764 = vmatprep.subr.mxu0 0.0
      %765 = vmatpush2.msra.mxu0 0.0
      %766 = vmatprep.subr.mxu0 0.0
      %767 = vmatpush2.msra.mxu0 0.0
      %768 = vmatprep.subr.mxu0 0.0
      %769 = vmatpush2.msra.mxu0 0.0
      %770 = vmatprep.subr.mxu0 0.0
      %771 = vmatpush2.msra.mxu0 0.0
      %772 = vmatprep.subr.mxu0 0.0
      %773 = vmatpush2.msra.mxu0 0.0
      %774 = vmatprep.subr.mxu0 0.0
      %775 = vmatpush2.msra.mxu0 0.0
      %776 = vmatprep.subr.mxu0 0.0
      %777 = vmatpush2.msra.mxu0 0.0
      %778 = vmatprep.subr.mxu0 0.0
      %779 = vmatpush2.msra.mxu0 0.0
      %780 = vmatprep.mubr.f32.mxu0 0.0
      %781 = vmatmul.mubr.f32.gmra.mxu0 %v705
      %v782 = vpop.f32.mrf.mxu0
      %v783 = vadd.f32 0.0, %v782
      %v784 = vpop.f32.mrf.mxu0
      %785 = vmatprep.mubr.f32.mxu0 0.0
      %786 = vmatmul.mubr.f32.gmra.mxu0 %v708
      %v787 = vpop.f32.mrf.mxu0
      %v788 = vadd.f32 0.0, %v787
      %v789 = vpop.f32.mrf.mxu0
      %790 = vmatprep.mubr.f32.mxu0 0.0
      %791 = vmatmul.mubr.f32.gmra.mxu0 %v711
      %v792 = vpop.f32.mrf.mxu0
      %v793 = vadd.f32 0.0, %v792
      %v794 = vpop.f32.mrf.mxu0
      %795 = vmatprep.mubr.f32.mxu0 0.0
      %796 = vmatmul.mubr.f32.gmra.mxu0 %v714
      %v797 = vpop.f32.mrf.mxu0
      %v798 = vadd.f32 0.0, %v797
      %v799 = vpop.f32.mrf.mxu0
      %800 = vdwg.mxu0
      %v801 = vadd.f32 %v346, %v783
      %v802 = vadd.f32 %v351, %v788
      %v803 = vadd.f32 %v356, %v793
      %v804 = vadd.f32 %v361, %v798
      %v805 = vld [vmem:[%s3 + $0x3] sm:$0x1]
      %v806 = vlaneseq
      %v807 = vshrl.u32 %v806, 7
      %v808 = vsub.s32 0, %v807
      %v809 = vrot.slane %v805, %v808
      %v810 = vadd.f32 %v801, %v809
      %v811 = vadd.f32 %v802, %v809
      %v812 = vadd.f32 %v803, %v809
      %v813 = vadd.f32 %v804, %v809
      %v816 = vunpack.c.l.s4 1966171168
      %v817 = vunpack.c.0.s8 %v816
      %v818 = vlaneseq
      %v819 = vshrl.u32 %v818, 7
      %v820 = vsub.s32 %v817, %v819
      %v821 = vrot.slane %v697, %v820
      %v822 = vcombine.high %v821, %v821
      %v824 = vunpack.c.l.s4 1966171168
      %v825 = vunpack.c.0.s8 %v824
      %v826 = vlaneseq
      %v827 = vshrl.u32 %v826, 7
      %v828 = vsub.s32 %v825, %v827
      %v829 = vrot.slane %v821, %v828
      %v831 = vunpack.c.l.s4 1966171168
      %v832 = vunpack.c.0.s8 %v831
      %v833 = vlaneseq
      %v834 = vshrl.u32 %v833, 7
      %v835 = vsub.s32 %v832, %v834
      %v836 = vrot.slane %v822, %v835
      %v837 = vlaneseq
      %v838 = vshrl.u32 %v837, 7
      %v839 = vsub.s32 0, %v838
      %v840 = vrot.slane %v829, %v839
      %v841 = vlaneseq
      %v842 = vshrl.u32 %v841, 7
      %v843 = vsub.s32 0, %v842
      %v844 = vrot.slane %v836, %v843
      %v847 = vadd.f32 %v810, %v840
      %v848 = vadd.f32 %v811, %v840
      %v849 = vadd.f32 %v812, %v844
      %v850 = vadd.f32 %v813, %v844
      %v851 = vmax.f32 %v847, 0.0
      %v852 = vmax.f32 %v848, 0.0
      %v853 = vmax.f32 %v849, 0.0
      %v854 = vmax.f32 %v850, 0.0
      %v855 = vld [vmem:[%s2 + $0xb8] sm:$0xff]
      %v856 = vld [vmem:[%s2 + $0xc0] sm:$0xff]
      %v857 = vld [vmem:[%s2 + $0xc8] sm:$0xff]
      %v858 = vld [vmem:[%s2 + $0xd0] sm:$0xff]
      %v859 = vld [vmem:[%s2 + $0xd8] sm:$0xff]
      %v860 = vld [vmem:[%s2 + $0xe0] sm:$0xff]
      %v861 = vld [vmem:[%s2 + $0xe8] sm:$0xff]
      %v862 = vld [vmem:[%s2 + $0xf0] sm:$0xff]
      %v863 = vld [vmem:[%s3 + $0x4] sm:$0x1]
      %v864 = vlaneseq
      %v865 = vshrl.u32 %v864, 7
      %v866 = vsub.s32 0, %v865
      %v867 = vrot.slane %v863, %v866
      %vm868 = vcmask 523264
      %v870 = vsel %vm868, %v851, 0
      %v873 = vsel %vm868, %v852, 0
      %v876 = vsel %vm868, %v853, 0
      %v879 = vsel %vm868, %v854, 0
      %881 = vmatprep.subr.mxu0 0.0
      %882 = vmatpush1.msra.mxu0 0.0
      %883 = vmatprep.subr.mxu0 0.0
      %884 = vmatpush1.msra.mxu0 0.0
      %885 = vmatprep.subr.mxu0 0.0
      %886 = vmatpush1.msra.mxu0 0.0
      %887 = vmatprep.subr.mxu0 0.0
      %888 = vmatpush1.msra.mxu0 0.0
      %889 = vmatprep.subr.mxu0 0.0
      %890 = vmatpush1.msra.mxu0 0.0
      %891 = vmatprep.subr.mxu0 0.0
      %892 = vmatpush1.msra.mxu0 0.0
      %893 = vmatprep.subr.mxu0 0.0
      %894 = vmatpush1.msra.mxu0 0.0
      %895 = vmatprep.subr.mxu0 0.0
      %896 = vmatpush1.msra.mxu0 0.0
      %897 = vmatprep.subr.mxu0 0.0
      %898 = vmatpush1.msra.mxu0 %v862
      %899 = vmatprep.subr.mxu0 0.0
      %900 = vmatpush1.msra.mxu0 %v861
      %901 = vmatprep.subr.mxu0 0.0
      %902 = vmatpush1.msra.mxu0 %v860
      %903 = vmatprep.subr.mxu0 0.0
      %904 = vmatpush1.msra.mxu0 %v859
      %905 = vmatprep.subr.mxu0 0.0
      %906 = vmatpush1.msra.mxu0 %v858
      %907 = vmatprep.subr.mxu0 0.0
      %908 = vmatpush1.msra.mxu0 %v857
      %909 = vmatprep.subr.mxu0 0.0
      %910 = vmatpush1.msra.mxu0 %v856
      %911 = vmatprep.subr.mxu0 0.0
      %912 = vmatpush1.msra.mxu0 %v855
      %913 = vmatprep.subr.mxu0 0.0
      %914 = vmatpush2.msra.mxu0 0.0
      %915 = vmatprep.subr.mxu0 0.0
      %916 = vmatpush2.msra.mxu0 0.0
      %917 = vmatprep.subr.mxu0 0.0
      %918 = vmatpush2.msra.mxu0 0.0
      %919 = vmatprep.subr.mxu0 0.0
      %920 = vmatpush2.msra.mxu0 0.0
      %921 = vmatprep.subr.mxu0 0.0
      %922 = vmatpush2.msra.mxu0 0.0
      %923 = vmatprep.subr.mxu0 0.0
      %924 = vmatpush2.msra.mxu0 0.0
      %925 = vmatprep.subr.mxu0 0.0
      %926 = vmatpush2.msra.mxu0 0.0
      %927 = vmatprep.subr.mxu0 0.0
      %928 = vmatpush2.msra.mxu0 0.0
      %929 = vmatprep.subr.mxu0 0.0
      %930 = vmatpush2.msra.mxu0 0.0
      %931 = vmatprep.subr.mxu0 0.0
      %932 = vmatpush2.msra.mxu0 0.0
      %933 = vmatprep.subr.mxu0 0.0
      %934 = vmatpush2.msra.mxu0 0.0
      %935 = vmatprep.subr.mxu0 0.0
      %936 = vmatpush2.msra.mxu0 0.0
      %937 = vmatprep.subr.mxu0 0.0
      %938 = vmatpush2.msra.mxu0 0.0
      %939 = vmatprep.subr.mxu0 0.0
      %940 = vmatpush2.msra.mxu0 0.0
      %941 = vmatprep.subr.mxu0 0.0
      %942 = vmatpush2.msra.mxu0 0.0
      %943 = vmatprep.subr.mxu0 0.0
      %944 = vmatpush2.msra.mxu0 0.0
      %945 = vmatprep.mubr.f32.mxu0 0.0
      %946 = vmatmul.mubr.f32.gmra.mxu0 %v870
      %v947 = vpop.f32.mrf.mxu0
      %v948 = vadd.f32 %v867, %v947
      %v949 = vpop.f32.mrf.mxu0
      %950 = vmatprep.mubr.f32.mxu0 0.0
      %951 = vmatmul.mubr.f32.gmra.mxu0 %v873
      %v952 = vpop.f32.mrf.mxu0
      %v953 = vadd.f32 %v867, %v952
      %v954 = vpop.f32.mrf.mxu0
      %955 = vmatprep.mubr.f32.mxu0 0.0
      %956 = vmatmul.mubr.f32.gmra.mxu0 %v876
      %v957 = vpop.f32.mrf.mxu0
      %v958 = vadd.f32 %v867, %v957
      %v959 = vpop.f32.mrf.mxu0
      %960 = vmatprep.mubr.f32.mxu0 0.0
      %961 = vmatmul.mubr.f32.gmra.mxu0 %v879
      %v962 = vpop.f32.mrf.mxu0
      %v963 = vadd.f32 %v867, %v962
      %v964 = vpop.f32.mrf.mxu0
      %965 = vdwg.mxu0
      %966 = vst.msk [vmem:[#allocation2] sm:$0xff] %vm868, %v948
      %967 = vst.msk [vmem:[#allocation2 + $0x8] sm:$0xff] %vm868, %v953
      %968 = vst.msk [vmem:[#allocation2 + $0x10] sm:$0xff] %vm868, %v958
      %969 = vst.msk [vmem:[#allocation2 + $0x18] sm:$0xff] %vm868, %v963
      %v970 = vld [vmem:[#allocation2] ss:$2 sm:$0xff]
      %s971 = scalar_lea.vmem [#allocation2], 16
      %v972 = vld [vmem:[%s971] ss:$2 sm:$0xff]
      %s973 = scalar_lea.vmem [#allocation2], 1
      %v974 = vld [vmem:[%s973] ss:$2 sm:$0xff]
      %s975 = scalar_lea.vmem [#allocation2], 17
      %v976 = vld [vmem:[%s975] ss:$2 sm:$0xff]
      %v977 = vmax.f32 %v970, %v974
      %v978 = vmax.f32 %v972, %v976
      %981 = vrot.lane.b32.xlu0 %v948, 64
      %v982 = vpop.permute.xlu0 %981
      %983 = vrot.lane.b32.xlu0 %v953, 64
      %v984 = vpop.permute.xlu0 %983
      %vm985 = vcmask 261120
      %v986 = vsel %vm985, %v982, 0
      %v988 = vsel %vm985, %v984, 0
      %v991 = vsel %vm985, %v977, 0
      %993 = vmatprep.subr.mxu0 0.0
      %994 = vmatpush1.xpose.msra.mxu0 0.0
      %995 = vmatprep.subr.mxu0 0.0
      %996 = vmatpush1.xpose.msra.mxu0 0.0
      %997 = vmatprep.subr.mxu0 0.0
      %998 = vmatpush1.xpose.msra.mxu0 0.0
      %999 = vmatprep.subr.mxu0 0.0
      %1000 = vmatpush1.xpose.msra.mxu0 0.0
      %1001 = vmatprep.subr.mxu0 0.0
      %1002 = vmatpush1.xpose.msra.mxu0 0.0
      %1003 = vmatprep.subr.mxu0 0.0
      %1004 = vmatpush1.xpose.msra.mxu0 0.0
      %1005 = vmatprep.subr.mxu0 0.0
      %1006 = vmatpush1.xpose.msra.mxu0 0.0
      %1007 = vmatprep.subr.mxu0 0.0
      %1008 = vmatpush1.xpose.msra.mxu0 0.0
      %1009 = vmatprep.subr.mxu0 0.0
      %1010 = vmatpush1.xpose.msra.mxu0 0.0
      %1011 = vmatprep.subr.mxu0 0.0
      %1012 = vmatpush1.xpose.msra.mxu0 0.0
      %1013 = vmatprep.subr.mxu0 0.0
      %1014 = vmatpush1.xpose.msra.mxu0 0.0
      %1015 = vmatprep.subr.mxu0 0.0
      %1016 = vmatpush1.xpose.msra.mxu0 0.0
      %1017 = vmatprep.subr.mxu0 0.0
      %1018 = vmatpush1.xpose.msra.mxu0 0.0
      %1019 = vmatprep.subr.mxu0 0.0
      %1020 = vmatpush1.xpose.msra.mxu0 0.0
      %1021 = vmatprep.subr.mxu0 0.0
      %1022 = vmatpush1.xpose.msra.mxu0 0.0
      %1023 = vmatprep.subr.mxu0 0.0
      %1024 = vmatpush1.xpose.msra.mxu0 %v991
      %1025 = vmatprep.subr.mxu0 0.0
      %1026 = vmatpush2.xpose.msra.mxu0 0.0
      %1027 = vmatprep.subr.mxu0 0.0
      %1028 = vmatpush2.xpose.msra.mxu0 0.0
      %1029 = vmatprep.subr.mxu0 0.0
      %1030 = vmatpush2.xpose.msra.mxu0 0.0
      %1031 = vmatprep.subr.mxu0 0.0
      %1032 = vmatpush2.xpose.msra.mxu0 0.0
      %1033 = vmatprep.subr.mxu0 0.0
      %1034 = vmatpush2.xpose.msra.mxu0 0.0
      %1035 = vmatprep.subr.mxu0 0.0
      %1036 = vmatpush2.xpose.msra.mxu0 0.0
      %1037 = vmatprep.subr.mxu0 0.0
      %1038 = vmatpush2.xpose.msra.mxu0 0.0
      %1039 = vmatprep.subr.mxu0 0.0
      %1040 = vmatpush2.xpose.msra.mxu0 0.0
      %1041 = vmatprep.subr.mxu0 0.0
      %1042 = vmatpush2.xpose.msra.mxu0 0.0
      %1043 = vmatprep.subr.mxu0 0.0
      %1044 = vmatpush2.xpose.msra.mxu0 0.0
      %1045 = vmatprep.subr.mxu0 0.0
      %1046 = vmatpush2.xpose.msra.mxu0 0.0
      %1047 = vmatprep.subr.mxu0 0.0
      %1048 = vmatpush2.xpose.msra.mxu0 0.0
      %1049 = vmatprep.subr.mxu0 0.0
      %1050 = vmatpush2.xpose.msra.mxu0 0.0
      %1051 = vmatprep.subr.mxu0 0.0
      %1052 = vmatpush2.xpose.msra.mxu0 0.0
      %1053 = vmatprep.subr.mxu0 0.0
      %1054 = vmatpush2.xpose.msra.mxu0 0.0
      %1055 = vmatprep.subr.mxu0 0.0
      %1056 = vmatpush2.xpose.msra.mxu0 0.0
      %1057 = vmatprep.mubr.f32.mxu0 0.0
      %1058 = vmatmul.mubr.f32.gmra.mxu0 %v986
      %v1059 = vpop.f32.mrf.mxu0
      %v1060 = vadd.f32 0.0, %v1059
      %v1061 = vpop.f32.mrf.mxu0
      %1062 = vmatprep.mubr.f32.mxu0 0.0
      %1063 = vmatmul.mubr.f32.gmra.mxu0 %v988
      %v1064 = vpop.f32.mrf.mxu0
      %v1065 = vadd.f32 0.0, %v1064
      %v1066 = vpop.f32.mrf.mxu0
      %1067 = vdwg.mxu0
      %1070 = vrot.lane.b32.xlu0 %v958, 64
      %v1071 = vpop.permute.xlu0 %1070
      %1072 = vrot.lane.b32.xlu0 %v963, 64
      %v1073 = vpop.permute.xlu0 %1072
      %v1074 = vsel %vm985, %v1071, 0
      %v1076 = vsel %vm985, %v1073, 0
      %v1079 = vsel %vm985, %v978, 0
      %1081 = vmatprep.subr.mxu0 0.0
      %1082 = vmatpush1.xpose.msra.mxu0 0.0
      %1083 = vmatprep.subr.mxu0 0.0
      %1084 = vmatpush1.xpose.msra.mxu0 0.0
      %1085 = vmatprep.subr.mxu0 0.0
      %1086 = vmatpush1.xpose.msra.mxu0 0.0
      %1087 = vmatprep.subr.mxu0 0.0
      %1088 = vmatpush1.xpose.msra.mxu0 0.0
      %1089 = vmatprep.subr.mxu0 0.0
      %1090 = vmatpush1.xpose.msra.mxu0 0.0
      %1091 = vmatprep.subr.mxu0 0.0
      %1092 = vmatpush1.xpose.msra.mxu0 0.0
      %1093 = vmatprep.subr.mxu0 0.0
      %1094 = vmatpush1.xpose.msra.mxu0 0.0
      %1095 = vmatprep.subr.mxu0 0.0
      %1096 = vmatpush1.xpose.msra.mxu0 0.0
      %1097 = vmatprep.subr.mxu0 0.0
      %1098 = vmatpush1.xpose.msra.mxu0 0.0
      %1099 = vmatprep.subr.mxu0 0.0
      %1100 = vmatpush1.xpose.msra.mxu0 0.0
      %1101 = vmatprep.subr.mxu0 0.0
      %1102 = vmatpush1.xpose.msra.mxu0 0.0
      %1103 = vmatprep.subr.mxu0 0.0
      %1104 = vmatpush1.xpose.msra.mxu0 0.0
      %1105 = vmatprep.subr.mxu0 0.0
      %1106 = vmatpush1.xpose.msra.mxu0 0.0
      %1107 = vmatprep.subr.mxu0 0.0
      %1108 = vmatpush1.xpose.msra.mxu0 0.0
      %1109 = vmatprep.subr.mxu0 0.0
      %1110 = vmatpush1.xpose.msra.mxu0 0.0
      %1111 = vmatprep.subr.mxu0 0.0
      %1112 = vmatpush1.xpose.msra.mxu0 %v1079
      %1113 = vmatprep.subr.mxu0 0.0
      %1114 = vmatpush2.xpose.msra.mxu0 0.0
      %1115 = vmatprep.subr.mxu0 0.0
      %1116 = vmatpush2.xpose.msra.mxu0 0.0
      %1117 = vmatprep.subr.mxu0 0.0
      %1118 = vmatpush2.xpose.msra.mxu0 0.0
      %1119 = vmatprep.subr.mxu0 0.0
      %1120 = vmatpush2.xpose.msra.mxu0 0.0
      %1121 = vmatprep.subr.mxu0 0.0
      %1122 = vmatpush2.xpose.msra.mxu0 0.0
      %1123 = vmatprep.subr.mxu0 0.0
      %1124 = vmatpush2.xpose.msra.mxu0 0.0
      %1125 = vmatprep.subr.mxu0 0.0
      %1126 = vmatpush2.xpose.msra.mxu0 0.0
      %1127 = vmatprep.subr.mxu0 0.0
      %1128 = vmatpush2.xpose.msra.mxu0 0.0
      %1129 = vmatprep.subr.mxu0 0.0
      %1130 = vmatpush2.xpose.msra.mxu0 0.0
      %1131 = vmatprep.subr.mxu0 0.0
      %1132 = vmatpush2.xpose.msra.mxu0 0.0
      %1133 = vmatprep.subr.mxu0 0.0
      %1134 = vmatpush2.xpose.msra.mxu0 0.0
      %1135 = vmatprep.subr.mxu0 0.0
      %1136 = vmatpush2.xpose.msra.mxu0 0.0
      %1137 = vmatprep.subr.mxu0 0.0
      %1138 = vmatpush2.xpose.msra.mxu0 0.0
      %1139 = vmatprep.subr.mxu0 0.0
      %1140 = vmatpush2.xpose.msra.mxu0 0.0
      %1141 = vmatprep.subr.mxu0 0.0
      %1142 = vmatpush2.xpose.msra.mxu0 0.0
      %1143 = vmatprep.subr.mxu0 0.0
      %1144 = vmatpush2.xpose.msra.mxu0 0.0
      %1145 = vmatprep.mubr.f32.mxu0 0.0
      %1146 = vmatmul.mubr.f32.gmra.mxu0 %v1074
      %v1147 = vpop.f32.mrf.mxu0
      %v1148 = vadd.f32 0.0, %v1147
      %v1149 = vpop.f32.mrf.mxu0
      %1150 = vmatprep.mubr.f32.mxu0 0.0
      %1151 = vmatmul.mubr.f32.gmra.mxu0 %v1076
      %v1152 = vpop.f32.mrf.mxu0
      %v1153 = vadd.f32 0.0, %v1152
      %v1154 = vpop.f32.mrf.mxu0
      %1155 = vdwg.mxu0
      %v1156 = vmul.f32 %v1060, 0.125
      %v1157 = vmul.f32 %v1065, 0.125
      %v1158 = vmul.f32 %v1148, 0.125
      %v1159 = vmul.f32 %v1153, 0.125
      %1160 = vrot.lane.b32.xlu0 %v977, 96
      %v1161 = vpop.permute.xlu0 %1160
      %vm1163 = vcmask 64512
      %v1165 = vsel %vm1163, %v1156, 0
      %v1168 = vsel %vm1163, %v1157, 0
      %1170 = vmatprep.subr.mxu0 0.0
      %1171 = vmatpush1.msra.mxu0 0.0
      %1172 = vmatprep.subr.mxu0 0.0
      %1173 = vmatpush1.msra.mxu0 0.0
      %1174 = vmatprep.subr.mxu0 0.0
      %1175 = vmatpush1.msra.mxu0 0.0
      %1176 = vmatprep.subr.mxu0 0.0
      %1177 = vmatpush1.msra.mxu0 0.0
      %1178 = vmatprep.subr.mxu0 0.0
      %1179 = vmatpush1.msra.mxu0 0.0
      %1180 = vmatprep.subr.mxu0 0.0
      %1181 = vmatpush1.msra.mxu0 0.0
      %1182 = vmatprep.subr.mxu0 0.0
      %1183 = vmatpush1.msra.mxu0 0.0
      %1184 = vmatprep.subr.mxu0 0.0
      %1185 = vmatpush1.msra.mxu0 0.0
      %1186 = vmatprep.subr.mxu0 0.0
      %1187 = vmatpush1.msra.mxu0 0.0
      %1188 = vmatprep.subr.mxu0 0.0
      %1189 = vmatpush1.msra.mxu0 0.0
      %1190 = vmatprep.subr.mxu0 0.0
      %1191 = vmatpush1.msra.mxu0 0.0
      %1192 = vmatprep.subr.mxu0 0.0
      %1193 = vmatpush1.msra.mxu0 0.0
      %1194 = vmatprep.subr.mxu0 0.0
      %1195 = vmatpush1.msra.mxu0 0.0
      %1196 = vmatprep.subr.mxu0 0.0
      %1197 = vmatpush1.msra.mxu0 0.0
      %1198 = vmatprep.subr.mxu0 0.0
      %1199 = vmatpush1.msra.mxu0 0.0
      %1200 = vmatprep.subr.mxu0 0.0
      %1201 = vmatpush1.msra.mxu0 %v1161
      %1202 = vmatprep.subr.mxu0 0.0
      %1203 = vmatpush2.msra.mxu0 0.0
      %1204 = vmatprep.subr.mxu0 0.0
      %1205 = vmatpush2.msra.mxu0 0.0
      %1206 = vmatprep.subr.mxu0 0.0
      %1207 = vmatpush2.msra.mxu0 0.0
      %1208 = vmatprep.subr.mxu0 0.0
      %1209 = vmatpush2.msra.mxu0 0.0
      %1210 = vmatprep.subr.mxu0 0.0
      %1211 = vmatpush2.msra.mxu0 0.0
      %1212 = vmatprep.subr.mxu0 0.0
      %1213 = vmatpush2.msra.mxu0 0.0
      %1214 = vmatprep.subr.mxu0 0.0
      %1215 = vmatpush2.msra.mxu0 0.0
      %1216 = vmatprep.subr.mxu0 0.0
      %1217 = vmatpush2.msra.mxu0 0.0
      %1218 = vmatprep.subr.mxu0 0.0
      %1219 = vmatpush2.msra.mxu0 0.0
      %1220 = vmatprep.subr.mxu0 0.0
      %1221 = vmatpush2.msra.mxu0 0.0
      %1222 = vmatprep.subr.mxu0 0.0
      %1223 = vmatpush2.msra.mxu0 0.0
      %1224 = vmatprep.subr.mxu0 0.0
      %1225 = vmatpush2.msra.mxu0 0.0
      %1226 = vmatprep.subr.mxu0 0.0
      %1227 = vmatpush2.msra.mxu0 0.0
      %1228 = vmatprep.subr.mxu0 0.0
      %1229 = vmatpush2.msra.mxu0 0.0
      %1230 = vmatprep.subr.mxu0 0.0
      %1231 = vmatpush2.msra.mxu0 0.0
      %1232 = vmatprep.subr.mxu0 0.0
      %1233 = vmatpush2.msra.mxu0 0.0
      %1234 = vmatprep.mubr.f32.mxu0 0.0
      %1235 = vmatmul.mubr.f32.gmra.mxu0 %v1165
      %v1236 = vpop.f32.mrf.mxu0
      %v1237 = vadd.f32 0.0, %v1236
      %v1238 = vpop.f32.mrf.mxu0
      %1239 = vmatprep.mubr.f32.mxu0 0.0
      %1240 = vmatmul.mubr.f32.gmra.mxu0 %v1168
      %v1241 = vpop.f32.mrf.mxu0
      %v1242 = vadd.f32 0.0, %v1241
      %v1243 = vpop.f32.mrf.mxu0
      %1244 = vdwg.mxu0
      %1245 = vrot.lane.b32.xlu0 %v978, 96
      %v1246 = vpop.permute.xlu0 %1245
      %v1249 = vsel %vm1163, %v1158, 0
      %v1252 = vsel %vm1163, %v1159, 0
      %1254 = vmatprep.subr.mxu0 0.0
      %1255 = vmatpush1.msra.mxu0 0.0
      %1256 = vmatprep.subr.mxu0 0.0
      %1257 = vmatpush1.msra.mxu0 0.0
      %1258 = vmatprep.subr.mxu0 0.0
      %1259 = vmatpush1.msra.mxu0 0.0
      %1260 = vmatprep.subr.mxu0 0.0
      %1261 = vmatpush1.msra.mxu0 0.0
      %1262 = vmatprep.subr.mxu0 0.0
      %1263 = vmatpush1.msra.mxu0 0.0
      %1264 = vmatprep.subr.mxu0 0.0
      %1265 = vmatpush1.msra.mxu0 0.0
      %1266 = vmatprep.subr.mxu0 0.0
      %1267 = vmatpush1.msra.mxu0 0.0
      %1268 = vmatprep.subr.mxu0 0.0
      %1269 = vmatpush1.msra.mxu0 0.0
      %1270 = vmatprep.subr.mxu0 0.0
      %1271 = vmatpush1.msra.mxu0 0.0
      %1272 = vmatprep.subr.mxu0 0.0
      %1273 = vmatpush1.msra.mxu0 0.0
      %1274 = vmatprep.subr.mxu0 0.0
      %1275 = vmatpush1.msra.mxu0 0.0
      %1276 = vmatprep.subr.mxu0 0.0
      %1277 = vmatpush1.msra.mxu0 0.0
      %1278 = vmatprep.subr.mxu0 0.0
      %1279 = vmatpush1.msra.mxu0 0.0
      %1280 = vmatprep.subr.mxu0 0.0
      %1281 = vmatpush1.msra.mxu0 0.0
      %1282 = vmatprep.subr.mxu0 0.0
      %1283 = vmatpush1.msra.mxu0 0.0
      %1284 = vmatprep.subr.mxu0 0.0
      %1285 = vmatpush1.msra.mxu0 %v1246
      %1286 = vmatprep.subr.mxu0 0.0
      %1287 = vmatpush2.msra.mxu0 0.0
      %1288 = vmatprep.subr.mxu0 0.0
      %1289 = vmatpush2.msra.mxu0 0.0
      %1290 = vmatprep.subr.mxu0 0.0
      %1291 = vmatpush2.msra.mxu0 0.0
      %1292 = vmatprep.subr.mxu0 0.0
      %1293 = vmatpush2.msra.mxu0 0.0
      %1294 = vmatprep.subr.mxu0 0.0
      %1295 = vmatpush2.msra.mxu0 0.0
      %1296 = vmatprep.subr.mxu0 0.0
      %1297 = vmatpush2.msra.mxu0 0.0
      %1298 = vmatprep.subr.mxu0 0.0
      %1299 = vmatpush2.msra.mxu0 0.0
      %1300 = vmatprep.subr.mxu0 0.0
      %1301 = vmatpush2.msra.mxu0 0.0
      %1302 = vmatprep.subr.mxu0 0.0
      %1303 = vmatpush2.msra.mxu0 0.0
      %1304 = vmatprep.subr.mxu0 0.0
      %1305 = vmatpush2.msra.mxu0 0.0
      %1306 = vmatprep.subr.mxu0 0.0
      %1307 = vmatpush2.msra.mxu0 0.0
      %1308 = vmatprep.subr.mxu0 0.0
      %1309 = vmatpush2.msra.mxu0 0.0
      %1310 = vmatprep.subr.mxu0 0.0
      %1311 = vmatpush2.msra.mxu0 0.0
      %1312 = vmatprep.subr.mxu0 0.0
      %1313 = vmatpush2.msra.mxu0 0.0
      %1314 = vmatprep.subr.mxu0 0.0
      %1315 = vmatpush2.msra.mxu0 0.0
      %1316 = vmatprep.subr.mxu0 0.0
      %1317 = vmatpush2.msra.mxu0 0.0
      %1318 = vmatprep.mubr.f32.mxu0 0.0
      %1319 = vmatmul.mubr.f32.gmra.mxu0 %v1249
      %v1320 = vpop.f32.mrf.mxu0
      %v1321 = vadd.f32 0.0, %v1320
      %v1322 = vpop.f32.mrf.mxu0
      %1323 = vmatprep.mubr.f32.mxu0 0.0
      %1324 = vmatmul.mubr.f32.gmra.mxu0 %v1252
      %v1325 = vpop.f32.mrf.mxu0
      %v1326 = vadd.f32 0.0, %v1325
      %v1327 = vpop.f32.mrf.mxu0
      %1328 = vdwg.mxu0
      %v1329 = vld [vmem:[%s2 + $0xf8] sm:$0xff]
      %v1330 = vld [vmem:[%s2 + $0x100] sm:$0xff]
      %v1331 = vld [vmem:[%s2 + $0x108] sm:$0xff]
      %v1332 = vld [vmem:[%s2 + $0x110] sm:$0xff]
      %v1333 = vld [vmem:[%s3 + $0x5] sm:$0x1]
      %v1334 = vlaneseq
      %v1335 = vshrl.u32 %v1334, 7
      %v1336 = vsub.s32 0, %v1335
      %v1337 = vrot.slane %v1333, %v1336
      %v1339 = vsel %vm985, %v1237, 0
      %v1342 = vsel %vm985, %v1242, 0
      %v1345 = vsel %vm985, %v1321, 0
      %v1348 = vsel %vm985, %v1326, 0
      %1350 = vmatprep.subr.mxu0 0.0
      %1351 = vmatpush1.msra.mxu0 0.0
      %1352 = vmatprep.subr.mxu0 0.0
      %1353 = vmatpush1.msra.mxu0 0.0
      %1354 = vmatprep.subr.mxu0 0.0
      %1355 = vmatpush1.msra.mxu0 0.0
      %1356 = vmatprep.subr.mxu0 0.0
      %1357 = vmatpush1.msra.mxu0 0.0
      %1358 = vmatprep.subr.mxu0 0.0
      %1359 = vmatpush1.msra.mxu0 0.0
      %1360 = vmatprep.subr.mxu0 0.0
      %1361 = vmatpush1.msra.mxu0 0.0
      %1362 = vmatprep.subr.mxu0 0.0
      %1363 = vmatpush1.msra.mxu0 0.0
      %1364 = vmatprep.subr.mxu0 0.0
      %1365 = vmatpush1.msra.mxu0 0.0
      %1366 = vmatprep.subr.mxu0 0.0
      %1367 = vmatpush1.msra.mxu0 0.0
      %1368 = vmatprep.subr.mxu0 0.0
      %1369 = vmatpush1.msra.mxu0 0.0
      %1370 = vmatprep.subr.mxu0 0.0
      %1371 = vmatpush1.msra.mxu0 0.0
      %1372 = vmatprep.subr.mxu0 0.0
      %1373 = vmatpush1.msra.mxu0 0.0
      %1374 = vmatprep.subr.mxu0 0.0
      %1375 = vmatpush1.msra.mxu0 %v1332
      %1376 = vmatprep.subr.mxu0 0.0
      %1377 = vmatpush1.msra.mxu0 %v1331
      %1378 = vmatprep.subr.mxu0 0.0
      %1379 = vmatpush1.msra.mxu0 %v1330
      %1380 = vmatprep.subr.mxu0 0.0
      %1381 = vmatpush1.msra.mxu0 %v1329
      %1382 = vmatprep.subr.mxu0 0.0
      %1383 = vmatpush2.msra.mxu0 0.0
      %1384 = vmatprep.subr.mxu0 0.0
      %1385 = vmatpush2.msra.mxu0 0.0
      %1386 = vmatprep.subr.mxu0 0.0
      %1387 = vmatpush2.msra.mxu0 0.0
      %1388 = vmatprep.subr.mxu0 0.0
      %1389 = vmatpush2.msra.mxu0 0.0
      %1390 = vmatprep.subr.mxu0 0.0
      %1391 = vmatpush2.msra.mxu0 0.0
      %1392 = vmatprep.subr.mxu0 0.0
      %1393 = vmatpush2.msra.mxu0 0.0
      %1394 = vmatprep.subr.mxu0 0.0
      %1395 = vmatpush2.msra.mxu0 0.0
      %1396 = vmatprep.subr.mxu0 0.0
      %1397 = vmatpush2.msra.mxu0 0.0
      %1398 = vmatprep.subr.mxu0 0.0
      %1399 = vmatpush2.msra.mxu0 0.0
      %1400 = vmatprep.subr.mxu0 0.0
      %1401 = vmatpush2.msra.mxu0 0.0
      %1402 = vmatprep.subr.mxu0 0.0
      %1403 = vmatpush2.msra.mxu0 0.0
      %1404 = vmatprep.subr.mxu0 0.0
      %1405 = vmatpush2.msra.mxu0 0.0
      %1406 = vmatprep.subr.mxu0 0.0
      %1407 = vmatpush2.msra.mxu0 0.0
      %1408 = vmatprep.subr.mxu0 0.0
      %1409 = vmatpush2.msra.mxu0 0.0
      %1410 = vmatprep.subr.mxu0 0.0
      %1411 = vmatpush2.msra.mxu0 0.0
      %1412 = vmatprep.subr.mxu0 0.0
      %1413 = vmatpush2.msra.mxu0 0.0
      %1414 = vmatprep.mubr.f32.mxu0 0.0
      %1415 = vmatmul.mubr.f32.gmra.mxu0 %v1339
      %v1416 = vpop.f32.mrf.mxu0
      %v1417 = vadd.f32 %v1337, %v1416
      %v1418 = vpop.f32.mrf.mxu0
      %1419 = vmatprep.mubr.f32.mxu0 0.0
      %1420 = vmatmul.mubr.f32.gmra.mxu0 %v1342
      %v1421 = vpop.f32.mrf.mxu0
      %v1422 = vadd.f32 %v1337, %v1421
      %v1423 = vpop.f32.mrf.mxu0
      %1424 = vmatprep.mubr.f32.mxu0 0.0
      %1425 = vmatmul.mubr.f32.gmra.mxu0 %v1345
      %v1426 = vpop.f32.mrf.mxu0
      %v1427 = vadd.f32 %v1337, %v1426
      %v1428 = vpop.f32.mrf.mxu0
      %1429 = vmatprep.mubr.f32.mxu0 0.0
      %1430 = vmatmul.mubr.f32.gmra.mxu0 %v1348
      %v1431 = vpop.f32.mrf.mxu0
      %v1432 = vadd.f32 %v1337, %v1431
      %v1433 = vpop.f32.mrf.mxu0
      %1434 = vdwg.mxu0
      %v1435 = vadd.f32 %v1417, %v851
      %v1436 = vadd.f32 %v1422, %v852
      %v1437 = vadd.f32 %v1427, %v853
      %v1438 = vadd.f32 %v1432, %v854
      %v1439 = vld [vmem:[%s2 + $0x118] sm:$0xff]
      %v1440 = vld [vmem:[%s2 + $0x120] sm:$0xff]
      %v1441 = vld [vmem:[%s2 + $0x128] sm:$0xff]
      %v1442 = vld [vmem:[%s2 + $0x130] sm:$0xff]
      %v1443 = vld [vmem:[%s2 + $0x138] sm:$0xff]
      %v1444 = vld [vmem:[%s2 + $0x140] sm:$0xff]
      %v1445 = vld [vmem:[%s2 + $0x148] sm:$0xff]
      %v1446 = vld [vmem:[%s2 + $0x150] sm:$0xff]
      %v1447 = vld [vmem:[%s3 + $0x6] sm:$0x1]
      %v1448 = vlaneseq
      %v1449 = vshrl.u32 %v1448, 7
      %v1450 = vsub.s32 0, %v1449
      %v1451 = vrot.slane %v1447, %v1450
      %v1453 = vsel %vm868, %v1435, 0
      %v1456 = vsel %vm868, %v1436, 0
      %v1459 = vsel %vm868, %v1437, 0
      %v1462 = vsel %vm868, %v1438, 0
      %1464 = vmatprep.subr.mxu0 0.0
      %1465 = vmatpush1.msra.mxu0 0.0
      %1466 = vmatprep.subr.mxu0 0.0
      %1467 = vmatpush1.msra.mxu0 0.0
      %1468 = vmatprep.subr.mxu0 0.0
      %1469 = vmatpush1.msra.mxu0 0.0
      %1470 = vmatprep.subr.mxu0 0.0
      %1471 = vmatpush1.msra.mxu0 0.0
      %1472 = vmatprep.subr.mxu0 0.0
      %1473 = vmatpush1.msra.mxu0 0.0
      %1474 = vmatprep.subr.mxu0 0.0
      %1475 = vmatpush1.msra.mxu0 0.0
      %1476 = vmatprep.subr.mxu0 0.0
      %1477 = vmatpush1.msra.mxu0 0.0
      %1478 = vmatprep.subr.mxu0 0.0
      %1479 = vmatpush1.msra.mxu0 0.0
      %1480 = vmatprep.subr.mxu0 0.0
      %1481 = vmatpush1.msra.mxu0 %v1446
      %1482 = vmatprep.subr.mxu0 0.0
      %1483 = vmatpush1.msra.mxu0 %v1445
      %1484 = vmatprep.subr.mxu0 0.0
      %1485 = vmatpush1.msra.mxu0 %v1444
      %1486 = vmatprep.subr.mxu0 0.0
      %1487 = vmatpush1.msra.mxu0 %v1443
      %1488 = vmatprep.subr.mxu0 0.0
      %1489 = vmatpush1.msra.mxu0 %v1442
      %1490 = vmatprep.subr.mxu0 0.0
      %1491 = vmatpush1.msra.mxu0 %v1441
      %1492 = vmatprep.subr.mxu0 0.0
      %1493 = vmatpush1.msra.mxu0 %v1440
      %1494 = vmatprep.subr.mxu0 0.0
      %1495 = vmatpush1.msra.mxu0 %v1439
      %1496 = vmatprep.subr.mxu0 0.0
      %1497 = vmatpush2.msra.mxu0 0.0
      %1498 = vmatprep.subr.mxu0 0.0
      %1499 = vmatpush2.msra.mxu0 0.0
      %1500 = vmatprep.subr.mxu0 0.0
      %1501 = vmatpush2.msra.mxu0 0.0
      %1502 = vmatprep.subr.mxu0 0.0
      %1503 = vmatpush2.msra.mxu0 0.0
      %1504 = vmatprep.subr.mxu0 0.0
      %1505 = vmatpush2.msra.mxu0 0.0
      %1506 = vmatprep.subr.mxu0 0.0
      %1507 = vmatpush2.msra.mxu0 0.0
      %1508 = vmatprep.subr.mxu0 0.0
      %1509 = vmatpush2.msra.mxu0 0.0
      %1510 = vmatprep.subr.mxu0 0.0
      %1511 = vmatpush2.msra.mxu0 0.0
      %1512 = vmatprep.subr.mxu0 0.0
      %1513 = vmatpush2.msra.mxu0 0.0
      %1514 = vmatprep.subr.mxu0 0.0
      %1515 = vmatpush2.msra.mxu0 0.0
      %1516 = vmatprep.subr.mxu0 0.0
      %1517 = vmatpush2.msra.mxu0 0.0
      %1518 = vmatprep.subr.mxu0 0.0
      %1519 = vmatpush2.msra.mxu0 0.0
      %1520 = vmatprep.subr.mxu0 0.0
      %1521 = vmatpush2.msra.mxu0 0.0
      %1522 = vmatprep.subr.mxu0 0.0
      %1523 = vmatpush2.msra.mxu0 0.0
      %1524 = vmatprep.subr.mxu0 0.0
      %1525 = vmatpush2.msra.mxu0 0.0
      %1526 = vmatprep.subr.mxu0 0.0
      %1527 = vmatpush2.msra.mxu0 0.0
      %1528 = vmatprep.mubr.f32.mxu0 0.0
      %1529 = vmatmul.mubr.f32.gmra.mxu0 %v1453
      %v1530 = vpop.f32.mrf.mxu0
      %v1531 = vadd.f32 %v1451, %v1530
      %v1532 = vpop.f32.mrf.mxu0
      %1533 = vmatprep.mubr.f32.mxu0 0.0
      %1534 = vmatmul.mubr.f32.gmra.mxu0 %v1456
      %v1535 = vpop.f32.mrf.mxu0
      %v1536 = vadd.f32 %v1451, %v1535
      %v1537 = vpop.f32.mrf.mxu0
      %1538 = vmatprep.mubr.f32.mxu0 0.0
      %1539 = vmatmul.mubr.f32.gmra.mxu0 %v1459
      %v1540 = vpop.f32.mrf.mxu0
      %v1541 = vadd.f32 %v1451, %v1540
      %v1542 = vpop.f32.mrf.mxu0
      %1543 = vmatprep.mubr.f32.mxu0 0.0
      %1544 = vmatmul.mubr.f32.gmra.mxu0 %v1462
      %v1545 = vpop.f32.mrf.mxu0
      %v1546 = vadd.f32 %v1451, %v1545
      %v1547 = vpop.f32.mrf.mxu0
      %1548 = vdwg.mxu0
      %v1549 = vsel %vm1163, %v1531, -inf
      %1550 = vmax.xlane.f32.xlu0 %v1549
      %v1551 = vpop.xlane.xlu0 %1550
      %v1552 = vsel %vm1163, %v1536, -inf
      %1553 = vmax.xlane.f32.xlu0 %v1552
      %v1554 = vpop.xlane.xlu0 %1553
      %v1555 = vsel %vm1163, %v1541, -inf
      %1556 = vmax.xlane.f32.xlu0 %v1555
      %v1557 = vpop.xlane.xlu0 %1556
      %v1558 = vsel %vm1163, %v1546, -inf
      %1559 = vmax.xlane.f32.xlu0 %v1558
      %v1560 = vpop.xlane.xlu0 %1559
      %v1561 = vsub.f32 %v1531, %v1551
      %v1562 = vsub.f32 %v1536, %v1554
      %v1563 = vsub.f32 %v1541, %v1557
      %v1564 = vsub.f32 %v1546, %v1560
      %v1565 = vmul.f32 %v1561, 1.442695
      %v1566 = vpow.pop %v1565
      %v1567 = vmul.f32 %v1562, 1.442695
      %v1568 = vpow.pop %v1567
      %v1569 = vmul.f32 %v1563, 1.442695
      %v1570 = vpow.pop %v1569
      %v1571 = vmul.f32 %v1564, 1.442695
      %v1572 = vpow.pop %v1571
      %v1573 = vsel %vm1163, %v1566, 0.0
      %1574 = vadd.xlane.f32.xlu0 %v1573
      %v1575 = vpop.xlane.xlu0 %1574
      %v1576 = vsel %vm1163, %v1568, 0.0
      %1577 = vadd.xlane.f32.xlu0 %v1576
      %v1578 = vpop.xlane.xlu0 %1577
      %v1579 = vsel %vm1163, %v1570, 0.0
      %1580 = vadd.xlane.f32.xlu0 %v1579
      %v1581 = vpop.xlane.xlu0 %1580
      %v1582 = vsel %vm1163, %v1572, 0.0
      %1583 = vadd.xlane.f32.xlu0 %v1582
      %v1584 = vpop.xlane.xlu0 %1583
      %v1585 = vlog2.pop %v1575
      %v1586 = vmul.f32 %v1585, 0.6931472
      %v1587 = vlog2.pop %v1578
      %v1588 = vmul.f32 %v1587, 0.6931472
      %v1589 = vlog2.pop %v1581
      %v1590 = vmul.f32 %v1589, 0.6931472
      %v1591 = vlog2.pop %v1584
      %v1592 = vmul.f32 %v1591, 0.6931472
      %v1593 = vsub.f32 %v1561, %v1586
      %v1594 = vsub.f32 %v1562, %v1588
      %v1595 = vsub.f32 %v1563, %v1590
      %v1596 = vsub.f32 %v1564, %v1592
      %1597 = vst.msk [vmem:[%s250] sm:$0xff] %vm1163, %v1593
      %1598 = vst.msk [vmem:[%s250 + $0x8] sm:$0xff] %vm1163, %v1594
      %1599 = vst.msk [vmem:[%s250 + $0x10] sm:$0xff] %vm1163, %v1595
      %1600 = vst.msk [vmem:[%s250 + $0x18] sm:$0xff] %vm1163, %v1596
      %vm1601 = vcmask 72768
      %v1602 = vsel %vm1601, %v1531, -inf
      %v1603 = vsel %vm1601, %v1536, -inf
      %v1604 = vmax.f32 %v1602, %v1603
      %v1605 = vrot.slane %v1604, 4
      %v1606 = vmax.f32 %v1604, %v1605
      %v1607 = vrot.slane %v1606, 2
      %v1608 = vmax.f32 %v1606, %v1607
      %v1609 = vrot.slane %v1608, 1
      %v1610 = vmax.f32 %v1608, %v1609
      %v1611 = vsel %vm1601, %v1541, -inf
      %v1612 = vsel %vm1601, %v1546, -inf
      %v1613 = vmax.f32 %v1611, %v1612
      %v1614 = vrot.slane %v1613, 4
      %v1615 = vmax.f32 %v1613, %v1614
      %v1616 = vrot.slane %v1615, 2
      %v1617 = vmax.f32 %v1615, %v1616
      %v1618 = vrot.slane %v1617, 1
      %v1619 = vmax.f32 %v1617, %v1618
      %v1620 = vsub.f32 %v1531, %v1610
      %v1621 = vsub.f32 %v1536, %v1610
      %v1622 = vsub.f32 %v1541, %v1619
      %v1623 = vsub.f32 %v1546, %v1619
      %v1624 = vmul.f32 %v1620, 1.442695
      %v1625 = vpow.pop %v1624
      %v1626 = vmul.f32 %v1621, 1.442695
      %v1627 = vpow.pop %v1626
      %v1628 = vmul.f32 %v1622, 1.442695
      %v1629 = vpow.pop %v1628
      %v1630 = vmul.f32 %v1623, 1.442695
      %v1631 = vpow.pop %v1630
      %v1632 = vsel %vm1601, %v1625, 0.0
      %v1633 = vsel %vm1601, %v1627, 0.0
      %v1634 = vadd.f32 %v1632, %v1633
      %v1635 = vrot.slane %v1634, 4
      %v1636 = vadd.f32 %v1634, %v1635
      %v1637 = vrot.slane %v1636, 2
      %v1638 = vadd.f32 %v1636, %v1637
      %v1639 = vrot.slane %v1638, 1
      %v1640 = vadd.f32 %v1638, %v1639
      %v1641 = vsel %vm1601, %v1629, 0.0
      %v1642 = vsel %vm1601, %v1631, 0.0
      %v1643 = vadd.f32 %v1641, %v1642
      %v1644 = vrot.slane %v1643, 4
      %v1645 = vadd.f32 %v1643, %v1644
      %v1646 = vrot.slane %v1645, 2
      %v1647 = vadd.f32 %v1645, %v1646
      %v1648 = vrot.slane %v1647, 1
      %v1649 = vadd.f32 %v1647, %v1648
      %v1650 = vrcp.pop %v1640
      %v1651 = vmul.f32 %v1625, %v1650
      %v1652 = vmul.f32 %v1627, %v1650
      %v1653 = vrcp.pop %v1649
      %v1654 = vmul.f32 %v1629, %v1653
      %v1655 = vmul.f32 %v1631, %v1653
      %1657 = vset.pattern.permute.xlu0 8
      %1658 = vperm.xlu0 %1657, %v1651
      %v1659 = vpop.permute.xlu0 %1658
      %1662 = vset.pattern.permute.xlu0 8
      %1663 = vperm.xlu0 %1662, %v1652
      %v1664 = vpop.permute.xlu0 %1663
      %1667 = vset.pattern.permute.xlu0 8
      %1668 = vperm.xlu0 %1667, %v1654
      %v1669 = vpop.permute.xlu0 %1668
      %1672 = vset.pattern.permute.xlu0 8
      %1673 = vperm.xlu0 %1672, %v1655
      %v1674 = vpop.permute.xlu0 %1673
      %v1676 = vmul.f32 %v1435, %v1659
      %v1677 = vmul.f32 %v1436, %v1664
      %v1678 = vmul.f32 %v1437, %v1669
      %v1679 = vmul.f32 %v1438, %v1674
      %v1680 = vsel %vm868, %v1676, 0.0
      %v1681 = vsel %vm868, %v1677, 0.0
      %v1682 = vadd.f32 %v1680, %v1681
      %v1683 = vrot.slane %v1682, 4
      %v1684 = vadd.f32 %v1682, %v1683
      %v1685 = vrot.slane %v1684, 2
      %v1686 = vadd.f32 %v1684, %v1685
      %v1687 = vrot.slane %v1686, 1
      %v1688 = vadd.f32 %v1686, %v1687
      %v1689 = vsel %vm868, %v1678, 0.0
      %v1690 = vsel %vm868, %v1679, 0.0
      %v1691 = vadd.f32 %v1689, %v1690
      %v1692 = vrot.slane %v1691, 4
      %v1693 = vadd.f32 %v1691, %v1692
      %v1694 = vrot.slane %v1693, 2
      %v1695 = vadd.f32 %v1693, %v1694
      %v1696 = vrot.slane %v1695, 1
      %v1697 = vadd.f32 %v1695, %v1696
      %v1698 = vld [vmem:[%s2 + $0x158] sm:$0xff]
      %v1699 = vld [vmem:[%s2 + $0x160] sm:$0xff]
      %v1700 = vld [vmem:[%s2 + $0x168] sm:$0xff]
      %v1701 = vld [vmem:[%s2 + $0x170] sm:$0xff]
      %v1702 = vld [vmem:[%s2 + $0x178] sm:$0xff]
      %v1703 = vld [vmem:[%s2 + $0x180] sm:$0xff]
      %v1704 = vld [vmem:[%s2 + $0x188] sm:$0xff]
      %v1705 = vld [vmem:[%s2 + $0x190] sm:$0xff]
      %v1706 = vld [vmem:[%s3 + $0x7] sm:$0x1]
      %v1707 = vlaneseq
      %v1708 = vshrl.u32 %v1707, 7
      %v1709 = vsub.s32 0, %v1708
      %v1710 = vrot.slane %v1706, %v1709
      %vm1713 = vcmask 1041409
      %v1714 = vsel %vm1713, %v1697, %v1688
      %v1715 = vsel %vm868, %v1714, 0
      %1717 = vmatprep.subr.mxu0 0.0
      %1718 = vmatpush1.msra.mxu0 0.0
      %1719 = vmatprep.subr.mxu0 0.0
      %1720 = vmatpush1.msra.mxu0 0.0
      %1721 = vmatprep.subr.mxu0 0.0
      %1722 = vmatpush1.msra.mxu0 0.0
      %1723 = vmatprep.subr.mxu0 0.0
      %1724 = vmatpush1.msra.mxu0 0.0
      %1725 = vmatprep.subr.mxu0 0.0
      %1726 = vmatpush1.msra.mxu0 0.0
      %1727 = vmatprep.subr.mxu0 0.0
      %1728 = vmatpush1.msra.mxu0 0.0
      %1729 = vmatprep.subr.mxu0 0.0
      %1730 = vmatpush1.msra.mxu0 0.0
      %1731 = vmatprep.subr.mxu0 0.0
      %1732 = vmatpush1.msra.mxu0 0.0
      %1733 = vmatprep.subr.mxu0 0.0
      %1734 = vmatpush1.msra.mxu0 %v1705
      %1735 = vmatprep.subr.mxu0 0.0
      %1736 = vmatpush1.msra.mxu0 %v1704
      %1737 = vmatprep.subr.mxu0 0.0
      %1738 = vmatpush1.msra.mxu0 %v1703
      %1739 = vmatprep.subr.mxu0 0.0
      %1740 = vmatpush1.msra.mxu0 %v1702
      %1741 = vmatprep.subr.mxu0 0.0
      %1742 = vmatpush1.msra.mxu0 %v1701
      %1743 = vmatprep.subr.mxu0 0.0
      %1744 = vmatpush1.msra.mxu0 %v1700
      %1745 = vmatprep.subr.mxu0 0.0
      %1746 = vmatpush1.msra.mxu0 %v1699
      %1747 = vmatprep.subr.mxu0 0.0
      %1748 = vmatpush1.msra.mxu0 %v1698
      %1749 = vmatprep.subr.mxu0 0.0
      %1750 = vmatpush2.msra.mxu0 0.0
      %1751 = vmatprep.subr.mxu0 0.0
      %1752 = vmatpush2.msra.mxu0 0.0
      %1753 = vmatprep.subr.mxu0 0.0
      %1754 = vmatpush2.msra.mxu0 0.0
      %1755 = vmatprep.subr.mxu0 0.0
      %1756 = vmatpush2.msra.mxu0 0.0
      %1757 = vmatprep.subr.mxu0 0.0
      %1758 = vmatpush2.msra.mxu0 0.0
      %1759 = vmatprep.subr.mxu0 0.0
      %1760 = vmatpush2.msra.mxu0 0.0
      %1761 = vmatprep.subr.mxu0 0.0
      %1762 = vmatpush2.msra.mxu0 0.0
      %1763 = vmatprep.subr.mxu0 0.0
      %1764 = vmatpush2.msra.mxu0 0.0
      %1765 = vmatprep.subr.mxu0 0.0
      %1766 = vmatpush2.msra.mxu0 0.0
      %1767 = vmatprep.subr.mxu0 0.0
      %1768 = vmatpush2.msra.mxu0 0.0
      %1769 = vmatprep.subr.mxu0 0.0
      %1770 = vmatpush2.msra.mxu0 0.0
      %1771 = vmatprep.subr.mxu0 0.0
      %1772 = vmatpush2.msra.mxu0 0.0
      %1773 = vmatprep.subr.mxu0 0.0
      %1774 = vmatpush2.msra.mxu0 0.0
      %1775 = vmatprep.subr.mxu0 0.0
      %1776 = vmatpush2.msra.mxu0 0.0
      %1777 = vmatprep.subr.mxu0 0.0
      %1778 = vmatpush2.msra.mxu0 0.0
      %1779 = vmatprep.subr.mxu0 0.0
      %1780 = vmatpush2.msra.mxu0 0.0
      %1781 = vmatprep.mubr.f32.mxu0 0.0
      %1782 = vmatmul.mubr.f32.gmra.mxu0 %v1715
      %v1783 = vpop.f32.mrf.mxu0
      %v1784 = vadd.f32 %v1710, %v1783
      %v1785 = vpop.f32.mrf.mxu0
      %1786 = vdwg.mxu0
      %v1787 = vmax.f32 %v1784, 0.0
      %v1788 = vld [vmem:[%s2 + $0x198] sm:$0xff]
      %v1789 = vld [vmem:[%s2 + $0x1a0] sm:$0xff]
      %v1790 = vld [vmem:[%s2 + $0x1a8] sm:$0xff]
      %v1791 = vld [vmem:[%s2 + $0x1b0] sm:$0xff]
      %v1792 = vld [vmem:[%s2 + $0x1b8] sm:$0xff]
      %v1793 = vld [vmem:[%s2 + $0x1c0] sm:$0xff]
      %v1794 = vld [vmem:[%s2 + $0x1c8] sm:$0xff]
      %v1795 = vld [vmem:[%s2 + $0x1d0] sm:$0xff]
      %v1796 = vld [vmem:[%s3 + $0x8] sm:$0x1]
      %v1797 = vlaneseq
      %v1798 = vshrl.u32 %v1797, 7
      %v1799 = vsub.s32 0, %v1798
      %v1800 = vrot.slane %v1796, %v1799
      %v1802 = vsel %vm868, %v1787, 0
      %1804 = vmatprep.subr.mxu0 0.0
      %1805 = vmatpush1.msra.mxu0 0.0
      %1806 = vmatprep.subr.mxu0 0.0
      %1807 = vmatpush1.msra.mxu0 0.0
      %1808 = vmatprep.subr.mxu0 0.0
      %1809 = vmatpush1.msra.mxu0 0.0
      %1810 = vmatprep.subr.mxu0 0.0
      %1811 = vmatpush1.msra.mxu0 0.0
      %1812 = vmatprep.subr.mxu0 0.0
      %1813 = vmatpush1.msra.mxu0 0.0
      %1814 = vmatprep.subr.mxu0 0.0
      %1815 = vmatpush1.msra.mxu0 0.0
      %1816 = vmatprep.subr.mxu0 0.0
      %1817 = vmatpush1.msra.mxu0 0.0
      %1818 = vmatprep.subr.mxu0 0.0
      %1819 = vmatpush1.msra.mxu0 0.0
      %1820 = vmatprep.subr.mxu0 0.0
      %1821 = vmatpush1.msra.mxu0 %v1795
      %1822 = vmatprep.subr.mxu0 0.0
      %1823 = vmatpush1.msra.mxu0 %v1794
      %1824 = vmatprep.subr.mxu0 0.0
      %1825 = vmatpush1.msra.mxu0 %v1793
      %1826 = vmatprep.subr.mxu0 0.0
      %1827 = vmatpush1.msra.mxu0 %v1792
      %1828 = vmatprep.subr.mxu0 0.0
      %1829 = vmatpush1.msra.mxu0 %v1791
      %1830 = vmatprep.subr.mxu0 0.0
      %1831 = vmatpush1.msra.mxu0 %v1790
      %1832 = vmatprep.subr.mxu0 0.0
      %1833 = vmatpush1.msra.mxu0 %v1789
      %1834 = vmatprep.subr.mxu0 0.0
      %1835 = vmatpush1.msra.mxu0 %v1788
      %1836 = vmatprep.subr.mxu0 0.0
      %1837 = vmatpush2.msra.mxu0 0.0
      %1838 = vmatprep.subr.mxu0 0.0
      %1839 = vmatpush2.msra.mxu0 0.0
      %1840 = vmatprep.subr.mxu0 0.0
      %1841 = vmatpush2.msra.mxu0 0.0
      %1842 = vmatprep.subr.mxu0 0.0
      %1843 = vmatpush2.msra.mxu0 0.0
      %1844 = vmatprep.subr.mxu0 0.0
      %1845 = vmatpush2.msra.mxu0 0.0
      %1846 = vmatprep.subr.mxu0 0.0
      %1847 = vmatpush2.msra.mxu0 0.0
      %1848 = vmatprep.subr.mxu0 0.0
      %1849 = vmatpush2.msra.mxu0 0.0
      %1850 = vmatprep.subr.mxu0 0.0
      %1851 = vmatpush2.msra.mxu0 0.0
      %1852 = vmatprep.subr.mxu0 0.0
      %1853 = vmatpush2.msra.mxu0 0.0
      %1854 = vmatprep.subr.mxu0 0.0
      %1855 = vmatpush2.msra.mxu0 0.0
      %1856 = vmatprep.subr.mxu0 0.0
      %1857 = vmatpush2.msra.mxu0 0.0
      %1858 = vmatprep.subr.mxu0 0.0
      %1859 = vmatpush2.msra.mxu0 0.0
      %1860 = vmatprep.subr.mxu0 0.0
      %1861 = vmatpush2.msra.mxu0 0.0
      %1862 = vmatprep.subr.mxu0 0.0
      %1863 = vmatpush2.msra.mxu0 0.0
      %1864 = vmatprep.subr.mxu0 0.0
      %1865 = vmatpush2.msra.mxu0 0.0
      %1866 = vmatprep.subr.mxu0 0.0
      %1867 = vmatpush2.msra.mxu0 0.0
      %1868 = vmatprep.mubr.f32.mxu0 0.0
      %1869 = vmatmul.mubr.f32.gmra.mxu0 %v1802
      %v1870 = vpop.f32.mrf.mxu0
      %v1871 = vadd.f32 %v1800, %v1870
      %v1872 = vpop.f32.mrf.mxu0
      %1873 = vdwg.mxu0
      %vm1874 = vcmask 410624
      %1875 = vst.msk [vmem:[%s255] sm:$0x3] %vm1874, %v1871
      %s1876 = smul.u32 4, %s17
      %p1877 = scmp.lt.s32.totalorder %s1876, 7
      %s1878 = scalar_select %p1877, %s1876, 7
      %s1879 = smul.addr %s1878, 8
      %s1880 = scalar_lea.vmem %s4, %s1879
      %p1881 = scmp.lt.s32.totalorder %s17, 1
      %s1882 = scalar_select %p1881, %s17, 1
      %s1883 = smul.addr %s1882, 2
      %s1884 = scalar_lea.vmem %s5, %s1883
      // Predicated region
      $region37: #{parsing_pose_net_forward.3} parent=35 // pred_check
        %p1885 = pneg %p129
      $region38: #{parsing_pose_net_forward.3} parent=35 // pred_check_branch
        %1887 = sbr.rel (%p1885) target = $region40
      $region39: #{parsing_pose_net_forward.3} parent=35 // pred_region
        %s1888 = smul.u32 4, %s17
      $region40: #{parsing_pose_net_forward.3} parent=35 // pred_fallthru
        _
      // Predicated region
      $region41: #{parsing_pose_net_forward.3} parent=35 // pred_check
        %p1889 = pneg %p155
      $region42: #{parsing_pose_net_forward.3} parent=35 // pred_check_branch
        %1891 = sbr.rel (%p1889) target = $region44
      $region43: #{parsing_pose_net_forward.3} parent=35 // pred_region
        _
      $region44: #{parsing_pose_net_forward.3} parent=35 // pred_fallthru
        _
    $region36: #{parsing_pose_net_forward.3} parent=5 // pred_fallthru
      _
    %p1892 = scmp.le.s32.totalorder 2, %s12
    // Predicated region
    $region45: #{parsing_pose_net_forward.3} parent=5 // pred_check
      %p1893 = pneg %p1892
    $region46: #{parsing_pose_net_forward.3} parent=5 // pred_check_branch
      %1895 = sbr.rel (%p1893) target = $region48
    $region47: #{parsing_pose_net_forward.3} parent=5 // pred_region
      %s1896 = ssub.s32 %s12, 2
      // Predicated region
      $region49: #{parsing_pose_net_forward.3} parent=47 // pred_check
        %p1897 = pneg %p135
      $region50: #{parsing_pose_net_forward.3} parent=47 // pred_check_branch
        %1899 = sbr.rel (%p1897) target = $region52
      $region51: #{parsing_pose_net_forward.3} parent=47 // pred_region
        %s1900 = smul.u32 4, %s18
        %p1901 = scmp.lt.s32.totalorder %s1900, 7
        %s1902 = scalar_select %p1901, %s1900, 7
        %s1903 = smul.addr %s1902, 8
        %s1904 = scalar_lea.vmem %s4, %s1903
      $region52: #{parsing_pose_net_forward.3} parent=47 // pred_fallthru
        _
      // Predicated region
      $region53: #{parsing_pose_net_forward.3} parent=47 // pred_check
        %p1905 = pneg %p161
      $region54: #{parsing_pose_net_forward.3} parent=47 // pred_check_branch
        %1907 = sbr.rel (%p1905) target = $region56
      $region55: #{parsing_pose_net_forward.3} parent=47 // pred_region
        %p1908 = scmp.lt.s32.totalorder %s18, 1
        %s1909 = scalar_select %p1908, %s18, 1
        %s1910 = smul.addr %s1909, 2
        %s1911 = scalar_lea.vmem %s5, %s1910
      $region56: #{parsing_pose_net_forward.3} parent=47 // pred_fallthru
        _
    $region48: #{parsing_pose_net_forward.3} parent=5 // pred_fallthru
      _
  $region6: #{parsing_pose_net_forward.3} parent=0 // loop_footer
    %s16 = sadd.s32 1, %s12
  $region7: #{parsing_pose_net_forward.3} parent=0 // loop_footer_branch
    %11 = sbr.rel target = $region3
  $region8: #{parsing_pose_net_forward.3} parent=0 // loop_exit
    _

// kernel: parsing_pose_net_forward.2
$region0: #{parsing_pose_net_forward.2}
  #allocation0 [shape = 'u32[]', space=smem, size = 0x4, offset = 0x4, fixed_abs, tag = 'smem constant byte address 0x4 - core index']
  #allocation1 [shape = 'u32[144,128]{1,0:T(1,128)}', space=vmem, size = 0x12000, scoped, tag = 'internal scratch']
  #allocation2 [shape = 'f32[4,128]{1,0:T(4,128)}', space=vmem, size = 0x800, scoped, tag = 'scratch operand']
  #allocation3 [shape = 'f32[2,2,128]{2,1,0:T(2,128)}', space=vmem, size = 0x800, scoped, tag = 'scratch operand']
  %s0 = inlined_call_operand.vmem [shape: f32[64,3], index: 0, kind: input, shape index: {}]
  %s1 = inlined_call_operand.hbm [shape: f32[384,128], index: 1, kind: input, shape index: {}]
  %s2 = inlined_call_operand.vmem [shape: f32[8,128], index: 2, kind: input, shape index: {}]
  %s3 = inlined_call_operand.hbm [shape: f32[3,128,512], index: 3, kind: input, shape index: {}]
  %s4 = inlined_call_operand.hbm [shape: f32[3,128,512], index: 4, kind: input, shape index: {}]
  %s5 = inlined_call_operand.vmem [shape: f32[3,1,512], index: 5, kind: input, shape index: {}]
  %s6 = inlined_call_operand.vmem [shape: f32[3,2,128], index: 6, kind: input, shape index: {}]
  %s7 = inlined_call_operand.vmem [shape: f32[3,2,128], index: 7, kind: input, shape index: {}]
  %s8 = inlined_call_operand.vmem [shape: f32[2,2,128], index: 8, kind: output, shape index: {}]
  %s9 = sld [smem:[#allocation0]]
  $region54: #{parsing_pose_net_forward.2} parent=0
    _
  %s11 = ssub.s32 1, %s9
  %s12 = scalar_select 0, %s11, %s9
  $region1: #{parsing_pose_net_forward.2} parent=0
    #allocation4 [shape = 'u8[196608]{0}', space=vmem, size = 0x30000, scoped, tag = 'input window, operand 1, single buffered']
    #allocation5 [shape = 's32[1]{0}', space=sflag, size = 0x4, scoped, tag = 'scoped memory for parsing_pose_net_forward.2']
    #allocation6 [shape = 'u8[786432]{0}', space=vmem, size = 0xc0000, scoped, tag = 'input window, operand 3, single buffered']
    #allocation7 [shape = 's32[1]{0}', space=sflag, size = 0x4, scoped, tag = 'scoped memory for parsing_pose_net_forward.2']
    #allocation8 [shape = 'u8[786432]{0}', space=vmem, size = 0xc0000, scoped, tag = 'input window, operand 4, single buffered']
    %13 = vsyncpa [#allocation5], 0
    %14 = vsyncpa [#allocation7], 0
    // Predicated region
    $region2: #{parsing_pose_net_forward.2} parent=1 // pred_check
      _
    $region3: #{parsing_pose_net_forward.2} parent=1 // pred_check_branch
      %16 = sbr.rel (0) target = $region5
    $region4: #{parsing_pose_net_forward.2} parent=1 // pred_region
      _
    $region5: #{parsing_pose_net_forward.2} parent=1 // pred_fallthru
      _
    // Predicated region
    $region6: #{parsing_pose_net_forward.2} parent=1 // pred_check
      _
    $region7: #{parsing_pose_net_forward.2} parent=1 // pred_check_branch
      %18 = sbr.rel (0) target = $region9
    $region8: #{parsing_pose_net_forward.2} parent=1 // pred_region
      %s20 = ssub.s32 6144, 6144
      %21 = vsyncadd [#allocation5], %s20
      %s22 = sshll.u32 [#allocation4], 4
      %s23 = int_to_ptr.vmem [resolvable:$true] %s22
      %28 = dma.hbm_to_vmem [thread:$0]  %s1, 6144, %s23, [#allocation5], 128, 128, 8
    $region9: #{parsing_pose_net_forward.2} parent=1 // pred_fallthru
      _
    // Predicated region
    $region10: #{parsing_pose_net_forward.2} parent=1 // pred_check
      _
    $region11: #{parsing_pose_net_forward.2} parent=1 // pred_check_branch
      %30 = sbr.rel (0) target = $region13
    $region12: #{parsing_pose_net_forward.2} parent=1 // pred_region
      _
    $region13: #{parsing_pose_net_forward.2} parent=1 // pred_fallthru
      _
    // Predicated region
    $region14: #{parsing_pose_net_forward.2} parent=1 // pred_check
      _
    $region15: #{parsing_pose_net_forward.2} parent=1 // pred_check_branch
      %32 = sbr.rel (0) target = $region17
    $region16: #{parsing_pose_net_forward.2} parent=1 // pred_region
      %s34 = ssub.s32 24576, 24576
      %35 = vsyncadd [#allocation7], %s34
      %s36 = sshll.u32 [#allocation6], 4
      %s37 = int_to_ptr.vmem [resolvable:$true] %s36
      %42 = dma.hbm_to_vmem [thread:$0]  %s3, 24576, %s37, [#allocation7], 512, 512, 32
    $region17: #{parsing_pose_net_forward.2} parent=1 // pred_fallthru
      _
    // Predicated region
    $region18: #{parsing_pose_net_forward.2} parent=1 // pred_check
      _
    $region19: #{parsing_pose_net_forward.2} parent=1 // pred_check_branch
      %44 = sbr.rel (0) target = $region21
    $region20: #{parsing_pose_net_forward.2} parent=1 // pred_region
      %s46 = ssub.s32 24576, 24576
      %47 = vsyncadd [#allocation7], %s46
      %s48 = sshll.u32 [#allocation8], 4
      %s49 = int_to_ptr.vmem [resolvable:$true] %s48
      %54 = dma.hbm_to_vmem [thread:$0]  %s4, 24576, %s49, [#allocation7], 512, 512, 32
    $region21: #{parsing_pose_net_forward.2} parent=1 // pred_fallthru
      _
    // Predicated region
    $region22: #{parsing_pose_net_forward.2} parent=1 // pred_check
      _
    $region23: #{parsing_pose_net_forward.2} parent=1 // pred_check_branch
      %56 = sbr.rel (0) target = $region25
    $region24: #{parsing_pose_net_forward.2} parent=1 // pred_region
      _
    $region25: #{parsing_pose_net_forward.2} parent=1 // pred_fallthru
      _
    // Predicated region
    $region26: #{parsing_pose_net_forward.2} parent=1 // pred_check
      _
    $region27: #{parsing_pose_net_forward.2} parent=1 // pred_check_branch
      %58 = sbr.rel (0) target = $region29
    $region28: #{parsing_pose_net_forward.2} parent=1 // pred_region
      _
    $region29: #{parsing_pose_net_forward.2} parent=1 // pred_fallthru
      _
    // Predicated region
    $region30: #{parsing_pose_net_forward.2} parent=1 // pred_check
      _
    $region31: #{parsing_pose_net_forward.2} parent=1 // pred_check_branch
      %60 = sbr.rel (0) target = $region33
    $region32: #{parsing_pose_net_forward.2} parent=1 // pred_region
      _
    $region33: #{parsing_pose_net_forward.2} parent=1 // pred_fallthru
      _
    // Predicated region
    $region34: #{parsing_pose_net_forward.2} parent=1 // pred_check
      _
    $region35: #{parsing_pose_net_forward.2} parent=1 // pred_check_branch
      %62 = sbr.rel (0) target = $region37
    $region36: #{parsing_pose_net_forward.2} parent=1 // pred_region
      %63 = dma.done [#allocation5], 6144
    $region37: #{parsing_pose_net_forward.2} parent=1 // pred_fallthru
      _
    // Predicated region
    $region38: #{parsing_pose_net_forward.2} parent=1 // pred_check
      _
    $region39: #{parsing_pose_net_forward.2} parent=1 // pred_check_branch
      %65 = sbr.rel (0) target = $region41
    $region40: #{parsing_pose_net_forward.2} parent=1 // pred_region
      %66 = dma.done [#allocation7], 24576
    $region41: #{parsing_pose_net_forward.2} parent=1 // pred_fallthru
      _
    // Predicated region
    $region42: #{parsing_pose_net_forward.2} parent=1 // pred_check
      _
    $region43: #{parsing_pose_net_forward.2} parent=1 // pred_check_branch
      %68 = sbr.rel (0) target = $region45
    $region44: #{parsing_pose_net_forward.2} parent=1 // pred_region
      %69 = dma.done [#allocation7], 24576
    $region45: #{parsing_pose_net_forward.2} parent=1 // pred_fallthru
      _
    %v70 = vld [vmem:[%s0] sm:$0xff]
    %v71 = vld [vmem:[%s0 + $0x8] sm:$0xff]
    %v72 = vld [vmem:[%s0 + $0x10] sm:$0xff]
    %v73 = vld [vmem:[%s0 + $0x18] sm:$0xff]
    %v74 = vld [vmem:[%s0 + $0x20] sm:$0xff]
    %v75 = vld [vmem:[%s0 + $0x28] sm:$0xff]
    %v76 = vld [vmem:[%s0 + $0x30] sm:$0xff]
    %v77 = vld [vmem:[%s0 + $0x38] sm:$0xff]
    %v78 = vld [vmem:[#allocation4] sm:$0x7]
    %vm79 = vcmask 23552
    %v81 = vsel %vm79, %v70, 0
    %v84 = vsel %vm79, %v71, 0
    %v87 = vsel %vm79, %v72, 0
    %v90 = vsel %vm79, %v73, 0
    %v93 = vsel %vm79, %v74, 0
    %v96 = vsel %vm79, %v75, 0
    %v99 = vsel %vm79, %v76, 0
    %v102 = vsel %vm79, %v77, 0
    %vm104 = vcmask 1042432
    %v106 = vsel %vm104, %v78, 0
    %108 = vmatprep.subr.mxu0 0.0
    %109 = vmatpush1.msra.mxu0 0.0
    %110 = vmatprep.subr.mxu0 0.0
    %111 = vmatpush1.msra.mxu0 0.0
    %112 = vmatprep.subr.mxu0 0.0
    %113 = vmatpush1.msra.mxu0 0.0
    %114 = vmatprep.subr.mxu0 0.0
    %115 = vmatpush1.msra.mxu0 0.0
    %116 = vmatprep.subr.mxu0 0.0
    %117 = vmatpush1.msra.mxu0 0.0
    %118 = vmatprep.subr.mxu0 0.0
    %119 = vmatpush1.msra.mxu0 0.0
    %120 = vmatprep.subr.mxu0 0.0
    %121 = vmatpush1.msra.mxu0 0.0
    %122 = vmatprep.subr.mxu0 0.0
    %123 = vmatpush1.msra.mxu0 0.0
    %124 = vmatprep.subr.mxu0 0.0
    %125 = vmatpush1.msra.mxu0 0.0
    %126 = vmatprep.subr.mxu0 0.0
    %127 = vmatpush1.msra.mxu0 0.0
    %128 = vmatprep.subr.mxu0 0.0
    %129 = vmatpush1.msra.mxu0 0.0
    %130 = vmatprep.subr.mxu0 0.0
    %131 = vmatpush1.msra.mxu0 0.0
    %132 = vmatprep.subr.mxu0 0.0
    %133 = vmatpush1.msra.mxu0 0.0
    %134 = vmatprep.subr.mxu0 0.0
    %135 = vmatpush1.msra.mxu0 0.0
    %136 = vmatprep.subr.mxu0 0.0
    %137 = vmatpush1.msra.mxu0 0.0
    %138 = vmatprep.subr.mxu0 0.0
    %139 = vmatpush1.msra.mxu0 %v106
    %140 = vmatprep.subr.mxu0 0.0
    %141 = vmatpush2.msra.mxu0 0.0
    %142 = vmatprep.subr.mxu0 0.0
    %143 = vmatpush2.msra.mxu0 0.0
    %144 = vmatprep.subr.mxu0 0.0
    %145 = vmatpush2.msra.mxu0 0.0
    %146 = vmatprep.subr.mxu0 0.0
    %147 = vmatpush2.msra.mxu0 0.0
    %148 = vmatprep.subr.mxu0 0.0
    %149 = vmatpush2.msra.mxu0 0.0
    %150 = vmatprep.subr.mxu0 0.0
    %151 = vmatpush2.msra.mxu0 0.0
    %152 = vmatprep.subr.mxu0 0.0
    %153 = vmatpush2.msra.mxu0 0.0
    %154 = vmatprep.subr.mxu0 0.0
    %155 = vmatpush2.msra.mxu0 0.0
    %156 = vmatprep.subr.mxu0 0.0
    %157 = vmatpush2.msra.mxu0 0.0
    %158 = vmatprep.subr.mxu0 0.0
    %159 = vmatpush2.msra.mxu0 0.0
    %160 = vmatprep.subr.mxu0 0.0
    %161 = vmatpush2.msra.mxu0 0.0
    %162 = vmatprep.subr.mxu0 0.0
    %163 = vmatpush2.msra.mxu0 0.0
    %164 = vmatprep.subr.mxu0 0.0
    %165 = vmatpush2.msra.mxu0 0.0
    %166 = vmatprep.subr.mxu0 0.0
    %167 = vmatpush2.msra.mxu0 0.0
    %168 = vmatprep.subr.mxu0 0.0
    %169 = vmatpush2.msra.mxu0 0.0
    %170 = vmatprep.subr.mxu0 0.0
    %171 = vmatpush2.msra.mxu0 0.0
    %172 = vmatprep.mubr.f32.mxu0 0.0
    %173 = vmatmul.mubr.f32.gmra.mxu0 %v81
    %v174 = vpop.f32.mrf.mxu0
    %v175 = vadd.f32 0.0, %v174
    %v176 = vpop.f32.mrf.mxu0
    %177 = vmatprep.mubr.f32.mxu0 0.0
    %178 = vmatmul.mubr.f32.gmra.mxu0 %v84
    %v179 = vpop.f32.mrf.mxu0
    %v180 = vadd.f32 0.0, %v179
    %v181 = vpop.f32.mrf.mxu0
    %182 = vmatprep.mubr.f32.mxu0 0.0
    %183 = vmatmul.mubr.f32.gmra.mxu0 %v87
    %v184 = vpop.f32.mrf.mxu0
    %v185 = vadd.f32 0.0, %v184
    %v186 = vpop.f32.mrf.mxu0
    %187 = vmatprep.mubr.f32.mxu0 0.0
    %188 = vmatmul.mubr.f32.gmra.mxu0 %v90
    %v189 = vpop.f32.mrf.mxu0
    %v190 = vadd.f32 0.0, %v189
    %v191 = vpop.f32.mrf.mxu0
    %192 = vmatprep.mubr.f32.mxu0 0.0
    %193 = vmatmul.mubr.f32.gmra.mxu0 %v93
    %v194 = vpop.f32.mrf.mxu0
    %v195 = vadd.f32 0.0, %v194
    %v196 = vpop.f32.mrf.mxu0
    %197 = vmatprep.mubr.f32.mxu0 0.0
    %198 = vmatmul.mubr.f32.gmra.mxu0 %v96
    %v199 = vpop.f32.mrf.mxu0
    %v200 = vadd.f32 0.0, %v199
    %v201 = vpop.f32.mrf.mxu0
    %202 = vmatprep.mubr.f32.mxu0 0.0
    %203 = vmatmul.mubr.f32.gmra.mxu0 %v99
    %v204 = vpop.f32.mrf.mxu0
    %v205 = vadd.f32 0.0, %v204
    %v206 = vpop.f32.mrf.mxu0
    %207 = vmatprep.mubr.f32.mxu0 0.0
    %208 = vmatmul.mubr.f32.gmra.mxu0 %v102
    %v209 = vpop.f32.mrf.mxu0
    %v210 = vadd.f32 0.0, %v209
    %v211 = vpop.f32.mrf.mxu0
    %212 = vdwg.mxu0
    %v213 = vld [vmem:[%s2] sm:$0x1]
    %v214 = vlaneseq
    %v215 = vshrl.u32 %v214, 7
    %v216 = vsub.s32 0, %v215
    %v217 = vrot.slane %v213, %v216
    %219 = vrot.lane.b32.xlu0 %v217, 64
    %v220 = vpop.permute.xlu0 %219
    %v222 = vadd.f32 %v175, %v220
    %v223 = vadd.f32 %v180, %v220
    %v224 = vadd.f32 %v185, %v220
    %v225 = vadd.f32 %v190, %v220
    %v226 = vadd.f32 %v195, %v220
    %v227 = vadd.f32 %v200, %v220
    %v228 = vadd.f32 %v205, %v220
    %v229 = vadd.f32 %v210, %v220
    %v230 = vmax.f32 %v222, 0.0
    %v231 = vmax.f32 %v223, 0.0
    %v232 = vmax.f32 %v224, 0.0
    %v233 = vmax.f32 %v225, 0.0
    %v234 = vmax.f32 %v226, 0.0
    %v235 = vmax.f32 %v227, 0.0
    %v236 = vmax.f32 %v228, 0.0
    %v237 = vmax.f32 %v229, 0.0
    %v238 = vld [vmem:[#allocation4 + $0x8] sm:$0xff]
    %v239 = vld [vmem:[#allocation4 + $0x10] sm:$0xf]
    %v240 = vld [vmem:[%s2 + $0x1] sm:$0x1]
    %v241 = vlaneseq
    %v242 = vshrl.u32 %v241, 7
    %v243 = vsub.s32 0, %v242
    %v244 = vrot.slane %v240, %v243
    %253 = vrot.lane.b32.xlu0 %v230, 64
    %v254 = vpop.permute.xlu0 %253
    %255 = vrot.lane.b32.xlu0 %v231, 64
    %v256 = vpop.permute.xlu0 %255
    %257 = vrot.lane.b32.xlu0 %v232, 64
    %v258 = vpop.permute.xlu0 %257
    %259 = vrot.lane.b32.xlu0 %v233, 64
    %v260 = vpop.permute.xlu0 %259
    %261 = vrot.lane.b32.xlu0 %v234, 64
    %v262 = vpop.permute.xlu0 %261
    %263 = vrot.lane.b32.xlu0 %v235, 64
    %v264 = vpop.permute.xlu0 %263
    %265 = vrot.lane.b32.xlu0 %v236, 64
    %v266 = vpop.permute.xlu0 %265
    %267 = vrot.lane.b32.xlu0 %v237, 64
    %v268 = vpop.permute.xlu0 %267
    %vm269 = vcmask 97280
    %v270 = vsel %vm269, %v254, 0
    %v272 = vsel %vm269, %v256, 0
    %v274 = vsel %vm269, %v258, 0
    %v276 = vsel %vm269, %v260, 0
    %v278 = vsel %vm269, %v262, 0
    %v280 = vsel %vm269, %v264, 0
    %v282 = vsel %vm269, %v266, 0
    %v284 = vsel %vm269, %v268, 0
    %vm286 = vcmask 1043456
    %v288 = vsel %vm286, %v239, 0
    %290 = vmatprep.subr.mxu0 0.0
    %291 = vmatpush1.msra.mxu0 0.0
    %292 = vmatprep.subr.mxu0 0.0
    %293 = vmatpush1.msra.mxu0 0.0
    %294 = vmatprep.subr.mxu0 0.0
    %295 = vmatpush1.msra.mxu0 0.0
    %296 = vmatprep.subr.mxu0 0.0
    %297 = vmatpush1.msra.mxu0 0.0
    %298 = vmatprep.subr.mxu0 0.0
    %299 = vmatpush1.msra.mxu0 0.0
    %300 = vmatprep.subr.mxu0 0.0
    %301 = vmatpush1.msra.mxu0 0.0
    %302 = vmatprep.subr.mxu0 0.0
    %303 = vmatpush1.msra.mxu0 0.0
    %304 = vmatprep.subr.mxu0 0.0
    %305 = vmatpush1.msra.mxu0 0.0
    %306 = vmatprep.subr.mxu0 0.0
    %307 = vmatpush1.msra.mxu0 0.0
    %308 = vmatprep.subr.mxu0 0.0
    %309 = vmatpush1.msra.mxu0 0.0
    %310 = vmatprep.subr.mxu0 0.0
    %311 = vmatpush1.msra.mxu0 0.0
    %312 = vmatprep.subr.mxu0 0.0
    %313 = vmatpush1.msra.mxu0 0.0
    %314 = vmatprep.subr.mxu0 0.0
    %315 = vmatpush1.msra.mxu0 0.0
    %316 = vmatprep.subr.mxu0 0.0
    %317 = vmatpush1.msra.mxu0 0.0
    %318 = vmatprep.subr.mxu0 0.0
    %319 = vmatpush1.msra.mxu0 %v288
    %320 = vmatprep.subr.mxu0 0.0
    %321 = vmatpush1.msra.mxu0 %v238
    %322 = vmatprep.subr.mxu0 0.0
    %323 = vmatpush2.msra.mxu0 0.0
    %324 = vmatprep.subr.mxu0 0.0
    %325 = vmatpush2.msra.mxu0 0.0
    %326 = vmatprep.subr.mxu0 0.0
    %327 = vmatpush2.msra.mxu0 0.0
    %328 = vmatprep.subr.mxu0 0.0
    %329 = vmatpush2.msra.mxu0 0.0
    %330 = vmatprep.subr.mxu0 0.0
    %331 = vmatpush2.msra.mxu0 0.0
    %332 = vmatprep.subr.mxu0 0.0
    %333 = vmatpush2.msra.mxu0 0.0
    %334 = vmatprep.subr.mxu0 0.0
    %335 = vmatpush2.msra.mxu0 0.0
    %336 = vmatprep.subr.mxu0 0.0
    %337 = vmatpush2.msra.mxu0 0.0
    %338 = vmatprep.subr.mxu0 0.0
    %339 = vmatpush2.msra.mxu0 0.0
    %340 = vmatprep.subr.mxu0 0.0
    %341 = vmatpush2.msra.mxu0 0.0
    %342 = vmatprep.subr.mxu0 0.0
    %343 = vmatpush2.msra.mxu0 0.0
    %344 = vmatprep.subr.mxu0 0.0
    %345 = vmatpush2.msra.mxu0 0.0
    %346 = vmatprep.subr.mxu0 0.0
    %347 = vmatpush2.msra.mxu0 0.0
    %348 = vmatprep.subr.mxu0 0.0
    %349 = vmatpush2.msra.mxu0 0.0
    %350 = vmatprep.subr.mxu0 0.0
    %351 = vmatpush2.msra.mxu0 0.0
    %352 = vmatprep.subr.mxu0 0.0
    %353 = vmatpush2.msra.mxu0 0.0
    %354 = vmatprep.mubr.f32.mxu0 0.0
    %355 = vmatmul.mubr.f32.gmra.mxu0 %v270
    %v356 = vpop.f32.mrf.mxu0
    %v357 = vadd.f32 %v244, %v356
    %v358 = vpop.f32.mrf.mxu0
    %359 = vmatprep.mubr.f32.mxu0 0.0
    %360 = vmatmul.mubr.f32.gmra.mxu0 %v272
    %v361 = vpop.f32.mrf.mxu0
    %v362 = vadd.f32 %v244, %v361
    %v363 = vpop.f32.mrf.mxu0
    %364 = vmatprep.mubr.f32.mxu0 0.0
    %365 = vmatmul.mubr.f32.gmra.mxu0 %v274
    %v366 = vpop.f32.mrf.mxu0
    %v367 = vadd.f32 %v244, %v366
    %v368 = vpop.f32.mrf.mxu0
    %369 = vmatprep.mubr.f32.mxu0 0.0
    %370 = vmatmul.mubr.f32.gmra.mxu0 %v276
    %v371 = vpop.f32.mrf.mxu0
    %v372 = vadd.f32 %v244, %v371
    %v373 = vpop.f32.mrf.mxu0
    %374 = vmatprep.mubr.f32.mxu0 0.0
    %375 = vmatmul.mubr.f32.gmra.mxu0 %v278
    %v376 = vpop.f32.mrf.mxu0
    %v377 = vadd.f32 %v244, %v376
    %v378 = vpop.f32.mrf.mxu0
    %379 = vmatprep.mubr.f32.mxu0 0.0
    %380 = vmatmul.mubr.f32.gmra.mxu0 %v280
    %v381 = vpop.f32.mrf.mxu0
    %v382 = vadd.f32 %v244, %v381
    %v383 = vpop.f32.mrf.mxu0
    %384 = vmatprep.mubr.f32.mxu0 0.0
    %385 = vmatmul.mubr.f32.gmra.mxu0 %v282
    %v386 = vpop.f32.mrf.mxu0
    %v387 = vadd.f32 %v244, %v386
    %v388 = vpop.f32.mrf.mxu0
    %389 = vmatprep.mubr.f32.mxu0 0.0
    %390 = vmatmul.mubr.f32.gmra.mxu0 %v284
    %v391 = vpop.f32.mrf.mxu0
    %v392 = vadd.f32 %v244, %v391
    %v393 = vpop.f32.mrf.mxu0
    %394 = vdwg.mxu0
    %v395 = vmax.f32 %v357, 0.0
    %v396 = vmax.f32 %v362, 0.0
    %v397 = vmax.f32 %v367, 0.0
    %v398 = vmax.f32 %v372, 0.0
    %v399 = vmax.f32 %v377, 0.0
    %v400 = vmax.f32 %v382, 0.0
    %v401 = vmax.f32 %v387, 0.0
    %v402 = vmax.f32 %v392, 0.0
    %v403 = vld [vmem:[#allocation4 + $0x18] sm:$0xff]
    %v404 = vld [vmem:[#allocation4 + $0x20] sm:$0xff]
    %v405 = vld [vmem:[#allocation4 + $0x28] sm:$0xff]
    %v406 = vld [vmem:[%s2 + $0x2] sm:$0x1]
    %v407 = vlaneseq
    %v408 = vshrl.u32 %v407, 7
    %v409 = vsub.s32 0, %v408
    %v410 = vrot.slane %v406, %v409
    %vm411 = vcmask 195584
    %v413 = vsel %vm411, %v395, 0
    %v416 = vsel %vm411, %v396, 0
    %v419 = vsel %vm411, %v397, 0
    %v422 = vsel %vm411, %v398, 0
    %v425 = vsel %vm411, %v399, 0
    %v428 = vsel %vm411, %v400, 0
    %v431 = vsel %vm411, %v401, 0
    %v434 = vsel %vm411, %v402, 0
    %436 = vmatprep.subr.mxu0 0.0
    %437 = vmatpush1.msra.mxu0 0.0
    %438 = vmatprep.subr.mxu0 0.0
    %439 = vmatpush1.msra.mxu0 0.0
    %440 = vmatprep.subr.mxu0 0.0
    %441 = vmatpush1.msra.mxu0 0.0
    %442 = vmatprep.subr.mxu0 0.0
    %443 = vmatpush1.msra.mxu0 0.0
    %444 = vmatprep.subr.mxu0 0.0
    %445 = vmatpush1.msra.mxu0 0.0
    %446 = vmatprep.subr.mxu0 0.0
    %447 = vmatpush1.msra.mxu0 0.0
    %448 = vmatprep.subr.mxu0 0.0
    %449 = vmatpush1.msra.mxu0 0.0
    %450 = vmatprep.subr.mxu0 0.0
    %451 = vmatpush1.msra.mxu0 0.0
    %452 = vmatprep.subr.mxu0 0.0
    %453 = vmatpush1.msra.mxu0 0.0
    %454 = vmatprep.subr.mxu0 0.0
    %455 = vmatpush1.msra.mxu0 0.0
    %456 = vmatprep.subr.mxu0 0.0
    %457 = vmatpush1.msra.mxu0 0.0
    %458 = vmatprep.subr.mxu0 0.0
    %459 = vmatpush1.msra.mxu0 0.0
    %460 = vmatprep.subr.mxu0 0.0
    %461 = vmatpush1.msra.mxu0 0.0
    %462 = vmatprep.subr.mxu0 0.0
    %463 = vmatpush1.msra.mxu0 %v405
    %464 = vmatprep.subr.mxu0 0.0
    %465 = vmatpush1.msra.mxu0 %v404
    %466 = vmatprep.subr.mxu0 0.0
    %467 = vmatpush1.msra.mxu0 %v403
    %468 = vmatprep.subr.mxu0 0.0
    %469 = vmatpush2.msra.mxu0 0.0
    %470 = vmatprep.subr.mxu0 0.0
    %471 = vmatpush2.msra.mxu0 0.0
    %472 = vmatprep.subr.mxu0 0.0
    %473 = vmatpush2.msra.mxu0 0.0
    %474 = vmatprep.subr.mxu0 0.0
    %475 = vmatpush2.msra.mxu0 0.0
    %476 = vmatprep.subr.mxu0 0.0
    %477 = vmatpush2.msra.mxu0 0.0
    %478 = vmatprep.subr.mxu0 0.0
    %479 = vmatpush2.msra.mxu0 0.0
    %480 = vmatprep.subr.mxu0 0.0
    %481 = vmatpush2.msra.mxu0 0.0
    %482 = vmatprep.subr.mxu0 0.0
    %483 = vmatpush2.msra.mxu0 0.0
    %484 = vmatprep.subr.mxu0 0.0
    %485 = vmatpush2.msra.mxu0 0.0
    %486 = vmatprep.subr.mxu0 0.0
    %487 = vmatpush2.msra.mxu0 0.0
    %488 = vmatprep.subr.mxu0 0.0
    %489 = vmatpush2.msra.mxu0 0.0
    %490 = vmatprep.subr.mxu0 0.0
    %491 = vmatpush2.msra.mxu0 0.0
    %492 = vmatprep.subr.mxu0 0.0
    %493 = vmatpush2.msra.mxu0 0.0
    %494 = vmatprep.subr.mxu0 0.0
    %495 = vmatpush2.msra.mxu0 0.0
    %496 = vmatprep.subr.mxu0 0.0
    %497 = vmatpush2.msra.mxu0 0.0
    %498 = vmatprep.subr.mxu0 0.0
    %499 = vmatpush2.msra.mxu0 0.0
    %500 = vmatprep.mubr.f32.mxu0 0.0
    %501 = vmatmul.mubr.f32.gmra.mxu0 %v413
    %v502 = vpop.f32.mrf.mxu0
    %v503 = vadd.f32 %v410, %v502
    %v504 = vpop.f32.mrf.mxu0
    %505 = vmatprep.mubr.f32.mxu0 0.0
    %506 = vmatmul.mubr.f32.gmra.mxu0 %v416
    %v507 = vpop.f32.mrf.mxu0
    %v508 = vadd.f32 %v410, %v507
    %v509 = vpop.f32.mrf.mxu0
    %510 = vmatprep.mubr.f32.mxu0 0.0
    %511 = vmatmul.mubr.f32.gmra.mxu0 %v419
    %v512 = vpop.f32.mrf.mxu0
    %v513 = vadd.f32 %v410, %v512
    %v514 = vpop.f32.mrf.mxu0
    %515 = vmatprep.mubr.f32.mxu0 0.0
    %516 = vmatmul.mubr.f32.gmra.mxu0 %v422
    %v517 = vpop.f32.mrf.mxu0
    %v518 = vadd.f32 %v410, %v517
    %v519 = vpop.f32.mrf.mxu0
    %520 = vmatprep.mubr.f32.mxu0 0.0
    %521 = vmatmul.mubr.f32.gmra.mxu0 %v425
    %v522 = vpop.f32.mrf.mxu0
    %v523 = vadd.f32 %v410, %v522
    %v524 = vpop.f32.mrf.mxu0
    %525 = vmatprep.mubr.f32.mxu0 0.0
    %526 = vmatmul.mubr.f32.gmra.mxu0 %v428
    %v527 = vpop.f32.mrf.mxu0
    %v528 = vadd.f32 %v410, %v527
    %v529 = vpop.f32.mrf.mxu0
    %530 = vmatprep.mubr.f32.mxu0 0.0
    %531 = vmatmul.mubr.f32.gmra.mxu0 %v431
    %v532 = vpop.f32.mrf.mxu0
    %v533 = vadd.f32 %v410, %v532
    %v534 = vpop.f32.mrf.mxu0
    %535 = vmatprep.mubr.f32.mxu0 0.0
    %536 = vmatmul.mubr.f32.gmra.mxu0 %v434
    %v537 = vpop.f32.mrf.mxu0
    %v538 = vadd.f32 %v410, %v537
    %v539 = vpop.f32.mrf.mxu0
    %540 = vdwg.mxu0
    %v541 = vmax.f32 %v503, 0.0
    %v542 = vmax.f32 %v508, 0.0
    %v543 = vmax.f32 %v513, 0.0
    %v544 = vmax.f32 %v518, 0.0
    %v545 = vmax.f32 %v523, 0.0
    %v546 = vmax.f32 %v528, 0.0
    %v547 = vmax.f32 %v533, 0.0
    %v548 = vmax.f32 %v538, 0.0
    %v549 = vld [vmem:[#allocation4 + $0x30] sm:$0xff]
    %v550 = vld [vmem:[#allocation4 + $0x38] sm:$0xff]
    %v551 = vld [vmem:[#allocation4 + $0x40] sm:$0xff]
    %v552 = vld [vmem:[#allocation4 + $0x48] sm:$0xff]
    %v553 = vld [vmem:[#allocation4 + $0x50] sm:$0xff]
    %v554 = vld [vmem:[#allocation4 + $0x58] sm:$0xff]
    %vm555 = vcmask 392192
    %v557 = vsel %vm555, %v541, 0
    %v560 = vsel %vm555, %v542, 0
    %v563 = vsel %vm555, %v543, 0
    %v566 = vsel %vm555, %v544, 0
    %v569 = vsel %vm555, %v545, 0
    %v572 = vsel %vm555, %v546, 0
    %v575 = vsel %vm555, %v547, 0
    %v578 = vsel %vm555, %v548, 0
    %580 = vmatprep.subr.mxu0 0.0
    %581 = vmatpush1.msra.mxu0 0.0
    %582 = vmatprep.subr.mxu0 0.0
    %583 = vmatpush1.msra.mxu0 0.0
    %584 = vmatprep.subr.mxu0 0.0
    %585 = vmatpush1.msra.mxu0 0.0
    %586 = vmatprep.subr.mxu0 0.0
    %587 = vmatpush1.msra.mxu0 0.0
    %588 = vmatprep.subr.mxu0 0.0
    %589 = vmatpush1.msra.mxu0 0.0
    %590 = vmatprep.subr.mxu0 0.0
    %591 = vmatpush1.msra.mxu0 0.0
    %592 = vmatprep.subr.mxu0 0.0
    %593 = vmatpush1.msra.mxu0 0.0
    %594 = vmatprep.subr.mxu0 0.0
    %595 = vmatpush1.msra.mxu0 0.0
    %596 = vmatprep.subr.mxu0 0.0
    %597 = vmatpush1.msra.mxu0 0.0
    %598 = vmatprep.subr.mxu0 0.0
    %599 = vmatpush1.msra.mxu0 0.0
    %600 = vmatprep.subr.mxu0 0.0
    %601 = vmatpush1.msra.mxu0 %v554
    %602 = vmatprep.subr.mxu0 0.0
    %603 = vmatpush1.msra.mxu0 %v553
    %604 = vmatprep.subr.mxu0 0.0
    %605 = vmatpush1.msra.mxu0 %v552
    %606 = vmatprep.subr.mxu0 0.0
    %607 = vmatpush1.msra.mxu0 %v551
    %608 = vmatprep.subr.mxu0 0.0
    %609 = vmatpush1.msra.mxu0 %v550
    %610 = vmatprep.subr.mxu0 0.0
    %611 = vmatpush1.msra.mxu0 %v549
    %612 = vmatprep.subr.mxu0 0.0
    %613 = vmatpush2.msra.mxu0 0.0
    %614 = vmatprep.subr.mxu0 0.0
    %615 = vmatpush2.msra.mxu0 0.0
    %616 = vmatprep.subr.mxu0 0.0
    %617 = vmatpush2.msra.mxu0 0.0
    %618 = vmatprep.subr.mxu0 0.0
    %619 = vmatpush2.msra.mxu0 0.0
    %620 = vmatprep.subr.mxu0 0.0
    %621 = vmatpush2.msra.mxu0 0.0
    %622 = vmatprep.subr.mxu0 0.0
    %623 = vmatpush2.msra.mxu0 0.0
    %624 = vmatprep.subr.mxu0 0.0
    %625 = vmatpush2.msra.mxu0 0.0
    %626 = vmatprep.subr.mxu0 0.0
    %627 = vmatpush2.msra.mxu0 0.0
    %628 = vmatprep.subr.mxu0 0.0
    %629 = vmatpush2.msra.mxu0 0.0
    %630 = vmatprep.subr.mxu0 0.0
    %631 = vmatpush2.msra.mxu0 0.0
    %632 = vmatprep.subr.mxu0 0.0
    %633 = vmatpush2.msra.mxu0 0.0
    %634 = vmatprep.subr.mxu0 0.0
    %635 = vmatpush2.msra.mxu0 0.0
    %636 = vmatprep.subr.mxu0 0.0
    %637 = vmatpush2.msra.mxu0 0.0
    %638 = vmatprep.subr.mxu0 0.0
    %639 = vmatpush2.msra.mxu0 0.0
    %640 = vmatprep.subr.mxu0 0.0
    %641 = vmatpush2.msra.mxu0 0.0
    %642 = vmatprep.subr.mxu0 0.0
    %643 = vmatpush2.msra.mxu0 0.0
    %644 = vmatprep.mubr.f32.mxu0 0.0
    %645 = vmatmul.mubr.f32.gmra.mxu0 %v557
    %v646 = vpop.f32.mrf.mxu0
    %v647 = vadd.f32 0.0, %v646
    %v648 = vpop.f32.mrf.mxu0
    %649 = vmatprep.mubr.f32.mxu0 0.0
    %650 = vmatmul.mubr.f32.gmra.mxu0 %v560
    %v651 = vpop.f32.mrf.mxu0
    %v652 = vadd.f32 0.0, %v651
    %v653 = vpop.f32.mrf.mxu0
    %654 = vmatprep.mubr.f32.mxu0 0.0
    %655 = vmatmul.mubr.f32.gmra.mxu0 %v563
    %v656 = vpop.f32.mrf.mxu0
    %v657 = vadd.f32 0.0, %v656
    %v658 = vpop.f32.mrf.mxu0
    %659 = vmatprep.mubr.f32.mxu0 0.0
    %660 = vmatmul.mubr.f32.gmra.mxu0 %v566
    %v661 = vpop.f32.mrf.mxu0
    %v662 = vadd.f32 0.0, %v661
    %v663 = vpop.f32.mrf.mxu0
    %664 = vmatprep.mubr.f32.mxu0 0.0
    %665 = vmatmul.mubr.f32.gmra.mxu0 %v569
    %v666 = vpop.f32.mrf.mxu0
    %v667 = vadd.f32 0.0, %v666
    %v668 = vpop.f32.mrf.mxu0
    %669 = vmatprep.mubr.f32.mxu0 0.0
    %670 = vmatmul.mubr.f32.gmra.mxu0 %v572
    %v671 = vpop.f32.mrf.mxu0
    %v672 = vadd.f32 0.0, %v671
    %v673 = vpop.f32.mrf.mxu0
    %674 = vmatprep.mubr.f32.mxu0 0.0
    %675 = vmatmul.mubr.f32.gmra.mxu0 %v575
    %v676 = vpop.f32.mrf.mxu0
    %v677 = vadd.f32 0.0, %v676
    %v678 = vpop.f32.mrf.mxu0
    %679 = vmatprep.mubr.f32.mxu0 0.0
    %680 = vmatmul.mubr.f32.gmra.mxu0 %v578
    %v681 = vpop.f32.mrf.mxu0
    %v682 = vadd.f32 0.0, %v681
    %v683 = vpop.f32.mrf.mxu0
    %684 = vdwg.mxu0
    %v685 = vadd.f32 %v175, %v647
    %v686 = vadd.f32 %v180, %v652
    %v687 = vadd.f32 %v185, %v657
    %v688 = vadd.f32 %v190, %v662
    %v689 = vadd.f32 %v195, %v667
    %v690 = vadd.f32 %v200, %v672
    %v691 = vadd.f32 %v205, %v677
    %v692 = vadd.f32 %v210, %v682
    %v693 = vld [vmem:[%s2 + $0x3] sm:$0x1]
    %v694 = vlaneseq
    %v695 = vshrl.u32 %v694, 7
    %v696 = vsub.s32 0, %v695
    %v697 = vrot.slane %v693, %v696
    %v698 = vadd.f32 %v685, %v697
    %v699 = vadd.f32 %v686, %v697
    %v700 = vadd.f32 %v687, %v697
    %v701 = vadd.f32 %v688, %v697
    %v702 = vadd.f32 %v689, %v697
    %v703 = vadd.f32 %v690, %v697
    %v704 = vadd.f32 %v691, %v697
    %v705 = vadd.f32 %v692, %v697
    %v706 = vmax.f32 %v698, 0.0
    %v707 = vmax.f32 %v699, 0.0
    %v708 = vmax.f32 %v700, 0.0
    %v709 = vmax.f32 %v701, 0.0
    %v710 = vmax.f32 %v702, 0.0
    %v711 = vmax.f32 %v703, 0.0
    %v712 = vmax.f32 %v704, 0.0
    %v713 = vmax.f32 %v705, 0.0
    %v714 = vld [vmem:[#allocation4 + $0x60] sm:$0xff]
    %v715 = vld [vmem:[#allocation4 + $0x68] sm:$0xff]
    %v716 = vld [vmem:[#allocation4 + $0x70] sm:$0xff]
    %v717 = vld [vmem:[#allocation4 + $0x78] sm:$0xff]
    %v718 = vld [vmem:[#allocation4 + $0x80] sm:$0xff]
    %v719 = vld [vmem:[#allocation4 + $0x88] sm:$0xff]
    %v720 = vld [vmem:[#allocation4 + $0x90] sm:$0xff]
    %v721 = vld [vmem:[#allocation4 + $0x98] sm:$0xff]
    %v722 = vld [vmem:[%s2 + $0x4] sm:$0x1]
    %v723 = vlaneseq
    %v724 = vshrl.u32 %v723, 7
    %v725 = vsub.s32 0, %v724
    %v726 = vrot.slane %v722, %v725
    %vm727 = vcmask 523264
    %v729 = vsel %vm727, %v706, 0
    %v732 = vsel %vm727, %v707, 0
    %v735 = vsel %vm727, %v708, 0
    %v738 = vsel %vm727, %v709, 0
    %v741 = vsel %vm727, %v710, 0
    %v744 = vsel %vm727, %v711, 0
    %v747 = vsel %vm727, %v712, 0
    %v750 = vsel %vm727, %v713, 0
    %752 = vmatprep.subr.mxu0 0.0
    %753 = vmatpush1.msra.mxu0 0.0
    %754 = vmatprep.subr.mxu0 0.0
    %755 = vmatpush1.msra.mxu0 0.0
    %756 = vmatprep.subr.mxu0 0.0
    %757 = vmatpush1.msra.mxu0 0.0
    %758 = vmatprep.subr.mxu0 0.0
    %759 = vmatpush1.msra.mxu0 0.0
    %760 = vmatprep.subr.mxu0 0.0
    %761 = vmatpush1.msra.mxu0 0.0
    %762 = vmatprep.subr.mxu0 0.0
    %763 = vmatpush1.msra.mxu0 0.0
    %764 = vmatprep.subr.mxu0 0.0
    %765 = vmatpush1.msra.mxu0 0.0
    %766 = vmatprep.subr.mxu0 0.0
    %767 = vmatpush1.msra.mxu0 0.0
    %768 = vmatprep.subr.mxu0 0.0
    %769 = vmatpush1.msra.mxu0 %v721
    %770 = vmatprep.subr.mxu0 0.0
    %771 = vmatpush1.msra.mxu0 %v720
    %772 = vmatprep.subr.mxu0 0.0
    %773 = vmatpush1.msra.mxu0 %v719
    %774 = vmatprep.subr.mxu0 0.0
    %775 = vmatpush1.msra.mxu0 %v718
    %776 = vmatprep.subr.mxu0 0.0
    %777 = vmatpush1.msra.mxu0 %v717
    %778 = vmatprep.subr.mxu0 0.0
    %779 = vmatpush1.msra.mxu0 %v716
    %780 = vmatprep.subr.mxu0 0.0
    %781 = vmatpush1.msra.mxu0 %v715
    %782 = vmatprep.subr.mxu0 0.0
    %783 = vmatpush1.msra.mxu0 %v714
    %784 = vmatprep.subr.mxu0 0.0
    %785 = vmatpush2.msra.mxu0 0.0
    %786 = vmatprep.subr.mxu0 0.0
    %787 = vmatpush2.msra.mxu0 0.0
    %788 = vmatprep.subr.mxu0 0.0
    %789 = vmatpush2.msra.mxu0 0.0
    %790 = vmatprep.subr.mxu0 0.0
    %791 = vmatpush2.msra.mxu0 0.0
    %792 = vmatprep.subr.mxu0 0.0
    %793 = vmatpush2.msra.mxu0 0.0
    %794 = vmatprep.subr.mxu0 0.0
    %795 = vmatpush2.msra.mxu0 0.0
    %796 = vmatprep.subr.mxu0 0.0
    %797 = vmatpush2.msra.mxu0 0.0
    %798 = vmatprep.subr.mxu0 0.0
    %799 = vmatpush2.msra.mxu0 0.0
    %800 = vmatprep.subr.mxu0 0.0
    %801 = vmatpush2.msra.mxu0 0.0
    %802 = vmatprep.subr.mxu0 0.0
    %803 = vmatpush2.msra.mxu0 0.0
    %804 = vmatprep.subr.mxu0 0.0
    %805 = vmatpush2.msra.mxu0 0.0
    %806 = vmatprep.subr.mxu0 0.0
    %807 = vmatpush2.msra.mxu0 0.0
    %808 = vmatprep.subr.mxu0 0.0
    %809 = vmatpush2.msra.mxu0 0.0
    %810 = vmatprep.subr.mxu0 0.0
    %811 = vmatpush2.msra.mxu0 0.0
    %812 = vmatprep.subr.mxu0 0.0
    %813 = vmatpush2.msra.mxu0 0.0
    %814 = vmatprep.subr.mxu0 0.0
    %815 = vmatpush2.msra.mxu0 0.0
    %816 = vmatprep.mubr.f32.mxu0 0.0
    %817 = vmatmul.mubr.f32.gmra.mxu0 %v729
    %v818 = vpop.f32.mrf.mxu0
    %v819 = vadd.f32 %v726, %v818
    %v820 = vpop.f32.mrf.mxu0
    %821 = vmatprep.mubr.f32.mxu0 0.0
    %822 = vmatmul.mubr.f32.gmra.mxu0 %v732
    %v823 = vpop.f32.mrf.mxu0
    %v824 = vadd.f32 %v726, %v823
    %v825 = vpop.f32.mrf.mxu0
    %826 = vmatprep.mubr.f32.mxu0 0.0
    %827 = vmatmul.mubr.f32.gmra.mxu0 %v735
    %v828 = vpop.f32.mrf.mxu0
    %v829 = vadd.f32 %v726, %v828
    %v830 = vpop.f32.mrf.mxu0
    %831 = vmatprep.mubr.f32.mxu0 0.0
    %832 = vmatmul.mubr.f32.gmra.mxu0 %v738
    %v833 = vpop.f32.mrf.mxu0
    %v834 = vadd.f32 %v726, %v833
    %v835 = vpop.f32.mrf.mxu0
    %836 = vmatprep.mubr.f32.mxu0 0.0
    %837 = vmatmul.mubr.f32.gmra.mxu0 %v741
    %v838 = vpop.f32.mrf.mxu0
    %v839 = vadd.f32 %v726, %v838
    %v840 = vpop.f32.mrf.mxu0
    %841 = vmatprep.mubr.f32.mxu0 0.0
    %842 = vmatmul.mubr.f32.gmra.mxu0 %v744
    %v843 = vpop.f32.mrf.mxu0
    %v844 = vadd.f32 %v726, %v843
    %v845 = vpop.f32.mrf.mxu0
    %846 = vmatprep.mubr.f32.mxu0 0.0
    %847 = vmatmul.mubr.f32.gmra.mxu0 %v747
    %v848 = vpop.f32.mrf.mxu0
    %v849 = vadd.f32 %v726, %v848
    %v850 = vpop.f32.mrf.mxu0
    %851 = vmatprep.mubr.f32.mxu0 0.0
    %852 = vmatmul.mubr.f32.gmra.mxu0 %v750
    %v853 = vpop.f32.mrf.mxu0
    %v854 = vadd.f32 %v726, %v853
    %v855 = vpop.f32.mrf.mxu0
    %856 = vdwg.mxu0
    %v857 = vmax.f32 %v819, 0.0
    %v858 = vmax.f32 %v824, 0.0
    %v859 = vmax.f32 %v829, 0.0
    %v860 = vmax.f32 %v834, 0.0
    %v861 = vmax.f32 %v839, 0.0
    %v862 = vmax.f32 %v844, 0.0
    %v863 = vmax.f32 %v849, 0.0
    %v864 = vmax.f32 %v854, 0.0
    %v865 = vld [vmem:[#allocation4 + $0xa0] sm:$0xff]
    %v866 = vld [vmem:[#allocation4 + $0xa8] sm:$0xff]
    %v867 = vld [vmem:[#allocation4 + $0xb0] sm:$0xff]
    %v868 = vld [vmem:[#allocation4 + $0xb8] sm:$0xff]
    %v869 = vld [vmem:[#allocation4 + $0xc0] sm:$0xff]
    %v870 = vld [vmem:[#allocation4 + $0xc8] sm:$0xff]
    %v871 = vld [vmem:[#allocation4 + $0xd0] sm:$0xff]
    %v872 = vld [vmem:[#allocation4 + $0xd8] sm:$0xff]
    %v873 = vld [vmem:[#allocation4 + $0xe0] sm:$0xff]
    %v874 = vld [vmem:[#allocation4 + $0xe8] sm:$0xff]
    %v875 = vld [vmem:[#allocation4 + $0xf0] sm:$0xff]
    %v876 = vld [vmem:[#allocation4 + $0xf8] sm:$0xff]
    %v877 = vld [vmem:[%s2 + $0x5] sm:$0x1]
    %v878 = vlaneseq
    %v879 = vshrl.u32 %v878, 7
    %v880 = vsub.s32 0, %v879
    %v881 = vrot.slane %v877, %v880
    %vm882 = vcmask 785408
    %v884 = vsel %vm882, %v857, 0
    %v887 = vsel %vm882, %v858, 0
    %v890 = vsel %vm882, %v859, 0
    %v893 = vsel %vm882, %v860, 0
    %v896 = vsel %vm882, %v861, 0
    %v899 = vsel %vm882, %v862, 0
    %v902 = vsel %vm882, %v863, 0
    %v905 = vsel %vm882, %v864, 0
    %907 = vmatprep.subr.mxu0 0.0
    %908 = vmatpush1.msra.mxu0 0.0
    %909 = vmatprep.subr.mxu0 0.0
    %910 = vmatpush1.msra.mxu0 0.0
    %911 = vmatprep.subr.mxu0 0.0
    %912 = vmatpush1.msra.mxu0 0.0
    %913 = vmatprep.subr.mxu0 0.0
    %914 = vmatpush1.msra.mxu0 0.0
    %915 = vmatprep.subr.mxu0 0.0
    %916 = vmatpush1.msra.mxu0 %v876
    %917 = vmatprep.subr.mxu0 0.0
    %918 = vmatpush1.msra.mxu0 %v875
    %919 = vmatprep.subr.mxu0 0.0
    %920 = vmatpush1.msra.mxu0 %v874
    %921 = vmatprep.subr.mxu0 0.0
    %922 = vmatpush1.msra.mxu0 %v873
    %923 = vmatprep.subr.mxu0 0.0
    %924 = vmatpush1.msra.mxu0 %v872
    %925 = vmatprep.subr.mxu0 0.0
    %926 = vmatpush1.msra.mxu0 %v871
    %927 = vmatprep.subr.mxu0 0.0
    %928 = vmatpush1.msra.mxu0 %v870
    %929 = vmatprep.subr.mxu0 0.0
    %930 = vmatpush1.msra.mxu0 %v869
    %931 = vmatprep.subr.mxu0 0.0
    %932 = vmatpush1.msra.mxu0 %v868
    %933 = vmatprep.subr.mxu0 0.0
    %934 = vmatpush1.msra.mxu0 %v867
    %935 = vmatprep.subr.mxu0 0.0
    %936 = vmatpush1.msra.mxu0 %v866
    %937 = vmatprep.subr.mxu0 0.0
    %938 = vmatpush1.msra.mxu0 %v865
    %939 = vmatprep.subr.mxu0 0.0
    %940 = vmatpush2.msra.mxu0 0.0
    %941 = vmatprep.subr.mxu0 0.0
    %942 = vmatpush2.msra.mxu0 0.0
    %943 = vmatprep.subr.mxu0 0.0
    %944 = vmatpush2.msra.mxu0 0.0
    %945 = vmatprep.subr.mxu0 0.0
    %946 = vmatpush2.msra.mxu0 0.0
    %947 = vmatprep.subr.mxu0 0.0
    %948 = vmatpush2.msra.mxu0 0.0
    %949 = vmatprep.subr.mxu0 0.0
    %950 = vmatpush2.msra.mxu0 0.0
    %951 = vmatprep.subr.mxu0 0.0
    %952 = vmatpush2.msra.mxu0 0.0
    %953 = vmatprep.subr.mxu0 0.0
    %954 = vmatpush2.msra.mxu0 0.0
    %955 = vmatprep.subr.mxu0 0.0
    %956 = vmatpush2.msra.mxu0 0.0
    %957 = vmatprep.subr.mxu0 0.0
    %958 = vmatpush2.msra.mxu0 0.0
    %959 = vmatprep.subr.mxu0 0.0
    %960 = vmatpush2.msra.mxu0 0.0
    %961 = vmatprep.subr.mxu0 0.0
    %962 = vmatpush2.msra.mxu0 0.0
    %963 = vmatprep.subr.mxu0 0.0
    %964 = vmatpush2.msra.mxu0 0.0
    %965 = vmatprep.subr.mxu0 0.0
    %966 = vmatpush2.msra.mxu0 0.0
    %967 = vmatprep.subr.mxu0 0.0
    %968 = vmatpush2.msra.mxu0 0.0
    %969 = vmatprep.subr.mxu0 0.0
    %970 = vmatpush2.msra.mxu0 0.0
    %971 = vmatprep.mubr.f32.mxu0 0.0
    %972 = vmatmul.mubr.f32.gmra.mxu0 %v884
    %v973 = vpop.f32.mrf.mxu0
    %v974 = vadd.f32 %v881, %v973
    %v975 = vpop.f32.mrf.mxu0
    %976 = vmatprep.mubr.f32.mxu0 0.0
    %977 = vmatmul.mubr.f32.gmra.mxu0 %v887
    %v978 = vpop.f32.mrf.mxu0
    %v979 = vadd.f32 %v881, %v978
    %v980 = vpop.f32.mrf.mxu0
    %981 = vmatprep.mubr.f32.mxu0 0.0
    %982 = vmatmul.mubr.f32.gmra.mxu0 %v890
    %v983 = vpop.f32.mrf.mxu0
    %v984 = vadd.f32 %v881, %v983
    %v985 = vpop.f32.mrf.mxu0
    %986 = vmatprep.mubr.f32.mxu0 0.0
    %987 = vmatmul.mubr.f32.gmra.mxu0 %v893
    %v988 = vpop.f32.mrf.mxu0
    %v989 = vadd.f32 %v881, %v988
    %v990 = vpop.f32.mrf.mxu0
    %991 = vmatprep.mubr.f32.mxu0 0.0
    %992 = vmatmul.mubr.f32.gmra.mxu0 %v896
    %v993 = vpop.f32.mrf.mxu0
    %v994 = vadd.f32 %v881, %v993
    %v995 = vpop.f32.mrf.mxu0
    %996 = vmatprep.mubr.f32.mxu0 0.0
    %997 = vmatmul.mubr.f32.gmra.mxu0 %v899
    %v998 = vpop.f32.mrf.mxu0
    %v999 = vadd.f32 %v881, %v998
    %v1000 = vpop.f32.mrf.mxu0
    %1001 = vmatprep.mubr.f32.mxu0 0.0
    %1002 = vmatmul.mubr.f32.gmra.mxu0 %v902
    %v1003 = vpop.f32.mrf.mxu0
    %v1004 = vadd.f32 %v881, %v1003
    %v1005 = vpop.f32.mrf.mxu0
    %1006 = vmatprep.mubr.f32.mxu0 0.0
    %1007 = vmatmul.mubr.f32.gmra.mxu0 %v905
    %v1008 = vpop.f32.mrf.mxu0
    %v1009 = vadd.f32 %v881, %v1008
    %v1010 = vpop.f32.mrf.mxu0
    %1011 = vdwg.mxu0
    %v1012 = vmax.f32 %v974, 0.0
    %v1013 = vmax.f32 %v979, 0.0
    %v1014 = vmax.f32 %v984, 0.0
    %v1015 = vmax.f32 %v989, 0.0
    %v1016 = vmax.f32 %v994, 0.0
    %v1017 = vmax.f32 %v999, 0.0
    %v1018 = vmax.f32 %v1004, 0.0
    %v1019 = vmax.f32 %v1009, 0.0
    %v1020 = vld [vmem:[#allocation4 + $0x100] sm:$0xff]
    %v1021 = vld [vmem:[#allocation4 + $0x108] sm:$0xff]
    %v1022 = vld [vmem:[#allocation4 + $0x110] sm:$0xff]
    %v1023 = vld [vmem:[#allocation4 + $0x118] sm:$0xff]
    %v1024 = vld [vmem:[#allocation4 + $0x120] sm:$0xff]
    %v1025 = vld [vmem:[#allocation4 + $0x128] sm:$0xff]
    %v1026 = vld [vmem:[#allocation4 + $0x130] sm:$0xff]
    %v1027 = vld [vmem:[#allocation4 + $0x138] sm:$0xff]
    %v1028 = vld [vmem:[#allocation4 + $0x140] sm:$0xff]
    %v1029 = vld [vmem:[#allocation4 + $0x148] sm:$0xff]
    %v1030 = vld [vmem:[#allocation4 + $0x150] sm:$0xff]
    %v1031 = vld [vmem:[#allocation4 + $0x158] sm:$0xff]
    %v1032 = vld [vmem:[#allocation4 + $0x160] sm:$0xff]
    %v1033 = vld [vmem:[#allocation4 + $0x168] sm:$0xff]
    %v1034 = vld [vmem:[#allocation4 + $0x170] sm:$0xff]
    %v1035 = vld [vmem:[#allocation4 + $0x178] sm:$0xff]
    %v1036 = vld [vmem:[%s2 + $0x6] sm:$0x1]
    %v1037 = vlaneseq
    %v1038 = vshrl.u32 %v1037, 7
    %v1039 = vsub.s32 0, %v1038
    %v1040 = vrot.slane %v1036, %v1039
    %1041 = vmatprep.subr.mxu0 0.0
    %1042 = vmatpush1.msra.mxu0 %v1035
    %1043 = vmatprep.subr.mxu0 0.0
    %1044 = vmatpush1.msra.mxu0 %v1034
    %1045 = vmatprep.subr.mxu0 0.0
    %1046 = vmatpush1.msra.mxu0 %v1033
    %1047 = vmatprep.subr.mxu0 0.0
    %1048 = vmatpush1.msra.mxu0 %v1032
    %1049 = vmatprep.subr.mxu0 0.0
    %1050 = vmatpush1.msra.mxu0 %v1031
    %1051 = vmatprep.subr.mxu0 0.0
    %1052 = vmatpush1.msra.mxu0 %v1030
    %1053 = vmatprep.subr.mxu0 0.0
    %1054 = vmatpush1.msra.mxu0 %v1029
    %1055 = vmatprep.subr.mxu0 0.0
    %1056 = vmatpush1.msra.mxu0 %v1028
    %1057 = vmatprep.subr.mxu0 0.0
    %1058 = vmatpush1.msra.mxu0 %v1027
    %1059 = vmatprep.subr.mxu0 0.0
    %1060 = vmatpush1.msra.mxu0 %v1026
    %1061 = vmatprep.subr.mxu0 0.0
    %1062 = vmatpush1.msra.mxu0 %v1025
    %1063 = vmatprep.subr.mxu0 0.0
    %1064 = vmatpush1.msra.mxu0 %v1024
    %1065 = vmatprep.subr.mxu0 0.0
    %1066 = vmatpush1.msra.mxu0 %v1023
    %1067 = vmatprep.subr.mxu0 0.0
    %1068 = vmatpush1.msra.mxu0 %v1022
    %1069 = vmatprep.subr.mxu0 0.0
    %1070 = vmatpush1.msra.mxu0 %v1021
    %1071 = vmatprep.subr.mxu0 0.0
    %1072 = vmatpush1.msra.mxu0 %v1020
    %1073 = vmatprep.subr.mxu0 0.0
    %1074 = vmatpush2.msra.mxu0 0.0
    %1075 = vmatprep.subr.mxu0 0.0
    %1076 = vmatpush2.msra.mxu0 0.0
    %1077 = vmatprep.subr.mxu0 0.0
    %1078 = vmatpush2.msra.mxu0 0.0
    %1079 = vmatprep.subr.mxu0 0.0
    %1080 = vmatpush2.msra.mxu0 0.0
    %1081 = vmatprep.subr.mxu0 0.0
    %1082 = vmatpush2.msra.mxu0 0.0
    %1083 = vmatprep.subr.mxu0 0.0
    %1084 = vmatpush2.msra.mxu0 0.0
    %1085 = vmatprep.subr.mxu0 0.0
    %1086 = vmatpush2.msra.mxu0 0.0
    %1087 = vmatprep.subr.mxu0 0.0
    %1088 = vmatpush2.msra.mxu0 0.0
    %1089 = vmatprep.subr.mxu0 0.0
    %1090 = vmatpush2.msra.mxu0 0.0
    %1091 = vmatprep.subr.mxu0 0.0
    %1092 = vmatpush2.msra.mxu0 0.0
    %1093 = vmatprep.subr.mxu0 0.0
    %1094 = vmatpush2.msra.mxu0 0.0
    %1095 = vmatprep.subr.mxu0 0.0
    %1096 = vmatpush2.msra.mxu0 0.0
    %1097 = vmatprep.subr.mxu0 0.0
    %1098 = vmatpush2.msra.mxu0 0.0
    %1099 = vmatprep.subr.mxu0 0.0
    %1100 = vmatpush2.msra.mxu0 0.0
    %1101 = vmatprep.subr.mxu0 0.0
    %1102 = vmatpush2.msra.mxu0 0.0
    %1103 = vmatprep.subr.mxu0 0.0
    %1104 = vmatpush2.msra.mxu0 0.0
    %1105 = vmatprep.mubr.f32.mxu0 0.0
    %1106 = vmatmul.mubr.f32.gmra.mxu0 %v1012
    %v1107 = vpop.f32.mrf.mxu0
    %v1108 = vadd.f32 %v1040, %v1107
    %v1109 = vpop.f32.mrf.mxu0
    %1110 = vmatprep.mubr.f32.mxu0 0.0
    %1111 = vmatmul.mubr.f32.gmra.mxu0 %v1013
    %v1112 = vpop.f32.mrf.mxu0
    %v1113 = vadd.f32 %v1040, %v1112
    %v1114 = vpop.f32.mrf.mxu0
    %1115 = vmatprep.mubr.f32.mxu0 0.0
    %1116 = vmatmul.mubr.f32.gmra.mxu0 %v1014
    %v1117 = vpop.f32.mrf.mxu0
    %v1118 = vadd.f32 %v1040, %v1117
    %v1119 = vpop.f32.mrf.mxu0
    %1120 = vmatprep.mubr.f32.mxu0 0.0
    %1121 = vmatmul.mubr.f32.gmra.mxu0 %v1015
    %v1122 = vpop.f32.mrf.mxu0
    %v1123 = vadd.f32 %v1040, %v1122
    %v1124 = vpop.f32.mrf.mxu0
    %1125 = vmatprep.mubr.f32.mxu0 0.0
    %1126 = vmatmul.mubr.f32.gmra.mxu0 %v1016
    %v1127 = vpop.f32.mrf.mxu0
    %v1128 = vadd.f32 %v1040, %v1127
    %v1129 = vpop.f32.mrf.mxu0
    %1130 = vmatprep.mubr.f32.mxu0 0.0
    %1131 = vmatmul.mubr.f32.gmra.mxu0 %v1017
    %v1132 = vpop.f32.mrf.mxu0
    %v1133 = vadd.f32 %v1040, %v1132
    %v1134 = vpop.f32.mrf.mxu0
    %1135 = vmatprep.mubr.f32.mxu0 0.0
    %1136 = vmatmul.mubr.f32.gmra.mxu0 %v1018
    %v1137 = vpop.f32.mrf.mxu0
    %v1138 = vadd.f32 %v1040, %v1137
    %v1139 = vpop.f32.mrf.mxu0
    %1140 = vmatprep.mubr.f32.mxu0 0.0
    %1141 = vmatmul.mubr.f32.gmra.mxu0 %v1019
    %v1142 = vpop.f32.mrf.mxu0
    %v1143 = vadd.f32 %v1040, %v1142
    %v1144 = vpop.f32.mrf.mxu0
    %1145 = vdwg.mxu0
    %vm1146 = vcmask 15360
    %v1147 = vsel %vm1146, %v1108, -inf
    %v1148 = vsel %vm1146, %v1113, -inf
    %v1149 = vmax.f32 %v1147, %v1148
    %v1150 = vrot.slane %v1149, 4
    %v1151 = vmax.f32 %v1149, %v1150
    %v1152 = vrot.slane %v1151, 2
    %v1153 = vmax.f32 %v1151, %v1152
    %v1154 = vrot.slane %v1153, 1
    %v1155 = vmax.f32 %v1153, %v1154
    %v1156 = vsel %vm1146, %v1118, -inf
    %v1157 = vsel %vm1146, %v1123, -inf
    %v1158 = vmax.f32 %v1156, %v1157
    %v1159 = vrot.slane %v1158, 4
    %v1160 = vmax.f32 %v1158, %v1159
    %v1161 = vrot.slane %v1160, 2
    %v1162 = vmax.f32 %v1160, %v1161
    %v1163 = vrot.slane %v1162, 1
    %v1164 = vmax.f32 %v1162, %v1163
    %v1165 = vsel %vm1146, %v1128, -inf
    %v1166 = vsel %vm1146, %v1133, -inf
    %v1167 = vmax.f32 %v1165, %v1166
    %v1168 = vrot.slane %v1167, 4
    %v1169 = vmax.f32 %v1167, %v1168
    %v1170 = vrot.slane %v1169, 2
    %v1171 = vmax.f32 %v1169, %v1170
    %v1172 = vrot.slane %v1171, 1
    %v1173 = vmax.f32 %v1171, %v1172
    %v1174 = vsel %vm1146, %v1138, -inf
    %v1175 = vsel %vm1146, %v1143, -inf
    %v1176 = vmax.f32 %v1174, %v1175
    %v1177 = vrot.slane %v1176, 4
    %v1178 = vmax.f32 %v1176, %v1177
    %v1179 = vrot.slane %v1178, 2
    %v1180 = vmax.f32 %v1178, %v1179
    %v1181 = vrot.slane %v1180, 1
    %v1182 = vmax.f32 %v1180, %v1181
    %v1183 = vsub.f32 %v1108, %v1155
    %v1184 = vsub.f32 %v1113, %v1155
    %v1185 = vsub.f32 %v1118, %v1164
    %v1186 = vsub.f32 %v1123, %v1164
    %v1187 = vsub.f32 %v1128, %v1173
    %v1188 = vsub.f32 %v1133, %v1173
    %v1189 = vsub.f32 %v1138, %v1182
    %v1190 = vsub.f32 %v1143, %v1182
    %v1191 = vmul.f32 %v1183, 1.442695
    %v1192 = vpow.pop %v1191
    %v1193 = vmul.f32 %v1184, 1.442695
    %v1194 = vpow.pop %v1193
    %v1195 = vmul.f32 %v1185, 1.442695
    %v1196 = vpow.pop %v1195
    %v1197 = vmul.f32 %v1186, 1.442695
    %v1198 = vpow.pop %v1197
    %v1199 = vmul.f32 %v1187, 1.442695
    %v1200 = vpow.pop %v1199
    %v1201 = vmul.f32 %v1188, 1.442695
    %v1202 = vpow.pop %v1201
    %v1203 = vmul.f32 %v1189, 1.442695
    %v1204 = vpow.pop %v1203
    %v1205 = vmul.f32 %v1190, 1.442695
    %v1206 = vpow.pop %v1205
    %v1207 = vsel %vm1146, %v1192, 0.0
    %v1208 = vsel %vm1146, %v1194, 0.0
    %v1209 = vadd.f32 %v1207, %v1208
    %v1210 = vrot.slane %v1209, 4
    %v1211 = vadd.f32 %v1209, %v1210
    %v1212 = vrot.slane %v1211, 2
    %v1213 = vadd.f32 %v1211, %v1212
    %v1214 = vrot.slane %v1213, 1
    %v1215 = vadd.f32 %v1213, %v1214
    %v1216 = vsel %vm1146, %v1196, 0.0
    %v1217 = vsel %vm1146, %v1198, 0.0
    %v1218 = vadd.f32 %v1216, %v1217
    %v1219 = vrot.slane %v1218, 4
    %v1220 = vadd.f32 %v1218, %v1219
    %v1221 = vrot.slane %v1220, 2
    %v1222 = vadd.f32 %v1220, %v1221
    %v1223 = vrot.slane %v1222, 1
    %v1224 = vadd.f32 %v1222, %v1223
    %v1225 = vsel %vm1146, %v1200, 0.0
    %v1226 = vsel %vm1146, %v1202, 0.0
    %v1227 = vadd.f32 %v1225, %v1226
    %v1228 = vrot.slane %v1227, 4
    %v1229 = vadd.f32 %v1227, %v1228
    %v1230 = vrot.slane %v1229, 2
    %v1231 = vadd.f32 %v1229, %v1230
    %v1232 = vrot.slane %v1231, 1
    %v1233 = vadd.f32 %v1231, %v1232
    %v1234 = vsel %vm1146, %v1204, 0.0
    %v1235 = vsel %vm1146, %v1206, 0.0
    %v1236 = vadd.f32 %v1234, %v1235
    %v1237 = vrot.slane %v1236, 4
    %v1238 = vadd.f32 %v1236, %v1237
    %v1239 = vrot.slane %v1238, 2
    %v1240 = vadd.f32 %v1238, %v1239
    %v1241 = vrot.slane %v1240, 1
    %v1242 = vadd.f32 %v1240, %v1241
    %v1243 = vrcp.pop %v1215
    %v1244 = vmul.f32 %v1192, %v1243
    %v1245 = vmul.f32 %v1194, %v1243
    %v1246 = vrcp.pop %v1224
    %v1247 = vmul.f32 %v1196, %v1246
    %v1248 = vmul.f32 %v1198, %v1246
    %v1249 = vrcp.pop %v1233
    %v1250 = vmul.f32 %v1200, %v1249
    %v1251 = vmul.f32 %v1202, %v1249
    %v1252 = vrcp.pop %v1242
    %v1253 = vmul.f32 %v1204, %v1252
    %v1254 = vmul.f32 %v1206, %v1252
    %v1255 = vlaneseq
    %v1256 = vand.u32 %v1255, 127
    %vm1257 = vcmp.lt.s32.totalorder %v1256, 64
    %1259 = vset.pattern.permute.xlu0 0
    %1260 = vperm.xlu0 %1259, %v1244
    %v1261 = vpop.permute.xlu0 %1260
    %1264 = vset.pattern.permute.xlu0 0
    %1265 = vperm.xlu0 %1264, %v1245
    %v1266 = vpop.permute.xlu0 %1265
    %1269 = vset.pattern.permute.xlu0 0
    %1270 = vperm.xlu0 %1269, %v1247
    %v1271 = vpop.permute.xlu0 %1270
    %1274 = vset.pattern.permute.xlu0 0
    %1275 = vperm.xlu0 %1274, %v1248
    %v1276 = vpop.permute.xlu0 %1275
    %1279 = vset.pattern.permute.xlu0 0
    %1280 = vperm.xlu0 %1279, %v1250
    %v1281 = vpop.permute.xlu0 %1280
    %1284 = vset.pattern.permute.xlu0 0
    %1285 = vperm.xlu0 %1284, %v1251
    %v1286 = vpop.permute.xlu0 %1285
    %1289 = vset.pattern.permute.xlu0 0
    %1290 = vperm.xlu0 %1289, %v1253
    %v1291 = vpop.permute.xlu0 %1290
    %1294 = vset.pattern.permute.xlu0 0
    %1295 = vperm.xlu0 %1294, %v1254
    %v1296 = vpop.permute.xlu0 %1295
    %1298 = vset.pattern.permute.xlu0 1
    %1299 = vperm.xlu0 %1298, %v1244
    %v1300 = vpop.permute.xlu0 %1299
    %1302 = vset.pattern.permute.xlu0 1
    %1303 = vperm.xlu0 %1302, %v1245
    %v1304 = vpop.permute.xlu0 %1303
    %1306 = vset.pattern.permute.xlu0 1
    %1307 = vperm.xlu0 %1306, %v1247
    %v1308 = vpop.permute.xlu0 %1307
    %1310 = vset.pattern.permute.xlu0 1
    %1311 = vperm.xlu0 %1310, %v1248
    %v1312 = vpop.permute.xlu0 %1311
    %1314 = vset.pattern.permute.xlu0 1
    %1315 = vperm.xlu0 %1314, %v1250
    %v1316 = vpop.permute.xlu0 %1315
    %1318 = vset.pattern.permute.xlu0 1
    %1319 = vperm.xlu0 %1318, %v1251
    %v1320 = vpop.permute.xlu0 %1319
    %1322 = vset.pattern.permute.xlu0 1
    %1323 = vperm.xlu0 %1322, %v1253
    %v1324 = vpop.permute.xlu0 %1323
    %1326 = vset.pattern.permute.xlu0 1
    %1327 = vperm.xlu0 %1326, %v1254
    %v1328 = vpop.permute.xlu0 %1327
    %v1330 = vsel %vm1257, %v1261, %v1300
    %v1331 = vsel %vm1257, %v1266, %v1304
    %v1332 = vsel %vm1257, %v1271, %v1308
    %v1333 = vsel %vm1257, %v1276, %v1312
    %v1334 = vsel %vm1257, %v1281, %v1316
    %v1335 = vsel %vm1257, %v1286, %v1320
    %v1336 = vsel %vm1257, %v1291, %v1324
    %v1337 = vsel %vm1257, %v1296, %v1328
    %v1338 = vmul.f32 %v1012, %v1330
    %v1339 = vmul.f32 %v1013, %v1331
    %v1340 = vmul.f32 %v1014, %v1332
    %v1341 = vmul.f32 %v1015, %v1333
    %v1342 = vmul.f32 %v1016, %v1334
    %v1343 = vmul.f32 %v1017, %v1335
    %v1344 = vmul.f32 %v1018, %v1336
    %v1345 = vmul.f32 %v1019, %v1337
    %v1346 = vadd.f32 %v1338, %v1339
    %v1347 = vrot.slane %v1346, 4
    %v1348 = vadd.f32 %v1346, %v1347
    %v1349 = vrot.slane %v1348, 2
    %v1350 = vadd.f32 %v1348, %v1349
    %v1351 = vrot.slane %v1350, 1
    %v1352 = vadd.f32 %v1350, %v1351
    %v1353 = vadd.f32 %v1340, %v1341
    %v1354 = vrot.slane %v1353, 4
    %v1355 = vadd.f32 %v1353, %v1354
    %v1356 = vrot.slane %v1355, 2
    %v1357 = vadd.f32 %v1355, %v1356
    %v1358 = vrot.slane %v1357, 1
    %v1359 = vadd.f32 %v1357, %v1358
    %v1360 = vadd.f32 %v1342, %v1343
    %v1361 = vrot.slane %v1360, 4
    %v1362 = vadd.f32 %v1360, %v1361
    %v1363 = vrot.slane %v1362, 2
    %v1364 = vadd.f32 %v1362, %v1363
    %v1365 = vrot.slane %v1364, 1
    %v1366 = vadd.f32 %v1364, %v1365
    %v1367 = vadd.f32 %v1344, %v1345
    %v1368 = vrot.slane %v1367, 4
    %v1369 = vadd.f32 %v1367, %v1368
    %v1370 = vrot.slane %v1369, 2
    %v1371 = vadd.f32 %v1369, %v1370
    %v1372 = vrot.slane %v1371, 1
    %v1373 = vadd.f32 %v1371, %v1372
    %vm1378 = vcmask 1041409
    %v1379 = vsel %vm1378, %v1359, %v1352
    %vm1380 = vcmask 1042434
    %v1381 = vsel %vm1380, %v1366, %v1379
    %vm1382 = vcmask 1043459
    %v1383 = vsel %vm1382, %v1373, %v1381
    %1385 = vst [vmem:[#allocation2] sm:$0xf] %v1383
    %v1386 = vld [vmem:[#allocation2] ss:$2 sm:$0x3]
    %1387 = vst [vmem:[#allocation3] sm:$0x3] %v1386
    %s1388 = scalar_lea.vmem [#allocation2], 1
    %v1389 = vld [vmem:[%s1388] ss:$2 sm:$0x3]
    %s1390 = scalar_lea.vmem [#allocation3], 2
    %1391 = vst [vmem:[%s1390] sm:$0x3] %v1389
    %v1392 = vld [vmem:[%s6] sm:$0x3]
    %v1393 = vld [vmem:[%s7] sm:$0x3]
    %v1394 = vld [vmem:[#allocation3] sm:$0x3]
    %v1395 = vld [vmem:[#allocation6] sm:$0xff]
    %v1396 = vld [vmem:[#allocation6 + $0x8] sm:$0xff]
    %v1397 = vld [vmem:[#allocation6 + $0x10] sm:$0xff]
    %v1398 = vld [vmem:[#allocation6 + $0x18] sm:$0xff]
    %v1399 = vld [vmem:[#allocation6 + $0x20] sm:$0xff]
    %v1400 = vld [vmem:[#allocation6 + $0x28] sm:$0xff]
    %v1401 = vld [vmem:[#allocation6 + $0x30] sm:$0xff]
    %v1402 = vld [vmem:[#allocation6 + $0x38] sm:$0xff]
    %v1403 = vld [vmem:[#allocation6 + $0x40] sm:$0xff]
    %v1404 = vld [vmem:[#allocation6 + $0x48] sm:$0xff]
    %v1405 = vld [vmem:[#allocation6 + $0x50] sm:$0xff]
    %v1406 = vld [vmem:[#allocation6 + $0x58] sm:$0xff]
    %v1407 = vld [vmem:[#allocation6 + $0x60] sm:$0xff]
    %v1408 = vld [vmem:[#allocation6 + $0x68] sm:$0xff]
    %v1409 = vld [vmem:[#allocation6 + $0x70] sm:$0xff]
    %v1410 = vld [vmem:[#allocation6 + $0x78] sm:$0xff]
    %v1411 = vld [vmem:[#allocation6 + $0x80] sm:$0xff]
    %v1412 = vld [vmem:[#allocation6 + $0x88] sm:$0xff]
    %v1413 = vld [vmem:[#allocation6 + $0x90] sm:$0xff]
    %v1414 = vld [vmem:[#allocation6 + $0x98] sm:$0xff]
    %v1415 = vld [vmem:[#allocation6 + $0xa0] sm:$0xff]
    %v1416 = vld [vmem:[#allocation6 + $0xa8] sm:$0xff]
    %v1417 = vld [vmem:[#allocation6 + $0xb0] sm:$0xff]
    %v1418 = vld [vmem:[#allocation6 + $0xb8] sm:$0xff]
    %v1419 = vld [vmem:[#allocation6 + $0xc0] sm:$0xff]
    %v1420 = vld [vmem:[#allocation6 + $0xc8] sm:$0xff]
    %v1421 = vld [vmem:[#allocation6 + $0xd0] sm:$0xff]
    %v1422 = vld [vmem:[#allocation6 + $0xd8] sm:$0xff]
    %v1423 = vld [vmem:[#allocation6 + $0xe0] sm:$0xff]
    %v1424 = vld [vmem:[#allocation6 + $0xe8] sm:$0xff]
    %v1425 = vld [vmem:[#allocation6 + $0xf0] sm:$0xff]
    %v1426 = vld [vmem:[#allocation6 + $0xf8] sm:$0xff]
    %v1427 = vld [vmem:[#allocation6 + $0x100] sm:$0xff]
    %v1428 = vld [vmem:[#allocation6 + $0x108] sm:$0xff]
    %v1429 = vld [vmem:[#allocation6 + $0x110] sm:$0xff]
    %v1430 = vld [vmem:[#allocation6 + $0x118] sm:$0xff]
    %v1431 = vld [vmem:[#allocation6 + $0x120] sm:$0xff]
    %v1432 = vld [vmem:[#allocation6 + $0x128] sm:$0xff]
    %v1433 = vld [vmem:[#allocation6 + $0x130] sm:$0xff]
    %v1434 = vld [vmem:[#allocation6 + $0x138] sm:$0xff]
    %v1435 = vld [vmem:[#allocation6 + $0x140] sm:$0xff]
    %v1436 = vld [vmem:[#allocation6 + $0x148] sm:$0xff]
    %v1437 = vld [vmem:[#allocation6 + $0x150] sm:$0xff]
    %v1438 = vld [vmem:[#allocation6 + $0x158] sm:$0xff]
    %v1439 = vld [vmem:[#allocation6 + $0x160] sm:$0xff]
    %v1440 = vld [vmem:[#allocation6 + $0x168] sm:$0xff]
    %v1441 = vld [vmem:[#allocation6 + $0x170] sm:$0xff]
    %v1442 = vld [vmem:[#allocation6 + $0x178] sm:$0xff]
    %v1443 = vld [vmem:[#allocation6 + $0x180] sm:$0xff]
    %v1444 = vld [vmem:[#allocation6 + $0x188] sm:$0xff]
    %v1445 = vld [vmem:[#allocation6 + $0x190] sm:$0xff]
    %v1446 = vld [vmem:[#allocation6 + $0x198] sm:$0xff]
    %v1447 = vld [vmem:[#allocation6 + $0x1a0] sm:$0xff]
    %v1448 = vld [vmem:[#allocation6 + $0x1a8] sm:$0xff]
    %v1449 = vld [vmem:[#allocation6 + $0x1b0] sm:$0xff]
    %v1450 = vld [vmem:[#allocation6 + $0x1b8] sm:$0xff]
    %v1451 = vld [vmem:[#allocation6 + $0x1c0] sm:$0xff]
    %v1452 = vld [vmem:[#allocation6 + $0x1c8] sm:$0xff]
    %v1453 = vld [vmem:[#allocation6 + $0x1d0] sm:$0xff]
    %v1454 = vld [vmem:[#allocation6 + $0x1d8] sm:$0xff]
    %v1455 = vld [vmem:[#allocation6 + $0x1e0] sm:$0xff]
    %v1456 = vld [vmem:[#allocation6 + $0x1e8] sm:$0xff]
    %v1457 = vld [vmem:[#allocation6 + $0x1f0] sm:$0xff]
    %v1458 = vld [vmem:[#allocation6 + $0x1f8] sm:$0xff]
    %v1459 = vld [vmem:[#allocation8] sm:$0xff]
    %v1460 = vld [vmem:[#allocation8 + $0x8] sm:$0xff]
    %v1461 = vld [vmem:[#allocation8 + $0x10] sm:$0xff]
    %v1462 = vld [vmem:[#allocation8 + $0x18] sm:$0xff]
    %v1463 = vld [vmem:[#allocation8 + $0x20] sm:$0xff]
    %v1464 = vld [vmem:[#allocation8 + $0x28] sm:$0xff]
    %v1465 = vld [vmem:[#allocation8 + $0x30] sm:$0xff]
    %v1466 = vld [vmem:[#allocation8 + $0x38] sm:$0xff]
    %v1467 = vld [vmem:[#allocation8 + $0x40] sm:$0xff]
    %v1468 = vld [vmem:[#allocation8 + $0x48] sm:$0xff]
    %v1469 = vld [vmem:[#allocation8 + $0x50] sm:$0xff]
    %v1470 = vld [vmem:[#allocation8 + $0x58] sm:$0xff]
    %v1471 = vld [vmem:[#allocation8 + $0x60] sm:$0xff]
    %v1472 = vld [vmem:[#allocation8 + $0x68] sm:$0xff]
    %v1473 = vld [vmem:[#allocation8 + $0x70] sm:$0xff]
    %v1474 = vld [vmem:[#allocation8 + $0x78] sm:$0xff]
    %v1475 = vld [vmem:[#allocation8 + $0x80] sm:$0xff]
    %v1476 = vld [vmem:[#allocation8 + $0x88] sm:$0xff]
    %v1477 = vld [vmem:[#allocation8 + $0x90] sm:$0xff]
    %v1478 = vld [vmem:[#allocation8 + $0x98] sm:$0xff]
    %v1479 = vld [vmem:[#allocation8 + $0xa0] sm:$0xff]
    %v1480 = vld [vmem:[#allocation8 + $0xa8] sm:$0xff]
    %v1481 = vld [vmem:[#allocation8 + $0xb0] sm:$0xff]
    %v1482 = vld [vmem:[#allocation8 + $0xb8] sm:$0xff]
    %v1483 = vld [vmem:[#allocation8 + $0xc0] sm:$0xff]
    %v1484 = vld [vmem:[#allocation8 + $0xc8] sm:$0xff]
    %v1485 = vld [vmem:[#allocation8 + $0xd0] sm:$0xff]
    %v1486 = vld [vmem:[#allocation8 + $0xd8] sm:$0xff]
    %v1487 = vld [vmem:[#allocation8 + $0xe0] sm:$0xff]
    %v1488 = vld [vmem:[#allocation8 + $0xe8] sm:$0xff]
    %v1489 = vld [vmem:[#allocation8 + $0xf0] sm:$0xff]
    %v1490 = vld [vmem:[#allocation8 + $0xf8] sm:$0xff]
    %v1491 = vld [vmem:[#allocation8 + $0x100] sm:$0xff]
    %v1492 = vld [vmem:[#allocation8 + $0x108] sm:$0xff]
    %v1493 = vld [vmem:[#allocation8 + $0x110] sm:$0xff]
    %v1494 = vld [vmem:[#allocation8 + $0x118] sm:$0xff]
    %v1495 = vld [vmem:[#allocation8 + $0x120] sm:$0xff]
    %v1496 = vld [vmem:[#allocation8 + $0x128] sm:$0xff]
    %v1497 = vld [vmem:[#allocation8 + $0x130] sm:$0xff]
    %v1498 = vld [vmem:[#allocation8 + $0x138] sm:$0xff]
    %v1499 = vld [vmem:[#allocation8 + $0x140] sm:$0xff]
    %v1500 = vld [vmem:[#allocation8 + $0x148] sm:$0xff]
    %v1501 = vld [vmem:[#allocation8 + $0x150] sm:$0xff]
    %v1502 = vld [vmem:[#allocation8 + $0x158] sm:$0xff]
    %v1503 = vld [vmem:[#allocation8 + $0x160] sm:$0xff]
    %v1504 = vld [vmem:[#allocation8 + $0x168] sm:$0xff]
    %v1505 = vld [vmem:[#allocation8 + $0x170] sm:$0xff]
    %v1506 = vld [vmem:[#allocation8 + $0x178] sm:$0xff]
    %v1507 = vld [vmem:[#allocation8 + $0x180] sm:$0xff]
    %v1508 = vld [vmem:[#allocation8 + $0x188] sm:$0xff]
    %v1509 = vld [vmem:[#allocation8 + $0x190] sm:$0xff]
    %v1510 = vld [vmem:[#allocation8 + $0x198] sm:$0xff]
    %v1511 = vld [vmem:[#allocation8 + $0x1a0] sm:$0xff]
    %v1512 = vld [vmem:[#allocation8 + $0x1a8] sm:$0xff]
    %v1513 = vld [vmem:[#allocation8 + $0x1b0] sm:$0xff]
    %v1514 = vld [vmem:[#allocation8 + $0x1b8] sm:$0xff]
    %v1515 = vld [vmem:[#allocation8 + $0x1c0] sm:$0xff]
    %v1516 = vld [vmem:[#allocation8 + $0x1c8] sm:$0xff]
    %v1517 = vld [vmem:[#allocation8 + $0x1d0] sm:$0xff]
    %v1518 = vld [vmem:[#allocation8 + $0x1d8] sm:$0xff]
    %v1519 = vld [vmem:[#allocation8 + $0x1e0] sm:$0xff]
    %v1520 = vld [vmem:[#allocation8 + $0x1e8] sm:$0xff]
    %v1521 = vld [vmem:[#allocation8 + $0x1f0] sm:$0xff]
    %v1522 = vld [vmem:[#allocation8 + $0x1f8] sm:$0xff]
    %1523 = vmatprep.subr.mxu0 %v1520
    %1524 = vmatpush1.msra.mxu0 %v1519
    %1525 = vmatprep.subr.mxu0 %v1516
    %1526 = vmatpush1.msra.mxu0 %v1515
    %1527 = vmatprep.subr.mxu0 %v1512
    %1528 = vmatpush1.msra.mxu0 %v1511
    %1529 = vmatprep.subr.mxu0 %v1508
    %1530 = vmatpush1.msra.mxu0 %v1507
    %1531 = vmatprep.subr.mxu0 %v1504
    %1532 = vmatpush1.msra.mxu0 %v1503
    %1533 = vmatprep.subr.mxu0 %v1500
    %1534 = vmatpush1.msra.mxu0 %v1499
    %1535 = vmatprep.subr.mxu0 %v1496
    %1536 = vmatpush1.msra.mxu0 %v1495
    %1537 = vmatprep.subr.mxu0 %v1492
    %1538 = vmatpush1.msra.mxu0 %v1491
    %1539 = vmatprep.subr.mxu0 %v1488
    %1540 = vmatpush1.msra.mxu0 %v1487
    %1541 = vmatprep.subr.mxu0 %v1484
    %1542 = vmatpush1.msra.mxu0 %v1483
    %1543 = vmatprep.subr.mxu0 %v1480
    %1544 = vmatpush1.msra.mxu0 %v1479
    %1545 = vmatprep.subr.mxu0 %v1476
    %1546 = vmatpush1.msra.mxu0 %v1475
    %1547 = vmatprep.subr.mxu0 %v1472
    %1548 = vmatpush1.msra.mxu0 %v1471
    %1549 = vmatprep.subr.mxu0 %v1468
    %1550 = vmatpush1.msra.mxu0 %v1467
    %1551 = vmatprep.subr.mxu0 %v1464
    %1552 = vmatpush1.msra.mxu0 %v1463
    %1553 = vmatprep.subr.mxu0 %v1460
    %1554 = vmatpush1.msra.mxu0 %v1459
    %1555 = vmatprep.subr.mxu0 0.0
    %1556 = vmatpush2.msra.mxu0 0.0
    %1557 = vmatprep.subr.mxu0 0.0
    %1558 = vmatpush2.msra.mxu0 0.0
    %1559 = vmatprep.subr.mxu0 0.0
    %1560 = vmatpush2.msra.mxu0 0.0
    %1561 = vmatprep.subr.mxu0 0.0
    %1562 = vmatpush2.msra.mxu0 0.0
    %1563 = vmatprep.subr.mxu0 0.0
    %1564 = vmatpush2.msra.mxu0 0.0
    %1565 = vmatprep.subr.mxu0 0.0
    %1566 = vmatpush2.msra.mxu0 0.0
    %1567 = vmatprep.subr.mxu0 0.0
    %1568 = vmatpush2.msra.mxu0 0.0
    %1569 = vmatprep.subr.mxu0 0.0
    %1570 = vmatpush2.msra.mxu0 0.0
    %1571 = vmatprep.subr.mxu0 0.0
    %1572 = vmatpush2.msra.mxu0 0.0
    %1573 = vmatprep.subr.mxu0 0.0
    %1574 = vmatpush2.msra.mxu0 0.0
    %1575 = vmatprep.subr.mxu0 0.0
    %1576 = vmatpush2.msra.mxu0 0.0
    %1577 = vmatprep.subr.mxu0 0.0
    %1578 = vmatpush2.msra.mxu0 0.0
    %1579 = vmatprep.subr.mxu0 0.0
    %1580 = vmatpush2.msra.mxu0 0.0
    %1581 = vmatprep.subr.mxu0 0.0
    %1582 = vmatpush2.msra.mxu0 0.0
    %1583 = vmatprep.subr.mxu0 0.0
    %1584 = vmatpush2.msra.mxu0 0.0
    %1585 = vmatprep.subr.mxu0 0.0
    %1586 = vmatpush2.msra.mxu0 0.0
    %1587 = vmatprep.mubr.f32.mxu0 0.0
    %1588 = vmatmul.mubr.f32.gmra.mxu0 %v1392
    %v1589 = vpop.f32.mrf.mxu0
    %v1590 = vadd.f32 0.0, %v1589
    %v1591 = vpop.f32.mrf.mxu0
    %v1592 = vadd.f32 0.0, %v1591
    %1593 = vdwg.mxu0
    %1594 = vmatprep.subr.mxu0 %v1522
    %1595 = vmatpush1.msra.mxu0 %v1521
    %1596 = vmatprep.subr.mxu0 %v1518
    %1597 = vmatpush1.msra.mxu0 %v1517
    %1598 = vmatprep.subr.mxu0 %v1514
    %1599 = vmatpush1.msra.mxu0 %v1513
    %1600 = vmatprep.subr.mxu0 %v1510
    %1601 = vmatpush1.msra.mxu0 %v1509
    %1602 = vmatprep.subr.mxu0 %v1506
    %1603 = vmatpush1.msra.mxu0 %v1505
    %1604 = vmatprep.subr.mxu0 %v1502
    %1605 = vmatpush1.msra.mxu0 %v1501
    %1606 = vmatprep.subr.mxu0 %v1498
    %1607 = vmatpush1.msra.mxu0 %v1497
    %1608 = vmatprep.subr.mxu0 %v1494
    %1609 = vmatpush1.msra.mxu0 %v1493
    %1610 = vmatprep.subr.mxu0 %v1490
    %1611 = vmatpush1.msra.mxu0 %v1489
    %1612 = vmatprep.subr.mxu0 %v1486
    %1613 = vmatpush1.msra.mxu0 %v1485
    %1614 = vmatprep.subr.mxu0 %v1482
    %1615 = vmatpush1.msra.mxu0 %v1481
    %1616 = vmatprep.subr.mxu0 %v1478
    %1617 = vmatpush1.msra.mxu0 %v1477
    %1618 = vmatprep.subr.mxu0 %v1474
    %1619 = vmatpush1.msra.mxu0 %v1473
    %1620 = vmatprep.subr.mxu0 %v1470
    %1621 = vmatpush1.msra.mxu0 %v1469
    %1622 = vmatprep.subr.mxu0 %v1466
    %1623 = vmatpush1.msra.mxu0 %v1465
    %1624 = vmatprep.subr.mxu0 %v1462
    %1625 = vmatpush1.msra.mxu0 %v1461
    %1626 = vmatprep.subr.mxu0 0.0
    %1627 = vmatpush2.msra.mxu0 0.0
    %1628 = vmatprep.subr.mxu0 0.0
    %1629 = vmatpush2.msra.mxu0 0.0
    %1630 = vmatprep.subr.mxu0 0.0
    %1631 = vmatpush2.msra.mxu0 0.0
    %1632 = vmatprep.subr.mxu0 0.0
    %1633 = vmatpush2.msra.mxu0 0.0
    %1634 = vmatprep.subr.mxu0 0.0
    %1635 = vmatpush2.msra.mxu0 0.0
    %1636 = vmatprep.subr.mxu0 0.0
    %1637 = vmatpush2.msra.mxu0 0.0
    %1638 = vmatprep.subr.mxu0 0.0
    %1639 = vmatpush2.msra.mxu0 0.0
    %1640 = vmatprep.subr.mxu0 0.0
    %1641 = vmatpush2.msra.mxu0 0.0
    %1642 = vmatprep.subr.mxu0 0.0
    %1643 = vmatpush2.msra.mxu0 0.0
    %1644 = vmatprep.subr.mxu0 0.0
    %1645 = vmatpush2.msra.mxu0 0.0
    %1646 = vmatprep.subr.mxu0 0.0
    %1647 = vmatpush2.msra.mxu0 0.0
    %1648 = vmatprep.subr.mxu0 0.0
    %1649 = vmatpush2.msra.mxu0 0.0
    %1650 = vmatprep.subr.mxu0 0.0
    %1651 = vmatpush2.msra.mxu0 0.0
    %1652 = vmatprep.subr.mxu0 0.0
    %1653 = vmatpush2.msra.mxu0 0.0
    %1654 = vmatprep.subr.mxu0 0.0
    %1655 = vmatpush2.msra.mxu0 0.0
    %1656 = vmatprep.subr.mxu0 0.0
    %1657 = vmatpush2.msra.mxu0 0.0
    %1658 = vmatprep.mubr.f32.mxu0 0.0
    %1659 = vmatmul.mubr.f32.gmra.mxu0 %v1392
    %v1660 = vpop.f32.mrf.mxu0
    %v1661 = vadd.f32 0.0, %v1660
    %v1662 = vpop.f32.mrf.mxu0
    %v1663 = vadd.f32 0.0, %v1662
    %1664 = vdwg.mxu0
    %1665 = vmatprep.subr.mxu0 %v1456
    %1666 = vmatpush1.msra.mxu0 %v1455
    %1667 = vmatprep.subr.mxu0 %v1452
    %1668 = vmatpush1.msra.mxu0 %v1451
    %1669 = vmatprep.subr.mxu0 %v1448
    %1670 = vmatpush1.msra.mxu0 %v1447
    %1671 = vmatprep.subr.mxu0 %v1444
    %1672 = vmatpush1.msra.mxu0 %v1443
    %1673 = vmatprep.subr.mxu0 %v1440
    %1674 = vmatpush1.msra.mxu0 %v1439
    %1675 = vmatprep.subr.mxu0 %v1436
    %1676 = vmatpush1.msra.mxu0 %v1435
    %1677 = vmatprep.subr.mxu0 %v1432
    %1678 = vmatpush1.msra.mxu0 %v1431
    %1679 = vmatprep.subr.mxu0 %v1428
    %1680 = vmatpush1.msra.mxu0 %v1427
    %1681 = vmatprep.subr.mxu0 %v1424
    %1682 = vmatpush1.msra.mxu0 %v1423
    %1683 = vmatprep.subr.mxu0 %v1420
    %1684 = vmatpush1.msra.mxu0 %v1419
    %1685 = vmatprep.subr.mxu0 %v1416
    %1686 = vmatpush1.msra.mxu0 %v1415
    %1687 = vmatprep.subr.mxu0 %v1412
    %1688 = vmatpush1.msra.mxu0 %v1411
    %1689 = vmatprep.subr.mxu0 %v1408
    %1690 = vmatpush1.msra.mxu0 %v1407
    %1691 = vmatprep.subr.mxu0 %v1404
    %1692 = vmatpush1.msra.mxu0 %v1403
    %1693 = vmatprep.subr.mxu0 %v1400
    %1694 = vmatpush1.msra.mxu0 %v1399
    %1695 = vmatprep.subr.mxu0 %v1396
    %1696 = vmatpush1.msra.mxu0 %v1395
    %1697 = vmatprep.subr.mxu0 0.0
    %1698 = vmatpush2.msra.mxu0 0.0
    %1699 = vmatprep.subr.mxu0 0.0
    %1700 = vmatpush2.msra.mxu0 0.0
    %1701 = vmatprep.subr.mxu0 0.0
    %1702 = vmatpush2.msra.mxu0 0.0
    %1703 = vmatprep.subr.mxu0 0.0
    %1704 = vmatpush2.msra.mxu0 0.0
    %1705 = vmatprep.subr.mxu0 0.0
    %1706 = vmatpush2.msra.mxu0 0.0
    %1707 = vmatprep.subr.mxu0 0.0
    %1708 = vmatpush2.msra.mxu0 0.0
    %1709 = vmatprep.subr.mxu0 0.0
    %1710 = vmatpush2.msra.mxu0 0.0
    %1711 = vmatprep.subr.mxu0 0.0
    %1712 = vmatpush2.msra.mxu0 0.0
    %1713 = vmatprep.subr.mxu0 0.0
    %1714 = vmatpush2.msra.mxu0 0.0
    %1715 = vmatprep.subr.mxu0 0.0
    %1716 = vmatpush2.msra.mxu0 0.0
    %1717 = vmatprep.subr.mxu0 0.0
    %1718 = vmatpush2.msra.mxu0 0.0
    %1719 = vmatprep.subr.mxu0 0.0
    %1720 = vmatpush2.msra.mxu0 0.0
    %1721 = vmatprep.subr.mxu0 0.0
    %1722 = vmatpush2.msra.mxu0 0.0
    %1723 = vmatprep.subr.mxu0 0.0
    %1724 = vmatpush2.msra.mxu0 0.0
    %1725 = vmatprep.subr.mxu0 0.0
    %1726 = vmatpush2.msra.mxu0 0.0
    %1727 = vmatprep.subr.mxu0 0.0
    %1728 = vmatpush2.msra.mxu0 0.0
    %1729 = vmatprep.mubr.f32.mxu0 0.0
    %1730 = vmatmul.mubr.f32.gmra.mxu0 %v1394
    %v1731 = vpop.f32.mrf.mxu0
    %v1732 = vadd.f32 %v1590, %v1731
    %v1733 = vpop.f32.mrf.mxu0
    %v1734 = vadd.f32 %v1592, %v1733
    %1735 = vdwg.mxu0
    %1736 = vmatprep.subr.mxu0 %v1458
    %1737 = vmatpush1.msra.mxu0 %v1457
    %1738 = vmatprep.subr.mxu0 %v1454
    %1739 = vmatpush1.msra.mxu0 %v1453
    %1740 = vmatprep.subr.mxu0 %v1450
    %1741 = vmatpush1.msra.mxu0 %v1449
    %1742 = vmatprep.subr.mxu0 %v1446
    %1743 = vmatpush1.msra.mxu0 %v1445
    %1744 = vmatprep.subr.mxu0 %v1442
    %1745 = vmatpush1.msra.mxu0 %v1441
    %1746 = vmatprep.subr.mxu0 %v1438
    %1747 = vmatpush1.msra.mxu0 %v1437
    %1748 = vmatprep.subr.mxu0 %v1434
    %1749 = vmatpush1.msra.mxu0 %v1433
    %1750 = vmatprep.subr.mxu0 %v1430
    %1751 = vmatpush1.msra.mxu0 %v1429
    %1752 = vmatprep.subr.mxu0 %v1426
    %1753 = vmatpush1.msra.mxu0 %v1425
    %1754 = vmatprep.subr.mxu0 %v1422
    %1755 = vmatpush1.msra.mxu0 %v1421
    %1756 = vmatprep.subr.mxu0 %v1418
    %1757 = vmatpush1.msra.mxu0 %v1417
    %1758 = vmatprep.subr.mxu0 %v1414
    %1759 = vmatpush1.msra.mxu0 %v1413
    %1760 = vmatprep.subr.mxu0 %v1410
    %1761 = vmatpush1.msra.mxu0 %v1409
    %1762 = vmatprep.subr.mxu0 %v1406
    %1763 = vmatpush1.msra.mxu0 %v1405
    %1764 = vmatprep.subr.mxu0 %v1402
    %1765 = vmatpush1.msra.mxu0 %v1401
    %1766 = vmatprep.subr.mxu0 %v1398
    %1767 = vmatpush1.msra.mxu0 %v1397
    %1768 = vmatprep.subr.mxu0 0.0
    %1769 = vmatpush2.msra.mxu0 0.0
    %1770 = vmatprep.subr.mxu0 0.0
    %1771 = vmatpush2.msra.mxu0 0.0
    %1772 = vmatprep.subr.mxu0 0.0
    %1773 = vmatpush2.msra.mxu0 0.0
    %1774 = vmatprep.subr.mxu0 0.0
    %1775 = vmatpush2.msra.mxu0 0.0
    %1776 = vmatprep.subr.mxu0 0.0
    %1777 = vmatpush2.msra.mxu0 0.0
    %1778 = vmatprep.subr.mxu0 0.0
    %1779 = vmatpush2.msra.mxu0 0.0
    %1780 = vmatprep.subr.mxu0 0.0
    %1781 = vmatpush2.msra.mxu0 0.0
    %1782 = vmatprep.subr.mxu0 0.0
    %1783 = vmatpush2.msra.mxu0 0.0
    %1784 = vmatprep.subr.mxu0 0.0
    %1785 = vmatpush2.msra.mxu0 0.0
    %1786 = vmatprep.subr.mxu0 0.0
    %1787 = vmatpush2.msra.mxu0 0.0
    %1788 = vmatprep.subr.mxu0 0.0
    %1789 = vmatpush2.msra.mxu0 0.0
    %1790 = vmatprep.subr.mxu0 0.0
    %1791 = vmatpush2.msra.mxu0 0.0
    %1792 = vmatprep.subr.mxu0 0.0
    %1793 = vmatpush2.msra.mxu0 0.0
    %1794 = vmatprep.subr.mxu0 0.0
    %1795 = vmatpush2.msra.mxu0 0.0
    %1796 = vmatprep.subr.mxu0 0.0
    %1797 = vmatpush2.msra.mxu0 0.0
    %1798 = vmatprep.subr.mxu0 0.0
    %1799 = vmatpush2.msra.mxu0 0.0
    %1800 = vmatprep.mubr.f32.mxu0 0.0
    %1801 = vmatmul.mubr.f32.gmra.mxu0 %v1394
    %v1802 = vpop.f32.mrf.mxu0
    %v1803 = vadd.f32 %v1661, %v1802
    %v1804 = vpop.f32.mrf.mxu0
    %v1805 = vadd.f32 %v1663, %v1804
    %1806 = vdwg.mxu0
    %v1807 = vld [vmem:[%s5] sm:$0xf]
    %v1809 = vlaneseq
    %v1810 = vshrl.u32 %v1809, 7
    %v1811 = vsub.s32 0, %v1810
    %v1812 = vrot.slane %v1807, %v1811
    %v1813 = vlaneseq
    %v1814 = vshrl.u32 %v1813, 7
    %v1815 = vsub.s32 1, %v1814
    %v1816 = vrot.slane %v1807, %v1815
    %v1817 = vlaneseq
    %v1818 = vshrl.u32 %v1817, 7
    %v1819 = vsub.s32 2, %v1818
    %v1820 = vrot.slane %v1807, %v1819
    %v1821 = vlaneseq
    %v1822 = vshrl.u32 %v1821, 7
    %v1823 = vsub.s32 3, %v1822
    %v1824 = vrot.slane %v1807, %v1823
    %v1829 = vadd.f32 %v1732, %v1812
    %v1830 = vadd.f32 %v1734, %v1816
    %v1831 = vadd.f32 %v1803, %v1820
    %v1832 = vadd.f32 %v1805, %v1824
    %v1833 = vxor.u32 %v1829, 2147483648
    %v1834 = vmul.f32 %v1833, 1.442695
    %v1835 = vpow.pop %v1834
    %v1836 = vadd.f32 %v1835, 1.0
    %v1837 = vrcp.pop %v1836
    %v1838 = vmul.f32 1.0, %v1837
    %v1839 = vxor.u32 %v1830, 2147483648
    %v1840 = vmul.f32 %v1839, 1.442695
    %v1841 = vpow.pop %v1840
    %v1842 = vadd.f32 %v1841, 1.0
    %v1843 = vrcp.pop %v1842
    %v1844 = vmul.f32 1.0, %v1843
    %v1845 = vtanh.pop %v1831
    %v1846 = vxor.u32 %v1832, 2147483648
    %v1847 = vmul.f32 %v1846, 1.442695
    %v1848 = vpow.pop %v1847
    %v1849 = vadd.f32 %v1848, 1.0
    %v1850 = vrcp.pop %v1849
    %v1851 = vmul.f32 1.0, %v1850
    %v1852 = vmul.f32 %v1844, %v1393
    %v1853 = vmul.f32 %v1838, %v1845
    %v1854 = vadd.f32 %v1852, %v1853
    %v1855 = vtanh.pop %v1854
    %v1856 = vmul.f32 %v1851, %v1855
    %1857 = vst [vmem:[#allocation3] sm:$0x3] %v1856
    %v1858 = vld [vmem:[%s1390] sm:$0x3]
    %v1859 = vld [vmem:[#allocation6] sm:$0xff]
    %v1860 = vld [vmem:[#allocation6 + $0x8] sm:$0xff]
    %v1861 = vld [vmem:[#allocation6 + $0x10] sm:$0xff]
    %v1862 = vld [vmem:[#allocation6 + $0x18] sm:$0xff]
    %v1863 = vld [vmem:[#allocation6 + $0x20] sm:$0xff]
    %v1864 = vld [vmem:[#allocation6 + $0x28] sm:$0xff]
    %v1865 = vld [vmem:[#allocation6 + $0x30] sm:$0xff]
    %v1866 = vld [vmem:[#allocation6 + $0x38] sm:$0xff]
    %v1867 = vld [vmem:[#allocation6 + $0x40] sm:$0xff]
    %v1868 = vld [vmem:[#allocation6 + $0x48] sm:$0xff]
    %v1869 = vld [vmem:[#allocation6 + $0x50] sm:$0xff]
    %v1870 = vld [vmem:[#allocation6 + $0x58] sm:$0xff]
    %v1871 = vld [vmem:[#allocation6 + $0x60] sm:$0xff]
    %v1872 = vld [vmem:[#allocation6 + $0x68] sm:$0xff]
    %v1873 = vld [vmem:[#allocation6 + $0x70] sm:$0xff]
    %v1874 = vld [vmem:[#allocation6 + $0x78] sm:$0xff]
    %v1875 = vld [vmem:[#allocation6 + $0x80] sm:$0xff]
    %v1876 = vld [vmem:[#allocation6 + $0x88] sm:$0xff]
    %v1877 = vld [vmem:[#allocation6 + $0x90] sm:$0xff]
    %v1878 = vld [vmem:[#allocation6 + $0x98] sm:$0xff]
    %v1879 = vld [vmem:[#allocation6 + $0xa0] sm:$0xff]
    %v1880 = vld [vmem:[#allocation6 + $0xa8] sm:$0xff]
    %v1881 = vld [vmem:[#allocation6 + $0xb0] sm:$0xff]
    %v1882 = vld [vmem:[#allocation6 + $0xb8] sm:$0xff]
    %v1883 = vld [vmem:[#allocation6 + $0xc0] sm:$0xff]
    %v1884 = vld [vmem:[#allocation6 + $0xc8] sm:$0xff]
    %v1885 = vld [vmem:[#allocation6 + $0xd0] sm:$0xff]
    %v1886 = vld [vmem:[#allocation6 + $0xd8] sm:$0xff]
    %v1887 = vld [vmem:[#allocation6 + $0xe0] sm:$0xff]
    %v1888 = vld [vmem:[#allocation6 + $0xe8] sm:$0xff]
    %v1889 = vld [vmem:[#allocation6 + $0xf0] sm:$0xff]
    %v1890 = vld [vmem:[#allocation6 + $0xf8] sm:$0xff]
    %v1891 = vld [vmem:[#allocation6 + $0x100] sm:$0xff]
    %v1892 = vld [vmem:[#allocation6 + $0x108] sm:$0xff]
    %v1893 = vld [vmem:[#allocation6 + $0x110] sm:$0xff]
    %v1894 = vld [vmem:[#allocation6 + $0x118] sm:$0xff]
    %v1895 = vld [vmem:[#allocation6 + $0x120] sm:$0xff]
    %v1896 = vld [vmem:[#allocation6 + $0x128] sm:$0xff]
    %v1897 = vld [vmem:[#allocation6 + $0x130] sm:$0xff]
    %v1898 = vld [vmem:[#allocation6 + $0x138] sm:$0xff]
    %v1899 = vld [vmem:[#allocation6 + $0x140] sm:$0xff]
    %v1900 = vld [vmem:[#allocation6 + $0x148] sm:$0xff]
    %v1901 = vld [vmem:[#allocation6 + $0x150] sm:$0xff]
    %v1902 = vld [vmem:[#allocation6 + $0x158] sm:$0xff]
    %v1903 = vld [vmem:[#allocation6 + $0x160] sm:$0xff]
    %v1904 = vld [vmem:[#allocation6 + $0x168] sm:$0xff]
    %v1905 = vld [vmem:[#allocation6 + $0x170] sm:$0xff]
    %v1906 = vld [vmem:[#allocation6 + $0x178] sm:$0xff]
    %v1907 = vld [vmem:[#allocation6 + $0x180] sm:$0xff]
    %v1908 = vld [vmem:[#allocation6 + $0x188] sm:$0xff]
    %v1909 = vld [vmem:[#allocation6 + $0x190] sm:$0xff]
    %v1910 = vld [vmem:[#allocation6 + $0x198] sm:$0xff]
    %v1911 = vld [vmem:[#allocation6 + $0x1a0] sm:$0xff]
    %v1912 = vld [vmem:[#allocation6 + $0x1a8] sm:$0xff]
    %v1913 = vld [vmem:[#allocation6 + $0x1b0] sm:$0xff]
    %v1914 = vld [vmem:[#allocation6 + $0x1b8] sm:$0xff]
    %v1915 = vld [vmem:[#allocation6 + $0x1c0] sm:$0xff]
    %v1916 = vld [vmem:[#allocation6 + $0x1c8] sm:$0xff]
    %v1917 = vld [vmem:[#allocation6 + $0x1d0] sm:$0xff]
    %v1918 = vld [vmem:[#allocation6 + $0x1d8] sm:$0xff]
    %v1919 = vld [vmem:[#allocation6 + $0x1e0] sm:$0xff]
    %v1920 = vld [vmem:[#allocation6 + $0x1e8] sm:$0xff]
    %v1921 = vld [vmem:[#allocation6 + $0x1f0] sm:$0xff]
    %v1922 = vld [vmem:[#allocation6 + $0x1f8] sm:$0xff]
    %v1923 = vld [vmem:[#allocation8] sm:$0xff]
    %v1924 = vld [vmem:[#allocation8 + $0x8] sm:$0xff]
    %v1925 = vld [vmem:[#allocation8 + $0x10] sm:$0xff]
    %v1926 = vld [vmem:[#allocation8 + $0x18] sm:$0xff]
    %v1927 = vld [vmem:[#allocation8 + $0x20] sm:$0xff]
    %v1928 = vld [vmem:[#allocation8 + $0x28] sm:$0xff]
    %v1929 = vld [vmem:[#allocation8 + $0x30] sm:$0xff]
    %v1930 = vld [vmem:[#allocation8 + $0x38] sm:$0xff]
    %v1931 = vld [vmem:[#allocation8 + $0x40] sm:$0xff]
    %v1932 = vld [vmem:[#allocation8 + $0x48] sm:$0xff]
    %v1933 = vld [vmem:[#allocation8 + $0x50] sm:$0xff]
    %v1934 = vld [vmem:[#allocation8 + $0x58] sm:$0xff]
    %v1935 = vld [vmem:[#allocation8 + $0x60] sm:$0xff]
    %v1936 = vld [vmem:[#allocation8 + $0x68] sm:$0xff]
    %v1937 = vld [vmem:[#allocation8 + $0x70] sm:$0xff]
    %v1938 = vld [vmem:[#allocation8 + $0x78] sm:$0xff]
    %v1939 = vld [vmem:[#allocation8 + $0x80] sm:$0xff]
    %v1940 = vld [vmem:[#allocation8 + $0x88] sm:$0xff]
    %v1941 = vld [vmem:[#allocation8 + $0x90] sm:$0xff]
    %v1942 = vld [vmem:[#allocation8 + $0x98] sm:$0xff]
    %v1943 = vld [vmem:[#allocation8 + $0xa0] sm:$0xff]
    %v1944 = vld [vmem:[#allocation8 + $0xa8] sm:$0xff]
    %v1945 = vld [vmem:[#allocation8 + $0xb0] sm:$0xff]
    %v1946 = vld [vmem:[#allocation8 + $0xb8] sm:$0xff]
    %v1947 = vld [vmem:[#allocation8 + $0xc0] sm:$0xff]
    %v1948 = vld [vmem:[#allocation8 + $0xc8] sm:$0xff]
    %v1949 = vld [vmem:[#allocation8 + $0xd0] sm:$0xff]
    %v1950 = vld [vmem:[#allocation8 + $0xd8] sm:$0xff]
    %v1951 = vld [vmem:[#allocation8 + $0xe0] sm:$0xff]
    %v1952 = vld [vmem:[#allocation8 + $0xe8] sm:$0xff]
    %v1953 = vld [vmem:[#allocation8 + $0xf0] sm:$0xff]
    %v1954 = vld [vmem:[#allocation8 + $0xf8] sm:$0xff]
    %v1955 = vld [vmem:[#allocation8 + $0x100] sm:$0xff]
    %v1956 = vld [vmem:[#allocation8 + $0x108] sm:$0xff]
    %v1957 = vld [vmem:[#allocation8 + $0x110] sm:$0xff]
    %v1958 = vld [vmem:[#allocation8 + $0x118] sm:$0xff]
    %v1959 = vld [vmem:[#allocation8 + $0x120] sm:$0xff]
    %v1960 = vld [vmem:[#allocation8 + $0x128] sm:$0xff]
    %v1961 = vld [vmem:[#allocation8 + $0x130] sm:$0xff]
    %v1962 = vld [vmem:[#allocation8 + $0x138] sm:$0xff]
    %v1963 = vld [vmem:[#allocation8 + $0x140] sm:$0xff]
    %v1964 = vld [vmem:[#allocation8 + $0x148] sm:$0xff]
    %v1965 = vld [vmem:[#allocation8 + $0x150] sm:$0xff]
    %v1966 = vld [vmem:[#allocation8 + $0x158] sm:$0xff]
    %v1967 = vld [vmem:[#allocation8 + $0x160] sm:$0xff]
    %v1968 = vld [vmem:[#allocation8 + $0x168] sm:$0xff]
    %v1969 = vld [vmem:[#allocation8 + $0x170] sm:$0xff]
    %v1970 = vld [vmem:[#allocation8 + $0x178] sm:$0xff]
    %v1971 = vld [vmem:[#allocation8 + $0x180] sm:$0xff]
    %v1972 = vld [vmem:[#allocation8 + $0x188] sm:$0xff]
    %v1973 = vld [vmem:[#allocation8 + $0x190] sm:$0xff]
    %v1974 = vld [vmem:[#allocation8 + $0x198] sm:$0xff]
    %v1975 = vld [vmem:[#allocation8 + $0x1a0] sm:$0xff]
    %v1976 = vld [vmem:[#allocation8 + $0x1a8] sm:$0xff]
    %v1977 = vld [vmem:[#allocation8 + $0x1b0] sm:$0xff]
    %v1978 = vld [vmem:[#allocation8 + $0x1b8] sm:$0xff]
    %v1979 = vld [vmem:[#allocation8 + $0x1c0] sm:$0xff]
    %v1980 = vld [vmem:[#allocation8 + $0x1c8] sm:$0xff]
    %v1981 = vld [vmem:[#allocation8 + $0x1d0] sm:$0xff]
    %v1982 = vld [vmem:[#allocation8 + $0x1d8] sm:$0xff]
    %v1983 = vld [vmem:[#allocation8 + $0x1e0] sm:$0xff]
    %v1984 = vld [vmem:[#allocation8 + $0x1e8] sm:$0xff]
    %v1985 = vld [vmem:[#allocation8 + $0x1f0] sm:$0xff]
    %v1986 = vld [vmem:[#allocation8 + $0x1f8] sm:$0xff]
    %1987 = vmatprep.subr.mxu0 %v1984
    %1988 = vmatpush1.msra.mxu0 %v1983
    %1989 = vmatprep.subr.mxu0 %v1980
    %1990 = vmatpush1.msra.mxu0 %v1979
    %1991 = vmatprep.subr.mxu0 %v1976
    %1992 = vmatpush1.msra.mxu0 %v1975
    %1993 = vmatprep.subr.mxu0 %v1972
    %1994 = vmatpush1.msra.mxu0 %v1971
    %1995 = vmatprep.subr.mxu0 %v1968
    %1996 = vmatpush1.msra.mxu0 %v1967
    %1997 = vmatprep.subr.mxu0 %v1964
    %1998 = vmatpush1.msra.mxu0 %v1963
    %1999 = vmatprep.subr.mxu0 %v1960
    %2000 = vmatpush1.msra.mxu0 %v1959
    %2001 = vmatprep.subr.mxu0 %v1956
    %2002 = vmatpush1.msra.mxu0 %v1955
    %2003 = vmatprep.subr.mxu0 %v1952
    %2004 = vmatpush1.msra.mxu0 %v1951
    %2005 = vmatprep.subr.mxu0 %v1948
    %2006 = vmatpush1.msra.mxu0 %v1947
    %2007 = vmatprep.subr.mxu0 %v1944
    %2008 = vmatpush1.msra.mxu0 %v1943
    %2009 = vmatprep.subr.mxu0 %v1940
    %2010 = vmatpush1.msra.mxu0 %v1939
    %2011 = vmatprep.subr.mxu0 %v1936
    %2012 = vmatpush1.msra.mxu0 %v1935
    %2013 = vmatprep.subr.mxu0 %v1932
    %2014 = vmatpush1.msra.mxu0 %v1931
    %2015 = vmatprep.subr.mxu0 %v1928
    %2016 = vmatpush1.msra.mxu0 %v1927
    %2017 = vmatprep.subr.mxu0 %v1924
    %2018 = vmatpush1.msra.mxu0 %v1923
    %2019 = vmatprep.subr.mxu0 0.0
    %2020 = vmatpush2.msra.mxu0 0.0
    %2021 = vmatprep.subr.mxu0 0.0
    %2022 = vmatpush2.msra.mxu0 0.0
    %2023 = vmatprep.subr.mxu0 0.0
    %2024 = vmatpush2.msra.mxu0 0.0
    %2025 = vmatprep.subr.mxu0 0.0
    %2026 = vmatpush2.msra.mxu0 0.0
    %2027 = vmatprep.subr.mxu0 0.0
    %2028 = vmatpush2.msra.mxu0 0.0
    %2029 = vmatprep.subr.mxu0 0.0
    %2030 = vmatpush2.msra.mxu0 0.0
    %2031 = vmatprep.subr.mxu0 0.0
    %2032 = vmatpush2.msra.mxu0 0.0
    %2033 = vmatprep.subr.mxu0 0.0
    %2034 = vmatpush2.msra.mxu0 0.0
    %2035 = vmatprep.subr.mxu0 0.0
    %2036 = vmatpush2.msra.mxu0 0.0
    %2037 = vmatprep.subr.mxu0 0.0
    %2038 = vmatpush2.msra.mxu0 0.0
    %2039 = vmatprep.subr.mxu0 0.0
    %2040 = vmatpush2.msra.mxu0 0.0
    %2041 = vmatprep.subr.mxu0 0.0
    %2042 = vmatpush2.msra.mxu0 0.0
    %2043 = vmatprep.subr.mxu0 0.0
    %2044 = vmatpush2.msra.mxu0 0.0
    %2045 = vmatprep.subr.mxu0 0.0
    %2046 = vmatpush2.msra.mxu0 0.0
    %2047 = vmatprep.subr.mxu0 0.0
    %2048 = vmatpush2.msra.mxu0 0.0
    %2049 = vmatprep.subr.mxu0 0.0
    %2050 = vmatpush2.msra.mxu0 0.0
    %2051 = vmatprep.mubr.f32.mxu0 0.0
    %2052 = vmatmul.mubr.f32.gmra.mxu0 %v1856
    %v2053 = vpop.f32.mrf.mxu0
    %v2054 = vadd.f32 0.0, %v2053
    %v2055 = vpop.f32.mrf.mxu0
    %v2056 = vadd.f32 0.0, %v2055
    %2057 = vdwg.mxu0
    %2058 = vmatprep.subr.mxu0 %v1986
    %2059 = vmatpush1.msra.mxu0 %v1985
    %2060 = vmatprep.subr.mxu0 %v1982
    %2061 = vmatpush1.msra.mxu0 %v1981
    %2062 = vmatprep.subr.mxu0 %v1978
    %2063 = vmatpush1.msra.mxu0 %v1977
    %2064 = vmatprep.subr.mxu0 %v1974
    %2065 = vmatpush1.msra.mxu0 %v1973
    %2066 = vmatprep.subr.mxu0 %v1970
    %2067 = vmatpush1.msra.mxu0 %v1969
    %2068 = vmatprep.subr.mxu0 %v1966
    %2069 = vmatpush1.msra.mxu0 %v1965
    %2070 = vmatprep.subr.mxu0 %v1962
    %2071 = vmatpush1.msra.mxu0 %v1961
    %2072 = vmatprep.subr.mxu0 %v1958
    %2073 = vmatpush1.msra.mxu0 %v1957
    %2074 = vmatprep.subr.mxu0 %v1954
    %2075 = vmatpush1.msra.mxu0 %v1953
    %2076 = vmatprep.subr.mxu0 %v1950
    %2077 = vmatpush1.msra.mxu0 %v1949
    %2078 = vmatprep.subr.mxu0 %v1946
    %2079 = vmatpush1.msra.mxu0 %v1945
    %2080 = vmatprep.subr.mxu0 %v1942
    %2081 = vmatpush1.msra.mxu0 %v1941
    %2082 = vmatprep.subr.mxu0 %v1938
    %2083 = vmatpush1.msra.mxu0 %v1937
    %2084 = vmatprep.subr.mxu0 %v1934
    %2085 = vmatpush1.msra.mxu0 %v1933
    %2086 = vmatprep.subr.mxu0 %v1930
    %2087 = vmatpush1.msra.mxu0 %v1929
    %2088 = vmatprep.subr.mxu0 %v1926
    %2089 = vmatpush1.msra.mxu0 %v1925
    %2090 = vmatprep.subr.mxu0 0.0
    %2091 = vmatpush2.msra.mxu0 0.0
    %2092 = vmatprep.subr.mxu0 0.0
    %2093 = vmatpush2.msra.mxu0 0.0
    %2094 = vmatprep.subr.mxu0 0.0
    %2095 = vmatpush2.msra.mxu0 0.0
    %2096 = vmatprep.subr.mxu0 0.0
    %2097 = vmatpush2.msra.mxu0 0.0
    %2098 = vmatprep.subr.mxu0 0.0
    %2099 = vmatpush2.msra.mxu0 0.0
    %2100 = vmatprep.subr.mxu0 0.0
    %2101 = vmatpush2.msra.mxu0 0.0
    %2102 = vmatprep.subr.mxu0 0.0
    %2103 = vmatpush2.msra.mxu0 0.0
    %2104 = vmatprep.subr.mxu0 0.0
    %2105 = vmatpush2.msra.mxu0 0.0
    %2106 = vmatprep.subr.mxu0 0.0
    %2107 = vmatpush2.msra.mxu0 0.0
    %2108 = vmatprep.subr.mxu0 0.0
    %2109 = vmatpush2.msra.mxu0 0.0
    %2110 = vmatprep.subr.mxu0 0.0
    %2111 = vmatpush2.msra.mxu0 0.0
    %2112 = vmatprep.subr.mxu0 0.0
    %2113 = vmatpush2.msra.mxu0 0.0
    %2114 = vmatprep.subr.mxu0 0.0
    %2115 = vmatpush2.msra.mxu0 0.0
    %2116 = vmatprep.subr.mxu0 0.0
    %2117 = vmatpush2.msra.mxu0 0.0
    %2118 = vmatprep.subr.mxu0 0.0
    %2119 = vmatpush2.msra.mxu0 0.0
    %2120 = vmatprep.subr.mxu0 0.0
    %2121 = vmatpush2.msra.mxu0 0.0
    %2122 = vmatprep.mubr.f32.mxu0 0.0
    %2123 = vmatmul.mubr.f32.gmra.mxu0 %v1856
    %v2124 = vpop.f32.mrf.mxu0
    %v2125 = vadd.f32 0.0, %v2124
    %v2126 = vpop.f32.mrf.mxu0
    %v2127 = vadd.f32 0.0, %v2126
    %2128 = vdwg.mxu0
    %2129 = vmatprep.subr.mxu0 %v1920
    %2130 = vmatpush1.msra.mxu0 %v1919
    %2131 = vmatprep.subr.mxu0 %v1916
    %2132 = vmatpush1.msra.mxu0 %v1915
    %2133 = vmatprep.subr.mxu0 %v1912
    %2134 = vmatpush1.msra.mxu0 %v1911
    %2135 = vmatprep.subr.mxu0 %v1908
    %2136 = vmatpush1.msra.mxu0 %v1907
    %2137 = vmatprep.subr.mxu0 %v1904
    %2138 = vmatpush1.msra.mxu0 %v1903
    %2139 = vmatprep.subr.mxu0 %v1900
    %2140 = vmatpush1.msra.mxu0 %v1899
    %2141 = vmatprep.subr.mxu0 %v1896
    %2142 = vmatpush1.msra.mxu0 %v1895
    %2143 = vmatprep.subr.mxu0 %v1892
    %2144 = vmatpush1.msra.mxu0 %v1891
    %2145 = vmatprep.subr.mxu0 %v1888
    %2146 = vmatpush1.msra.mxu0 %v1887
    %2147 = vmatprep.subr.mxu0 %v1884
    %2148 = vmatpush1.msra.mxu0 %v1883
    %2149 = vmatprep.subr.mxu0 %v1880
    %2150 = vmatpush1.msra.mxu0 %v1879
    %2151 = vmatprep.subr.mxu0 %v1876
    %2152 = vmatpush1.msra.mxu0 %v1875
    %2153 = vmatprep.subr.mxu0 %v1872
    %2154 = vmatpush1.msra.mxu0 %v1871
    %2155 = vmatprep.subr.mxu0 %v1868
    %2156 = vmatpush1.msra.mxu0 %v1867
    %2157 = vmatprep.subr.mxu0 %v1864
    %2158 = vmatpush1.msra.mxu0 %v1863
    %2159 = vmatprep.subr.mxu0 %v1860
    %2160 = vmatpush1.msra.mxu0 %v1859
    %2161 = vmatprep.subr.mxu0 0.0
    %2162 = vmatpush2.msra.mxu0 0.0
    %2163 = vmatprep.subr.mxu0 0.0
    %2164 = vmatpush2.msra.mxu0 0.0
    %2165 = vmatprep.subr.mxu0 0.0
    %2166 = vmatpush2.msra.mxu0 0.0
    %2167 = vmatprep.subr.mxu0 0.0
    %2168 = vmatpush2.msra.mxu0 0.0
    %2169 = vmatprep.subr.mxu0 0.0
    %2170 = vmatpush2.msra.mxu0 0.0
    %2171 = vmatprep.subr.mxu0 0.0
    %2172 = vmatpush2.msra.mxu0 0.0
    %2173 = vmatprep.subr.mxu0 0.0
    %2174 = vmatpush2.msra.mxu0 0.0
    %2175 = vmatprep.subr.mxu0 0.0
    %2176 = vmatpush2.msra.mxu0 0.0
    %2177 = vmatprep.subr.mxu0 0.0
    %2178 = vmatpush2.msra.mxu0 0.0
    %2179 = vmatprep.subr.mxu0 0.0
    %2180 = vmatpush2.msra.mxu0 0.0
    %2181 = vmatprep.subr.mxu0 0.0
    %2182 = vmatpush2.msra.mxu0 0.0
    %2183 = vmatprep.subr.mxu0 0.0
    %2184 = vmatpush2.msra.mxu0 0.0
    %2185 = vmatprep.subr.mxu0 0.0
    %2186 = vmatpush2.msra.mxu0 0.0
    %2187 = vmatprep.subr.mxu0 0.0
    %2188 = vmatpush2.msra.mxu0 0.0
    %2189 = vmatprep.subr.mxu0 0.0
    %2190 = vmatpush2.msra.mxu0 0.0
    %2191 = vmatprep.subr.mxu0 0.0
    %2192 = vmatpush2.msra.mxu0 0.0
    %2193 = vmatprep.mubr.f32.mxu0 0.0
    %2194 = vmatmul.mubr.f32.gmra.mxu0 %v1858
    %v2195 = vpop.f32.mrf.mxu0
    %v2196 = vadd.f32 %v2054, %v2195
    %v2197 = vpop.f32.mrf.mxu0
    %v2198 = vadd.f32 %v2056, %v2197
    %2199 = vdwg.mxu0
    %2200 = vmatprep.subr.mxu0 %v1922
    %2201 = vmatpush1.msra.mxu0 %v1921
    %2202 = vmatprep.subr.mxu0 %v1918
    %2203 = vmatpush1.msra.mxu0 %v1917
    %2204 = vmatprep.subr.mxu0 %v1914
    %2205 = vmatpush1.msra.mxu0 %v1913
    %2206 = vmatprep.subr.mxu0 %v1910
    %2207 = vmatpush1.msra.mxu0 %v1909
    %2208 = vmatprep.subr.mxu0 %v1906
    %2209 = vmatpush1.msra.mxu0 %v1905
    %2210 = vmatprep.subr.mxu0 %v1902
    %2211 = vmatpush1.msra.mxu0 %v1901
    %2212 = vmatprep.subr.mxu0 %v1898
    %2213 = vmatpush1.msra.mxu0 %v1897
    %2214 = vmatprep.subr.mxu0 %v1894
    %2215 = vmatpush1.msra.mxu0 %v1893
    %2216 = vmatprep.subr.mxu0 %v1890
    %2217 = vmatpush1.msra.mxu0 %v1889
    %2218 = vmatprep.subr.mxu0 %v1886
    %2219 = vmatpush1.msra.mxu0 %v1885
    %2220 = vmatprep.subr.mxu0 %v1882
    %2221 = vmatpush1.msra.mxu0 %v1881
    %2222 = vmatprep.subr.mxu0 %v1878
    %2223 = vmatpush1.msra.mxu0 %v1877
    %2224 = vmatprep.subr.mxu0 %v1874
    %2225 = vmatpush1.msra.mxu0 %v1873
    %2226 = vmatprep.subr.mxu0 %v1870
    %2227 = vmatpush1.msra.mxu0 %v1869
    %2228 = vmatprep.subr.mxu0 %v1866
    %2229 = vmatpush1.msra.mxu0 %v1865
    %2230 = vmatprep.subr.mxu0 %v1862
    %2231 = vmatpush1.msra.mxu0 %v1861
    %2232 = vmatprep.subr.mxu0 0.0
    %2233 = vmatpush2.msra.mxu0 0.0
    %2234 = vmatprep.subr.mxu0 0.0
    %2235 = vmatpush2.msra.mxu0 0.0
    %2236 = vmatprep.subr.mxu0 0.0
    %2237 = vmatpush2.msra.mxu0 0.0
    %2238 = vmatprep.subr.mxu0 0.0
    %2239 = vmatpush2.msra.mxu0 0.0
    %2240 = vmatprep.subr.mxu0 0.0
    %2241 = vmatpush2.msra.mxu0 0.0
    %2242 = vmatprep.subr.mxu0 0.0
    %2243 = vmatpush2.msra.mxu0 0.0
    %2244 = vmatprep.subr.mxu0 0.0
    %2245 = vmatpush2.msra.mxu0 0.0
    %2246 = vmatprep.subr.mxu0 0.0
    %2247 = vmatpush2.msra.mxu0 0.0
    %2248 = vmatprep.subr.mxu0 0.0
    %2249 = vmatpush2.msra.mxu0 0.0
    %2250 = vmatprep.subr.mxu0 0.0
    %2251 = vmatpush2.msra.mxu0 0.0
    %2252 = vmatprep.subr.mxu0 0.0
    %2253 = vmatpush2.msra.mxu0 0.0
    %2254 = vmatprep.subr.mxu0 0.0
    %2255 = vmatpush2.msra.mxu0 0.0
    %2256 = vmatprep.subr.mxu0 0.0
    %2257 = vmatpush2.msra.mxu0 0.0
    %2258 = vmatprep.subr.mxu0 0.0
    %2259 = vmatpush2.msra.mxu0 0.0
    %2260 = vmatprep.subr.mxu0 0.0
    %2261 = vmatpush2.msra.mxu0 0.0
    %2262 = vmatprep.subr.mxu0 0.0
    %2263 = vmatpush2.msra.mxu0 0.0
    %2264 = vmatprep.mubr.f32.mxu0 0.0
    %2265 = vmatmul.mubr.f32.gmra.mxu0 %v1858
    %v2266 = vpop.f32.mrf.mxu0
    %v2267 = vadd.f32 %v2125, %v2266
    %v2268 = vpop.f32.mrf.mxu0
    %v2269 = vadd.f32 %v2127, %v2268
    %2270 = vdwg.mxu0
    %v2271 = vld [vmem:[%s5] sm:$0xf]
    %v2273 = vlaneseq
    %v2274 = vshrl.u32 %v2273, 7
    %v2275 = vsub.s32 0, %v2274
    %v2276 = vrot.slane %v2271, %v2275
    %v2277 = vlaneseq
    %v2278 = vshrl.u32 %v2277, 7
    %v2279 = vsub.s32 1, %v2278
    %v2280 = vrot.slane %v2271, %v2279
    %v2281 = vlaneseq
    %v2282 = vshrl.u32 %v2281, 7
    %v2283 = vsub.s32 2, %v2282
    %v2284 = vrot.slane %v2271, %v2283
    %v2285 = vlaneseq
    %v2286 = vshrl.u32 %v2285, 7
    %v2287 = vsub.s32 3, %v2286
    %v2288 = vrot.slane %v2271, %v2287
    %v2293 = vadd.f32 %v2196, %v2276
    %v2294 = vadd.f32 %v2198, %v2280
    %v2295 = vadd.f32 %v2267, %v2284
    %v2296 = vadd.f32 %v2269, %v2288
    %v2297 = vxor.u32 %v2293, 2147483648
    %v2298 = vmul.f32 %v2297, 1.442695
    %v2299 = vpow.pop %v2298
    %v2300 = vadd.f32 %v2299, 1.0
    %v2301 = vrcp.pop %v2300
    %v2302 = vmul.f32 1.0, %v2301
    %v2303 = vxor.u32 %v2294, 2147483648
    %v2304 = vmul.f32 %v2303, 1.442695
    %v2305 = vpow.pop %v2304
    %v2306 = vadd.f32 %v2305, 1.0
    %v2307 = vrcp.pop %v2306
    %v2308 = vmul.f32 1.0, %v2307
    %v2309 = vtanh.pop %v2295
    %v2310 = vxor.u32 %v2296, 2147483648
    %v2311 = vmul.f32 %v2310, 1.442695
    %v2312 = vpow.pop %v2311
    %v2313 = vadd.f32 %v2312, 1.0
    %v2314 = vrcp.pop %v2313
    %v2315 = vmul.f32 1.0, %v2314
    %v2316 = vmul.f32 %v2308, %v1854
    %v2317 = vmul.f32 %v2302, %v2309
    %v2318 = vadd.f32 %v2316, %v2317
    %v2319 = vtanh.pop %v2318
    %v2320 = vmul.f32 %v2315, %v2319
    %2321 = vst [vmem:[%s1390] sm:$0x3] %v2320
    %s2322 = scalar_lea.vmem %s6, 2
    %v2323 = vld [vmem:[%s2322] sm:$0x3]
    %s2324 = scalar_lea.vmem %s7, 2
    %v2325 = vld [vmem:[%s2324] sm:$0x3]
    %v2326 = vld [vmem:[#allocation3] sm:$0x3]
    %s2327 = scalar_lea.vmem [#allocation6], 512
    %v2328 = vld [vmem:[%s2327] sm:$0xff]
    %v2329 = vld [vmem:[%s2327 + $0x8] sm:$0xff]
    %v2330 = vld [vmem:[%s2327 + $0x10] sm:$0xff]
    %v2331 = vld [vmem:[%s2327 + $0x18] sm:$0xff]
    %v2332 = vld [vmem:[%s2327 + $0x20] sm:$0xff]
    %v2333 = vld [vmem:[%s2327 + $0x28] sm:$0xff]
    %v2334 = vld [vmem:[%s2327 + $0x30] sm:$0xff]
    %v2335 = vld [vmem:[%s2327 + $0x38] sm:$0xff]
    %v2336 = vld [vmem:[%s2327 + $0x40] sm:$0xff]
    %v2337 = vld [vmem:[%s2327 + $0x48] sm:$0xff]
    %v2338 = vld [vmem:[%s2327 + $0x50] sm:$0xff]
    %v2339 = vld [vmem:[%s2327 + $0x58] sm:$0xff]
    %v2340 = vld [vmem:[%s2327 + $0x60] sm:$0xff]
    %v2341 = vld [vmem:[%s2327 + $0x68] sm:$0xff]
    %v2342 = vld [vmem:[%s2327 + $0x70] sm:$0xff]
    %v2343 = vld [vmem:[%s2327 + $0x78] sm:$0xff]
    %v2344 = vld [vmem:[%s2327 + $0x80] sm:$0xff]
    %v2345 = vld [vmem:[%s2327 + $0x88] sm:$0xff]
    %v2346 = vld [vmem:[%s2327 + $0x90] sm:$0xff]
    %v2347 = vld [vmem:[%s2327 + $0x98] sm:$0xff]
    %v2348 = vld [vmem:[%s2327 + $0xa0] sm:$0xff]
    %v2349 = vld [vmem:[%s2327 + $0xa8] sm:$0xff]
    %v2350 = vld [vmem:[%s2327 + $0xb0] sm:$0xff]
    %v2351 = vld [vmem:[%s2327 + $0xb8] sm:$0xff]
    %v2352 = vld [vmem:[%s2327 + $0xc0] sm:$0xff]
    %v2353 = vld [vmem:[%s2327 + $0xc8] sm:$0xff]
    %v2354 = vld [vmem:[%s2327 + $0xd0] sm:$0xff]
    %v2355 = vld [vmem:[%s2327 + $0xd8] sm:$0xff]
    %v2356 = vld [vmem:[%s2327 + $0xe0] sm:$0xff]
    %v2357 = vld [vmem:[%s2327 + $0xe8] sm:$0xff]
    %v2358 = vld [vmem:[%s2327 + $0xf0] sm:$0xff]
    %v2359 = vld [vmem:[%s2327 + $0xf8] sm:$0xff]
    %v2360 = vld [vmem:[%s2327 + $0x100] sm:$0xff]
    %v2361 = vld [vmem:[%s2327 + $0x108] sm:$0xff]
    %v2362 = vld [vmem:[%s2327 + $0x110] sm:$0xff]
    %v2363 = vld [vmem:[%s2327 + $0x118] sm:$0xff]
    %v2364 = vld [vmem:[%s2327 + $0x120] sm:$0xff]
    %v2365 = vld [vmem:[%s2327 + $0x128] sm:$0xff]
    %v2366 = vld [vmem:[%s2327 + $0x130] sm:$0xff]
    %v2367 = vld [vmem:[%s2327 + $0x138] sm:$0xff]
    %v2368 = vld [vmem:[%s2327 + $0x140] sm:$0xff]
    %v2369 = vld [vmem:[%s2327 + $0x148] sm:$0xff]
    %v2370 = vld [vmem:[%s2327 + $0x150] sm:$0xff]
    %v2371 = vld [vmem:[%s2327 + $0x158] sm:$0xff]
    %v2372 = vld [vmem:[%s2327 + $0x160] sm:$0xff]
    %v2373 = vld [vmem:[%s2327 + $0x168] sm:$0xff]
    %v2374 = vld [vmem:[%s2327 + $0x170] sm:$0xff]
    %v2375 = vld [vmem:[%s2327 + $0x178] sm:$0xff]
    %v2376 = vld [vmem:[%s2327 + $0x180] sm:$0xff]
    %v2377 = vld [vmem:[%s2327 + $0x188] sm:$0xff]
    %v2378 = vld [vmem:[%s2327 + $0x190] sm:$0xff]
    %v2379 = vld [vmem:[%s2327 + $0x198] sm:$0xff]
    %v2380 = vld [vmem:[%s2327 + $0x1a0] sm:$0xff]
    %v2381 = vld [vmem:[%s2327 + $0x1a8] sm:$0xff]
    %v2382 = vld [vmem:[%s2327 + $0x1b0] sm:$0xff]
    %v2383 = vld [vmem:[%s2327 + $0x1b8] sm:$0xff]
    %v2384 = vld [vmem:[%s2327 + $0x1c0] sm:$0xff]
    %v2385 = vld [vmem:[%s2327 + $0x1c8] sm:$0xff]
    %v2386 = vld [vmem:[%s2327 + $0x1d0] sm:$0xff]
    %v2387 = vld [vmem:[%s2327 + $0x1d8] sm:$0xff]
    %v2388 = vld [vmem:[%s2327 + $0x1e0] sm:$0xff]
    %v2389 = vld [vmem:[%s2327 + $0x1e8] sm:$0xff]
    %v2390 = vld [vmem:[%s2327 + $0x1f0] sm:$0xff]
    %v2391 = vld [vmem:[%s2327 + $0x1f8] sm:$0xff]
    %s2392 = scalar_lea.vmem [#allocation8], 512
    %v2393 = vld [vmem:[%s2392] sm:$0xff]
    %v2394 = vld [vmem:[%s2392 + $0x8] sm:$0xff]
    %v2395 = vld [vmem:[%s2392 + $0x10] sm:$0xff]
    %v2396 = vld [vmem:[%s2392 + $0x18] sm:$0xff]
    %v2397 = vld [vmem:[%s2392 + $0x20] sm:$0xff]
    %v2398 = vld [vmem:[%s2392 + $0x28] sm:$0xff]
    %v2399 = vld [vmem:[%s2392 + $0x30] sm:$0xff]
    %v2400 = vld [vmem:[%s2392 + $0x38] sm:$0xff]
    %v2401 = vld [vmem:[%s2392 + $0x40] sm:$0xff]
    %v2402 = vld [vmem:[%s2392 + $0x48] sm:$0xff]
    %v2403 = vld [vmem:[%s2392 + $0x50] sm:$0xff]
    %v2404 = vld [vmem:[%s2392 + $0x58] sm:$0xff]
    %v2405 = vld [vmem:[%s2392 + $0x60] sm:$0xff]
    %v2406 = vld [vmem:[%s2392 + $0x68] sm:$0xff]
    %v2407 = vld [vmem:[%s2392 + $0x70] sm:$0xff]
    %v2408 = vld [vmem:[%s2392 + $0x78] sm:$0xff]
    %v2409 = vld [vmem:[%s2392 + $0x80] sm:$0xff]
    %v2410 = vld [vmem:[%s2392 + $0x88] sm:$0xff]
    %v2411 = vld [vmem:[%s2392 + $0x90] sm:$0xff]
    %v2412 = vld [vmem:[%s2392 + $0x98] sm:$0xff]
    %v2413 = vld [vmem:[%s2392 + $0xa0] sm:$0xff]
    %v2414 = vld [vmem:[%s2392 + $0xa8] sm:$0xff]
    %v2415 = vld [vmem:[%s2392 + $0xb0] sm:$0xff]
    %v2416 = vld [vmem:[%s2392 + $0xb8] sm:$0xff]
    %v2417 = vld [vmem:[%s2392 + $0xc0] sm:$0xff]
    %v2418 = vld [vmem:[%s2392 + $0xc8] sm:$0xff]
    %v2419 = vld [vmem:[%s2392 + $0xd0] sm:$0xff]
    %v2420 = vld [vmem:[%s2392 + $0xd8] sm:$0xff]
    %v2421 = vld [vmem:[%s2392 + $0xe0] sm:$0xff]
    %v2422 = vld [vmem:[%s2392 + $0xe8] sm:$0xff]
    %v2423 = vld [vmem:[%s2392 + $0xf0] sm:$0xff]
    %v2424 = vld [vmem:[%s2392 + $0xf8] sm:$0xff]
    %v2425 = vld [vmem:[%s2392 + $0x100] sm:$0xff]
    %v2426 = vld [vmem:[%s2392 + $0x108] sm:$0xff]
    %v2427 = vld [vmem:[%s2392 + $0x110] sm:$0xff]
    %v2428 = vld [vmem:[%s2392 + $0x118] sm:$0xff]
    %v2429 = vld [vmem:[%s2392 + $0x120] sm:$0xff]
    %v2430 = vld [vmem:[%s2392 + $0x128] sm:$0xff]
    %v2431 = vld [vmem:[%s2392 + $0x130] sm:$0xff]
    %v2432 = vld [vmem:[%s2392 + $0x138] sm:$0xff]
    %v2433 = vld [vmem:[%s2392 + $0x140] sm:$0xff]
    %v2434 = vld [vmem:[%s2392 + $0x148] sm:$0xff]
    %v2435 = vld [vmem:[%s2392 + $0x150] sm:$0xff]
    %v2436 = vld [vmem:[%s2392 + $0x158] sm:$0xff]
    %v2437 = vld [vmem:[%s2392 + $0x160] sm:$0xff]
    %v2438 = vld [vmem:[%s2392 + $0x168] sm:$0xff]
    %v2439 = vld [vmem:[%s2392 + $0x170] sm:$0xff]
    %v2440 = vld [vmem:[%s2392 + $0x178] sm:$0xff]
    %v2441 = vld [vmem:[%s2392 + $0x180] sm:$0xff]
    %v2442 = vld [vmem:[%s2392 + $0x188] sm:$0xff]
    %v2443 = vld [vmem:[%s2392 + $0x190] sm:$0xff]
    %v2444 = vld [vmem:[%s2392 + $0x198] sm:$0xff]
    %v2445 = vld [vmem:[%s2392 + $0x1a0] sm:$0xff]
    %v2446 = vld [vmem:[%s2392 + $0x1a8] sm:$0xff]
    %v2447 = vld [vmem:[%s2392 + $0x1b0] sm:$0xff]
    %v2448 = vld [vmem:[%s2392 + $0x1b8] sm:$0xff]
    %v2449 = vld [vmem:[%s2392 + $0x1c0] sm:$0xff]
    %v2450 = vld [vmem:[%s2392 + $0x1c8] sm:$0xff]
    %v2451 = vld [vmem:[%s2392 + $0x1d0] sm:$0xff]
    %v2452 = vld [vmem:[%s2392 + $0x1d8] sm:$0xff]
    %v2453 = vld [vmem:[%s2392 + $0x1e0] sm:$0xff]
    %v2454 = vld [vmem:[%s2392 + $0x1e8] sm:$0xff]
    %v2455 = vld [vmem:[%s2392 + $0x1f0] sm:$0xff]
    %v2456 = vld [vmem:[%s2392 + $0x1f8] sm:$0xff]
    %2457 = vmatprep.subr.mxu0 %v2454
    %2458 = vmatpush1.msra.mxu0 %v2453
    %2459 = vmatprep.subr.mxu0 %v2450
    %2460 = vmatpush1.msra.mxu0 %v2449
    %2461 = vmatprep.subr.mxu0 %v2446
    %2462 = vmatpush1.msra.mxu0 %v2445
    %2463 = vmatprep.subr.mxu0 %v2442
    %2464 = vmatpush1.msra.mxu0 %v2441
    %2465 = vmatprep.subr.mxu0 %v2438
    %2466 = vmatpush1.msra.mxu0 %v2437
    %2467 = vmatprep.subr.mxu0 %v2434
    %2468 = vmatpush1.msra.mxu0 %v2433
    %2469 = vmatprep.subr.mxu0 %v2430
    %2470 = vmatpush1.msra.mxu0 %v2429
    %2471 = vmatprep.subr.mxu0 %v2426
    %2472 = vmatpush1.msra.mxu0 %v2425
    %2473 = vmatprep.subr.mxu0 %v2422
    %2474 = vmatpush1.msra.mxu0 %v2421
    %2475 = vmatprep.subr.mxu0 %v2418
    %2476 = vmatpush1.msra.mxu0 %v2417
    %2477 = vmatprep.subr.mxu0 %v2414
    %2478 = vmatpush1.msra.mxu0 %v2413
    %2479 = vmatprep.subr.mxu0 %v2410
    %2480 = vmatpush1.msra.mxu0 %v2409
    %2481 = vmatprep.subr.mxu0 %v2406
    %2482 = vmatpush1.msra.mxu0 %v2405
    %2483 = vmatprep.subr.mxu0 %v2402
    %2484 = vmatpush1.msra.mxu0 %v2401
    %2485 = vmatprep.subr.mxu0 %v2398
    %2486 = vmatpush1.msra.mxu0 %v2397
    %2487 = vmatprep.subr.mxu0 %v2394
    %2488 = vmatpush1.msra.mxu0 %v2393
    %2489 = vmatprep.subr.mxu0 0.0
    %2490 = vmatpush2.msra.mxu0 0.0
    %2491 = vmatprep.subr.mxu0 0.0
    %2492 = vmatpush2.msra.mxu0 0.0
    %2493 = vmatprep.subr.mxu0 0.0
    %2494 = vmatpush2.msra.mxu0 0.0
    %2495 = vmatprep.subr.mxu0 0.0
    %2496 = vmatpush2.msra.mxu0 0.0
    %2497 = vmatprep.subr.mxu0 0.0
    %2498 = vmatpush2.msra.mxu0 0.0
    %2499 = vmatprep.subr.mxu0 0.0
    %2500 = vmatpush2.msra.mxu0 0.0
    %2501 = vmatprep.subr.mxu0 0.0
    %2502 = vmatpush2.msra.mxu0 0.0
    %2503 = vmatprep.subr.mxu0 0.0
    %2504 = vmatpush2.msra.mxu0 0.0
    %2505 = vmatprep.subr.mxu0 0.0
    %2506 = vmatpush2.msra.mxu0 0.0
    %2507 = vmatprep.subr.mxu0 0.0
    %2508 = vmatpush2.msra.mxu0 0.0
    %2509 = vmatprep.subr.mxu0 0.0
    %2510 = vmatpush2.msra.mxu0 0.0
    %2511 = vmatprep.subr.mxu0 0.0
    %2512 = vmatpush2.msra.mxu0 0.0
    %2513 = vmatprep.subr.mxu0 0.0
    %2514 = vmatpush2.msra.mxu0 0.0
    %2515 = vmatprep.subr.mxu0 0.0
    %2516 = vmatpush2.msra.mxu0 0.0
    %2517 = vmatprep.subr.mxu0 0.0
    %2518 = vmatpush2.msra.mxu0 0.0
    %2519 = vmatprep.subr.mxu0 0.0
    %2520 = vmatpush2.msra.mxu0 0.0
    %2521 = vmatprep.mubr.f32.mxu0 0.0
    %2522 = vmatmul.mubr.f32.gmra.mxu0 %v2323
    %v2523 = vpop.f32.mrf.mxu0
    %v2524 = vadd.f32 0.0, %v2523
    %v2525 = vpop.f32.mrf.mxu0
    %v2526 = vadd.f32 0.0, %v2525
    %2527 = vdwg.mxu0
    %2528 = vmatprep.subr.mxu0 %v2456
    %2529 = vmatpush1.msra.mxu0 %v2455
    %2530 = vmatprep.subr.mxu0 %v2452
    %2531 = vmatpush1.msra.mxu0 %v2451
    %2532 = vmatprep.subr.mxu0 %v2448
    %2533 = vmatpush1.msra.mxu0 %v2447
    %2534 = vmatprep.subr.mxu0 %v2444
    %2535 = vmatpush1.msra.mxu0 %v2443
    %2536 = vmatprep.subr.mxu0 %v2440
    %2537 = vmatpush1.msra.mxu0 %v2439
    %2538 = vmatprep.subr.mxu0 %v2436
    %2539 = vmatpush1.msra.mxu0 %v2435
    %2540 = vmatprep.subr.mxu0 %v2432
    %2541 = vmatpush1.msra.mxu0 %v2431
    %2542 = vmatprep.subr.mxu0 %v2428
    %2543 = vmatpush1.msra.mxu0 %v2427
    %2544 = vmatprep.subr.mxu0 %v2424
    %2545 = vmatpush1.msra.mxu0 %v2423
    %2546 = vmatprep.subr.mxu0 %v2420
    %2547 = vmatpush1.msra.mxu0 %v2419
    %2548 = vmatprep.subr.mxu0 %v2416
    %2549 = vmatpush1.msra.mxu0 %v2415
    %2550 = vmatprep.subr.mxu0 %v2412
    %2551 = vmatpush1.msra.mxu0 %v2411
    %2552 = vmatprep.subr.mxu0 %v2408
    %2553 = vmatpush1.msra.mxu0 %v2407
    %2554 = vmatprep.subr.mxu0 %v2404
    %2555 = vmatpush1.msra.mxu0 %v2403
    %2556 = vmatprep.subr.mxu0 %v2400
    %2557 = vmatpush1.msra.mxu0 %v2399
    %2558 = vmatprep.subr.mxu0 %v2396
    %2559 = vmatpush1.msra.mxu0 %v2395
    %2560 = vmatprep.subr.mxu0 0.0
    %2561 = vmatpush2.msra.mxu0 0.0
    %2562 = vmatprep.subr.mxu0 0.0
    %2563 = vmatpush2.msra.mxu0 0.0
    %2564 = vmatprep.subr.mxu0 0.0
    %2565 = vmatpush2.msra.mxu0 0.0
    %2566 = vmatprep.subr.mxu0 0.0
    %2567 = vmatpush2.msra.mxu0 0.0
    %2568 = vmatprep.subr.mxu0 0.0
    %2569 = vmatpush2.msra.mxu0 0.0
    %2570 = vmatprep.subr.mxu0 0.0
    %2571 = vmatpush2.msra.mxu0 0.0
    %2572 = vmatprep.subr.mxu0 0.0
    %2573 = vmatpush2.msra.mxu0 0.0
    %2574 = vmatprep.subr.mxu0 0.0
    %2575 = vmatpush2.msra.mxu0 0.0
    %2576 = vmatprep.subr.mxu0 0.0
    %2577 = vmatpush2.msra.mxu0 0.0
    %2578 = vmatprep.subr.mxu0 0.0
    %2579 = vmatpush2.msra.mxu0 0.0
    %2580 = vmatprep.subr.mxu0 0.0
    %2581 = vmatpush2.msra.mxu0 0.0
    %2582 = vmatprep.subr.mxu0 0.0
    %2583 = vmatpush2.msra.mxu0 0.0
    %2584 = vmatprep.subr.mxu0 0.0
    %2585 = vmatpush2.msra.mxu0 0.0
    %2586 = vmatprep.subr.mxu0 0.0
    %2587 = vmatpush2.msra.mxu0 0.0
    %2588 = vmatprep.subr.mxu0 0.0
    %2589 = vmatpush2.msra.mxu0 0.0
    %2590 = vmatprep.subr.mxu0 0.0
    %2591 = vmatpush2.msra.mxu0 0.0
    %2592 = vmatprep.mubr.f32.mxu0 0.0
    %2593 = vmatmul.mubr.f32.gmra.mxu0 %v2323
    %v2594 = vpop.f32.mrf.mxu0
    %v2595 = vadd.f32 0.0, %v2594
    %v2596 = vpop.f32.mrf.mxu0
    %v2597 = vadd.f32 0.0, %v2596
    %2598 = vdwg.mxu0
    %2599 = vmatprep.subr.mxu0 %v2389
    %2600 = vmatpush1.msra.mxu0 %v2388
    %2601 = vmatprep.subr.mxu0 %v2385
    %2602 = vmatpush1.msra.mxu0 %v2384
    %2603 = vmatprep.subr.mxu0 %v2381
    %2604 = vmatpush1.msra.mxu0 %v2380
    %2605 = vmatprep.subr.mxu0 %v2377
    %2606 = vmatpush1.msra.mxu0 %v2376
    %2607 = vmatprep.subr.mxu0 %v2373
    %2608 = vmatpush1.msra.mxu0 %v2372
    %2609 = vmatprep.subr.mxu0 %v2369
    %2610 = vmatpush1.msra.mxu0 %v2368
    %2611 = vmatprep.subr.mxu0 %v2365
    %2612 = vmatpush1.msra.mxu0 %v2364
    %2613 = vmatprep.subr.mxu0 %v2361
    %2614 = vmatpush1.msra.mxu0 %v2360
    %2615 = vmatprep.subr.mxu0 %v2357
    %2616 = vmatpush1.msra.mxu0 %v2356
    %2617 = vmatprep.subr.mxu0 %v2353
    %2618 = vmatpush1.msra.mxu0 %v2352
    %2619 = vmatprep.subr.mxu0 %v2349
    %2620 = vmatpush1.msra.mxu0 %v2348
    %2621 = vmatprep.subr.mxu0 %v2345
    %2622 = vmatpush1.msra.mxu0 %v2344
    %2623 = vmatprep.subr.mxu0 %v2341
    %2624 = vmatpush1.msra.mxu0 %v2340
    %2625 = vmatprep.subr.mxu0 %v2337
    %2626 = vmatpush1.msra.mxu0 %v2336
    %2627 = vmatprep.subr.mxu0 %v2333
    %2628 = vmatpush1.msra.mxu0 %v2332
    %2629 = vmatprep.subr.mxu0 %v2329
    %2630 = vmatpush1.msra.mxu0 %v2328
    %2631 = vmatprep.subr.mxu0 0.0
    %2632 = vmatpush2.msra.mxu0 0.0
    %2633 = vmatprep.subr.mxu0 0.0
    %2634 = vmatpush2.msra.mxu0 0.0
    %2635 = vmatprep.subr.mxu0 0.0
    %2636 = vmatpush2.msra.mxu0 0.0
    %2637 = vmatprep.subr.mxu0 0.0
    %2638 = vmatpush2.msra.mxu0 0.0
    %2639 = vmatprep.subr.mxu0 0.0
    %2640 = vmatpush2.msra.mxu0 0.0
    %2641 = vmatprep.subr.mxu0 0.0
    %2642 = vmatpush2.msra.mxu0 0.0
    %2643 = vmatprep.subr.mxu0 0.0
    %2644 = vmatpush2.msra.mxu0 0.0
    %2645 = vmatprep.subr.mxu0 0.0
    %2646 = vmatpush2.msra.mxu0 0.0
    %2647 = vmatprep.subr.mxu0 0.0
    %2648 = vmatpush2.msra.mxu0 0.0
    %2649 = vmatprep.subr.mxu0 0.0
    %2650 = vmatpush2.msra.mxu0 0.0
    %2651 = vmatprep.subr.mxu0 0.0
    %2652 = vmatpush2.msra.mxu0 0.0
    %2653 = vmatprep.subr.mxu0 0.0
    %2654 = vmatpush2.msra.mxu0 0.0
    %2655 = vmatprep.subr.mxu0 0.0
    %2656 = vmatpush2.msra.mxu0 0.0
    %2657 = vmatprep.subr.mxu0 0.0
    %2658 = vmatpush2.msra.mxu0 0.0
    %2659 = vmatprep.subr.mxu0 0.0
    %2660 = vmatpush2.msra.mxu0 0.0
    %2661 = vmatprep.subr.mxu0 0.0
    %2662 = vmatpush2.msra.mxu0 0.0
    %2663 = vmatprep.mubr.f32.mxu0 0.0
    %2664 = vmatmul.mubr.f32.gmra.mxu0 %v2326
    %v2665 = vpop.f32.mrf.mxu0
    %v2666 = vadd.f32 %v2524, %v2665
    %v2667 = vpop.f32.mrf.mxu0
    %v2668 = vadd.f32 %v2526, %v2667
    %2669 = vdwg.mxu0
    %2670 = vmatprep.subr.mxu0 %v2391
    %2671 = vmatpush1.msra.mxu0 %v2390
    %2672 = vmatprep.subr.mxu0 %v2387
    %2673 = vmatpush1.msra.mxu0 %v2386
    %2674 = vmatprep.subr.mxu0 %v2383
    %2675 = vmatpush1.msra.mxu0 %v2382
    %2676 = vmatprep.subr.mxu0 %v2379
    %2677 = vmatpush1.msra.mxu0 %v2378
    %2678 = vmatprep.subr.mxu0 %v2375
    %2679 = vmatpush1.msra.mxu0 %v2374
    %2680 = vmatprep.subr.mxu0 %v2371
    %2681 = vmatpush1.msra.mxu0 %v2370
    %2682 = vmatprep.subr.mxu0 %v2367
    %2683 = vmatpush1.msra.mxu0 %v2366
    %2684 = vmatprep.subr.mxu0 %v2363
    %2685 = vmatpush1.msra.mxu0 %v2362
    %2686 = vmatprep.subr.mxu0 %v2359
    %2687 = vmatpush1.msra.mxu0 %v2358
    %2688 = vmatprep.subr.mxu0 %v2355
    %2689 = vmatpush1.msra.mxu0 %v2354
    %2690 = vmatprep.subr.mxu0 %v2351
    %2691 = vmatpush1.msra.mxu0 %v2350
    %2692 = vmatprep.subr.mxu0 %v2347
    %2693 = vmatpush1.msra.mxu0 %v2346
    %2694 = vmatprep.subr.mxu0 %v2343
    %2695 = vmatpush1.msra.mxu0 %v2342
    %2696 = vmatprep.subr.mxu0 %v2339
    %2697 = vmatpush1.msra.mxu0 %v2338
    %2698 = vmatprep.subr.mxu0 %v2335
    %2699 = vmatpush1.msra.mxu0 %v2334
    %2700 = vmatprep.subr.mxu0 %v2331
    %2701 = vmatpush1.msra.mxu0 %v2330
    %2702 = vmatprep.subr.mxu0 0.0
    %2703 = vmatpush2.msra.mxu0 0.0
    %2704 = vmatprep.subr.mxu0 0.0
    %2705 = vmatpush2.msra.mxu0 0.0
    %2706 = vmatprep.subr.mxu0 0.0
    %2707 = vmatpush2.msra.mxu0 0.0
    %2708 = vmatprep.subr.mxu0 0.0
    %2709 = vmatpush2.msra.mxu0 0.0
    %2710 = vmatprep.subr.mxu0 0.0
    %2711 = vmatpush2.msra.mxu0 0.0
    %2712 = vmatprep.subr.mxu0 0.0
    %2713 = vmatpush2.msra.mxu0 0.0
    %2714 = vmatprep.subr.mxu0 0.0
    %2715 = vmatpush2.msra.mxu0 0.0
    %2716 = vmatprep.subr.mxu0 0.0
    %2717 = vmatpush2.msra.mxu0 0.0
    %2718 = vmatprep.subr.mxu0 0.0
    %2719 = vmatpush2.msra.mxu0 0.0
    %2720 = vmatprep.subr.mxu0 0.0
    %2721 = vmatpush2.msra.mxu0 0.0
    %2722 = vmatprep.subr.mxu0 0.0
    %2723 = vmatpush2.msra.mxu0 0.0
    %2724 = vmatprep.subr.mxu0 0.0
    %2725 = vmatpush2.msra.mxu0 0.0
    %2726 = vmatprep.subr.mxu0 0.0
    %2727 = vmatpush2.msra.mxu0 0.0
    %2728 = vmatprep.subr.mxu0 0.0
    %2729 = vmatpush2.msra.mxu0 0.0
    %2730 = vmatprep.subr.mxu0 0.0
    %2731 = vmatpush2.msra.mxu0 0.0
    %2732 = vmatprep.subr.mxu0 0.0
    %2733 = vmatpush2.msra.mxu0 0.0
    %2734 = vmatprep.mubr.f32.mxu0 0.0
    %2735 = vmatmul.mubr.f32.gmra.mxu0 %v2326
    %v2736 = vpop.f32.mrf.mxu0
    %v2737 = vadd.f32 %v2595, %v2736
    %v2738 = vpop.f32.mrf.mxu0
    %v2739 = vadd.f32 %v2597, %v2738
    %2740 = vdwg.mxu0
    %s2741 = scalar_lea.vmem %s5, 4
    %v2742 = vld [vmem:[%s2741] sm:$0xf]
    %v2744 = vlaneseq
    %v2745 = vshrl.u32 %v2744, 7
    %v2746 = vsub.s32 0, %v2745
    %v2747 = vrot.slane %v2742, %v2746
    %v2748 = vlaneseq
    %v2749 = vshrl.u32 %v2748, 7
    %v2750 = vsub.s32 1, %v2749
    %v2751 = vrot.slane %v2742, %v2750
    %v2752 = vlaneseq
    %v2753 = vshrl.u32 %v2752, 7
    %v2754 = vsub.s32 2, %v2753
    %v2755 = vrot.slane %v2742, %v2754
    %v2756 = vlaneseq
    %v2757 = vshrl.u32 %v2756, 7
    %v2758 = vsub.s32 3, %v2757
    %v2759 = vrot.slane %v2742, %v2758
    %v2764 = vadd.f32 %v2666, %v2747
    %v2765 = vadd.f32 %v2668, %v2751
    %v2766 = vadd.f32 %v2737, %v2755
    %v2767 = vadd.f32 %v2739, %v2759
    %v2768 = vxor.u32 %v2764, 2147483648
    %v2769 = vmul.f32 %v2768, 1.442695
    %v2770 = vpow.pop %v2769
    %v2771 = vadd.f32 %v2770, 1.0
    %v2772 = vrcp.pop %v2771
    %v2773 = vmul.f32 1.0, %v2772
    %v2774 = vxor.u32 %v2765, 2147483648
    %v2775 = vmul.f32 %v2774, 1.442695
    %v2776 = vpow.pop %v2775
    %v2777 = vadd.f32 %v2776, 1.0
    %v2778 = vrcp.pop %v2777
    %v2779 = vmul.f32 1.0, %v2778
    %v2780 = vtanh.pop %v2766
    %v2781 = vxor.u32 %v2767, 2147483648
    %v2782 = vmul.f32 %v2781, 1.442695
    %v2783 = vpow.pop %v2782
    %v2784 = vadd.f32 %v2783, 1.0
    %v2785 = vrcp.pop %v2784
    %v2786 = vmul.f32 1.0, %v2785
    %v2787 = vmul.f32 %v2779, %v2325
    %v2788 = vmul.f32 %v2773, %v2780
    %v2789 = vadd.f32 %v2787, %v2788
    %v2790 = vtanh.pop %v2789
    %v2791 = vmul.f32 %v2786, %v2790
    %2792 = vst [vmem:[#allocation3] sm:$0x3] %v2791
    %v2793 = vld [vmem:[%s1390] sm:$0x3]
    %v2794 = vld [vmem:[%s2327] sm:$0xff]
    %v2795 = vld [vmem:[%s2327 + $0x8] sm:$0xff]
    %v2796 = vld [vmem:[%s2327 + $0x10] sm:$0xff]
    %v2797 = vld [vmem:[%s2327 + $0x18] sm:$0xff]
    %v2798 = vld [vmem:[%s2327 + $0x20] sm:$0xff]
    %v2799 = vld [vmem:[%s2327 + $0x28] sm:$0xff]
    %v2800 = vld [vmem:[%s2327 + $0x30] sm:$0xff]
    %v2801 = vld [vmem:[%s2327 + $0x38] sm:$0xff]
    %v2802 = vld [vmem:[%s2327 + $0x40] sm:$0xff]
    %v2803 = vld [vmem:[%s2327 + $0x48] sm:$0xff]
    %v2804 = vld [vmem:[%s2327 + $0x50] sm:$0xff]
    %v2805 = vld [vmem:[%s2327 + $0x58] sm:$0xff]
    %v2806 = vld [vmem:[%s2327 + $0x60] sm:$0xff]
    %v2807 = vld [vmem:[%s2327 + $0x68] sm:$0xff]
    %v2808 = vld [vmem:[%s2327 + $0x70] sm:$0xff]
    %v2809 = vld [vmem:[%s2327 + $0x78] sm:$0xff]
    %v2810 = vld [vmem:[%s2327 + $0x80] sm:$0xff]
    %v2811 = vld [vmem:[%s2327 + $0x88] sm:$0xff]
    %v2812 = vld [vmem:[%s2327 + $0x90] sm:$0xff]
    %v2813 = vld [vmem:[%s2327 + $0x98] sm:$0xff]
    %v2814 = vld [vmem:[%s2327 + $0xa0] sm:$0xff]
    %v2815 = vld [vmem:[%s2327 + $0xa8] sm:$0xff]
    %v2816 = vld [vmem:[%s2327 + $0xb0] sm:$0xff]
    %v2817 = vld [vmem:[%s2327 + $0xb8] sm:$0xff]
    %v2818 = vld [vmem:[%s2327 + $0xc0] sm:$0xff]
    %v2819 = vld [vmem:[%s2327 + $0xc8] sm:$0xff]
    %v2820 = vld [vmem:[%s2327 + $0xd0] sm:$0xff]
    %v2821 = vld [vmem:[%s2327 + $0xd8] sm:$0xff]
    %v2822 = vld [vmem:[%s2327 + $0xe0] sm:$0xff]
    %v2823 = vld [vmem:[%s2327 + $0xe8] sm:$0xff]
    %v2824 = vld [vmem:[%s2327 + $0xf0] sm:$0xff]
    %v2825 = vld [vmem:[%s2327 + $0xf8] sm:$0xff]
    %v2826 = vld [vmem:[%s2327 + $0x100] sm:$0xff]
    %v2827 = vld [vmem:[%s2327 + $0x108] sm:$0xff]
    %v2828 = vld [vmem:[%s2327 + $0x110] sm:$0xff]
    %v2829 = vld [vmem:[%s2327 + $0x118] sm:$0xff]
    %v2830 = vld [vmem:[%s2327 + $0x120] sm:$0xff]
    %v2831 = vld [vmem:[%s2327 + $0x128] sm:$0xff]
    %v2832 = vld [vmem:[%s2327 + $0x130] sm:$0xff]
    %v2833 = vld [vmem:[%s2327 + $0x138] sm:$0xff]
    %v2834 = vld [vmem:[%s2327 + $0x140] sm:$0xff]
    %v2835 = vld [vmem:[%s2327 + $0x148] sm:$0xff]
    %v2836 = vld [vmem:[%s2327 + $0x150] sm:$0xff]
    %v2837 = vld [vmem:[%s2327 + $0x158] sm:$0xff]
    %v2838 = vld [vmem:[%s2327 + $0x160] sm:$0xff]
    %v2839 = vld [vmem:[%s2327 + $0x168] sm:$0xff]
    %v2840 = vld [vmem:[%s2327 + $0x170] sm:$0xff]
    %v2841 = vld [vmem:[%s2327 + $0x178] sm:$0xff]
    %v2842 = vld [vmem:[%s2327 + $0x180] sm:$0xff]
    %v2843 = vld [vmem:[%s2327 + $0x188] sm:$0xff]
    %v2844 = vld [vmem:[%s2327 + $0x190] sm:$0xff]
    %v2845 = vld [vmem:[%s2327 + $0x198] sm:$0xff]
    %v2846 = vld [vmem:[%s2327 + $0x1a0] sm:$0xff]
    %v2847 = vld [vmem:[%s2327 + $0x1a8] sm:$0xff]
    %v2848 = vld [vmem:[%s2327 + $0x1b0] sm:$0xff]
    %v2849 = vld [vmem:[%s2327 + $0x1b8] sm:$0xff]
    %v2850 = vld [vmem:[%s2327 + $0x1c0] sm:$0xff]
    %v2851 = vld [vmem:[%s2327 + $0x1c8] sm:$0xff]
    %v2852 = vld [vmem:[%s2327 + $0x1d0] sm:$0xff]
    %v2853 = vld [vmem:[%s2327 + $0x1d8] sm:$0xff]
    %v2854 = vld [vmem:[%s2327 + $0x1e0] sm:$0xff]
    %v2855 = vld [vmem:[%s2327 + $0x1e8] sm:$0xff]
    %v2856 = vld [vmem:[%s2327 + $0x1f0] sm:$0xff]
    %v2857 = vld [vmem:[%s2327 + $0x1f8] sm:$0xff]
    %v2858 = vld [vmem:[%s2392] sm:$0xff]
    %v2859 = vld [vmem:[%s2392 + $0x8] sm:$0xff]
    %v2860 = vld [vmem:[%s2392 + $0x10] sm:$0xff]
    %v2861 = vld [vmem:[%s2392 + $0x18] sm:$0xff]
    %v2862 = vld [vmem:[%s2392 + $0x20] sm:$0xff]
    %v2863 = vld [vmem:[%s2392 + $0x28] sm:$0xff]
    %v2864 = vld [vmem:[%s2392 + $0x30] sm:$0xff]
    %v2865 = vld [vmem:[%s2392 + $0x38] sm:$0xff]
    %v2866 = vld [vmem:[%s2392 + $0x40] sm:$0xff]
    %v2867 = vld [vmem:[%s2392 + $0x48] sm:$0xff]
    %v2868 = vld [vmem:[%s2392 + $0x50] sm:$0xff]
    %v2869 = vld [vmem:[%s2392 + $0x58] sm:$0xff]
    %v2870 = vld [vmem:[%s2392 + $0x60] sm:$0xff]
    %v2871 = vld [vmem:[%s2392 + $0x68] sm:$0xff]
    %v2872 = vld [vmem:[%s2392 + $0x70] sm:$0xff]
    %v2873 = vld [vmem:[%s2392 + $0x78] sm:$0xff]
    %v2874 = vld [vmem:[%s2392 + $0x80] sm:$0xff]
    %v2875 = vld [vmem:[%s2392 + $0x88] sm:$0xff]
    %v2876 = vld [vmem:[%s2392 + $0x90] sm:$0xff]
    %v2877 = vld [vmem:[%s2392 + $0x98] sm:$0xff]
    %v2878 = vld [vmem:[%s2392 + $0xa0] sm:$0xff]
    %v2879 = vld [vmem:[%s2392 + $0xa8] sm:$0xff]
    %v2880 = vld [vmem:[%s2392 + $0xb0] sm:$0xff]
    %v2881 = vld [vmem:[%s2392 + $0xb8] sm:$0xff]
    %v2882 = vld [vmem:[%s2392 + $0xc0] sm:$0xff]
    %v2883 = vld [vmem:[%s2392 + $0xc8] sm:$0xff]
    %v2884 = vld [vmem:[%s2392 + $0xd0] sm:$0xff]
    %v2885 = vld [vmem:[%s2392 + $0xd8] sm:$0xff]
    %v2886 = vld [vmem:[%s2392 + $0xe0] sm:$0xff]
    %v2887 = vld [vmem:[%s2392 + $0xe8] sm:$0xff]
    %v2888 = vld [vmem:[%s2392 + $0xf0] sm:$0xff]
    %v2889 = vld [vmem:[%s2392 + $0xf8] sm:$0xff]
    %v2890 = vld [vmem:[%s2392 + $0x100] sm:$0xff]
    %v2891 = vld [vmem:[%s2392 + $0x108] sm:$0xff]
    %v2892 = vld [vmem:[%s2392 + $0x110] sm:$0xff]
    %v2893 = vld [vmem:[%s2392 + $0x118] sm:$0xff]
    %v2894 = vld [vmem:[%s2392 + $0x120] sm:$0xff]
    %v2895 = vld [vmem:[%s2392 + $0x128] sm:$0xff]
    %v2896 = vld [vmem:[%s2392 + $0x130] sm:$0xff]
    %v2897 = vld [vmem:[%s2392 + $0x138] sm:$0xff]
    %v2898 = vld [vmem:[%s2392 + $0x140] sm:$0xff]
    %v2899 = vld [vmem:[%s2392 + $0x148] sm:$0xff]
    %v2900 = vld [vmem:[%s2392 + $0x150] sm:$0xff]
    %v2901 = vld [vmem:[%s2392 + $0x158] sm:$0xff]
    %v2902 = vld [vmem:[%s2392 + $0x160] sm:$0xff]
    %v2903 = vld [vmem:[%s2392 + $0x168] sm:$0xff]
    %v2904 = vld [vmem:[%s2392 + $0x170] sm:$0xff]
    %v2905 = vld [vmem:[%s2392 + $0x178] sm:$0xff]
    %v2906 = vld [vmem:[%s2392 + $0x180] sm:$0xff]
    %v2907 = vld [vmem:[%s2392 + $0x188] sm:$0xff]
    %v2908 = vld [vmem:[%s2392 + $0x190] sm:$0xff]
    %v2909 = vld [vmem:[%s2392 + $0x198] sm:$0xff]
    %v2910 = vld [vmem:[%s2392 + $0x1a0] sm:$0xff]
    %v2911 = vld [vmem:[%s2392 + $0x1a8] sm:$0xff]
    %v2912 = vld [vmem:[%s2392 + $0x1b0] sm:$0xff]
    %v2913 = vld [vmem:[%s2392 + $0x1b8] sm:$0xff]
    %v2914 = vld [vmem:[%s2392 + $0x1c0] sm:$0xff]
    %v2915 = vld [vmem:[%s2392 + $0x1c8] sm:$0xff]
    %v2916 = vld [vmem:[%s2392 + $0x1d0] sm:$0xff]
    %v2917 = vld [vmem:[%s2392 + $0x1d8] sm:$0xff]
    %v2918 = vld [vmem:[%s2392 + $0x1e0] sm:$0xff]
    %v2919 = vld [vmem:[%s2392 + $0x1e8] sm:$0xff]
    %v2920 = vld [vmem:[%s2392 + $0x1f0] sm:$0xff]
    %v2921 = vld [vmem:[%s2392 + $0x1f8] sm:$0xff]
    %2922 = vmatprep.subr.mxu0 %v2919
    %2923 = vmatpush1.msra.mxu0 %v2918
    %2924 = vmatprep.subr.mxu0 %v2915
    %2925 = vmatpush1.msra.mxu0 %v2914
    %2926 = vmatprep.subr.mxu0 %v2911
    %2927 = vmatpush1.msra.mxu0 %v2910
    %2928 = vmatprep.subr.mxu0 %v2907
    %2929 = vmatpush1.msra.mxu0 %v2906
    %2930 = vmatprep.subr.mxu0 %v2903
    %2931 = vmatpush1.msra.mxu0 %v2902
    %2932 = vmatprep.subr.mxu0 %v2899
    %2933 = vmatpush1.msra.mxu0 %v2898
    %2934 = vmatprep.subr.mxu0 %v2895
    %2935 = vmatpush1.msra.mxu0 %v2894
    %2936 = vmatprep.subr.mxu0 %v2891
    %2937 = vmatpush1.msra.mxu0 %v2890
    %2938 = vmatprep.subr.mxu0 %v2887
    %2939 = vmatpush1.msra.mxu0 %v2886
    %2940 = vmatprep.subr.mxu0 %v2883
    %2941 = vmatpush1.msra.mxu0 %v2882
    %2942 = vmatprep.subr.mxu0 %v2879
    %2943 = vmatpush1.msra.mxu0 %v2878
    %2944 = vmatprep.subr.mxu0 %v2875
    %2945 = vmatpush1.msra.mxu0 %v2874
    %2946 = vmatprep.subr.mxu0 %v2871
    %2947 = vmatpush1.msra.mxu0 %v2870
    %2948 = vmatprep.subr.mxu0 %v2867
    %2949 = vmatpush1.msra.mxu0 %v2866
    %2950 = vmatprep.subr.mxu0 %v2863
    %2951 = vmatpush1.msra.mxu0 %v2862
    %2952 = vmatprep.subr.mxu0 %v2859
    %2953 = vmatpush1.msra.mxu0 %v2858
    %2954 = vmatprep.subr.mxu0 0.0
    %2955 = vmatpush2.msra.mxu0 0.0
    %2956 = vmatprep.subr.mxu0 0.0
    %2957 = vmatpush2.msra.mxu0 0.0
    %2958 = vmatprep.subr.mxu0 0.0
    %2959 = vmatpush2.msra.mxu0 0.0
    %2960 = vmatprep.subr.mxu0 0.0
    %2961 = vmatpush2.msra.mxu0 0.0
    %2962 = vmatprep.subr.mxu0 0.0
    %2963 = vmatpush2.msra.mxu0 0.0
    %2964 = vmatprep.subr.mxu0 0.0
    %2965 = vmatpush2.msra.mxu0 0.0
    %2966 = vmatprep.subr.mxu0 0.0
    %2967 = vmatpush2.msra.mxu0 0.0
    %2968 = vmatprep.subr.mxu0 0.0
    %2969 = vmatpush2.msra.mxu0 0.0
    %2970 = vmatprep.subr.mxu0 0.0
    %2971 = vmatpush2.msra.mxu0 0.0
    %2972 = vmatprep.subr.mxu0 0.0
    %2973 = vmatpush2.msra.mxu0 0.0
    %2974 = vmatprep.subr.mxu0 0.0
    %2975 = vmatpush2.msra.mxu0 0.0
    %2976 = vmatprep.subr.mxu0 0.0
    %2977 = vmatpush2.msra.mxu0 0.0
    %2978 = vmatprep.subr.mxu0 0.0
    %2979 = vmatpush2.msra.mxu0 0.0
    %2980 = vmatprep.subr.mxu0 0.0
    %2981 = vmatpush2.msra.mxu0 0.0
    %2982 = vmatprep.subr.mxu0 0.0
    %2983 = vmatpush2.msra.mxu0 0.0
    %2984 = vmatprep.subr.mxu0 0.0
    %2985 = vmatpush2.msra.mxu0 0.0
    %2986 = vmatprep.mubr.f32.mxu0 0.0
    %2987 = vmatmul.mubr.f32.gmra.mxu0 %v2791
    %v2988 = vpop.f32.mrf.mxu0
    %v2989 = vadd.f32 0.0, %v2988
    %v2990 = vpop.f32.mrf.mxu0
    %v2991 = vadd.f32 0.0, %v2990
    %2992 = vdwg.mxu0
    %2993 = vmatprep.subr.mxu0 %v2921
    %2994 = vmatpush1.msra.mxu0 %v2920
    %2995 = vmatprep.subr.mxu0 %v2917
    %2996 = vmatpush1.msra.mxu0 %v2916
    %2997 = vmatprep.subr.mxu0 %v2913
    %2998 = vmatpush1.msra.mxu0 %v2912
    %2999 = vmatprep.subr.mxu0 %v2909
    %3000 = vmatpush1.msra.mxu0 %v2908
    %3001 = vmatprep.subr.mxu0 %v2905
    %3002 = vmatpush1.msra.mxu0 %v2904
    %3003 = vmatprep.subr.mxu0 %v2901
    %3004 = vmatpush1.msra.mxu0 %v2900
    %3005 = vmatprep.subr.mxu0 %v2897
    %3006 = vmatpush1.msra.mxu0 %v2896
    %3007 = vmatprep.subr.mxu0 %v2893
    %3008 = vmatpush1.msra.mxu0 %v2892
    %3009 = vmatprep.subr.mxu0 %v2889
    %3010 = vmatpush1.msra.mxu0 %v2888
    %3011 = vmatprep.subr.mxu0 %v2885
    %3012 = vmatpush1.msra.mxu0 %v2884
    %3013 = vmatprep.subr.mxu0 %v2881
    %3014 = vmatpush1.msra.mxu0 %v2880
    %3015 = vmatprep.subr.mxu0 %v2877
    %3016 = vmatpush1.msra.mxu0 %v2876
    %3017 = vmatprep.subr.mxu0 %v2873
    %3018 = vmatpush1.msra.mxu0 %v2872
    %3019 = vmatprep.subr.mxu0 %v2869
    %3020 = vmatpush1.msra.mxu0 %v2868
    %3021 = vmatprep.subr.mxu0 %v2865
    %3022 = vmatpush1.msra.mxu0 %v2864
    %3023 = vmatprep.subr.mxu0 %v2861
    %3024 = vmatpush1.msra.mxu0 %v2860
    %3025 = vmatprep.subr.mxu0 0.0
    %3026 = vmatpush2.msra.mxu0 0.0
    %3027 = vmatprep.subr.mxu0 0.0
    %3028 = vmatpush2.msra.mxu0 0.0
    %3029 = vmatprep.subr.mxu0 0.0
    %3030 = vmatpush2.msra.mxu0 0.0
    %3031 = vmatprep.subr.mxu0 0.0
    %3032 = vmatpush2.msra.mxu0 0.0
    %3033 = vmatprep.subr.mxu0 0.0
    %3034 = vmatpush2.msra.mxu0 0.0
    %3035 = vmatprep.subr.mxu0 0.0
    %3036 = vmatpush2.msra.mxu0 0.0
    %3037 = vmatprep.subr.mxu0 0.0
    %3038 = vmatpush2.msra.mxu0 0.0
    %3039 = vmatprep.subr.mxu0 0.0
    %3040 = vmatpush2.msra.mxu0 0.0
    %3041 = vmatprep.subr.mxu0 0.0
    %3042 = vmatpush2.msra.mxu0 0.0
    %3043 = vmatprep.subr.mxu0 0.0
    %3044 = vmatpush2.msra.mxu0 0.0
    %3045 = vmatprep.subr.mxu0 0.0
    %3046 = vmatpush2.msra.mxu0 0.0
    %3047 = vmatprep.subr.mxu0 0.0
    %3048 = vmatpush2.msra.mxu0 0.0
    %3049 = vmatprep.subr.mxu0 0.0
    %3050 = vmatpush2.msra.mxu0 0.0
    %3051 = vmatprep.subr.mxu0 0.0
    %3052 = vmatpush2.msra.mxu0 0.0
    %3053 = vmatprep.subr.mxu0 0.0
    %3054 = vmatpush2.msra.mxu0 0.0
    %3055 = vmatprep.subr.mxu0 0.0
    %3056 = vmatpush2.msra.mxu0 0.0
    %3057 = vmatprep.mubr.f32.mxu0 0.0
    %3058 = vmatmul.mubr.f32.gmra.mxu0 %v2791
    %v3059 = vpop.f32.mrf.mxu0
    %v3060 = vadd.f32 0.0, %v3059
    %v3061 = vpop.f32.mrf.mxu0
    %v3062 = vadd.f32 0.0, %v3061
    %3063 = vdwg.mxu0
    %3064 = vmatprep.subr.mxu0 %v2855
    %3065 = vmatpush1.msra.mxu0 %v2854
    %3066 = vmatprep.subr.mxu0 %v2851
    %3067 = vmatpush1.msra.mxu0 %v2850
    %3068 = vmatprep.subr.mxu0 %v2847
    %3069 = vmatpush1.msra.mxu0 %v2846
    %3070 = vmatprep.subr.mxu0 %v2843
    %3071 = vmatpush1.msra.mxu0 %v2842
    %3072 = vmatprep.subr.mxu0 %v2839
    %3073 = vmatpush1.msra.mxu0 %v2838
    %3074 = vmatprep.subr.mxu0 %v2835
    %3075 = vmatpush1.msra.mxu0 %v2834
    %3076 = vmatprep.subr.mxu0 %v2831
    %3077 = vmatpush1.msra.mxu0 %v2830
    %3078 = vmatprep.subr.mxu0 %v2827
    %3079 = vmatpush1.msra.mxu0 %v2826
    %3080 = vmatprep.subr.mxu0 %v2823
    %3081 = vmatpush1.msra.mxu0 %v2822
    %3082 = vmatprep.subr.mxu0 %v2819
    %3083 = vmatpush1.msra.mxu0 %v2818
    %3084 = vmatprep.subr.mxu0 %v2815
    %3085 = vmatpush1.msra.mxu0 %v2814
    %3086 = vmatprep.subr.mxu0 %v2811
    %3087 = vmatpush1.msra.mxu0 %v2810
    %3088 = vmatprep.subr.mxu0 %v2807
    %3089 = vmatpush1.msra.mxu0 %v2806
    %3090 = vmatprep.subr.mxu0 %v2803
    %3091 = vmatpush1.msra.mxu0 %v2802
    %3092 = vmatprep.subr.mxu0 %v2799
    %3093 = vmatpush1.msra.mxu0 %v2798
    %3094 = vmatprep.subr.mxu0 %v2795
    %3095 = vmatpush1.msra.mxu0 %v2794
    %3096 = vmatprep.subr.mxu0 0.0
    %3097 = vmatpush2.msra.mxu0 0.0
    %3098 = vmatprep.subr.mxu0 0.0
    %3099 = vmatpush2.msra.mxu0 0.0
    %3100 = vmatprep.subr.mxu0 0.0
    %3101 = vmatpush2.msra.mxu0 0.0
    %3102 = vmatprep.subr.mxu0 0.0
    %3103 = vmatpush2.msra.mxu0 0.0
    %3104 = vmatprep.subr.mxu0 0.0
    %3105 = vmatpush2.msra.mxu0 0.0
    %3106 = vmatprep.subr.mxu0 0.0
    %3107 = vmatpush2.msra.mxu0 0.0
    %3108 = vmatprep.subr.mxu0 0.0
    %3109 = vmatpush2.msra.mxu0 0.0
    %3110 = vmatprep.subr.mxu0 0.0
    %3111 = vmatpush2.msra.mxu0 0.0
    %3112 = vmatprep.subr.mxu0 0.0
    %3113 = vmatpush2.msra.mxu0 0.0
    %3114 = vmatprep.subr.mxu0 0.0
    %3115 = vmatpush2.msra.mxu0 0.0
    %3116 = vmatprep.subr.mxu0 0.0
    %3117 = vmatpush2.msra.mxu0 0.0
    %3118 = vmatprep.subr.mxu0 0.0
    %3119 = vmatpush2.msra.mxu0 0.0
    %3120 = vmatprep.subr.mxu0 0.0
    %3121 = vmatpush2.msra.mxu0 0.0
    %3122 = vmatprep.subr.mxu0 0.0
    %3123 = vmatpush2.msra.mxu0 0.0
    %3124 = vmatprep.subr.mxu0 0.0
    %3125 = vmatpush2.msra.mxu0 0.0
    %3126 = vmatprep.subr.mxu0 0.0
    %3127 = vmatpush2.msra.mxu0 0.0
    %3128 = vmatprep.mubr.f32.mxu0 0.0
    %3129 = vmatmul.mubr.f32.gmra.mxu0 %v2793
    %v3130 = vpop.f32.mrf.mxu0
    %v3131 = vadd.f32 %v2989, %v3130
    %v3132 = vpop.f32.mrf.mxu0
    %v3133 = vadd.f32 %v2991, %v3132
    %3134 = vdwg.mxu0
    %3135 = vmatprep.subr.mxu0 %v2857
    %3136 = vmatpush1.msra.mxu0 %v2856
    %3137 = vmatprep.subr.mxu0 %v2853
    %3138 = vmatpush1.msra.mxu0 %v2852
    %3139 = vmatprep.subr.mxu0 %v2849
    %3140 = vmatpush1.msra.mxu0 %v2848
    %3141 = vmatprep.subr.mxu0 %v2845
    %3142 = vmatpush1.msra.mxu0 %v2844
    %3143 = vmatprep.subr.mxu0 %v2841
    %3144 = vmatpush1.msra.mxu0 %v2840
    %3145 = vmatprep.subr.mxu0 %v2837
    %3146 = vmatpush1.msra.mxu0 %v2836
    %3147 = vmatprep.subr.mxu0 %v2833
    %3148 = vmatpush1.msra.mxu0 %v2832
    %3149 = vmatprep.subr.mxu0 %v2829
    %3150 = vmatpush1.msra.mxu0 %v2828
    %3151 = vmatprep.subr.mxu0 %v2825
    %3152 = vmatpush1.msra.mxu0 %v2824
    %3153 = vmatprep.subr.mxu0 %v2821
    %3154 = vmatpush1.msra.mxu0 %v2820
    %3155 = vmatprep.subr.mxu0 %v2817
    %3156 = vmatpush1.msra.mxu0 %v2816
    %3157 = vmatprep.subr.mxu0 %v2813
    %3158 = vmatpush1.msra.mxu0 %v2812
    %3159 = vmatprep.subr.mxu0 %v2809
    %3160 = vmatpush1.msra.mxu0 %v2808
    %3161 = vmatprep.subr.mxu0 %v2805
    %3162 = vmatpush1.msra.mxu0 %v2804
    %3163 = vmatprep.subr.mxu0 %v2801
    %3164 = vmatpush1.msra.mxu0 %v2800
    %3165 = vmatprep.subr.mxu0 %v2797
    %3166 = vmatpush1.msra.mxu0 %v2796
    %3167 = vmatprep.subr.mxu0 0.0
    %3168 = vmatpush2.msra.mxu0 0.0
    %3169 = vmatprep.subr.mxu0 0.0
    %3170 = vmatpush2.msra.mxu0 0.0
    %3171 = vmatprep.subr.mxu0 0.0
    %3172 = vmatpush2.msra.mxu0 0.0
    %3173 = vmatprep.subr.mxu0 0.0
    %3174 = vmatpush2.msra.mxu0 0.0
    %3175 = vmatprep.subr.mxu0 0.0
    %3176 = vmatpush2.msra.mxu0 0.0
    %3177 = vmatprep.subr.mxu0 0.0
    %3178 = vmatpush2.msra.mxu0 0.0
    %3179 = vmatprep.subr.mxu0 0.0
    %3180 = vmatpush2.msra.mxu0 0.0
    %3181 = vmatprep.subr.mxu0 0.0
    %3182 = vmatpush2.msra.mxu0 0.0
    %3183 = vmatprep.subr.mxu0 0.0
    %3184 = vmatpush2.msra.mxu0 0.0
    %3185 = vmatprep.subr.mxu0 0.0
    %3186 = vmatpush2.msra.mxu0 0.0
    %3187 = vmatprep.subr.mxu0 0.0
    %3188 = vmatpush2.msra.mxu0 0.0
    %3189 = vmatprep.subr.mxu0 0.0
    %3190 = vmatpush2.msra.mxu0 0.0
    %3191 = vmatprep.subr.mxu0 0.0
    %3192 = vmatpush2.msra.mxu0 0.0
    %3193 = vmatprep.subr.mxu0 0.0
    %3194 = vmatpush2.msra.mxu0 0.0
    %3195 = vmatprep.subr.mxu0 0.0
    %3196 = vmatpush2.msra.mxu0 0.0
    %3197 = vmatprep.subr.mxu0 0.0
    %3198 = vmatpush2.msra.mxu0 0.0
    %3199 = vmatprep.mubr.f32.mxu0 0.0
    %3200 = vmatmul.mubr.f32.gmra.mxu0 %v2793
    %v3201 = vpop.f32.mrf.mxu0
    %v3202 = vadd.f32 %v3060, %v3201
    %v3203 = vpop.f32.mrf.mxu0
    %v3204 = vadd.f32 %v3062, %v3203
    %3205 = vdwg.mxu0
    %v3206 = vld [vmem:[%s2741] sm:$0xf]
    %v3208 = vlaneseq
    %v3209 = vshrl.u32 %v3208, 7
    %v3210 = vsub.s32 0, %v3209
    %v3211 = vrot.slane %v3206, %v3210
    %v3212 = vlaneseq
    %v3213 = vshrl.u32 %v3212, 7
    %v3214 = vsub.s32 1, %v3213
    %v3215 = vrot.slane %v3206, %v3214
    %v3216 = vlaneseq
    %v3217 = vshrl.u32 %v3216, 7
    %v3218 = vsub.s32 2, %v3217
    %v3219 = vrot.slane %v3206, %v3218
    %v3220 = vlaneseq
    %v3221 = vshrl.u32 %v3220, 7
    %v3222 = vsub.s32 3, %v3221
    %v3223 = vrot.slane %v3206, %v3222
    %v3228 = vadd.f32 %v3131, %v3211
    %v3229 = vadd.f32 %v3133, %v3215
    %v3230 = vadd.f32 %v3202, %v3219
    %v3231 = vadd.f32 %v3204, %v3223
    %v3232 = vxor.u32 %v3228, 2147483648
    %v3233 = vmul.f32 %v3232, 1.442695
    %v3234 = vpow.pop %v3233
    %v3235 = vadd.f32 %v3234, 1.0
    %v3236 = vrcp.pop %v3235
    %v3237 = vmul.f32 1.0, %v3236
    %v3238 = vxor.u32 %v3229, 2147483648
    %v3239 = vmul.f32 %v3238, 1.442695
    %v3240 = vpow.pop %v3239
    %v3241 = vadd.f32 %v3240, 1.0
    %v3242 = vrcp.pop %v3241
    %v3243 = vmul.f32 1.0, %v3242
    %v3244 = vtanh.pop %v3230
    %v3245 = vxor.u32 %v3231, 2147483648
    %v3246 = vmul.f32 %v3245, 1.442695
    %v3247 = vpow.pop %v3246
    %v3248 = vadd.f32 %v3247, 1.0
    %v3249 = vrcp.pop %v3248
    %v3250 = vmul.f32 1.0, %v3249
    %v3251 = vmul.f32 %v3243, %v2789
    %v3252 = vmul.f32 %v3237, %v3244
    %v3253 = vadd.f32 %v3251, %v3252
    %v3254 = vtanh.pop %v3253
    %v3255 = vmul.f32 %v3250, %v3254
    %3256 = vst [vmem:[%s1390] sm:$0x3] %v3255
    %s3257 = scalar_lea.vmem %s6, 4
    %v3258 = vld [vmem:[%s3257] sm:$0x3]
    %s3259 = scalar_lea.vmem %s7, 4
    %v3260 = vld [vmem:[%s3259] sm:$0x3]
    %v3261 = vld [vmem:[#allocation3] sm:$0x3]
    %s3262 = scalar_lea.vmem [#allocation6], 1024
    %v3263 = vld [vmem:[%s3262] sm:$0xff]
    %v3264 = vld [vmem:[%s3262 + $0x8] sm:$0xff]
    %v3265 = vld [vmem:[%s3262 + $0x10] sm:$0xff]
    %v3266 = vld [vmem:[%s3262 + $0x18] sm:$0xff]
    %v3267 = vld [vmem:[%s3262 + $0x20] sm:$0xff]
    %v3268 = vld [vmem:[%s3262 + $0x28] sm:$0xff]
    %v3269 = vld [vmem:[%s3262 + $0x30] sm:$0xff]
    %v3270 = vld [vmem:[%s3262 + $0x38] sm:$0xff]
    %v3271 = vld [vmem:[%s3262 + $0x40] sm:$0xff]
    %v3272 = vld [vmem:[%s3262 + $0x48] sm:$0xff]
    %v3273 = vld [vmem:[%s3262 + $0x50] sm:$0xff]
    %v3274 = vld [vmem:[%s3262 + $0x58] sm:$0xff]
    %v3275 = vld [vmem:[%s3262 + $0x60] sm:$0xff]
    %v3276 = vld [vmem:[%s3262 + $0x68] sm:$0xff]
    %v3277 = vld [vmem:[%s3262 + $0x70] sm:$0xff]
    %v3278 = vld [vmem:[%s3262 + $0x78] sm:$0xff]
    %v3279 = vld [vmem:[%s3262 + $0x80] sm:$0xff]
    %v3280 = vld [vmem:[%s3262 + $0x88] sm:$0xff]
    %v3281 = vld [vmem:[%s3262 + $0x90] sm:$0xff]
    %v3282 = vld [vmem:[%s3262 + $0x98] sm:$0xff]
    %v3283 = vld [vmem:[%s3262 + $0xa0] sm:$0xff]
    %v3284 = vld [vmem:[%s3262 + $0xa8] sm:$0xff]
    %v3285 = vld [vmem:[%s3262 + $0xb0] sm:$0xff]
    %v3286 = vld [vmem:[%s3262 + $0xb8] sm:$0xff]
    %v3287 = vld [vmem:[%s3262 + $0xc0] sm:$0xff]
    %v3288 = vld [vmem:[%s3262 + $0xc8] sm:$0xff]
    %v3289 = vld [vmem:[%s3262 + $0xd0] sm:$0xff]
    %v3290 = vld [vmem:[%s3262 + $0xd8] sm:$0xff]
    %v3291 = vld [vmem:[%s3262 + $0xe0] sm:$0xff]
    %v3292 = vld [vmem:[%s3262 + $0xe8] sm:$0xff]
    %v3293 = vld [vmem:[%s3262 + $0xf0] sm:$0xff]
    %v3294 = vld [vmem:[%s3262 + $0xf8] sm:$0xff]
    %v3295 = vld [vmem:[%s3262 + $0x100] sm:$0xff]
    %v3296 = vld [vmem:[%s3262 + $0x108] sm:$0xff]
    %v3297 = vld [vmem:[%s3262 + $0x110] sm:$0xff]
    %v3298 = vld [vmem:[%s3262 + $0x118] sm:$0xff]
    %v3299 = vld [vmem:[%s3262 + $0x120] sm:$0xff]
    %v3300 = vld [vmem:[%s3262 + $0x128] sm:$0xff]
    %v3301 = vld [vmem:[%s3262 + $0x130] sm:$0xff]
    %v3302 = vld [vmem:[%s3262 + $0x138] sm:$0xff]
    %v3303 = vld [vmem:[%s3262 + $0x140] sm:$0xff]
    %v3304 = vld [vmem:[%s3262 + $0x148] sm:$0xff]
    %v3305 = vld [vmem:[%s3262 + $0x150] sm:$0xff]
    %v3306 = vld [vmem:[%s3262 + $0x158] sm:$0xff]
    %v3307 = vld [vmem:[%s3262 + $0x160] sm:$0xff]
    %v3308 = vld [vmem:[%s3262 + $0x168] sm:$0xff]
    %v3309 = vld [vmem:[%s3262 + $0x170] sm:$0xff]
    %v3310 = vld [vmem:[%s3262 + $0x178] sm:$0xff]
    %v3311 = vld [vmem:[%s3262 + $0x180] sm:$0xff]
    %v3312 = vld [vmem:[%s3262 + $0x188] sm:$0xff]
    %v3313 = vld [vmem:[%s3262 + $0x190] sm:$0xff]
    %v3314 = vld [vmem:[%s3262 + $0x198] sm:$0xff]
    %v3315 = vld [vmem:[%s3262 + $0x1a0] sm:$0xff]
    %v3316 = vld [vmem:[%s3262 + $0x1a8] sm:$0xff]
    %v3317 = vld [vmem:[%s3262 + $0x1b0] sm:$0xff]
    %v3318 = vld [vmem:[%s3262 + $0x1b8] sm:$0xff]
    %v3319 = vld [vmem:[%s3262 + $0x1c0] sm:$0xff]
    %v3320 = vld [vmem:[%s3262 + $0x1c8] sm:$0xff]
    %v3321 = vld [vmem:[%s3262 + $0x1d0] sm:$0xff]
    %v3322 = vld [vmem:[%s3262 + $0x1d8] sm:$0xff]
    %v3323 = vld [vmem:[%s3262 + $0x1e0] sm:$0xff]
    %v3324 = vld [vmem:[%s3262 + $0x1e8] sm:$0xff]
    %v3325 = vld [vmem:[%s3262 + $0x1f0] sm:$0xff]
    %v3326 = vld [vmem:[%s3262 + $0x1f8] sm:$0xff]
    %s3327 = scalar_lea.vmem [#allocation8], 1024
    %v3328 = vld [vmem:[%s3327] sm:$0xff]
    %v3329 = vld [vmem:[%s3327 + $0x8] sm:$0xff]
    %v3330 = vld [vmem:[%s3327 + $0x10] sm:$0xff]
    %v3331 = vld [vmem:[%s3327 + $0x18] sm:$0xff]
    %v3332 = vld [vmem:[%s3327 + $0x20] sm:$0xff]
    %v3333 = vld [vmem:[%s3327 + $0x28] sm:$0xff]
    %v3334 = vld [vmem:[%s3327 + $0x30] sm:$0xff]
    %v3335 = vld [vmem:[%s3327 + $0x38] sm:$0xff]
    %v3336 = vld [vmem:[%s3327 + $0x40] sm:$0xff]
    %v3337 = vld [vmem:[%s3327 + $0x48] sm:$0xff]
    %v3338 = vld [vmem:[%s3327 + $0x50] sm:$0xff]
    %v3339 = vld [vmem:[%s3327 + $0x58] sm:$0xff]
    %v3340 = vld [vmem:[%s3327 + $0x60] sm:$0xff]
    %v3341 = vld [vmem:[%s3327 + $0x68] sm:$0xff]
    %v3342 = vld [vmem:[%s3327 + $0x70] sm:$0xff]
    %v3343 = vld [vmem:[%s3327 + $0x78] sm:$0xff]
    %v3344 = vld [vmem:[%s3327 + $0x80] sm:$0xff]
    %v3345 = vld [vmem:[%s3327 + $0x88] sm:$0xff]
    %v3346 = vld [vmem:[%s3327 + $0x90] sm:$0xff]
    %v3347 = vld [vmem:[%s3327 + $0x98] sm:$0xff]
    %v3348 = vld [vmem:[%s3327 + $0xa0] sm:$0xff]
    %v3349 = vld [vmem:[%s3327 + $0xa8] sm:$0xff]
    %v3350 = vld [vmem:[%s3327 + $0xb0] sm:$0xff]
    %v3351 = vld [vmem:[%s3327 + $0xb8] sm:$0xff]
    %v3352 = vld [vmem:[%s3327 + $0xc0] sm:$0xff]
    %v3353 = vld [vmem:[%s3327 + $0xc8] sm:$0xff]
    %v3354 = vld [vmem:[%s3327 + $0xd0] sm:$0xff]
    %v3355 = vld [vmem:[%s3327 + $0xd8] sm:$0xff]
    %v3356 = vld [vmem:[%s3327 + $0xe0] sm:$0xff]
    %v3357 = vld [vmem:[%s3327 + $0xe8] sm:$0xff]
    %v3358 = vld [vmem:[%s3327 + $0xf0] sm:$0xff]
    %v3359 = vld [vmem:[%s3327 + $0xf8] sm:$0xff]
    %v3360 = vld [vmem:[%s3327 + $0x100] sm:$0xff]
    %v3361 = vld [vmem:[%s3327 + $0x108] sm:$0xff]
    %v3362 = vld [vmem:[%s3327 + $0x110] sm:$0xff]
    %v3363 = vld [vmem:[%s3327 + $0x118] sm:$0xff]
    %v3364 = vld [vmem:[%s3327 + $0x120] sm:$0xff]
    %v3365 = vld [vmem:[%s3327 + $0x128] sm:$0xff]
    %v3366 = vld [vmem:[%s3327 + $0x130] sm:$0xff]
    %v3367 = vld [vmem:[%s3327 + $0x138] sm:$0xff]
    %v3368 = vld [vmem:[%s3327 + $0x140] sm:$0xff]
    %v3369 = vld [vmem:[%s3327 + $0x148] sm:$0xff]
    %v3370 = vld [vmem:[%s3327 + $0x150] sm:$0xff]
    %v3371 = vld [vmem:[%s3327 + $0x158] sm:$0xff]
    %v3372 = vld [vmem:[%s3327 + $0x160] sm:$0xff]
    %v3373 = vld [vmem:[%s3327 + $0x168] sm:$0xff]
    %v3374 = vld [vmem:[%s3327 + $0x170] sm:$0xff]
    %v3375 = vld [vmem:[%s3327 + $0x178] sm:$0xff]
    %v3376 = vld [vmem:[%s3327 + $0x180] sm:$0xff]
    %v3377 = vld [vmem:[%s3327 + $0x188] sm:$0xff]
    %v3378 = vld [vmem:[%s3327 + $0x190] sm:$0xff]
    %v3379 = vld [vmem:[%s3327 + $0x198] sm:$0xff]
    %v3380 = vld [vmem:[%s3327 + $0x1a0] sm:$0xff]
    %v3381 = vld [vmem:[%s3327 + $0x1a8] sm:$0xff]
    %v3382 = vld [vmem:[%s3327 + $0x1b0] sm:$0xff]
    %v3383 = vld [vmem:[%s3327 + $0x1b8] sm:$0xff]
    %v3384 = vld [vmem:[%s3327 + $0x1c0] sm:$0xff]
    %v3385 = vld [vmem:[%s3327 + $0x1c8] sm:$0xff]
    %v3386 = vld [vmem:[%s3327 + $0x1d0] sm:$0xff]
    %v3387 = vld [vmem:[%s3327 + $0x1d8] sm:$0xff]
    %v3388 = vld [vmem:[%s3327 + $0x1e0] sm:$0xff]
    %v3389 = vld [vmem:[%s3327 + $0x1e8] sm:$0xff]
    %v3390 = vld [vmem:[%s3327 + $0x1f0] sm:$0xff]
    %v3391 = vld [vmem:[%s3327 + $0x1f8] sm:$0xff]
    %3392 = vmatprep.subr.mxu0 %v3389
    %3393 = vmatpush1.msra.mxu0 %v3388
    %3394 = vmatprep.subr.mxu0 %v3385
    %3395 = vmatpush1.msra.mxu0 %v3384
    %3396 = vmatprep.subr.mxu0 %v3381
    %3397 = vmatpush1.msra.mxu0 %v3380
    %3398 = vmatprep.subr.mxu0 %v3377
    %3399 = vmatpush1.msra.mxu0 %v3376
    %3400 = vmatprep.subr.mxu0 %v3373
    %3401 = vmatpush1.msra.mxu0 %v3372
    %3402 = vmatprep.subr.mxu0 %v3369
    %3403 = vmatpush1.msra.mxu0 %v3368
    %3404 = vmatprep.subr.mxu0 %v3365
    %3405 = vmatpush1.msra.mxu0 %v3364
    %3406 = vmatprep.subr.mxu0 %v3361
    %3407 = vmatpush1.msra.mxu0 %v3360
    %3408 = vmatprep.subr.mxu0 %v3357
    %3409 = vmatpush1.msra.mxu0 %v3356
    %3410 = vmatprep.subr.mxu0 %v3353
    %3411 = vmatpush1.msra.mxu0 %v3352
    %3412 = vmatprep.subr.mxu0 %v3349
    %3413 = vmatpush1.msra.mxu0 %v3348
    %3414 = vmatprep.subr.mxu0 %v3345
    %3415 = vmatpush1.msra.mxu0 %v3344
    %3416 = vmatprep.subr.mxu0 %v3341
    %3417 = vmatpush1.msra.mxu0 %v3340
    %3418 = vmatprep.subr.mxu0 %v3337
    %3419 = vmatpush1.msra.mxu0 %v3336
    %3420 = vmatprep.subr.mxu0 %v3333
    %3421 = vmatpush1.msra.mxu0 %v3332
    %3422 = vmatprep.subr.mxu0 %v3329
    %3423 = vmatpush1.msra.mxu0 %v3328
    %3424 = vmatprep.subr.mxu0 0.0
    %3425 = vmatpush2.msra.mxu0 0.0
    %3426 = vmatprep.subr.mxu0 0.0
    %3427 = vmatpush2.msra.mxu0 0.0
    %3428 = vmatprep.subr.mxu0 0.0
    %3429 = vmatpush2.msra.mxu0 0.0
    %3430 = vmatprep.subr.mxu0 0.0
    %3431 = vmatpush2.msra.mxu0 0.0
    %3432 = vmatprep.subr.mxu0 0.0
    %3433 = vmatpush2.msra.mxu0 0.0
    %3434 = vmatprep.subr.mxu0 0.0
    %3435 = vmatpush2.msra.mxu0 0.0
    %3436 = vmatprep.subr.mxu0 0.0
    %3437 = vmatpush2.msra.mxu0 0.0
    %3438 = vmatprep.subr.mxu0 0.0
    %3439 = vmatpush2.msra.mxu0 0.0
    %3440 = vmatprep.subr.mxu0 0.0
    %3441 = vmatpush2.msra.mxu0 0.0
    %3442 = vmatprep.subr.mxu0 0.0
    %3443 = vmatpush2.msra.mxu0 0.0
    %3444 = vmatprep.subr.mxu0 0.0
    %3445 = vmatpush2.msra.mxu0 0.0
    %3446 = vmatprep.subr.mxu0 0.0
    %3447 = vmatpush2.msra.mxu0 0.0
    %3448 = vmatprep.subr.mxu0 0.0
    %3449 = vmatpush2.msra.mxu0 0.0
    %3450 = vmatprep.subr.mxu0 0.0
    %3451 = vmatpush2.msra.mxu0 0.0
    %3452 = vmatprep.subr.mxu0 0.0
    %3453 = vmatpush2.msra.mxu0 0.0
    %3454 = vmatprep.subr.mxu0 0.0
    %3455 = vmatpush2.msra.mxu0 0.0
    %3456 = vmatprep.mubr.f32.mxu0 0.0
    %3457 = vmatmul.mubr.f32.gmra.mxu0 %v3258
    %v3458 = vpop.f32.mrf.mxu0
    %v3459 = vadd.f32 0.0, %v3458
    %v3460 = vpop.f32.mrf.mxu0
    %v3461 = vadd.f32 0.0, %v3460
    %3462 = vdwg.mxu0
    %3463 = vmatprep.subr.mxu0 %v3391
    %3464 = vmatpush1.msra.mxu0 %v3390
    %3465 = vmatprep.subr.mxu0 %v3387
    %3466 = vmatpush1.msra.mxu0 %v3386
    %3467 = vmatprep.subr.mxu0 %v3383
    %3468 = vmatpush1.msra.mxu0 %v3382
    %3469 = vmatprep.subr.mxu0 %v3379
    %3470 = vmatpush1.msra.mxu0 %v3378
    %3471 = vmatprep.subr.mxu0 %v3375
    %3472 = vmatpush1.msra.mxu0 %v3374
    %3473 = vmatprep.subr.mxu0 %v3371
    %3474 = vmatpush1.msra.mxu0 %v3370
    %3475 = vmatprep.subr.mxu0 %v3367
    %3476 = vmatpush1.msra.mxu0 %v3366
    %3477 = vmatprep.subr.mxu0 %v3363
    %3478 = vmatpush1.msra.mxu0 %v3362
    %3479 = vmatprep.subr.mxu0 %v3359
    %3480 = vmatpush1.msra.mxu0 %v3358
    %3481 = vmatprep.subr.mxu0 %v3355
    %3482 = vmatpush1.msra.mxu0 %v3354
    %3483 = vmatprep.subr.mxu0 %v3351
    %3484 = vmatpush1.msra.mxu0 %v3350
    %3485 = vmatprep.subr.mxu0 %v3347
    %3486 = vmatpush1.msra.mxu0 %v3346
    %3487 = vmatprep.subr.mxu0 %v3343
    %3488 = vmatpush1.msra.mxu0 %v3342
    %3489 = vmatprep.subr.mxu0 %v3339
    %3490 = vmatpush1.msra.mxu0 %v3338
    %3491 = vmatprep.subr.mxu0 %v3335
    %3492 = vmatpush1.msra.mxu0 %v3334
    %3493 = vmatprep.subr.mxu0 %v3331
    %3494 = vmatpush1.msra.mxu0 %v3330
    %3495 = vmatprep.subr.mxu0 0.0
    %3496 = vmatpush2.msra.mxu0 0.0
    %3497 = vmatprep.subr.mxu0 0.0
    %3498 = vmatpush2.msra.mxu0 0.0
    %3499 = vmatprep.subr.mxu0 0.0
    %3500 = vmatpush2.msra.mxu0 0.0
    %3501 = vmatprep.subr.mxu0 0.0
    %3502 = vmatpush2.msra.mxu0 0.0
    %3503 = vmatprep.subr.mxu0 0.0
    %3504 = vmatpush2.msra.mxu0 0.0
    %3505 = vmatprep.subr.mxu0 0.0
    %3506 = vmatpush2.msra.mxu0 0.0
    %3507 = vmatprep.subr.mxu0 0.0
    %3508 = vmatpush2.msra.mxu0 0.0
    %3509 = vmatprep.subr.mxu0 0.0
    %3510 = vmatpush2.msra.mxu0 0.0
    %3511 = vmatprep.subr.mxu0 0.0
    %3512 = vmatpush2.msra.mxu0 0.0
    %3513 = vmatprep.subr.mxu0 0.0
    %3514 = vmatpush2.msra.mxu0 0.0
    %3515 = vmatprep.subr.mxu0 0.0
    %3516 = vmatpush2.msra.mxu0 0.0
    %3517 = vmatprep.subr.mxu0 0.0
    %3518 = vmatpush2.msra.mxu0 0.0
    %3519 = vmatprep.subr.mxu0 0.0
    %3520 = vmatpush2.msra.mxu0 0.0
    %3521 = vmatprep.subr.mxu0 0.0
    %3522 = vmatpush2.msra.mxu0 0.0
    %3523 = vmatprep.subr.mxu0 0.0
    %3524 = vmatpush2.msra.mxu0 0.0
    %3525 = vmatprep.subr.mxu0 0.0
    %3526 = vmatpush2.msra.mxu0 0.0
    %3527 = vmatprep.mubr.f32.mxu0 0.0
    %3528 = vmatmul.mubr.f32.gmra.mxu0 %v3258
    %v3529 = vpop.f32.mrf.mxu0
    %v3530 = vadd.f32 0.0, %v3529
    %v3531 = vpop.f32.mrf.mxu0
    %v3532 = vadd.f32 0.0, %v3531
    %3533 = vdwg.mxu0
    %3534 = vmatprep.subr.mxu0 %v3324
    %3535 = vmatpush1.msra.mxu0 %v3323
    %3536 = vmatprep.subr.mxu0 %v3320
    %3537 = vmatpush1.msra.mxu0 %v3319
    %3538 = vmatprep.subr.mxu0 %v3316
    %3539 = vmatpush1.msra.mxu0 %v3315
    %3540 = vmatprep.subr.mxu0 %v3312
    %3541 = vmatpush1.msra.mxu0 %v3311
    %3542 = vmatprep.subr.mxu0 %v3308
    %3543 = vmatpush1.msra.mxu0 %v3307
    %3544 = vmatprep.subr.mxu0 %v3304
    %3545 = vmatpush1.msra.mxu0 %v3303
    %3546 = vmatprep.subr.mxu0 %v3300
    %3547 = vmatpush1.msra.mxu0 %v3299
    %3548 = vmatprep.subr.mxu0 %v3296
    %3549 = vmatpush1.msra.mxu0 %v3295
    %3550 = vmatprep.subr.mxu0 %v3292
    %3551 = vmatpush1.msra.mxu0 %v3291
    %3552 = vmatprep.subr.mxu0 %v3288
    %3553 = vmatpush1.msra.mxu0 %v3287
    %3554 = vmatprep.subr.mxu0 %v3284
    %3555 = vmatpush1.msra.mxu0 %v3283
    %3556 = vmatprep.subr.mxu0 %v3280
    %3557 = vmatpush1.msra.mxu0 %v3279
    %3558 = vmatprep.subr.mxu0 %v3276
    %3559 = vmatpush1.msra.mxu0 %v3275
    %3560 = vmatprep.subr.mxu0 %v3272
    %3561 = vmatpush1.msra.mxu0 %v3271
    %3562 = vmatprep.subr.mxu0 %v3268
    %3563 = vmatpush1.msra.mxu0 %v3267
    %3564 = vmatprep.subr.mxu0 %v3264
    %3565 = vmatpush1.msra.mxu0 %v3263
    %3566 = vmatprep.subr.mxu0 0.0
    %3567 = vmatpush2.msra.mxu0 0.0
    %3568 = vmatprep.subr.mxu0 0.0
    %3569 = vmatpush2.msra.mxu0 0.0
    %3570 = vmatprep.subr.mxu0 0.0
    %3571 = vmatpush2.msra.mxu0 0.0
    %3572 = vmatprep.subr.mxu0 0.0
    %3573 = vmatpush2.msra.mxu0 0.0
    %3574 = vmatprep.subr.mxu0 0.0
    %3575 = vmatpush2.msra.mxu0 0.0
    %3576 = vmatprep.subr.mxu0 0.0
    %3577 = vmatpush2.msra.mxu0 0.0
    %3578 = vmatprep.subr.mxu0 0.0
    %3579 = vmatpush2.msra.mxu0 0.0
    %3580 = vmatprep.subr.mxu0 0.0
    %3581 = vmatpush2.msra.mxu0 0.0
    %3582 = vmatprep.subr.mxu0 0.0
    %3583 = vmatpush2.msra.mxu0 0.0
    %3584 = vmatprep.subr.mxu0 0.0
    %3585 = vmatpush2.msra.mxu0 0.0
    %3586 = vmatprep.subr.mxu0 0.0
    %3587 = vmatpush2.msra.mxu0 0.0
    %3588 = vmatprep.subr.mxu0 0.0
    %3589 = vmatpush2.msra.mxu0 0.0
    %3590 = vmatprep.subr.mxu0 0.0
    %3591 = vmatpush2.msra.mxu0 0.0
    %3592 = vmatprep.subr.mxu0 0.0
    %3593 = vmatpush2.msra.mxu0 0.0
    %3594 = vmatprep.subr.mxu0 0.0
    %3595 = vmatpush2.msra.mxu0 0.0
    %3596 = vmatprep.subr.mxu0 0.0
    %3597 = vmatpush2.msra.mxu0 0.0
    %3598 = vmatprep.mubr.f32.mxu0 0.0
    %3599 = vmatmul.mubr.f32.gmra.mxu0 %v3261
    %v3600 = vpop.f32.mrf.mxu0
    %v3601 = vadd.f32 %v3459, %v3600
    %v3602 = vpop.f32.mrf.mxu0
    %v3603 = vadd.f32 %v3461, %v3602
    %3604 = vdwg.mxu0
    %3605 = vmatprep.subr.mxu0 %v3326
    %3606 = vmatpush1.msra.mxu0 %v3325
    %3607 = vmatprep.subr.mxu0 %v3322
    %3608 = vmatpush1.msra.mxu0 %v3321
    %3609 = vmatprep.subr.mxu0 %v3318
    %3610 = vmatpush1.msra.mxu0 %v3317
    %3611 = vmatprep.subr.mxu0 %v3314
    %3612 = vmatpush1.msra.mxu0 %v3313
    %3613 = vmatprep.subr.mxu0 %v3310
    %3614 = vmatpush1.msra.mxu0 %v3309
    %3615 = vmatprep.subr.mxu0 %v3306
    %3616 = vmatpush1.msra.mxu0 %v3305
    %3617 = vmatprep.subr.mxu0 %v3302
    %3618 = vmatpush1.msra.mxu0 %v3301
    %3619 = vmatprep.subr.mxu0 %v3298
    %3620 = vmatpush1.msra.mxu0 %v3297
    %3621 = vmatprep.subr.mxu0 %v3294
    %3622 = vmatpush1.msra.mxu0 %v3293
    %3623 = vmatprep.subr.mxu0 %v3290
    %3624 = vmatpush1.msra.mxu0 %v3289
    %3625 = vmatprep.subr.mxu0 %v3286
    %3626 = vmatpush1.msra.mxu0 %v3285
    %3627 = vmatprep.subr.mxu0 %v3282
    %3628 = vmatpush1.msra.mxu0 %v3281
    %3629 = vmatprep.subr.mxu0 %v3278
    %3630 = vmatpush1.msra.mxu0 %v3277
    %3631 = vmatprep.subr.mxu0 %v3274
    %3632 = vmatpush1.msra.mxu0 %v3273
    %3633 = vmatprep.subr.mxu0 %v3270
    %3634 = vmatpush1.msra.mxu0 %v3269
    %3635 = vmatprep.subr.mxu0 %v3266
    %3636 = vmatpush1.msra.mxu0 %v3265
    %3637 = vmatprep.subr.mxu0 0.0
    %3638 = vmatpush2.msra.mxu0 0.0
    %3639 = vmatprep.subr.mxu0 0.0
    %3640 = vmatpush2.msra.mxu0 0.0
    %3641 = vmatprep.subr.mxu0 0.0
    %3642 = vmatpush2.msra.mxu0 0.0
    %3643 = vmatprep.subr.mxu0 0.0
    %3644 = vmatpush2.msra.mxu0 0.0
    %3645 = vmatprep.subr.mxu0 0.0
    %3646 = vmatpush2.msra.mxu0 0.0
    %3647 = vmatprep.subr.mxu0 0.0
    %3648 = vmatpush2.msra.mxu0 0.0
    %3649 = vmatprep.subr.mxu0 0.0
    %3650 = vmatpush2.msra.mxu0 0.0
    %3651 = vmatprep.subr.mxu0 0.0
    %3652 = vmatpush2.msra.mxu0 0.0
    %3653 = vmatprep.subr.mxu0 0.0
    %3654 = vmatpush2.msra.mxu0 0.0
    %3655 = vmatprep.subr.mxu0 0.0
    %3656 = vmatpush2.msra.mxu0 0.0
    %3657 = vmatprep.subr.mxu0 0.0
    %3658 = vmatpush2.msra.mxu0 0.0
    %3659 = vmatprep.subr.mxu0 0.0
    %3660 = vmatpush2.msra.mxu0 0.0
    %3661 = vmatprep.subr.mxu0 0.0
    %3662 = vmatpush2.msra.mxu0 0.0
    %3663 = vmatprep.subr.mxu0 0.0
    %3664 = vmatpush2.msra.mxu0 0.0
    %3665 = vmatprep.subr.mxu0 0.0
    %3666 = vmatpush2.msra.mxu0 0.0
    %3667 = vmatprep.subr.mxu0 0.0
    %3668 = vmatpush2.msra.mxu0 0.0
    %3669 = vmatprep.mubr.f32.mxu0 0.0
    %3670 = vmatmul.mubr.f32.gmra.mxu0 %v3261
    %v3671 = vpop.f32.mrf.mxu0
    %v3672 = vadd.f32 %v3530, %v3671
    %v3673 = vpop.f32.mrf.mxu0
    %v3674 = vadd.f32 %v3532, %v3673
    %3675 = vdwg.mxu0
    %s3676 = scalar_lea.vmem %s5, 8
    %v3677 = vld [vmem:[%s3676] sm:$0xf]
    %v3679 = vlaneseq
    %v3680 = vshrl.u32 %v3679, 7
    %v3681 = vsub.s32 0, %v3680
    %v3682 = vrot.slane %v3677, %v3681
    %v3683 = vlaneseq
    %v3684 = vshrl.u32 %v3683, 7
    %v3685 = vsub.s32 1, %v3684
    %v3686 = vrot.slane %v3677, %v3685
    %v3687 = vlaneseq
    %v3688 = vshrl.u32 %v3687, 7
    %v3689 = vsub.s32 2, %v3688
    %v3690 = vrot.slane %v3677, %v3689
    %v3691 = vlaneseq
    %v3692 = vshrl.u32 %v3691, 7
    %v3693 = vsub.s32 3, %v3692
    %v3694 = vrot.slane %v3677, %v3693
    %v3699 = vadd.f32 %v3601, %v3682
    %v3700 = vadd.f32 %v3603, %v3686
    %v3701 = vadd.f32 %v3672, %v3690
    %v3702 = vadd.f32 %v3674, %v3694
    %v3703 = vxor.u32 %v3699, 2147483648
    %v3704 = vmul.f32 %v3703, 1.442695
    %v3705 = vpow.pop %v3704
    %v3706 = vadd.f32 %v3705, 1.0
    %v3707 = vrcp.pop %v3706
    %v3708 = vmul.f32 1.0, %v3707
    %v3709 = vxor.u32 %v3700, 2147483648
    %v3710 = vmul.f32 %v3709, 1.442695
    %v3711 = vpow.pop %v3710
    %v3712 = vadd.f32 %v3711, 1.0
    %v3713 = vrcp.pop %v3712
    %v3714 = vmul.f32 1.0, %v3713
    %v3715 = vtanh.pop %v3701
    %v3716 = vxor.u32 %v3702, 2147483648
    %v3717 = vmul.f32 %v3716, 1.442695
    %v3718 = vpow.pop %v3717
    %v3719 = vadd.f32 %v3718, 1.0
    %v3720 = vrcp.pop %v3719
    %v3721 = vmul.f32 1.0, %v3720
    %v3722 = vmul.f32 %v3714, %v3260
    %v3723 = vmul.f32 %v3708, %v3715
    %v3724 = vadd.f32 %v3722, %v3723
    %v3725 = vtanh.pop %v3724
    %v3726 = vmul.f32 %v3721, %v3725
    %3727 = vst [vmem:[#allocation3] sm:$0x3] %v3726
    %v3728 = vld [vmem:[%s1390] sm:$0x3]
    %v3729 = vld [vmem:[%s3262] sm:$0xff]
    %v3730 = vld [vmem:[%s3262 + $0x8] sm:$0xff]
    %v3731 = vld [vmem:[%s3262 + $0x10] sm:$0xff]
    %v3732 = vld [vmem:[%s3262 + $0x18] sm:$0xff]
    %v3733 = vld [vmem:[%s3262 + $0x20] sm:$0xff]
    %v3734 = vld [vmem:[%s3262 + $0x28] sm:$0xff]
    %v3735 = vld [vmem:[%s3262 + $0x30] sm:$0xff]
    %v3736 = vld [vmem:[%s3262 + $0x38] sm:$0xff]
    %v3737 = vld [vmem:[%s3262 + $0x40] sm:$0xff]
    %v3738 = vld [vmem:[%s3262 + $0x48] sm:$0xff]
    %v3739 = vld [vmem:[%s3262 + $0x50] sm:$0xff]
    %v3740 = vld [vmem:[%s3262 + $0x58] sm:$0xff]
    %v3741 = vld [vmem:[%s3262 + $0x60] sm:$0xff]
    %v3742 = vld [vmem:[%s3262 + $0x68] sm:$0xff]
    %v3743 = vld [vmem:[%s3262 + $0x70] sm:$0xff]
    %v3744 = vld [vmem:[%s3262 + $0x78] sm:$0xff]
    %v3745 = vld [vmem:[%s3262 + $0x80] sm:$0xff]
    %v3746 = vld [vmem:[%s3262 + $0x88] sm:$0xff]
    %v3747 = vld [vmem:[%s3262 + $0x90] sm:$0xff]
    %v3748 = vld [vmem:[%s3262 + $0x98] sm:$0xff]
    %v3749 = vld [vmem:[%s3262 + $0xa0] sm:$0xff]
    %v3750 = vld [vmem:[%s3262 + $0xa8] sm:$0xff]
    %v3751 = vld [vmem:[%s3262 + $0xb0] sm:$0xff]
    %v3752 = vld [vmem:[%s3262 + $0xb8] sm:$0xff]
    %v3753 = vld [vmem:[%s3262 + $0xc0] sm:$0xff]
    %v3754 = vld [vmem:[%s3262 + $0xc8] sm:$0xff]
    %v3755 = vld [vmem:[%s3262 + $0xd0] sm:$0xff]
    %v3756 = vld [vmem:[%s3262 + $0xd8] sm:$0xff]
    %v3757 = vld [vmem:[%s3262 + $0xe0] sm:$0xff]
    %v3758 = vld [vmem:[%s3262 + $0xe8] sm:$0xff]
    %v3759 = vld [vmem:[%s3262 + $0xf0] sm:$0xff]
    %v3760 = vld [vmem:[%s3262 + $0xf8] sm:$0xff]
    %v3761 = vld [vmem:[%s3262 + $0x100] sm:$0xff]
    %v3762 = vld [vmem:[%s3262 + $0x108] sm:$0xff]
    %v3763 = vld [vmem:[%s3262 + $0x110] sm:$0xff]
    %v3764 = vld [vmem:[%s3262 + $0x118] sm:$0xff]
    %v3765 = vld [vmem:[%s3262 + $0x120] sm:$0xff]
    %v3766 = vld [vmem:[%s3262 + $0x128] sm:$0xff]
    %v3767 = vld [vmem:[%s3262 + $0x130] sm:$0xff]
    %v3768 = vld [vmem:[%s3262 + $0x138] sm:$0xff]
    %v3769 = vld [vmem:[%s3262 + $0x140] sm:$0xff]
    %v3770 = vld [vmem:[%s3262 + $0x148] sm:$0xff]
    %v3771 = vld [vmem:[%s3262 + $0x150] sm:$0xff]
    %v3772 = vld [vmem:[%s3262 + $0x158] sm:$0xff]
    %v3773 = vld [vmem:[%s3262 + $0x160] sm:$0xff]
    %v3774 = vld [vmem:[%s3262 + $0x168] sm:$0xff]
    %v3775 = vld [vmem:[%s3262 + $0x170] sm:$0xff]
    %v3776 = vld [vmem:[%s3262 + $0x178] sm:$0xff]
    %v3777 = vld [vmem:[%s3262 + $0x180] sm:$0xff]
    %v3778 = vld [vmem:[%s3262 + $0x188] sm:$0xff]
    %v3779 = vld [vmem:[%s3262 + $0x190] sm:$0xff]
    %v3780 = vld [vmem:[%s3262 + $0x198] sm:$0xff]
    %v3781 = vld [vmem:[%s3262 + $0x1a0] sm:$0xff]
    %v3782 = vld [vmem:[%s3262 + $0x1a8] sm:$0xff]
    %v3783 = vld [vmem:[%s3262 + $0x1b0] sm:$0xff]
    %v3784 = vld [vmem:[%s3262 + $0x1b8] sm:$0xff]
    %v3785 = vld [vmem:[%s3262 + $0x1c0] sm:$0xff]
    %v3786 = vld [vmem:[%s3262 + $0x1c8] sm:$0xff]
    %v3787 = vld [vmem:[%s3262 + $0x1d0] sm:$0xff]
    %v3788 = vld [vmem:[%s3262 + $0x1d8] sm:$0xff]
    %v3789 = vld [vmem:[%s3262 + $0x1e0] sm:$0xff]
    %v3790 = vld [vmem:[%s3262 + $0x1e8] sm:$0xff]
    %v3791 = vld [vmem:[%s3262 + $0x1f0] sm:$0xff]
    %v3792 = vld [vmem:[%s3262 + $0x1f8] sm:$0xff]
    %v3793 = vld [vmem:[%s3327] sm:$0xff]
    %v3794 = vld [vmem:[%s3327 + $0x8] sm:$0xff]
    %v3795 = vld [vmem:[%s3327 + $0x10] sm:$0xff]
    %v3796 = vld [vmem:[%s3327 + $0x18] sm:$0xff]
    %v3797 = vld [vmem:[%s3327 + $0x20] sm:$0xff]
    %v3798 = vld [vmem:[%s3327 + $0x28] sm:$0xff]
    %v3799 = vld [vmem:[%s3327 + $0x30] sm:$0xff]
    %v3800 = vld [vmem:[%s3327 + $0x38] sm:$0xff]
    %v3801 = vld [vmem:[%s3327 + $0x40] sm:$0xff]
    %v3802 = vld [vmem:[%s3327 + $0x48] sm:$0xff]
    %v3803 = vld [vmem:[%s3327 + $0x50] sm:$0xff]
    %v3804 = vld [vmem:[%s3327 + $0x58] sm:$0xff]
    %v3805 = vld [vmem:[%s3327 + $0x60] sm:$0xff]
    %v3806 = vld [vmem:[%s3327 + $0x68] sm:$0xff]
    %v3807 = vld [vmem:[%s3327 + $0x70] sm:$0xff]
    %v3808 = vld [vmem:[%s3327 + $0x78] sm:$0xff]
    %v3809 = vld [vmem:[%s3327 + $0x80] sm:$0xff]
    %v3810 = vld [vmem:[%s3327 + $0x88] sm:$0xff]
    %v3811 = vld [vmem:[%s3327 + $0x90] sm:$0xff]
    %v3812 = vld [vmem:[%s3327 + $0x98] sm:$0xff]
    %v3813 = vld [vmem:[%s3327 + $0xa0] sm:$0xff]
    %v3814 = vld [vmem:[%s3327 + $0xa8] sm:$0xff]
    %v3815 = vld [vmem:[%s3327 + $0xb0] sm:$0xff]
    %v3816 = vld [vmem:[%s3327 + $0xb8] sm:$0xff]
    %v3817 = vld [vmem:[%s3327 + $0xc0] sm:$0xff]
    %v3818 = vld [vmem:[%s3327 + $0xc8] sm:$0xff]
    %v3819 = vld [vmem:[%s3327 + $0xd0] sm:$0xff]
    %v3820 = vld [vmem:[%s3327 + $0xd8] sm:$0xff]
    %v3821 = vld [vmem:[%s3327 + $0xe0] sm:$0xff]
    %v3822 = vld [vmem:[%s3327 + $0xe8] sm:$0xff]
    %v3823 = vld [vmem:[%s3327 + $0xf0] sm:$0xff]
    %v3824 = vld [vmem:[%s3327 + $0xf8] sm:$0xff]
    %v3825 = vld [vmem:[%s3327 + $0x100] sm:$0xff]
    %v3826 = vld [vmem:[%s3327 + $0x108] sm:$0xff]
    %v3827 = vld [vmem:[%s3327 + $0x110] sm:$0xff]
    %v3828 = vld [vmem:[%s3327 + $0x118] sm:$0xff]
    %v3829 = vld [vmem:[%s3327 + $0x120] sm:$0xff]
    %v3830 = vld [vmem:[%s3327 + $0x128] sm:$0xff]
    %v3831 = vld [vmem:[%s3327 + $0x130] sm:$0xff]
    %v3832 = vld [vmem:[%s3327 + $0x138] sm:$0xff]
    %v3833 = vld [vmem:[%s3327 + $0x140] sm:$0xff]
    %v3834 = vld [vmem:[%s3327 + $0x148] sm:$0xff]
    %v3835 = vld [vmem:[%s3327 + $0x150] sm:$0xff]
    %v3836 = vld [vmem:[%s3327 + $0x158] sm:$0xff]
    %v3837 = vld [vmem:[%s3327 + $0x160] sm:$0xff]
    %v3838 = vld [vmem:[%s3327 + $0x168] sm:$0xff]
    %v3839 = vld [vmem:[%s3327 + $0x170] sm:$0xff]
    %v3840 = vld [vmem:[%s3327 + $0x178] sm:$0xff]
    %v3841 = vld [vmem:[%s3327 + $0x180] sm:$0xff]
    %v3842 = vld [vmem:[%s3327 + $0x188] sm:$0xff]
    %v3843 = vld [vmem:[%s3327 + $0x190] sm:$0xff]
    %v3844 = vld [vmem:[%s3327 + $0x198] sm:$0xff]
    %v3845 = vld [vmem:[%s3327 + $0x1a0] sm:$0xff]
    %v3846 = vld [vmem:[%s3327 + $0x1a8] sm:$0xff]
    %v3847 = vld [vmem:[%s3327 + $0x1b0] sm:$0xff]
    %v3848 = vld [vmem:[%s3327 + $0x1b8] sm:$0xff]
    %v3849 = vld [vmem:[%s3327 + $0x1c0] sm:$0xff]
    %v3850 = vld [vmem:[%s3327 + $0x1c8] sm:$0xff]
    %v3851 = vld [vmem:[%s3327 + $0x1d0] sm:$0xff]
    %v3852 = vld [vmem:[%s3327 + $0x1d8] sm:$0xff]
    %v3853 = vld [vmem:[%s3327 + $0x1e0] sm:$0xff]
    %v3854 = vld [vmem:[%s3327 + $0x1e8] sm:$0xff]
    %v3855 = vld [vmem:[%s3327 + $0x1f0] sm:$0xff]
    %v3856 = vld [vmem:[%s3327 + $0x1f8] sm:$0xff]
    %3857 = vmatprep.subr.mxu0 %v3854
    %3858 = vmatpush1.msra.mxu0 %v3853
    %3859 = vmatprep.subr.mxu0 %v3850
    %3860 = vmatpush1.msra.mxu0 %v3849
    %3861 = vmatprep.subr.mxu0 %v3846
    %3862 = vmatpush1.msra.mxu0 %v3845
    %3863 = vmatprep.subr.mxu0 %v3842
    %3864 = vmatpush1.msra.mxu0 %v3841
    %3865 = vmatprep.subr.mxu0 %v3838
    %3866 = vmatpush1.msra.mxu0 %v3837
    %3867 = vmatprep.subr.mxu0 %v3834
    %3868 = vmatpush1.msra.mxu0 %v3833
    %3869 = vmatprep.subr.mxu0 %v3830
    %3870 = vmatpush1.msra.mxu0 %v3829
    %3871 = vmatprep.subr.mxu0 %v3826
    %3872 = vmatpush1.msra.mxu0 %v3825
    %3873 = vmatprep.subr.mxu0 %v3822
    %3874 = vmatpush1.msra.mxu0 %v3821
    %3875 = vmatprep.subr.mxu0 %v3818
    %3876 = vmatpush1.msra.mxu0 %v3817
    %3877 = vmatprep.subr.mxu0 %v3814
    %3878 = vmatpush1.msra.mxu0 %v3813
    %3879 = vmatprep.subr.mxu0 %v3810
    %3880 = vmatpush1.msra.mxu0 %v3809
    %3881 = vmatprep.subr.mxu0 %v3806
    %3882 = vmatpush1.msra.mxu0 %v3805
    %3883 = vmatprep.subr.mxu0 %v3802
    %3884 = vmatpush1.msra.mxu0 %v3801
    %3885 = vmatprep.subr.mxu0 %v3798
    %3886 = vmatpush1.msra.mxu0 %v3797
    %3887 = vmatprep.subr.mxu0 %v3794
    %3888 = vmatpush1.msra.mxu0 %v3793
    %3889 = vmatprep.subr.mxu0 0.0
    %3890 = vmatpush2.msra.mxu0 0.0
    %3891 = vmatprep.subr.mxu0 0.0
    %3892 = vmatpush2.msra.mxu0 0.0
    %3893 = vmatprep.subr.mxu0 0.0
    %3894 = vmatpush2.msra.mxu0 0.0
    %3895 = vmatprep.subr.mxu0 0.0
    %3896 = vmatpush2.msra.mxu0 0.0
    %3897 = vmatprep.subr.mxu0 0.0
    %3898 = vmatpush2.msra.mxu0 0.0
    %3899 = vmatprep.subr.mxu0 0.0
    %3900 = vmatpush2.msra.mxu0 0.0
    %3901 = vmatprep.subr.mxu0 0.0
    %3902 = vmatpush2.msra.mxu0 0.0
    %3903 = vmatprep.subr.mxu0 0.0
    %3904 = vmatpush2.msra.mxu0 0.0
    %3905 = vmatprep.subr.mxu0 0.0
    %3906 = vmatpush2.msra.mxu0 0.0
    %3907 = vmatprep.subr.mxu0 0.0
    %3908 = vmatpush2.msra.mxu0 0.0
    %3909 = vmatprep.subr.mxu0 0.0
    %3910 = vmatpush2.msra.mxu0 0.0
    %3911 = vmatprep.subr.mxu0 0.0
    %3912 = vmatpush2.msra.mxu0 0.0
    %3913 = vmatprep.subr.mxu0 0.0
    %3914 = vmatpush2.msra.mxu0 0.0
    %3915 = vmatprep.subr.mxu0 0.0
    %3916 = vmatpush2.msra.mxu0 0.0
    %3917 = vmatprep.subr.mxu0 0.0
    %3918 = vmatpush2.msra.mxu0 0.0
    %3919 = vmatprep.subr.mxu0 0.0
    %3920 = vmatpush2.msra.mxu0 0.0
    %3921 = vmatprep.mubr.f32.mxu0 0.0
    %3922 = vmatmul.mubr.f32.gmra.mxu0 %v3726
    %v3923 = vpop.f32.mrf.mxu0
    %v3924 = vadd.f32 0.0, %v3923
    %v3925 = vpop.f32.mrf.mxu0
    %v3926 = vadd.f32 0.0, %v3925
    %3927 = vdwg.mxu0
    %3928 = vmatprep.subr.mxu0 %v3856
    %3929 = vmatpush1.msra.mxu0 %v3855
    %3930 = vmatprep.subr.mxu0 %v3852
    %3931 = vmatpush1.msra.mxu0 %v3851
    %3932 = vmatprep.subr.mxu0 %v3848
    %3933 = vmatpush1.msra.mxu0 %v3847
    %3934 = vmatprep.subr.mxu0 %v3844
    %3935 = vmatpush1.msra.mxu0 %v3843
    %3936 = vmatprep.subr.mxu0 %v3840
    %3937 = vmatpush1.msra.mxu0 %v3839
    %3938 = vmatprep.subr.mxu0 %v3836
    %3939 = vmatpush1.msra.mxu0 %v3835
    %3940 = vmatprep.subr.mxu0 %v3832
    %3941 = vmatpush1.msra.mxu0 %v3831
    %3942 = vmatprep.subr.mxu0 %v3828
    %3943 = vmatpush1.msra.mxu0 %v3827
    %3944 = vmatprep.subr.mxu0 %v3824
    %3945 = vmatpush1.msra.mxu0 %v3823
    %3946 = vmatprep.subr.mxu0 %v3820
    %3947 = vmatpush1.msra.mxu0 %v3819
    %3948 = vmatprep.subr.mxu0 %v3816
    %3949 = vmatpush1.msra.mxu0 %v3815
    %3950 = vmatprep.subr.mxu0 %v3812
    %3951 = vmatpush1.msra.mxu0 %v3811
    %3952 = vmatprep.subr.mxu0 %v3808
    %3953 = vmatpush1.msra.mxu0 %v3807
    %3954 = vmatprep.subr.mxu0 %v3804
    %3955 = vmatpush1.msra.mxu0 %v3803
    %3956 = vmatprep.subr.mxu0 %v3800
    %3957 = vmatpush1.msra.mxu0 %v3799
    %3958 = vmatprep.subr.mxu0 %v3796
    %3959 = vmatpush1.msra.mxu0 %v3795
    %3960 = vmatprep.subr.mxu0 0.0
    %3961 = vmatpush2.msra.mxu0 0.0
    %3962 = vmatprep.subr.mxu0 0.0
    %3963 = vmatpush2.msra.mxu0 0.0
    %3964 = vmatprep.subr.mxu0 0.0
    %3965 = vmatpush2.msra.mxu0 0.0
    %3966 = vmatprep.subr.mxu0 0.0
    %3967 = vmatpush2.msra.mxu0 0.0
    %3968 = vmatprep.subr.mxu0 0.0
    %3969 = vmatpush2.msra.mxu0 0.0
    %3970 = vmatprep.subr.mxu0 0.0
    %3971 = vmatpush2.msra.mxu0 0.0
    %3972 = vmatprep.subr.mxu0 0.0
    %3973 = vmatpush2.msra.mxu0 0.0
    %3974 = vmatprep.subr.mxu0 0.0
    %3975 = vmatpush2.msra.mxu0 0.0
    %3976 = vmatprep.subr.mxu0 0.0
    %3977 = vmatpush2.msra.mxu0 0.0
    %3978 = vmatprep.subr.mxu0 0.0
    %3979 = vmatpush2.msra.mxu0 0.0
    %3980 = vmatprep.subr.mxu0 0.0
    %3981 = vmatpush2.msra.mxu0 0.0
    %3982 = vmatprep.subr.mxu0 0.0
    %3983 = vmatpush2.msra.mxu0 0.0
    %3984 = vmatprep.subr.mxu0 0.0
    %3985 = vmatpush2.msra.mxu0 0.0
    %3986 = vmatprep.subr.mxu0 0.0
    %3987 = vmatpush2.msra.mxu0 0.0
    %3988 = vmatprep.subr.mxu0 0.0
    %3989 = vmatpush2.msra.mxu0 0.0
    %3990 = vmatprep.subr.mxu0 0.0
    %3991 = vmatpush2.msra.mxu0 0.0
    %3992 = vmatprep.mubr.f32.mxu0 0.0
    %3993 = vmatmul.mubr.f32.gmra.mxu0 %v3726
    %v3994 = vpop.f32.mrf.mxu0
    %v3995 = vadd.f32 0.0, %v3994
    %v3996 = vpop.f32.mrf.mxu0
    %v3997 = vadd.f32 0.0, %v3996
    %3998 = vdwg.mxu0
    %3999 = vmatprep.subr.mxu0 %v3790
    %4000 = vmatpush1.msra.mxu0 %v3789
    %4001 = vmatprep.subr.mxu0 %v3786
    %4002 = vmatpush1.msra.mxu0 %v3785
    %4003 = vmatprep.subr.mxu0 %v3782
    %4004 = vmatpush1.msra.mxu0 %v3781
    %4005 = vmatprep.subr.mxu0 %v3778
    %4006 = vmatpush1.msra.mxu0 %v3777
    %4007 = vmatprep.subr.mxu0 %v3774
    %4008 = vmatpush1.msra.mxu0 %v3773
    %4009 = vmatprep.subr.mxu0 %v3770
    %4010 = vmatpush1.msra.mxu0 %v3769
    %4011 = vmatprep.subr.mxu0 %v3766
    %4012 = vmatpush1.msra.mxu0 %v3765
    %4013 = vmatprep.subr.mxu0 %v3762
    %4014 = vmatpush1.msra.mxu0 %v3761
    %4015 = vmatprep.subr.mxu0 %v3758
    %4016 = vmatpush1.msra.mxu0 %v3757
    %4017 = vmatprep.subr.mxu0 %v3754
    %4018 = vmatpush1.msra.mxu0 %v3753
    %4019 = vmatprep.subr.mxu0 %v3750
    %4020 = vmatpush1.msra.mxu0 %v3749
    %4021 = vmatprep.subr.mxu0 %v3746
    %4022 = vmatpush1.msra.mxu0 %v3745
    %4023 = vmatprep.subr.mxu0 %v3742
    %4024 = vmatpush1.msra.mxu0 %v3741
    %4025 = vmatprep.subr.mxu0 %v3738
    %4026 = vmatpush1.msra.mxu0 %v3737
    %4027 = vmatprep.subr.mxu0 %v3734
    %4028 = vmatpush1.msra.mxu0 %v3733
    %4029 = vmatprep.subr.mxu0 %v3730
    %4030 = vmatpush1.msra.mxu0 %v3729
    %4031 = vmatprep.subr.mxu0 0.0
    %4032 = vmatpush2.msra.mxu0 0.0
    %4033 = vmatprep.subr.mxu0 0.0
    %4034 = vmatpush2.msra.mxu0 0.0
    %4035 = vmatprep.subr.mxu0 0.0
    %4036 = vmatpush2.msra.mxu0 0.0
    %4037 = vmatprep.subr.mxu0 0.0
    %4038 = vmatpush2.msra.mxu0 0.0
    %4039 = vmatprep.subr.mxu0 0.0
    %4040 = vmatpush2.msra.mxu0 0.0
    %4041 = vmatprep.subr.mxu0 0.0
    %4042 = vmatpush2.msra.mxu0 0.0
    %4043 = vmatprep.subr.mxu0 0.0
    %4044 = vmatpush2.msra.mxu0 0.0
    %4045 = vmatprep.subr.mxu0 0.0
    %4046 = vmatpush2.msra.mxu0 0.0
    %4047 = vmatprep.subr.mxu0 0.0
    %4048 = vmatpush2.msra.mxu0 0.0
    %4049 = vmatprep.subr.mxu0 0.0
    %4050 = vmatpush2.msra.mxu0 0.0
    %4051 = vmatprep.subr.mxu0 0.0
    %4052 = vmatpush2.msra.mxu0 0.0
    %4053 = vmatprep.subr.mxu0 0.0
    %4054 = vmatpush2.msra.mxu0 0.0
    %4055 = vmatprep.subr.mxu0 0.0
    %4056 = vmatpush2.msra.mxu0 0.0
    %4057 = vmatprep.subr.mxu0 0.0
    %4058 = vmatpush2.msra.mxu0 0.0
    %4059 = vmatprep.subr.mxu0 0.0
    %4060 = vmatpush2.msra.mxu0 0.0
    %4061 = vmatprep.subr.mxu0 0.0
    %4062 = vmatpush2.msra.mxu0 0.0
    %4063 = vmatprep.mubr.f32.mxu0 0.0
    %4064 = vmatmul.mubr.f32.gmra.mxu0 %v3728
    %v4065 = vpop.f32.mrf.mxu0
    %v4066 = vadd.f32 %v3924, %v4065
    %v4067 = vpop.f32.mrf.mxu0
    %v4068 = vadd.f32 %v3926, %v4067
    %4069 = vdwg.mxu0
    %4070 = vmatprep.subr.mxu0 %v3792
    %4071 = vmatpush1.msra.mxu0 %v3791
    %4072 = vmatprep.subr.mxu0 %v3788
    %4073 = vmatpush1.msra.mxu0 %v3787
    %4074 = vmatprep.subr.mxu0 %v3784
    %4075 = vmatpush1.msra.mxu0 %v3783
    %4076 = vmatprep.subr.mxu0 %v3780
    %4077 = vmatpush1.msra.mxu0 %v3779
    %4078 = vmatprep.subr.mxu0 %v3776
    %4079 = vmatpush1.msra.mxu0 %v3775
    %4080 = vmatprep.subr.mxu0 %v3772
    %4081 = vmatpush1.msra.mxu0 %v3771
    %4082 = vmatprep.subr.mxu0 %v3768
    %4083 = vmatpush1.msra.mxu0 %v3767
    %4084 = vmatprep.subr.mxu0 %v3764
    %4085 = vmatpush1.msra.mxu0 %v3763
    %4086 = vmatprep.subr.mxu0 %v3760
    %4087 = vmatpush1.msra.mxu0 %v3759
    %4088 = vmatprep.subr.mxu0 %v3756
    %4089 = vmatpush1.msra.mxu0 %v3755
    %4090 = vmatprep.subr.mxu0 %v3752
    %4091 = vmatpush1.msra.mxu0 %v3751
    %4092 = vmatprep.subr.mxu0 %v3748
    %4093 = vmatpush1.msra.mxu0 %v3747
    %4094 = vmatprep.subr.mxu0 %v3744
    %4095 = vmatpush1.msra.mxu0 %v3743
    %4096 = vmatprep.subr.mxu0 %v3740
    %4097 = vmatpush1.msra.mxu0 %v3739
    %4098 = vmatprep.subr.mxu0 %v3736
    %4099 = vmatpush1.msra.mxu0 %v3735
    %4100 = vmatprep.subr.mxu0 %v3732
    %4101 = vmatpush1.msra.mxu0 %v3731
    %4102 = vmatprep.subr.mxu0 0.0
    %4103 = vmatpush2.msra.mxu0 0.0
    %4104 = vmatprep.subr.mxu0 0.0
    %4105 = vmatpush2.msra.mxu0 0.0
    %4106 = vmatprep.subr.mxu0 0.0
    %4107 = vmatpush2.msra.mxu0 0.0
    %4108 = vmatprep.subr.mxu0 0.0
    %4109 = vmatpush2.msra.mxu0 0.0
    %4110 = vmatprep.subr.mxu0 0.0
    %4111 = vmatpush2.msra.mxu0 0.0
    %4112 = vmatprep.subr.mxu0 0.0
    %4113 = vmatpush2.msra.mxu0 0.0
    %4114 = vmatprep.subr.mxu0 0.0
    %4115 = vmatpush2.msra.mxu0 0.0
    %4116 = vmatprep.subr.mxu0 0.0
    %4117 = vmatpush2.msra.mxu0 0.0
    %4118 = vmatprep.subr.mxu0 0.0
    %4119 = vmatpush2.msra.mxu0 0.0
    %4120 = vmatprep.subr.mxu0 0.0
    %4121 = vmatpush2.msra.mxu0 0.0
    %4122 = vmatprep.subr.mxu0 0.0
    %4123 = vmatpush2.msra.mxu0 0.0
    %4124 = vmatprep.subr.mxu0 0.0
    %4125 = vmatpush2.msra.mxu0 0.0
    %4126 = vmatprep.subr.mxu0 0.0
    %4127 = vmatpush2.msra.mxu0 0.0
    %4128 = vmatprep.subr.mxu0 0.0
    %4129 = vmatpush2.msra.mxu0 0.0
    %4130 = vmatprep.subr.mxu0 0.0
    %4131 = vmatpush2.msra.mxu0 0.0
    %4132 = vmatprep.subr.mxu0 0.0
    %4133 = vmatpush2.msra.mxu0 0.0
    %4134 = vmatprep.mubr.f32.mxu0 0.0
    %4135 = vmatmul.mubr.f32.gmra.mxu0 %v3728
    %v4136 = vpop.f32.mrf.mxu0
    %v4137 = vadd.f32 %v3995, %v4136
    %v4138 = vpop.f32.mrf.mxu0
    %v4139 = vadd.f32 %v3997, %v4138
    %4140 = vdwg.mxu0
    %v4141 = vld [vmem:[%s3676] sm:$0xf]
    %v4143 = vlaneseq
    %v4144 = vshrl.u32 %v4143, 7
    %v4145 = vsub.s32 0, %v4144
    %v4146 = vrot.slane %v4141, %v4145
    %v4147 = vlaneseq
    %v4148 = vshrl.u32 %v4147, 7
    %v4149 = vsub.s32 1, %v4148
    %v4150 = vrot.slane %v4141, %v4149
    %v4151 = vlaneseq
    %v4152 = vshrl.u32 %v4151, 7
    %v4153 = vsub.s32 2, %v4152
    %v4154 = vrot.slane %v4141, %v4153
    %v4155 = vlaneseq
    %v4156 = vshrl.u32 %v4155, 7
    %v4157 = vsub.s32 3, %v4156
    %v4158 = vrot.slane %v4141, %v4157
    %v4163 = vadd.f32 %v4066, %v4146
    %v4164 = vadd.f32 %v4068, %v4150
    %v4165 = vadd.f32 %v4137, %v4154
    %v4166 = vadd.f32 %v4139, %v4158
    %v4167 = vxor.u32 %v4163, 2147483648
    %v4168 = vmul.f32 %v4167, 1.442695
    %v4169 = vpow.pop %v4168
    %v4170 = vadd.f32 %v4169, 1.0
    %v4171 = vrcp.pop %v4170
    %v4172 = vmul.f32 1.0, %v4171
    %v4173 = vxor.u32 %v4164, 2147483648
    %v4174 = vmul.f32 %v4173, 1.442695
    %v4175 = vpow.pop %v4174
    %v4176 = vadd.f32 %v4175, 1.0
    %v4177 = vrcp.pop %v4176
    %v4178 = vmul.f32 1.0, %v4177
    %v4179 = vtanh.pop %v4165
    %v4180 = vxor.u32 %v4166, 2147483648
    %v4181 = vmul.f32 %v4180, 1.442695
    %v4182 = vpow.pop %v4181
    %v4183 = vadd.f32 %v4182, 1.0
    %v4184 = vrcp.pop %v4183
    %v4185 = vmul.f32 1.0, %v4184
    %v4186 = vmul.f32 %v4178, %v3724
    %v4187 = vmul.f32 %v4172, %v4179
    %v4188 = vadd.f32 %v4186, %v4187
    %v4189 = vtanh.pop %v4188
    %v4190 = vmul.f32 %v4185, %v4189
    %4191 = vst [vmem:[%s1390] sm:$0x3] %v4190
    %v4192 = vld [vmem:[#allocation3] sm:$0x3]
    %v4193 = vld [vmem:[#allocation3 + $0x2] sm:$0x3]
    %4194 = vst [vmem:[%s8] sm:$0x3] %v4192
    %4195 = vst [vmem:[%s8 + $0x2] sm:$0x3] %v4193
    // Predicated region
    $region46: #{parsing_pose_net_forward.2} parent=1 // pred_check
      _
    $region47: #{parsing_pose_net_forward.2} parent=1 // pred_check_branch
      %4197 = sbr.rel (0) target = $region49
    $region48: #{parsing_pose_net_forward.2} parent=1 // pred_region
      _
    $region49: #{parsing_pose_net_forward.2} parent=1 // pred_fallthru
      _
    // Predicated region
    $region50: #{parsing_pose_net_forward.2} parent=1 // pred_check
      _
    $region51: #{parsing_pose_net_forward.2} parent=1 // pred_check_branch
      %4199 = sbr.rel (0) target = $region53
    $region52: #{parsing_pose_net_forward.2} parent=1 // pred_region
      _
    $region53: #{parsing_pose_net_forward.2} parent=1 // pred_fallthru
      _
    %4200 = vsyncpa [#allocation5], 1
    %4201 = vsyncpa [#allocation7], 1

</llo_original>
